<compile_context>
chip_gen: v7x
topology: tpu7x:2x2x1
jax: 0.10.0
libtpu: 0.0.40
codegen_flags: <defaults>
</compile_context>

<pallas_src>
import functools

import jax
import jax.numpy as jnp
from jax import lax
from jax.experimental import pallas as pl
from jax.experimental.pallas import tpu as pltpu

EPS = 1e-5


def _common_block_kernel(x_ref, w1_ref, g1_ref, b1_ref, w2_ref, g2_ref, b2_ref,
                         out_ref, xp_ref, *, N, H, W, Cp):
    """Fused: relu(bn1(conv1(x))) -> relu(bn2(conv2(.)) + x).

    x_ref  : (N, H, W, Cp)       NHWC input, channels zero-padded to Cp (128-multiple)
    w*_ref : (9, Cp, Cp)         per-tap conv weights, tap order (kh, kw) row-major
    g*_ref : (1, Cp)             BN gamma (zero in padded channels)
    b*_ref : (1, Cp)             BN beta  (zero in padded channels)
    out_ref: (N, H, W, Cp)
    xp_ref : (N, H+2, W+2, Cp)   VMEM halo scratch, reused by both stages
    """
    M = N * H * W
    inv_m = 1.0 / M

    # Zero the halo scratch once; the 1-pixel border stays zero for both stages
    # (only the interior is overwritten below) => implicit padding=1.
    xp_ref[...] = jnp.zeros_like(xp_ref)

    def conv3x3_bn(w_ref, g_ref, b_ref):
        # 3x3 / stride-1 conv as 9 accumulated lane-dense MXU matmuls.
        acc = jnp.zeros((M, Cp), jnp.float32)
        for kh in range(3):
            for kw in range(3):
                patch = xp_ref[:, kh:kh + H, kw:kw + W, :].reshape(M, Cp)
                acc = acc + jnp.dot(patch, w_ref[kh * 3 + kw],
                                    preferred_element_type=jnp.float32)
        # BatchNorm2d, training-mode biased batch stats, single pass over acc,
        # folded into per-channel scale/bias:  y = acc*scale + bias.
        mean = jnp.sum(acc, axis=0, keepdims=True) * inv_m
        var = jnp.sum(acc * acc, axis=0, keepdims=True) * inv_m - mean * mean
        scale = g_ref[...] * lax.rsqrt(var + EPS)
        bias = b_ref[...] - mean * scale
        return acc * scale + bias

    # Stage 1: relu(bn1(conv1(x)))  -- no residual, no zeros input.
    xp_ref[:, 1:H + 1, 1:W + 1, :] = x_ref[...]
    y1 = jnp.maximum(conv3x3_bn(w1_ref, g1_ref, b1_ref), 0.0)

    # Stage 2: relu(bn2(conv2(y1)) + identity); y1 stays in VMEM.
    xp_ref[:, 1:H + 1, 1:W + 1, :] = y1.reshape(N, H, W, Cp)
    y2 = conv3x3_bn(w2_ref, g2_ref, b2_ref)
    y2 = jnp.maximum(y2 + x_ref[...].reshape(M, Cp), 0.0)
    out_ref[...] = y2.reshape(N, H, W, Cp)


def common_block_forward(x_nchw, params):
    """Pallas implementation of CommonBlock.forward (stride=1, Cin==Cout)."""
    # NCHW -> NHWC (channels-last, lane axis).
    x = jnp.transpose(x_nchw, (0, 2, 3, 1)).astype(jnp.float32)
    N, H, W, C = x.shape
    Cp = max(128, ((C + 127) // 128) * 128)        # lane-dense channel count

    def prep_w(w_oihw):
        # OIHW -> (KH, KW, Cin, Cout), zero-pad channels to Cp, -> (9, Cp, Cp).
        w = jnp.transpose(w_oihw, (2, 3, 1, 0)).astype(jnp.float32)
        w = jnp.pad(w, ((0, 0), (0, 0), (0, Cp - C), (0, Cp - C)))
        return w.reshape(9, Cp, Cp)

    def prep_v(v):
        # (C,) -> (1, Cp) with zeros in padded channels.
        return jnp.pad(v.astype(jnp.float32), (0, Cp - C)).reshape(1, Cp)

    x_p = jnp.pad(x, ((0, 0), (0, 0), (0, 0), (0, Cp - C)))

    kernel = functools.partial(_common_block_kernel, N=N, H=H, W=W, Cp=Cp)
    vmem = pl.BlockSpec(memory_space=pltpu.MemorySpace.VMEM)

    y_p = pl.pallas_call(
        kernel,
        out_shape=jax.ShapeDtypeStruct((N, H, W, Cp), jnp.float32),
        in_specs=[vmem] * 7,
        out_specs=vmem,
        scratch_shapes=[pltpu.VMEM((N, H + 2, W + 2, Cp), jnp.float32)],
        compiler_params=pltpu.CompilerParams(vmem_limit_bytes=48 * 1024 * 1024),
    )(x_p, prep_w(params["w1"]), prep_v(params["g1"]), prep_v(params["b1"]),
      prep_w(params["w2"]), prep_v(params["g2"]), prep_v(params["b2"]))

    # Drop channel padding, NHWC -> NCHW.
    return jnp.transpose(y_p[..., :C], (0, 3, 1, 2))


def _reference_forward(x_nchw, params):
    """Pure-JAX (XLA) reference used only for correctness checking."""
    def conv(x, w):
        return lax.conv_general_dilated(
            x, w, window_strides=(1, 1), padding=((1, 1), (1, 1)),
            dimension_numbers=("NCHW", "OIHW", "NCHW"))

    def bn(x, g, b):
        mean = jnp.mean(x, axis=(0, 2, 3), keepdims=True)
        var = jnp.mean((x - mean) ** 2, axis=(0, 2, 3), keepdims=True)
        xn = (x - mean) * lax.rsqrt(var + EPS)
        return xn * g.reshape(1, -1, 1, 1) + b.reshape(1, -1, 1, 1)

    y = jax.nn.relu(bn(conv(x_nchw, params["w1"]), params["g1"], params["b1"]))
    y = bn(conv(y, params["w2"]), params["g2"], params["b2"])
    return jax.nn.relu(y + x_nchw)


if __name__ == "__main__":
    # Small shapes: batch=2, channels=8, spatial=16x16, stride=1.
    N, C, H, W = 2, 8, 16, 16

    key = jax.random.PRNGKey(0)
    k1, k2, k3, k4, k5, kx = jax.random.split(key, 6)
    params = {
        "w1": jax.random.normal(k1, (C, C, 3, 3), jnp.float32) * 0.1,  # OIHW
        "w2": jax.random.normal(k2, (C, C, 3, 3), jnp.float32) * 0.1,  # OIHW
        "g1": 1.0 + 0.1 * jax.random.normal(k3, (C,), jnp.float32),
        "b1": 0.1 * jax.random.normal(k4, (C,), jnp.float32),
        "g2": 1.0 + 0.1 * jax.random.normal(k5, (C,), jnp.float32),
        "b2": jnp.zeros((C,), jnp.float32),
    }
    x = jax.random.normal(kx, (N, C, H, W), jnp.float32)

    out = jax.block_until_ready(common_block_forward(x, params))
    ref = jax.block_until_ready(_reference_forward(x, params))

    assert out.shape == (N, C, H, W), out.shape
    err = float(jnp.max(jnp.abs(out - ref)))
    assert err < 1e-4, f"max abs error {err}"
    print("KERNEL_OK")
</pallas_src>

<mosaic_0001>
module attributes {stable_mosaic.version = 11 : i64} {
  func.func @_common_block_kernel(%arg0: memref<2x16x16x128xf32, #tpu.memory_space<vmem>>, %arg1: memref<9x128x128xf32, #tpu.memory_space<vmem>>, %arg2: memref<1x128xf32, #tpu.memory_space<vmem>>, %arg3: memref<1x128xf32, #tpu.memory_space<vmem>>, %arg4: memref<9x128x128xf32, #tpu.memory_space<vmem>>, %arg5: memref<1x128xf32, #tpu.memory_space<vmem>>, %arg6: memref<1x128xf32, #tpu.memory_space<vmem>>, %arg7: memref<2x16x16x128xf32, #tpu.memory_space<vmem>>, %arg8: memref<2x18x18x128xf32, #tpu.memory_space<vmem>>) attributes {dimension_semantics = [], scalar_prefetch = 0 : i64, scratch_operands = 1 : i64, tpu.core_type = #tpu.core_type<tc>} {
    %cst = arith.constant 0.000000e+00 : f32
    %0 = vector.broadcast %cst : f32 to vector<2x18x18x128xf32>
    %c0 = arith.constant 0 : index
    %c0_0 = arith.constant 0 : index
    %c0_1 = arith.constant 0 : index
    %c0_2 = arith.constant 0 : index
    %1 = vector.load %arg8[%c0, %c0_0, %c0_1, %c0_2] : memref<2x18x18x128xf32, #tpu.memory_space<vmem>>, vector<2x18x18x128xf32>
    tpu.vector_store %arg8[%c0, %c0_0, %c0_1, %c0_2], %0 {strides = array<i32>} : memref<2x18x18x128xf32, #tpu.memory_space<vmem>>, vector<2x18x18x128xf32>,
    %c0_3 = arith.constant 0 : index
    %c0_4 = arith.constant 0 : index
    %c0_5 = arith.constant 0 : index
    %c0_6 = arith.constant 0 : index
    %2 = vector.load %arg0[%c0_3, %c0_4, %c0_5, %c0_6] : memref<2x16x16x128xf32, #tpu.memory_space<vmem>>, vector<2x16x16x128xf32>
    %c0_7 = arith.constant 0 : index
    %c1 = arith.constant 1 : index
    %c1_8 = arith.constant 1 : index
    %c0_9 = arith.constant 0 : index
    %3 = vector.load %arg8[%c0_7, %c1, %c1_8, %c0_9] : memref<2x18x18x128xf32, #tpu.memory_space<vmem>>, vector<2x16x16x128xf32>
    tpu.vector_store %arg8[%c0_7, %c1, %c1_8, %c0_9], %2 {strides = array<i32>} : memref<2x18x18x128xf32, #tpu.memory_space<vmem>>, vector<2x16x16x128xf32>,
    %cst_10 = arith.constant 0.000000e+00 : f32
    %4 = vector.broadcast %cst_10 : f32 to vector<512x128xf32>
    %c0_11 = arith.constant 0 : index
    %c0_12 = arith.constant 0 : index
    %c0_13 = arith.constant 0 : index
    %c0_14 = arith.constant 0 : index
    %5 = vector.load %arg8[%c0_11, %c0_12, %c0_13, %c0_14] : memref<2x18x18x128xf32, #tpu.memory_space<vmem>>, vector<2x16x16x128xf32>
    %6 = vector.shape_cast %5 : vector<2x16x16x128xf32> to vector<512x128xf32>
    %c0_15 = arith.constant 0 : index
    %c0_16 = arith.constant 0 : index
    %c0_17 = arith.constant 0 : index
    %7 = vector.load %arg1[%c0_15, %c0_16, %c0_17] : memref<9x128x128xf32, #tpu.memory_space<vmem>>, vector<1x128x128xf32>
    %8 = vector.shape_cast %7 : vector<1x128x128xf32> to vector<128x128xf32>
    %cst_18 = arith.constant dense<0.000000e+00> : vector<512x128xf32>
    %9 = tpu.matmul %6, %8, %cst_18 {dimension_numbers = #tpu.dot_dimension_numbers<[1], [0], [0], [1], [0, 0, 1, 1], [], []>} : vector<512x128xf32>, vector<128x128xf32>, vector<512x128xf32> -> vector<512x128xf32>
    %10 = arith.addf %4, %9 : vector<512x128xf32>
    %c0_19 = arith.constant 0 : index
    %c0_20 = arith.constant 0 : index
    %c1_21 = arith.constant 1 : index
    %c0_22 = arith.constant 0 : index
    %11 = vector.load %arg8[%c0_19, %c0_20, %c1_21, %c0_22] : memref<2x18x18x128xf32, #tpu.memory_space<vmem>>, vector<2x16x16x128xf32>
    %12 = vector.shape_cast %11 : vector<2x16x16x128xf32> to vector<512x128xf32>
    %c1_23 = arith.constant 1 : index
    %c0_24 = arith.constant 0 : index
    %c0_25 = arith.constant 0 : index
    %13 = vector.load %arg1[%c1_23, %c0_24, %c0_25] : memref<9x128x128xf32, #tpu.memory_space<vmem>>, vector<1x128x128xf32>
    %14 = vector.shape_cast %13 : vector<1x128x128xf32> to vector<128x128xf32>
    %cst_26 = arith.constant dense<0.000000e+00> : vector<512x128xf32>
    %15 = tpu.matmul %12, %14, %cst_26 {dimension_numbers = #tpu.dot_dimension_numbers<[1], [0], [0], [1], [0, 0, 1, 1], [], []>} : vector<512x128xf32>, vector<128x128xf32>, vector<512x128xf32> -> vector<512x128xf32>
    %16 = arith.addf %10, %15 : vector<512x128xf32>
    %c0_27 = arith.constant 0 : index
    %c0_28 = arith.constant 0 : index
    %c2 = arith.constant 2 : index
    %c0_29 = arith.constant 0 : index
    %17 = vector.load %arg8[%c0_27, %c0_28, %c2, %c0_29] : memref<2x18x18x128xf32, #tpu.memory_space<vmem>>, vector<2x16x16x128xf32>
    %18 = vector.shape_cast %17 : vector<2x16x16x128xf32> to vector<512x128xf32>
    %c2_30 = arith.constant 2 : index
    %c0_31 = arith.constant 0 : index
    %c0_32 = arith.constant 0 : index
    %19 = vector.load %arg1[%c2_30, %c0_31, %c0_32] : memref<9x128x128xf32, #tpu.memory_space<vmem>>, vector<1x128x128xf32>
    %20 = vector.shape_cast %19 : vector<1x128x128xf32> to vector<128x128xf32>
    %cst_33 = arith.constant dense<0.000000e+00> : vector<512x128xf32>
    %21 = tpu.matmul %18, %20, %cst_33 {dimension_numbers = #tpu.dot_dimension_numbers<[1], [0], [0], [1], [0, 0, 1, 1], [], []>} : vector<512x128xf32>, vector<128x128xf32>, vector<512x128xf32> -> vector<512x128xf32>
    %22 = arith.addf %16, %21 : vector<512x128xf32>
    %c0_34 = arith.constant 0 : index
    %c1_35 = arith.constant 1 : index
    %c0_36 = arith.constant 0 : index
    %c0_37 = arith.constant 0 : index
    %23 = vector.load %arg8[%c0_34, %c1_35, %c0_36, %c0_37] : memref<2x18x18x128xf32, #tpu.memory_space<vmem>>, vector<2x16x16x128xf32>
    %24 = vector.shape_cast %23 : vector<2x16x16x128xf32> to vector<512x128xf32>
    %c3 = arith.constant 3 : index
    %c0_38 = arith.constant 0 : index
    %c0_39 = arith.constant 0 : index
    %25 = vector.load %arg1[%c3, %c0_38, %c0_39] : memref<9x128x128xf32, #tpu.memory_space<vmem>>, vector<1x128x128xf32>
    %26 = vector.shape_cast %25 : vector<1x128x128xf32> to vector<128x128xf32>
    %cst_40 = arith.constant dense<0.000000e+00> : vector<512x128xf32>
    %27 = tpu.matmul %24, %26, %cst_40 {dimension_numbers = #tpu.dot_dimension_numbers<[1], [0], [0], [1], [0, 0, 1, 1], [], []>} : vector<512x128xf32>, vector<128x128xf32>, vector<512x128xf32> -> vector<512x128xf32>
    %28 = arith.addf %22, %27 : vector<512x128xf32>
    %c0_41 = arith.constant 0 : index
    %c1_42 = arith.constant 1 : index
    %c1_43 = arith.constant 1 : index
    %c0_44 = arith.constant 0 : index
    %29 = vector.load %arg8[%c0_41, %c1_42, %c1_43, %c0_44] : memref<2x18x18x128xf32, #tpu.memory_space<vmem>>, vector<2x16x16x128xf32>
    %30 = vector.shape_cast %29 : vector<2x16x16x128xf32> to vector<512x128xf32>
    %c4 = arith.constant 4 : index
    %c0_45 = arith.constant 0 : index
    %c0_46 = arith.constant 0 : index
    %31 = vector.load %arg1[%c4, %c0_45, %c0_46] : memref<9x128x128xf32, #tpu.memory_space<vmem>>, vector<1x128x128xf32>
    %32 = vector.shape_cast %31 : vector<1x128x128xf32> to vector<128x128xf32>
    %cst_47 = arith.constant dense<0.000000e+00> : vector<512x128xf32>
    %33 = tpu.matmul %30, %32, %cst_47 {dimension_numbers = #tpu.dot_dimension_numbers<[1], [0], [0], [1], [0, 0, 1, 1], [], []>} : vector<512x128xf32>, vector<128x128xf32>, vector<512x128xf32> -> vector<512x128xf32>
    %34 = arith.addf %28, %33 : vector<512x128xf32>
    %c0_48 = arith.constant 0 : index
    %c1_49 = arith.constant 1 : index
    %c2_50 = arith.constant 2 : index
    %c0_51 = arith.constant 0 : index
    %35 = vector.load %arg8[%c0_48, %c1_49, %c2_50, %c0_51] : memref<2x18x18x128xf32, #tpu.memory_space<vmem>>, vector<2x16x16x128xf32>
    %36 = vector.shape_cast %35 : vector<2x16x16x128xf32> to vector<512x128xf32>
    %c5 = arith.constant 5 : index
    %c0_52 = arith.constant 0 : index
    %c0_53 = arith.constant 0 : index
    %37 = vector.load %arg1[%c5, %c0_52, %c0_53] : memref<9x128x128xf32, #tpu.memory_space<vmem>>, vector<1x128x128xf32>
    %38 = vector.shape_cast %37 : vector<1x128x128xf32> to vector<128x128xf32>
    %cst_54 = arith.constant dense<0.000000e+00> : vector<512x128xf32>
    %39 = tpu.matmul %36, %38, %cst_54 {dimension_numbers = #tpu.dot_dimension_numbers<[1], [0], [0], [1], [0, 0, 1, 1], [], []>} : vector<512x128xf32>, vector<128x128xf32>, vector<512x128xf32> -> vector<512x128xf32>
    %40 = arith.addf %34, %39 : vector<512x128xf32>
    %c0_55 = arith.constant 0 : index
    %c2_56 = arith.constant 2 : index
    %c0_57 = arith.constant 0 : index
    %c0_58 = arith.constant 0 : index
    %41 = vector.load %arg8[%c0_55, %c2_56, %c0_57, %c0_58] : memref<2x18x18x128xf32, #tpu.memory_space<vmem>>, vector<2x16x16x128xf32>
    %42 = vector.shape_cast %41 : vector<2x16x16x128xf32> to vector<512x128xf32>
    %c6 = arith.constant 6 : index
    %c0_59 = arith.constant 0 : index
    %c0_60 = arith.constant 0 : index
    %43 = vector.load %arg1[%c6, %c0_59, %c0_60] : memref<9x128x128xf32, #tpu.memory_space<vmem>>, vector<1x128x128xf32>
    %44 = vector.shape_cast %43 : vector<1x128x128xf32> to vector<128x128xf32>
    %cst_61 = arith.constant dense<0.000000e+00> : vector<512x128xf32>
    %45 = tpu.matmul %42, %44, %cst_61 {dimension_numbers = #tpu.dot_dimension_numbers<[1], [0], [0], [1], [0, 0, 1, 1], [], []>} : vector<512x128xf32>, vector<128x128xf32>, vector<512x128xf32> -> vector<512x128xf32>
    %46 = arith.addf %40, %45 : vector<512x128xf32>
    %c0_62 = arith.constant 0 : index
    %c2_63 = arith.constant 2 : index
    %c1_64 = arith.constant 1 : index
    %c0_65 = arith.constant 0 : index
    %47 = vector.load %arg8[%c0_62, %c2_63, %c1_64, %c0_65] : memref<2x18x18x128xf32, #tpu.memory_space<vmem>>, vector<2x16x16x128xf32>
    %48 = vector.shape_cast %47 : vector<2x16x16x128xf32> to vector<512x128xf32>
    %c7 = arith.constant 7 : index
    %c0_66 = arith.constant 0 : index
    %c0_67 = arith.constant 0 : index
    %49 = vector.load %arg1[%c7, %c0_66, %c0_67] : memref<9x128x128xf32, #tpu.memory_space<vmem>>, vector<1x128x128xf32>
    %50 = vector.shape_cast %49 : vector<1x128x128xf32> to vector<128x128xf32>
    %cst_68 = arith.constant dense<0.000000e+00> : vector<512x128xf32>
    %51 = tpu.matmul %48, %50, %cst_68 {dimension_numbers = #tpu.dot_dimension_numbers<[1], [0], [0], [1], [0, 0, 1, 1], [], []>} : vector<512x128xf32>, vector<128x128xf32>, vector<512x128xf32> -> vector<512x128xf32>
    %52 = arith.addf %46, %51 : vector<512x128xf32>
    %c0_69 = arith.constant 0 : index
    %c2_70 = arith.constant 2 : index
    %c2_71 = arith.constant 2 : index
    %c0_72 = arith.constant 0 : index
    %53 = vector.load %arg8[%c0_69, %c2_70, %c2_71, %c0_72] : memref<2x18x18x128xf32, #tpu.memory_space<vmem>>, vector<2x16x16x128xf32>
    %54 = vector.shape_cast %53 : vector<2x16x16x128xf32> to vector<512x128xf32>
    %c8 = arith.constant 8 : index
    %c0_73 = arith.constant 0 : index
    %c0_74 = arith.constant 0 : index
    %55 = vector.load %arg1[%c8, %c0_73, %c0_74] : memref<9x128x128xf32, #tpu.memory_space<vmem>>, vector<1x128x128xf32>
    %56 = vector.shape_cast %55 : vector<1x128x128xf32> to vector<128x128xf32>
    %cst_75 = arith.constant dense<0.000000e+00> : vector<512x128xf32>
    %57 = tpu.matmul %54, %56, %cst_75 {dimension_numbers = #tpu.dot_dimension_numbers<[1], [0], [0], [1], [0, 0, 1, 1], [], []>} : vector<512x128xf32>, vector<128x128xf32>, vector<512x128xf32> -> vector<512x128xf32>
    %58 = arith.addf %52, %57 : vector<512x128xf32>
    %cst_76 = arith.constant dense<0.000000e+00> : vector<128xf32>
    %59 = vector.multi_reduction <add>, %58, %cst_76 [0] : vector<512x128xf32> to vector<128xf32>
    %60 = vector.shape_cast %59 : vector<128xf32> to vector<1x128xf32>
    %cst_77 = arith.constant 0.001953125 : f32
    %61 = vector.broadcast %cst_77 : f32 to vector<1x128xf32>
    %62 = arith.mulf %60, %61 : vector<1x128xf32>
    %63 = arith.mulf %58, %58 : vector<512x128xf32>
    %cst_78 = arith.constant dense<0.000000e+00> : vector<128xf32>
    %64 = vector.multi_reduction <add>, %63, %cst_78 [0] : vector<512x128xf32> to vector<128xf32>
    %65 = vector.shape_cast %64 : vector<128xf32> to vector<1x128xf32>
    %cst_79 = arith.constant 0.001953125 : f32
    %66 = vector.broadcast %cst_79 : f32 to vector<1x128xf32>
    %67 = arith.mulf %65, %66 : vector<1x128xf32>
    %68 = arith.mulf %62, %62 : vector<1x128xf32>
    %69 = arith.subf %67, %68 : vector<1x128xf32>
    %c0_80 = arith.constant 0 : index
    %c0_81 = arith.constant 0 : index
    %70 = vector.load %arg2[%c0_80, %c0_81] : memref<1x128xf32, #tpu.memory_space<vmem>>, vector<1x128xf32>
    %cst_82 = arith.constant 9.99999974E-6 : f32
    %71 = vector.broadcast %cst_82 : f32 to vector<1x128xf32>
    %72 = arith.addf %69, %71 : vector<1x128xf32>
    %73 = math.rsqrt %72 : vector<1x128xf32>
    %74 = arith.mulf %70, %73 : vector<1x128xf32>
    %c0_83 = arith.constant 0 : index
    %c0_84 = arith.constant 0 : index
    %75 = vector.load %arg3[%c0_83, %c0_84] : memref<1x128xf32, #tpu.memory_space<vmem>>, vector<1x128xf32>
    %76 = arith.mulf %62, %74 : vector<1x128xf32>
    %77 = arith.subf %75, %76 : vector<1x128xf32>
    %78 = vector.broadcast %74 : vector<1x128xf32> to vector<512x128xf32>
    %79 = arith.mulf %58, %78 : vector<512x128xf32>
    %80 = vector.broadcast %77 : vector<1x128xf32> to vector<512x128xf32>
    %81 = arith.addf %79, %80 : vector<512x128xf32>
    %cst_85 = arith.constant 0.000000e+00 : f32
    %82 = vector.broadcast %cst_85 : f32 to vector<512x128xf32>
    %83 = arith.maximumf %81, %82 : vector<512x128xf32>
    %84 = vector.shape_cast %83 : vector<512x128xf32> to vector<2x16x16x128xf32>
    %c0_86 = arith.constant 0 : index
    %c1_87 = arith.constant 1 : index
    %c1_88 = arith.constant 1 : index
    %c0_89 = arith.constant 0 : index
    %85 = vector.load %arg8[%c0_86, %c1_87, %c1_88, %c0_89] : memref<2x18x18x128xf32, #tpu.memory_space<vmem>>, vector<2x16x16x128xf32>
    tpu.vector_store %arg8[%c0_86, %c1_87, %c1_88, %c0_89], %84 {strides = array<i32>} : memref<2x18x18x128xf32, #tpu.memory_space<vmem>>, vector<2x16x16x128xf32>,
    %cst_90 = arith.constant 0.000000e+00 : f32
    %86 = vector.broadcast %cst_90 : f32 to vector<512x128xf32>
    %c0_91 = arith.constant 0 : index
    %c0_92 = arith.constant 0 : index
    %c0_93 = arith.constant 0 : index
    %c0_94 = arith.constant 0 : index
    %87 = vector.load %arg8[%c0_91, %c0_92, %c0_93, %c0_94] : memref<2x18x18x128xf32, #tpu.memory_space<vmem>>, vector<2x16x16x128xf32>
    %88 = vector.shape_cast %87 : vector<2x16x16x128xf32> to vector<512x128xf32>
    %c0_95 = arith.constant 0 : index
    %c0_96 = arith.constant 0 : index
    %c0_97 = arith.constant 0 : index
    %89 = vector.load %arg4[%c0_95, %c0_96, %c0_97] : memref<9x128x128xf32, #tpu.memory_space<vmem>>, vector<1x128x128xf32>
    %90 = vector.shape_cast %89 : vector<1x128x128xf32> to vector<128x128xf32>
    %cst_98 = arith.constant dense<0.000000e+00> : vector<512x128xf32>
    %91 = tpu.matmul %88, %90, %cst_98 {dimension_numbers = #tpu.dot_dimension_numbers<[1], [0], [0], [1], [0, 0, 1, 1], [], []>} : vector<512x128xf32>, vector<128x128xf32>, vector<512x128xf32> -> vector<512x128xf32>
    %92 = arith.addf %86, %91 : vector<512x128xf32>
    %c0_99 = arith.constant 0 : index
    %c0_100 = arith.constant 0 : index
    %c1_101 = arith.constant 1 : index
    %c0_102 = arith.constant 0 : index
    %93 = vector.load %arg8[%c0_99, %c0_100, %c1_101, %c0_102] : memref<2x18x18x128xf32, #tpu.memory_space<vmem>>, vector<2x16x16x128xf32>
    %94 = vector.shape_cast %93 : vector<2x16x16x128xf32> to vector<512x128xf32>
    %c1_103 = arith.constant 1 : index
    %c0_104 = arith.constant 0 : index
    %c0_105 = arith.constant 0 : index
    %95 = vector.load %arg4[%c1_103, %c0_104, %c0_105] : memref<9x128x128xf32, #tpu.memory_space<vmem>>, vector<1x128x128xf32>
    %96 = vector.shape_cast %95 : vector<1x128x128xf32> to vector<128x128xf32>
    %cst_106 = arith.constant dense<0.000000e+00> : vector<512x128xf32>
    %97 = tpu.matmul %94, %96, %cst_106 {dimension_numbers = #tpu.dot_dimension_numbers<[1], [0], [0], [1], [0, 0, 1, 1], [], []>} : vector<512x128xf32>, vector<128x128xf32>, vector<512x128xf32> -> vector<512x128xf32>
    %98 = arith.addf %92, %97 : vector<512x128xf32>
    %c0_107 = arith.constant 0 : index
    %c0_108 = arith.constant 0 : index
    %c2_109 = arith.constant 2 : index
    %c0_110 = arith.constant 0 : index
    %99 = vector.load %arg8[%c0_107, %c0_108, %c2_109, %c0_110] : memref<2x18x18x128xf32, #tpu.memory_space<vmem>>, vector<2x16x16x128xf32>
    %100 = vector.shape_cast %99 : vector<2x16x16x128xf32> to vector<512x128xf32>
    %c2_111 = arith.constant 2 : index
    %c0_112 = arith.constant 0 : index
    %c0_113 = arith.constant 0 : index
    %101 = vector.load %arg4[%c2_111, %c0_112, %c0_113] : memref<9x128x128xf32, #tpu.memory_space<vmem>>, vector<1x128x128xf32>
    %102 = vector.shape_cast %101 : vector<1x128x128xf32> to vector<128x128xf32>
    %cst_114 = arith.constant dense<0.000000e+00> : vector<512x128xf32>
    %103 = tpu.matmul %100, %102, %cst_114 {dimension_numbers = #tpu.dot_dimension_numbers<[1], [0], [0], [1], [0, 0, 1, 1], [], []>} : vector<512x128xf32>, vector<128x128xf32>, vector<512x128xf32> -> vector<512x128xf32>
    %104 = arith.addf %98, %103 : vector<512x128xf32>
    %c0_115 = arith.constant 0 : index
    %c1_116 = arith.constant 1 : index
    %c0_117 = arith.constant 0 : index
    %c0_118 = arith.constant 0 : index
    %105 = vector.load %arg8[%c0_115, %c1_116, %c0_117, %c0_118] : memref<2x18x18x128xf32, #tpu.memory_space<vmem>>, vector<2x16x16x128xf32>
    %106 = vector.shape_cast %105 : vector<2x16x16x128xf32> to vector<512x128xf32>
    %c3_119 = arith.constant 3 : index
    %c0_120 = arith.constant 0 : index
    %c0_121 = arith.constant 0 : index
    %107 = vector.load %arg4[%c3_119, %c0_120, %c0_121] : memref<9x128x128xf32, #tpu.memory_space<vmem>>, vector<1x128x128xf32>
    %108 = vector.shape_cast %107 : vector<1x128x128xf32> to vector<128x128xf32>
    %cst_122 = arith.constant dense<0.000000e+00> : vector<512x128xf32>
    %109 = tpu.matmul %106, %108, %cst_122 {dimension_numbers = #tpu.dot_dimension_numbers<[1], [0], [0], [1], [0, 0, 1, 1], [], []>} : vector<512x128xf32>, vector<128x128xf32>, vector<512x128xf32> -> vector<512x128xf32>
    %110 = arith.addf %104, %109 : vector<512x128xf32>
    %c0_123 = arith.constant 0 : index
    %c1_124 = arith.constant 1 : index
    %c1_125 = arith.constant 1 : index
    %c0_126 = arith.constant 0 : index
    %111 = vector.load %arg8[%c0_123, %c1_124, %c1_125, %c0_126] : memref<2x18x18x128xf32, #tpu.memory_space<vmem>>, vector<2x16x16x128xf32>
    %112 = vector.shape_cast %111 : vector<2x16x16x128xf32> to vector<512x128xf32>
    %c4_127 = arith.constant 4 : index
    %c0_128 = arith.constant 0 : index
    %c0_129 = arith.constant 0 : index
    %113 = vector.load %arg4[%c4_127, %c0_128, %c0_129] : memref<9x128x128xf32, #tpu.memory_space<vmem>>, vector<1x128x128xf32>
    %114 = vector.shape_cast %113 : vector<1x128x128xf32> to vector<128x128xf32>
    %cst_130 = arith.constant dense<0.000000e+00> : vector<512x128xf32>
    %115 = tpu.matmul %112, %114, %cst_130 {dimension_numbers = #tpu.dot_dimension_numbers<[1], [0], [0], [1], [0, 0, 1, 1], [], []>} : vector<512x128xf32>, vector<128x128xf32>, vector<512x128xf32> -> vector<512x128xf32>
    %116 = arith.addf %110, %115 : vector<512x128xf32>
    %c0_131 = arith.constant 0 : index
    %c1_132 = arith.constant 1 : index
    %c2_133 = arith.constant 2 : index
    %c0_134 = arith.constant 0 : index
    %117 = vector.load %arg8[%c0_131, %c1_132, %c2_133, %c0_134] : memref<2x18x18x128xf32, #tpu.memory_space<vmem>>, vector<2x16x16x128xf32>
    %118 = vector.shape_cast %117 : vector<2x16x16x128xf32> to vector<512x128xf32>
    %c5_135 = arith.constant 5 : index
    %c0_136 = arith.constant 0 : index
    %c0_137 = arith.constant 0 : index
    %119 = vector.load %arg4[%c5_135, %c0_136, %c0_137] : memref<9x128x128xf32, #tpu.memory_space<vmem>>, vector<1x128x128xf32>
    %120 = vector.shape_cast %119 : vector<1x128x128xf32> to vector<128x128xf32>
    %cst_138 = arith.constant dense<0.000000e+00> : vector<512x128xf32>
    %121 = tpu.matmul %118, %120, %cst_138 {dimension_numbers = #tpu.dot_dimension_numbers<[1], [0], [0], [1], [0, 0, 1, 1], [], []>} : vector<512x128xf32>, vector<128x128xf32>, vector<512x128xf32> -> vector<512x128xf32>
    %122 = arith.addf %116, %121 : vector<512x128xf32>
    %c0_139 = arith.constant 0 : index
    %c2_140 = arith.constant 2 : index
    %c0_141 = arith.constant 0 : index
    %c0_142 = arith.constant 0 : index
    %123 = vector.load %arg8[%c0_139, %c2_140, %c0_141, %c0_142] : memref<2x18x18x128xf32, #tpu.memory_space<vmem>>, vector<2x16x16x128xf32>
    %124 = vector.shape_cast %123 : vector<2x16x16x128xf32> to vector<512x128xf32>
    %c6_143 = arith.constant 6 : index
    %c0_144 = arith.constant 0 : index
    %c0_145 = arith.constant 0 : index
    %125 = vector.load %arg4[%c6_143, %c0_144, %c0_145] : memref<9x128x128xf32, #tpu.memory_space<vmem>>, vector<1x128x128xf32>
    %126 = vector.shape_cast %125 : vector<1x128x128xf32> to vector<128x128xf32>
    %cst_146 = arith.constant dense<0.000000e+00> : vector<512x128xf32>
    %127 = tpu.matmul %124, %126, %cst_146 {dimension_numbers = #tpu.dot_dimension_numbers<[1], [0], [0], [1], [0, 0, 1, 1], [], []>} : vector<512x128xf32>, vector<128x128xf32>, vector<512x128xf32> -> vector<512x128xf32>
    %128 = arith.addf %122, %127 : vector<512x128xf32>
    %c0_147 = arith.constant 0 : index
    %c2_148 = arith.constant 2 : index
    %c1_149 = arith.constant 1 : index
    %c0_150 = arith.constant 0 : index
    %129 = vector.load %arg8[%c0_147, %c2_148, %c1_149, %c0_150] : memref<2x18x18x128xf32, #tpu.memory_space<vmem>>, vector<2x16x16x128xf32>
    %130 = vector.shape_cast %129 : vector<2x16x16x128xf32> to vector<512x128xf32>
    %c7_151 = arith.constant 7 : index
    %c0_152 = arith.constant 0 : index
    %c0_153 = arith.constant 0 : index
    %131 = vector.load %arg4[%c7_151, %c0_152, %c0_153] : memref<9x128x128xf32, #tpu.memory_space<vmem>>, vector<1x128x128xf32>
    %132 = vector.shape_cast %131 : vector<1x128x128xf32> to vector<128x128xf32>
    %cst_154 = arith.constant dense<0.000000e+00> : vector<512x128xf32>
    %133 = tpu.matmul %130, %132, %cst_154 {dimension_numbers = #tpu.dot_dimension_numbers<[1], [0], [0], [1], [0, 0, 1, 1], [], []>} : vector<512x128xf32>, vector<128x128xf32>, vector<512x128xf32> -> vector<512x128xf32>
    %134 = arith.addf %128, %133 : vector<512x128xf32>
    %c0_155 = arith.constant 0 : index
    %c2_156 = arith.constant 2 : index
    %c2_157 = arith.constant 2 : index
    %c0_158 = arith.constant 0 : index
    %135 = vector.load %arg8[%c0_155, %c2_156, %c2_157, %c0_158] : memref<2x18x18x128xf32, #tpu.memory_space<vmem>>, vector<2x16x16x128xf32>
    %136 = vector.shape_cast %135 : vector<2x16x16x128xf32> to vector<512x128xf32>
    %c8_159 = arith.constant 8 : index
    %c0_160 = arith.constant 0 : index
    %c0_161 = arith.constant 0 : index
    %137 = vector.load %arg4[%c8_159, %c0_160, %c0_161] : memref<9x128x128xf32, #tpu.memory_space<vmem>>, vector<1x128x128xf32>
    %138 = vector.shape_cast %137 : vector<1x128x128xf32> to vector<128x128xf32>
    %cst_162 = arith.constant dense<0.000000e+00> : vector<512x128xf32>
    %139 = tpu.matmul %136, %138, %cst_162 {dimension_numbers = #tpu.dot_dimension_numbers<[1], [0], [0], [1], [0, 0, 1, 1], [], []>} : vector<512x128xf32>, vector<128x128xf32>, vector<512x128xf32> -> vector<512x128xf32>
    %140 = arith.addf %134, %139 : vector<512x128xf32>
    %cst_163 = arith.constant dense<0.000000e+00> : vector<128xf32>
    %141 = vector.multi_reduction <add>, %140, %cst_163 [0] : vector<512x128xf32> to vector<128xf32>
    %142 = vector.shape_cast %141 : vector<128xf32> to vector<1x128xf32>
    %cst_164 = arith.constant 0.001953125 : f32
    %143 = vector.broadcast %cst_164 : f32 to vector<1x128xf32>
    %144 = arith.mulf %142, %143 : vector<1x128xf32>
    %145 = arith.mulf %140, %140 : vector<512x128xf32>
    %cst_165 = arith.constant dense<0.000000e+00> : vector<128xf32>
    %146 = vector.multi_reduction <add>, %145, %cst_165 [0] : vector<512x128xf32> to vector<128xf32>
    %147 = vector.shape_cast %146 : vector<128xf32> to vector<1x128xf32>
    %cst_166 = arith.constant 0.001953125 : f32
    %148 = vector.broadcast %cst_166 : f32 to vector<1x128xf32>
    %149 = arith.mulf %147, %148 : vector<1x128xf32>
    %150 = arith.mulf %144, %144 : vector<1x128xf32>
    %151 = arith.subf %149, %150 : vector<1x128xf32>
    %c0_167 = arith.constant 0 : index
    %c0_168 = arith.constant 0 : index
    %152 = vector.load %arg5[%c0_167, %c0_168] : memref<1x128xf32, #tpu.memory_space<vmem>>, vector<1x128xf32>
    %cst_169 = arith.constant 9.99999974E-6 : f32
    %153 = vector.broadcast %cst_169 : f32 to vector<1x128xf32>
    %154 = arith.addf %151, %153 : vector<1x128xf32>
    %155 = math.rsqrt %154 : vector<1x128xf32>
    %156 = arith.mulf %152, %155 : vector<1x128xf32>
    %c0_170 = arith.constant 0 : index
    %c0_171 = arith.constant 0 : index
    %157 = vector.load %arg6[%c0_170, %c0_171] : memref<1x128xf32, #tpu.memory_space<vmem>>, vector<1x128xf32>
    %158 = arith.mulf %144, %156 : vector<1x128xf32>
    %159 = arith.subf %157, %158 : vector<1x128xf32>
    %160 = vector.broadcast %156 : vector<1x128xf32> to vector<512x128xf32>
    %161 = arith.mulf %140, %160 : vector<512x128xf32>
    %162 = vector.broadcast %159 : vector<1x128xf32> to vector<512x128xf32>
    %163 = arith.addf %161, %162 : vector<512x128xf32>
    %c0_172 = arith.constant 0 : index
    %c0_173 = arith.constant 0 : index
    %c0_174 = arith.constant 0 : index
    %c0_175 = arith.constant 0 : index
    %164 = vector.load %arg0[%c0_172, %c0_173, %c0_174, %c0_175] : memref<2x16x16x128xf32, #tpu.memory_space<vmem>>, vector<2x16x16x128xf32>
    %165 = vector.shape_cast %164 : vector<2x16x16x128xf32> to vector<512x128xf32>
    %166 = arith.addf %163, %165 : vector<512x128xf32>
    %cst_176 = arith.constant 0.000000e+00 : f32
    %167 = vector.broadcast %cst_176 : f32 to vector<512x128xf32>
    %168 = arith.maximumf %166, %167 : vector<512x128xf32>
    %169 = vector.shape_cast %168 : vector<512x128xf32> to vector<2x16x16x128xf32>
    %c0_177 = arith.constant 0 : index
    %c0_178 = arith.constant 0 : index
    %c0_179 = arith.constant 0 : index
    %c0_180 = arith.constant 0 : index
    %170 = vector.load %arg7[%c0_177, %c0_178, %c0_179, %c0_180] : memref<2x16x16x128xf32, #tpu.memory_space<vmem>>, vector<2x16x16x128xf32>
    tpu.vector_store %arg7[%c0_177, %c0_178, %c0_179, %c0_180], %169 {strides = array<i32>} : memref<2x16x16x128xf32, #tpu.memory_space<vmem>>, vector<2x16x16x128xf32>,
    return
  }
}

</mosaic_0001>

<llo_original>
// kernel: tpu_custom_call.1
$region0: #{tpu_custom_call.1}
  #allocation0 [shape = 'u32[]', space=smem, size = 0x4, offset = 0x4, fixed_abs, tag = 'smem constant byte address 0x4 - core index']
  #allocation1 [shape = 'u32[144,128]{1,0:T(1,128)}', space=vmem, size = 0x12000, scoped, tag = 'internal scratch']
  #allocation2 [shape = 'f32[2,18,18,128]{3,2,1,0:T(8,128)}', space=vmem, size = 0x6c000, scoped, tag = 'scratch operand']
  %s0 = inlined_call_operand.hbm [shape: f32[2,16,16,128], index: 0, kind: input, shape index: {}]
  %s1 = inlined_call_operand.hbm [shape: f32[9,128,128], index: 1, kind: input, shape index: {}]
  %s2 = inlined_call_operand.vmem [shape: f32[1,128], index: 2, kind: input, shape index: {}]
  %s3 = inlined_call_operand.vmem [shape: f32[1,128], index: 3, kind: input, shape index: {}]
  %s4 = inlined_call_operand.hbm [shape: f32[9,128,128], index: 4, kind: input, shape index: {}]
  %s5 = inlined_call_operand.vmem [shape: f32[1,128], index: 5, kind: input, shape index: {}]
  %s6 = inlined_call_operand.vmem [shape: f32[1,128], index: 6, kind: input, shape index: {}]
  %s7 = inlined_call_operand.hbm [shape: f32[2,16,16,128], index: 7, kind: output, shape index: {}]
  %s8 = sld [smem:[#allocation0]]
  $region50: #{tpu_custom_call.1} parent=0
    _
  %s10 = ssub.s32 1, %s8
  %s11 = scalar_select 0, %s10, %s8
  $region1: #{tpu_custom_call.1} parent=0
    #allocation3 [shape = 'u8[262144]{0}', space=vmem, size = 0x40000, scoped, tag = 'input window, operand 0, single buffered']
    #allocation4 [shape = 's32[1]{0}', space=sflag, size = 0x4, scoped, tag = 'scoped memory for tpu_custom_call.1']
    #allocation5 [shape = 's32[1]{0}', space=sflag, size = 0x4, scoped, tag = 'scoped memory for tpu_custom_call.1']
    #allocation6 [shape = 'u8[589824]{0}', space=vmem, size = 0x90000, scoped, tag = 'input window, operand 1, single buffered']
    #allocation7 [shape = 's32[1]{0}', space=sflag, size = 0x4, scoped, tag = 'scoped memory for tpu_custom_call.1']
    #allocation8 [shape = 'u8[589824]{0}', space=vmem, size = 0x90000, scoped, tag = 'input window, operand 4, single buffered']
    #allocation9 [shape = 'u8[262144]{0}', space=vmem, size = 0x40000, scoped, tag = 'output window, operand 0, single buffered']
    %12 = vsyncpa [#allocation4], 0
    %13 = vsyncpa [#allocation7], 0
    %14 = vsyncpa [#allocation5], 0
    // Predicated region
    $region2: #{tpu_custom_call.1} parent=1 // pred_check
      _
    $region3: #{tpu_custom_call.1} parent=1 // pred_check_branch
      %16 = sbr.rel (0) target = $region5
    $region4: #{tpu_custom_call.1} parent=1 // pred_region
      %s18 = ssub.s32 8192, 8192
      %19 = vsyncadd [#allocation4], %s18
      %s20 = sshll.u32 [#allocation3], 4
      %s21 = int_to_ptr.vmem [resolvable:$true] %s20
      %26 = dma.hbm_to_vmem [thread:$0]  %s0, 8192, %s21, [#allocation4], 128, 128, 8
    $region5: #{tpu_custom_call.1} parent=1 // pred_fallthru
      _
    // Predicated region
    $region6: #{tpu_custom_call.1} parent=1 // pred_check
      _
    $region7: #{tpu_custom_call.1} parent=1 // pred_check_branch
      %28 = sbr.rel (0) target = $region9
    $region8: #{tpu_custom_call.1} parent=1 // pred_region
      %s30 = ssub.s32 18432, 18432
      %31 = vsyncadd [#allocation7], %s30
      %s32 = sshll.u32 [#allocation6], 4
      %s33 = int_to_ptr.vmem [resolvable:$true] %s32
      %38 = dma.hbm_to_vmem [thread:$0]  %s1, 18432, %s33, [#allocation7], 128, 128, 8
    $region9: #{tpu_custom_call.1} parent=1 // pred_fallthru
      _
    // Predicated region
    $region10: #{tpu_custom_call.1} parent=1 // pred_check
      _
    $region11: #{tpu_custom_call.1} parent=1 // pred_check_branch
      %40 = sbr.rel (0) target = $region13
    $region12: #{tpu_custom_call.1} parent=1 // pred_region
      _
    $region13: #{tpu_custom_call.1} parent=1 // pred_fallthru
      _
    // Predicated region
    $region14: #{tpu_custom_call.1} parent=1 // pred_check
      _
    $region15: #{tpu_custom_call.1} parent=1 // pred_check_branch
      %42 = sbr.rel (0) target = $region17
    $region16: #{tpu_custom_call.1} parent=1 // pred_region
      _
    $region17: #{tpu_custom_call.1} parent=1 // pred_fallthru
      _
    // Predicated region
    $region18: #{tpu_custom_call.1} parent=1 // pred_check
      _
    $region19: #{tpu_custom_call.1} parent=1 // pred_check_branch
      %44 = sbr.rel (0) target = $region21
    $region20: #{tpu_custom_call.1} parent=1 // pred_region
      %s46 = ssub.s32 18432, 18432
      %47 = vsyncadd [#allocation7], %s46
      %s48 = sshll.u32 [#allocation8], 4
      %s49 = int_to_ptr.vmem [resolvable:$true] %s48
      %54 = dma.hbm_to_vmem [thread:$0]  %s4, 18432, %s49, [#allocation7], 128, 128, 8
    $region21: #{tpu_custom_call.1} parent=1 // pred_fallthru
      _
    // Predicated region
    $region22: #{tpu_custom_call.1} parent=1 // pred_check
      _
    $region23: #{tpu_custom_call.1} parent=1 // pred_check_branch
      %56 = sbr.rel (0) target = $region25
    $region24: #{tpu_custom_call.1} parent=1 // pred_region
      _
    $region25: #{tpu_custom_call.1} parent=1 // pred_fallthru
      _
    // Predicated region
    $region26: #{tpu_custom_call.1} parent=1 // pred_check
      _
    $region27: #{tpu_custom_call.1} parent=1 // pred_check_branch
      %58 = sbr.rel (0) target = $region29
    $region28: #{tpu_custom_call.1} parent=1 // pred_region
      _
    $region29: #{tpu_custom_call.1} parent=1 // pred_fallthru
      _
    // Predicated region
    $region30: #{tpu_custom_call.1} parent=1 // pred_check
      _
    $region31: #{tpu_custom_call.1} parent=1 // pred_check_branch
      %60 = sbr.rel (0) target = $region33
    $region32: #{tpu_custom_call.1} parent=1 // pred_region
      %61 = dma.done [#allocation4], 8192
    $region33: #{tpu_custom_call.1} parent=1 // pred_fallthru
      _
    // Predicated region
    $region34: #{tpu_custom_call.1} parent=1 // pred_check
      _
    $region35: #{tpu_custom_call.1} parent=1 // pred_check_branch
      %63 = sbr.rel (0) target = $region37
    $region36: #{tpu_custom_call.1} parent=1 // pred_region
      %64 = dma.done [#allocation7], 18432
    $region37: #{tpu_custom_call.1} parent=1 // pred_fallthru
      _
    // Predicated region
    $region38: #{tpu_custom_call.1} parent=1 // pred_check
      _
    $region39: #{tpu_custom_call.1} parent=1 // pred_check_branch
      %66 = sbr.rel (0) target = $region41
    $region40: #{tpu_custom_call.1} parent=1 // pred_region
      %67 = dma.done [#allocation7], 18432
    $region41: #{tpu_custom_call.1} parent=1 // pred_fallthru
      _
    %68 = vst [vmem:[#allocation2] sm:$0xff] 0.0
    %69 = vst [vmem:[#allocation2 + $0x8] sm:$0xff] 0.0
    %70 = vst [vmem:[#allocation2 + $0x10] sm:$0x3] 0.0
    %71 = vst [vmem:[#allocation2 + $0x18] sm:$0xff] 0.0
    %72 = vst [vmem:[#allocation2 + $0x20] sm:$0xff] 0.0
    %73 = vst [vmem:[#allocation2 + $0x28] sm:$0x3] 0.0
    %74 = vst [vmem:[#allocation2 + $0x30] sm:$0xff] 0.0
    %75 = vst [vmem:[#allocation2 + $0x38] sm:$0xff] 0.0
    %76 = vst [vmem:[#allocation2 + $0x40] sm:$0x3] 0.0
    %77 = vst [vmem:[#allocation2 + $0x48] sm:$0xff] 0.0
    %78 = vst [vmem:[#allocation2 + $0x50] sm:$0xff] 0.0
    %79 = vst [vmem:[#allocation2 + $0x58] sm:$0x3] 0.0
    %80 = vst [vmem:[#allocation2 + $0x60] sm:$0xff] 0.0
    %81 = vst [vmem:[#allocation2 + $0x68] sm:$0xff] 0.0
    %82 = vst [vmem:[#allocation2 + $0x70] sm:$0x3] 0.0
    %83 = vst [vmem:[#allocation2 + $0x78] sm:$0xff] 0.0
    %84 = vst [vmem:[#allocation2 + $0x80] sm:$0xff] 0.0
    %85 = vst [vmem:[#allocation2 + $0x88] sm:$0x3] 0.0
    %86 = vst [vmem:[#allocation2 + $0x90] sm:$0xff] 0.0
    %87 = vst [vmem:[#allocation2 + $0x98] sm:$0xff] 0.0
    %88 = vst [vmem:[#allocation2 + $0xa0] sm:$0x3] 0.0
    %89 = vst [vmem:[#allocation2 + $0xa8] sm:$0xff] 0.0
    %90 = vst [vmem:[#allocation2 + $0xb0] sm:$0xff] 0.0
    %91 = vst [vmem:[#allocation2 + $0xb8] sm:$0x3] 0.0
    %92 = vst [vmem:[#allocation2 + $0xc0] sm:$0xff] 0.0
    %93 = vst [vmem:[#allocation2 + $0xc8] sm:$0xff] 0.0
    %94 = vst [vmem:[#allocation2 + $0xd0] sm:$0x3] 0.0
    %95 = vst [vmem:[#allocation2 + $0xd8] sm:$0xff] 0.0
    %96 = vst [vmem:[#allocation2 + $0xe0] sm:$0xff] 0.0
    %97 = vst [vmem:[#allocation2 + $0xe8] sm:$0x3] 0.0
    %98 = vst [vmem:[#allocation2 + $0xf0] sm:$0xff] 0.0
    %99 = vst [vmem:[#allocation2 + $0xf8] sm:$0xff] 0.0
    %100 = vst [vmem:[#allocation2 + $0x100] sm:$0x3] 0.0
    %101 = vst [vmem:[#allocation2 + $0x108] sm:$0xff] 0.0
    %102 = vst [vmem:[#allocation2 + $0x110] sm:$0xff] 0.0
    %103 = vst [vmem:[#allocation2 + $0x118] sm:$0x3] 0.0
    %104 = vst [vmem:[#allocation2 + $0x120] sm:$0xff] 0.0
    %105 = vst [vmem:[#allocation2 + $0x128] sm:$0xff] 0.0
    %106 = vst [vmem:[#allocation2 + $0x130] sm:$0x3] 0.0
    %107 = vst [vmem:[#allocation2 + $0x138] sm:$0xff] 0.0
    %108 = vst [vmem:[#allocation2 + $0x140] sm:$0xff] 0.0
    %109 = vst [vmem:[#allocation2 + $0x148] sm:$0x3] 0.0
    %110 = vst [vmem:[#allocation2 + $0x150] sm:$0xff] 0.0
    %111 = vst [vmem:[#allocation2 + $0x158] sm:$0xff] 0.0
    %112 = vst [vmem:[#allocation2 + $0x160] sm:$0x3] 0.0
    %113 = vst [vmem:[#allocation2 + $0x168] sm:$0xff] 0.0
    %114 = vst [vmem:[#allocation2 + $0x170] sm:$0xff] 0.0
    %115 = vst [vmem:[#allocation2 + $0x178] sm:$0x3] 0.0
    %116 = vst [vmem:[#allocation2 + $0x180] sm:$0xff] 0.0
    %117 = vst [vmem:[#allocation2 + $0x188] sm:$0xff] 0.0
    %118 = vst [vmem:[#allocation2 + $0x190] sm:$0x3] 0.0
    %119 = vst [vmem:[#allocation2 + $0x198] sm:$0xff] 0.0
    %120 = vst [vmem:[#allocation2 + $0x1a0] sm:$0xff] 0.0
    %121 = vst [vmem:[#allocation2 + $0x1a8] sm:$0x3] 0.0
    %122 = vst [vmem:[#allocation2 + $0x1b0] sm:$0xff] 0.0
    %123 = vst [vmem:[#allocation2 + $0x1b8] sm:$0xff] 0.0
    %124 = vst [vmem:[#allocation2 + $0x1c0] sm:$0x3] 0.0
    %125 = vst [vmem:[#allocation2 + $0x1c8] sm:$0xff] 0.0
    %126 = vst [vmem:[#allocation2 + $0x1d0] sm:$0xff] 0.0
    %127 = vst [vmem:[#allocation2 + $0x1d8] sm:$0x3] 0.0
    %128 = vst [vmem:[#allocation2 + $0x1e0] sm:$0xff] 0.0
    %129 = vst [vmem:[#allocation2 + $0x1e8] sm:$0xff] 0.0
    %130 = vst [vmem:[#allocation2 + $0x1f0] sm:$0x3] 0.0
    %131 = vst [vmem:[#allocation2 + $0x1f8] sm:$0xff] 0.0
    %132 = vst [vmem:[#allocation2 + $0x200] sm:$0xff] 0.0
    %133 = vst [vmem:[#allocation2 + $0x208] sm:$0x3] 0.0
    %134 = vst [vmem:[#allocation2 + $0x210] sm:$0xff] 0.0
    %135 = vst [vmem:[#allocation2 + $0x218] sm:$0xff] 0.0
    %136 = vst [vmem:[#allocation2 + $0x220] sm:$0x3] 0.0
    %137 = vst [vmem:[#allocation2 + $0x228] sm:$0xff] 0.0
    %138 = vst [vmem:[#allocation2 + $0x230] sm:$0xff] 0.0
    %139 = vst [vmem:[#allocation2 + $0x238] sm:$0x3] 0.0
    %140 = vst [vmem:[#allocation2 + $0x240] sm:$0xff] 0.0
    %141 = vst [vmem:[#allocation2 + $0x248] sm:$0xff] 0.0
    %142 = vst [vmem:[#allocation2 + $0x250] sm:$0x3] 0.0
    %143 = vst [vmem:[#allocation2 + $0x258] sm:$0xff] 0.0
    %144 = vst [vmem:[#allocation2 + $0x260] sm:$0xff] 0.0
    %145 = vst [vmem:[#allocation2 + $0x268] sm:$0x3] 0.0
    %146 = vst [vmem:[#allocation2 + $0x270] sm:$0xff] 0.0
    %147 = vst [vmem:[#allocation2 + $0x278] sm:$0xff] 0.0
    %148 = vst [vmem:[#allocation2 + $0x280] sm:$0x3] 0.0
    %149 = vst [vmem:[#allocation2 + $0x288] sm:$0xff] 0.0
    %150 = vst [vmem:[#allocation2 + $0x290] sm:$0xff] 0.0
    %151 = vst [vmem:[#allocation2 + $0x298] sm:$0x3] 0.0
    %152 = vst [vmem:[#allocation2 + $0x2a0] sm:$0xff] 0.0
    %153 = vst [vmem:[#allocation2 + $0x2a8] sm:$0xff] 0.0
    %154 = vst [vmem:[#allocation2 + $0x2b0] sm:$0x3] 0.0
    %155 = vst [vmem:[#allocation2 + $0x2b8] sm:$0xff] 0.0
    %156 = vst [vmem:[#allocation2 + $0x2c0] sm:$0xff] 0.0
    %157 = vst [vmem:[#allocation2 + $0x2c8] sm:$0x3] 0.0
    %158 = vst [vmem:[#allocation2 + $0x2d0] sm:$0xff] 0.0
    %159 = vst [vmem:[#allocation2 + $0x2d8] sm:$0xff] 0.0
    %160 = vst [vmem:[#allocation2 + $0x2e0] sm:$0x3] 0.0
    %161 = vst [vmem:[#allocation2 + $0x2e8] sm:$0xff] 0.0
    %162 = vst [vmem:[#allocation2 + $0x2f0] sm:$0xff] 0.0
    %163 = vst [vmem:[#allocation2 + $0x2f8] sm:$0x3] 0.0
    %164 = vst [vmem:[#allocation2 + $0x300] sm:$0xff] 0.0
    %165 = vst [vmem:[#allocation2 + $0x308] sm:$0xff] 0.0
    %166 = vst [vmem:[#allocation2 + $0x310] sm:$0x3] 0.0
    %167 = vst [vmem:[#allocation2 + $0x318] sm:$0xff] 0.0
    %168 = vst [vmem:[#allocation2 + $0x320] sm:$0xff] 0.0
    %169 = vst [vmem:[#allocation2 + $0x328] sm:$0x3] 0.0
    %170 = vst [vmem:[#allocation2 + $0x330] sm:$0xff] 0.0
    %171 = vst [vmem:[#allocation2 + $0x338] sm:$0xff] 0.0
    %172 = vst [vmem:[#allocation2 + $0x340] sm:$0x3] 0.0
    %173 = vst [vmem:[#allocation2 + $0x348] sm:$0xff] 0.0
    %174 = vst [vmem:[#allocation2 + $0x350] sm:$0xff] 0.0
    %175 = vst [vmem:[#allocation2 + $0x358] sm:$0x3] 0.0
    %v176 = vld [vmem:[#allocation3] sm:$0xff]
    %v177 = vld [vmem:[#allocation3 + $0x8] sm:$0xff]
    %v178 = vld [vmem:[#allocation3 + $0x10] sm:$0xff]
    %v179 = vld [vmem:[#allocation3 + $0x18] sm:$0xff]
    %v180 = vld [vmem:[#allocation3 + $0x20] sm:$0xff]
    %v181 = vld [vmem:[#allocation3 + $0x28] sm:$0xff]
    %v182 = vld [vmem:[#allocation3 + $0x30] sm:$0xff]
    %v183 = vld [vmem:[#allocation3 + $0x38] sm:$0xff]
    %v184 = vld [vmem:[#allocation3 + $0x40] sm:$0xff]
    %v185 = vld [vmem:[#allocation3 + $0x48] sm:$0xff]
    %v186 = vld [vmem:[#allocation3 + $0x50] sm:$0xff]
    %v187 = vld [vmem:[#allocation3 + $0x58] sm:$0xff]
    %v188 = vld [vmem:[#allocation3 + $0x60] sm:$0xff]
    %v189 = vld [vmem:[#allocation3 + $0x68] sm:$0xff]
    %v190 = vld [vmem:[#allocation3 + $0x70] sm:$0xff]
    %v191 = vld [vmem:[#allocation3 + $0x78] sm:$0xff]
    %v192 = vld [vmem:[#allocation3 + $0x80] sm:$0xff]
    %v193 = vld [vmem:[#allocation3 + $0x88] sm:$0xff]
    %v194 = vld [vmem:[#allocation3 + $0x90] sm:$0xff]
    %v195 = vld [vmem:[#allocation3 + $0x98] sm:$0xff]
    %v196 = vld [vmem:[#allocation3 + $0xa0] sm:$0xff]
    %v197 = vld [vmem:[#allocation3 + $0xa8] sm:$0xff]
    %v198 = vld [vmem:[#allocation3 + $0xb0] sm:$0xff]
    %v199 = vld [vmem:[#allocation3 + $0xb8] sm:$0xff]
    %v200 = vld [vmem:[#allocation3 + $0xc0] sm:$0xff]
    %v201 = vld [vmem:[#allocation3 + $0xc8] sm:$0xff]
    %v202 = vld [vmem:[#allocation3 + $0xd0] sm:$0xff]
    %v203 = vld [vmem:[#allocation3 + $0xd8] sm:$0xff]
    %v204 = vld [vmem:[#allocation3 + $0xe0] sm:$0xff]
    %v205 = vld [vmem:[#allocation3 + $0xe8] sm:$0xff]
    %v206 = vld [vmem:[#allocation3 + $0xf0] sm:$0xff]
    %v207 = vld [vmem:[#allocation3 + $0xf8] sm:$0xff]
    %v208 = vld [vmem:[#allocation3 + $0x100] sm:$0xff]
    %v209 = vld [vmem:[#allocation3 + $0x108] sm:$0xff]
    %v210 = vld [vmem:[#allocation3 + $0x110] sm:$0xff]
    %v211 = vld [vmem:[#allocation3 + $0x118] sm:$0xff]
    %v212 = vld [vmem:[#allocation3 + $0x120] sm:$0xff]
    %v213 = vld [vmem:[#allocation3 + $0x128] sm:$0xff]
    %v214 = vld [vmem:[#allocation3 + $0x130] sm:$0xff]
    %v215 = vld [vmem:[#allocation3 + $0x138] sm:$0xff]
    %v216 = vld [vmem:[#allocation3 + $0x140] sm:$0xff]
    %v217 = vld [vmem:[#allocation3 + $0x148] sm:$0xff]
    %v218 = vld [vmem:[#allocation3 + $0x150] sm:$0xff]
    %v219 = vld [vmem:[#allocation3 + $0x158] sm:$0xff]
    %v220 = vld [vmem:[#allocation3 + $0x160] sm:$0xff]
    %v221 = vld [vmem:[#allocation3 + $0x168] sm:$0xff]
    %v222 = vld [vmem:[#allocation3 + $0x170] sm:$0xff]
    %v223 = vld [vmem:[#allocation3 + $0x178] sm:$0xff]
    %v224 = vld [vmem:[#allocation3 + $0x180] sm:$0xff]
    %v225 = vld [vmem:[#allocation3 + $0x188] sm:$0xff]
    %v226 = vld [vmem:[#allocation3 + $0x190] sm:$0xff]
    %v227 = vld [vmem:[#allocation3 + $0x198] sm:$0xff]
    %v228 = vld [vmem:[#allocation3 + $0x1a0] sm:$0xff]
    %v229 = vld [vmem:[#allocation3 + $0x1a8] sm:$0xff]
    %v230 = vld [vmem:[#allocation3 + $0x1b0] sm:$0xff]
    %v231 = vld [vmem:[#allocation3 + $0x1b8] sm:$0xff]
    %v232 = vld [vmem:[#allocation3 + $0x1c0] sm:$0xff]
    %v233 = vld [vmem:[#allocation3 + $0x1c8] sm:$0xff]
    %v234 = vld [vmem:[#allocation3 + $0x1d0] sm:$0xff]
    %v235 = vld [vmem:[#allocation3 + $0x1d8] sm:$0xff]
    %v236 = vld [vmem:[#allocation3 + $0x1e0] sm:$0xff]
    %v237 = vld [vmem:[#allocation3 + $0x1e8] sm:$0xff]
    %v238 = vld [vmem:[#allocation3 + $0x1f0] sm:$0xff]
    %v239 = vld [vmem:[#allocation3 + $0x1f8] sm:$0xff]
    %s240 = scalar_lea.vmem [#allocation2], 24
    %241 = vst [vmem:[%s240 + $0x1] sm:$0xff] %v176
    %242 = vst [vmem:[%s240 + $0x9] sm:$0xff] %v177
    %243 = vst [vmem:[%s240 + $0x19] sm:$0xff] %v178
    %244 = vst [vmem:[%s240 + $0x21] sm:$0xff] %v179
    %245 = vst [vmem:[%s240 + $0x31] sm:$0xff] %v180
    %246 = vst [vmem:[%s240 + $0x39] sm:$0xff] %v181
    %247 = vst [vmem:[%s240 + $0x49] sm:$0xff] %v182
    %248 = vst [vmem:[%s240 + $0x51] sm:$0xff] %v183
    %249 = vst [vmem:[%s240 + $0x61] sm:$0xff] %v184
    %250 = vst [vmem:[%s240 + $0x69] sm:$0xff] %v185
    %251 = vst [vmem:[%s240 + $0x79] sm:$0xff] %v186
    %252 = vst [vmem:[%s240 + $0x81] sm:$0xff] %v187
    %253 = vst [vmem:[%s240 + $0x91] sm:$0xff] %v188
    %254 = vst [vmem:[%s240 + $0x99] sm:$0xff] %v189
    %255 = vst [vmem:[%s240 + $0xa9] sm:$0xff] %v190
    %256 = vst [vmem:[%s240 + $0xb1] sm:$0xff] %v191
    %257 = vst [vmem:[%s240 + $0xc1] sm:$0xff] %v192
    %258 = vst [vmem:[%s240 + $0xc9] sm:$0xff] %v193
    %259 = vst [vmem:[%s240 + $0xd9] sm:$0xff] %v194
    %260 = vst [vmem:[%s240 + $0xe1] sm:$0xff] %v195
    %261 = vst [vmem:[%s240 + $0xf1] sm:$0xff] %v196
    %262 = vst [vmem:[%s240 + $0xf9] sm:$0xff] %v197
    %263 = vst [vmem:[%s240 + $0x109] sm:$0xff] %v198
    %264 = vst [vmem:[%s240 + $0x111] sm:$0xff] %v199
    %265 = vst [vmem:[%s240 + $0x121] sm:$0xff] %v200
    %266 = vst [vmem:[%s240 + $0x129] sm:$0xff] %v201
    %267 = vst [vmem:[%s240 + $0x139] sm:$0xff] %v202
    %268 = vst [vmem:[%s240 + $0x141] sm:$0xff] %v203
    %269 = vst [vmem:[%s240 + $0x151] sm:$0xff] %v204
    %270 = vst [vmem:[%s240 + $0x159] sm:$0xff] %v205
    %271 = vst [vmem:[%s240 + $0x169] sm:$0xff] %v206
    %272 = vst [vmem:[%s240 + $0x171] sm:$0xff] %v207
    %273 = vst [vmem:[%s240 + $0x1b1] sm:$0xff] %v208
    %274 = vst [vmem:[%s240 + $0x1b9] sm:$0xff] %v209
    %275 = vst [vmem:[%s240 + $0x1c9] sm:$0xff] %v210
    %276 = vst [vmem:[%s240 + $0x1d1] sm:$0xff] %v211
    %277 = vst [vmem:[%s240 + $0x1e1] sm:$0xff] %v212
    %278 = vst [vmem:[%s240 + $0x1e9] sm:$0xff] %v213
    %279 = vst [vmem:[%s240 + $0x1f9] sm:$0xff] %v214
    %280 = vst [vmem:[%s240 + $0x201] sm:$0xff] %v215
    %281 = vst [vmem:[%s240 + $0x211] sm:$0xff] %v216
    %282 = vst [vmem:[%s240 + $0x219] sm:$0xff] %v217
    %283 = vst [vmem:[%s240 + $0x229] sm:$0xff] %v218
    %284 = vst [vmem:[%s240 + $0x231] sm:$0xff] %v219
    %285 = vst [vmem:[%s240 + $0x241] sm:$0xff] %v220
    %286 = vst [vmem:[%s240 + $0x249] sm:$0xff] %v221
    %287 = vst [vmem:[%s240 + $0x259] sm:$0xff] %v222
    %288 = vst [vmem:[%s240 + $0x261] sm:$0xff] %v223
    %289 = vst [vmem:[%s240 + $0x271] sm:$0xff] %v224
    %290 = vst [vmem:[%s240 + $0x279] sm:$0xff] %v225
    %291 = vst [vmem:[%s240 + $0x289] sm:$0xff] %v226
    %292 = vst [vmem:[%s240 + $0x291] sm:$0xff] %v227
    %293 = vst [vmem:[%s240 + $0x2a1] sm:$0xff] %v228
    %294 = vst [vmem:[%s240 + $0x2a9] sm:$0xff] %v229
    %295 = vst [vmem:[%s240 + $0x2b9] sm:$0xff] %v230
    %296 = vst [vmem:[%s240 + $0x2c1] sm:$0xff] %v231
    %297 = vst [vmem:[%s240 + $0x2d1] sm:$0xff] %v232
    %298 = vst [vmem:[%s240 + $0x2d9] sm:$0xff] %v233
    %299 = vst [vmem:[%s240 + $0x2e9] sm:$0xff] %v234
    %300 = vst [vmem:[%s240 + $0x2f1] sm:$0xff] %v235
    %301 = vst [vmem:[%s240 + $0x301] sm:$0xff] %v236
    %302 = vst [vmem:[%s240 + $0x309] sm:$0xff] %v237
    %303 = vst [vmem:[%s240 + $0x319] sm:$0xff] %v238
    %304 = vst [vmem:[%s240 + $0x321] sm:$0xff] %v239
    %v305 = vld [vmem:[#allocation2] sm:$0xff]
    %v306 = vld [vmem:[#allocation2 + $0x8] sm:$0xff]
    %v307 = vld [vmem:[#allocation2 + $0x18] sm:$0xff]
    %v308 = vld [vmem:[#allocation2 + $0x20] sm:$0xff]
    %v309 = vld [vmem:[#allocation2 + $0x30] sm:$0xff]
    %v310 = vld [vmem:[#allocation2 + $0x38] sm:$0xff]
    %v311 = vld [vmem:[#allocation2 + $0x48] sm:$0xff]
    %v312 = vld [vmem:[#allocation2 + $0x50] sm:$0xff]
    %v313 = vld [vmem:[#allocation2 + $0x60] sm:$0xff]
    %v314 = vld [vmem:[#allocation2 + $0x68] sm:$0xff]
    %v315 = vld [vmem:[#allocation2 + $0x78] sm:$0xff]
    %v316 = vld [vmem:[#allocation2 + $0x80] sm:$0xff]
    %v317 = vld [vmem:[#allocation2 + $0x90] sm:$0xff]
    %v318 = vld [vmem:[#allocation2 + $0x98] sm:$0xff]
    %v319 = vld [vmem:[#allocation2 + $0xa8] sm:$0xff]
    %v320 = vld [vmem:[#allocation2 + $0xb0] sm:$0xff]
    %v321 = vld [vmem:[#allocation2 + $0xc0] sm:$0xff]
    %v322 = vld [vmem:[#allocation2 + $0xc8] sm:$0xff]
    %v323 = vld [vmem:[#allocation2 + $0xd8] sm:$0xff]
    %v324 = vld [vmem:[#allocation2 + $0xe0] sm:$0xff]
    %v325 = vld [vmem:[#allocation2 + $0xf0] sm:$0xff]
    %v326 = vld [vmem:[#allocation2 + $0xf8] sm:$0xff]
    %v327 = vld [vmem:[#allocation2 + $0x108] sm:$0xff]
    %v328 = vld [vmem:[#allocation2 + $0x110] sm:$0xff]
    %v329 = vld [vmem:[#allocation2 + $0x120] sm:$0xff]
    %v330 = vld [vmem:[#allocation2 + $0x128] sm:$0xff]
    %v331 = vld [vmem:[#allocation2 + $0x138] sm:$0xff]
    %v332 = vld [vmem:[#allocation2 + $0x140] sm:$0xff]
    %v333 = vld [vmem:[#allocation2 + $0x150] sm:$0xff]
    %v334 = vld [vmem:[#allocation2 + $0x158] sm:$0xff]
    %v335 = vld [vmem:[#allocation2 + $0x168] sm:$0xff]
    %v336 = vld [vmem:[#allocation2 + $0x170] sm:$0xff]
    %v337 = vld [vmem:[#allocation2 + $0x1b0] sm:$0xff]
    %v338 = vld [vmem:[#allocation2 + $0x1b8] sm:$0xff]
    %v339 = vld [vmem:[#allocation2 + $0x1c8] sm:$0xff]
    %v340 = vld [vmem:[#allocation2 + $0x1d0] sm:$0xff]
    %v341 = vld [vmem:[#allocation2 + $0x1e0] sm:$0xff]
    %v342 = vld [vmem:[#allocation2 + $0x1e8] sm:$0xff]
    %v343 = vld [vmem:[#allocation2 + $0x1f8] sm:$0xff]
    %v344 = vld [vmem:[#allocation2 + $0x200] sm:$0xff]
    %v345 = vld [vmem:[#allocation2 + $0x210] sm:$0xff]
    %v346 = vld [vmem:[#allocation2 + $0x218] sm:$0xff]
    %v347 = vld [vmem:[#allocation2 + $0x228] sm:$0xff]
    %v348 = vld [vmem:[#allocation2 + $0x230] sm:$0xff]
    %v349 = vld [vmem:[#allocation2 + $0x240] sm:$0xff]
    %v350 = vld [vmem:[#allocation2 + $0x248] sm:$0xff]
    %v351 = vld [vmem:[#allocation2 + $0x258] sm:$0xff]
    %v352 = vld [vmem:[#allocation2 + $0x260] sm:$0xff]
    %v353 = vld [vmem:[#allocation2 + $0x270] sm:$0xff]
    %v354 = vld [vmem:[#allocation2 + $0x278] sm:$0xff]
    %v355 = vld [vmem:[#allocation2 + $0x288] sm:$0xff]
    %v356 = vld [vmem:[#allocation2 + $0x290] sm:$0xff]
    %v357 = vld [vmem:[#allocation2 + $0x2a0] sm:$0xff]
    %v358 = vld [vmem:[#allocation2 + $0x2a8] sm:$0xff]
    %v359 = vld [vmem:[#allocation2 + $0x2b8] sm:$0xff]
    %v360 = vld [vmem:[#allocation2 + $0x2c0] sm:$0xff]
    %v361 = vld [vmem:[#allocation2 + $0x2d0] sm:$0xff]
    %v362 = vld [vmem:[#allocation2 + $0x2d8] sm:$0xff]
    %v363 = vld [vmem:[#allocation2 + $0x2e8] sm:$0xff]
    %v364 = vld [vmem:[#allocation2 + $0x2f0] sm:$0xff]
    %v365 = vld [vmem:[#allocation2 + $0x300] sm:$0xff]
    %v366 = vld [vmem:[#allocation2 + $0x308] sm:$0xff]
    %v367 = vld [vmem:[#allocation2 + $0x318] sm:$0xff]
    %v368 = vld [vmem:[#allocation2 + $0x320] sm:$0xff]
    %v369 = vld [vmem:[#allocation6] sm:$0xff]
    %v370 = vld [vmem:[#allocation6 + $0x8] sm:$0xff]
    %v371 = vld [vmem:[#allocation6 + $0x10] sm:$0xff]
    %v372 = vld [vmem:[#allocation6 + $0x18] sm:$0xff]
    %v373 = vld [vmem:[#allocation6 + $0x20] sm:$0xff]
    %v374 = vld [vmem:[#allocation6 + $0x28] sm:$0xff]
    %v375 = vld [vmem:[#allocation6 + $0x30] sm:$0xff]
    %v376 = vld [vmem:[#allocation6 + $0x38] sm:$0xff]
    %v377 = vld [vmem:[#allocation6 + $0x40] sm:$0xff]
    %v378 = vld [vmem:[#allocation6 + $0x48] sm:$0xff]
    %v379 = vld [vmem:[#allocation6 + $0x50] sm:$0xff]
    %v380 = vld [vmem:[#allocation6 + $0x58] sm:$0xff]
    %v381 = vld [vmem:[#allocation6 + $0x60] sm:$0xff]
    %v382 = vld [vmem:[#allocation6 + $0x68] sm:$0xff]
    %v383 = vld [vmem:[#allocation6 + $0x70] sm:$0xff]
    %v384 = vld [vmem:[#allocation6 + $0x78] sm:$0xff]
    %v385 = vld [vmem:[#allocation2 + $0x1] sm:$0xff]
    %v386 = vld [vmem:[#allocation2 + $0x9] sm:$0xff]
    %v387 = vld [vmem:[#allocation2 + $0x19] sm:$0xff]
    %v388 = vld [vmem:[#allocation2 + $0x21] sm:$0xff]
    %v389 = vld [vmem:[#allocation2 + $0x31] sm:$0xff]
    %v390 = vld [vmem:[#allocation2 + $0x39] sm:$0xff]
    %v391 = vld [vmem:[#allocation2 + $0x49] sm:$0xff]
    %v392 = vld [vmem:[#allocation2 + $0x51] sm:$0xff]
    %v393 = vld [vmem:[#allocation2 + $0x61] sm:$0xff]
    %v394 = vld [vmem:[#allocation2 + $0x69] sm:$0xff]
    %v395 = vld [vmem:[#allocation2 + $0x79] sm:$0xff]
    %v396 = vld [vmem:[#allocation2 + $0x81] sm:$0xff]
    %v397 = vld [vmem:[#allocation2 + $0x91] sm:$0xff]
    %v398 = vld [vmem:[#allocation2 + $0x99] sm:$0xff]
    %v399 = vld [vmem:[#allocation2 + $0xa9] sm:$0xff]
    %v400 = vld [vmem:[#allocation2 + $0xb1] sm:$0xff]
    %v401 = vld [vmem:[#allocation2 + $0xc1] sm:$0xff]
    %v402 = vld [vmem:[#allocation2 + $0xc9] sm:$0xff]
    %v403 = vld [vmem:[#allocation2 + $0xd9] sm:$0xff]
    %v404 = vld [vmem:[#allocation2 + $0xe1] sm:$0xff]
    %v405 = vld [vmem:[#allocation2 + $0xf1] sm:$0xff]
    %v406 = vld [vmem:[#allocation2 + $0xf9] sm:$0xff]
    %v407 = vld [vmem:[#allocation2 + $0x109] sm:$0xff]
    %v408 = vld [vmem:[#allocation2 + $0x111] sm:$0xff]
    %v409 = vld [vmem:[#allocation2 + $0x121] sm:$0xff]
    %v410 = vld [vmem:[#allocation2 + $0x129] sm:$0xff]
    %v411 = vld [vmem:[#allocation2 + $0x139] sm:$0xff]
    %v412 = vld [vmem:[#allocation2 + $0x141] sm:$0xff]
    %v413 = vld [vmem:[#allocation2 + $0x151] sm:$0xff]
    %v414 = vld [vmem:[#allocation2 + $0x159] sm:$0xff]
    %v415 = vld [vmem:[#allocation2 + $0x169] sm:$0xff]
    %v416 = vld [vmem:[#allocation2 + $0x171] sm:$0xff]
    %v417 = vld [vmem:[#allocation2 + $0x1b1] sm:$0xff]
    %v418 = vld [vmem:[#allocation2 + $0x1b9] sm:$0xff]
    %v419 = vld [vmem:[#allocation2 + $0x1c9] sm:$0xff]
    %v420 = vld [vmem:[#allocation2 + $0x1d1] sm:$0xff]
    %v421 = vld [vmem:[#allocation2 + $0x1e1] sm:$0xff]
    %v422 = vld [vmem:[#allocation2 + $0x1e9] sm:$0xff]
    %v423 = vld [vmem:[#allocation2 + $0x1f9] sm:$0xff]
    %v424 = vld [vmem:[#allocation2 + $0x201] sm:$0xff]
    %v425 = vld [vmem:[#allocation2 + $0x211] sm:$0xff]
    %v426 = vld [vmem:[#allocation2 + $0x219] sm:$0xff]
    %v427 = vld [vmem:[#allocation2 + $0x229] sm:$0xff]
    %v428 = vld [vmem:[#allocation2 + $0x231] sm:$0xff]
    %v429 = vld [vmem:[#allocation2 + $0x241] sm:$0xff]
    %v430 = vld [vmem:[#allocation2 + $0x249] sm:$0xff]
    %v431 = vld [vmem:[#allocation2 + $0x259] sm:$0xff]
    %v432 = vld [vmem:[#allocation2 + $0x261] sm:$0xff]
    %v433 = vld [vmem:[#allocation2 + $0x271] sm:$0xff]
    %v434 = vld [vmem:[#allocation2 + $0x279] sm:$0xff]
    %v435 = vld [vmem:[#allocation2 + $0x289] sm:$0xff]
    %v436 = vld [vmem:[#allocation2 + $0x291] sm:$0xff]
    %v437 = vld [vmem:[#allocation2 + $0x2a1] sm:$0xff]
    %v438 = vld [vmem:[#allocation2 + $0x2a9] sm:$0xff]
    %v439 = vld [vmem:[#allocation2 + $0x2b9] sm:$0xff]
    %v440 = vld [vmem:[#allocation2 + $0x2c1] sm:$0xff]
    %v441 = vld [vmem:[#allocation2 + $0x2d1] sm:$0xff]
    %v442 = vld [vmem:[#allocation2 + $0x2d9] sm:$0xff]
    %v443 = vld [vmem:[#allocation2 + $0x2e9] sm:$0xff]
    %v444 = vld [vmem:[#allocation2 + $0x2f1] sm:$0xff]
    %v445 = vld [vmem:[#allocation2 + $0x301] sm:$0xff]
    %v446 = vld [vmem:[#allocation2 + $0x309] sm:$0xff]
    %v447 = vld [vmem:[#allocation2 + $0x319] sm:$0xff]
    %v448 = vld [vmem:[#allocation2 + $0x321] sm:$0xff]
    %s449 = scalar_lea.vmem [#allocation6], 128
    %v450 = vld [vmem:[%s449] sm:$0xff]
    %v451 = vld [vmem:[%s449 + $0x8] sm:$0xff]
    %v452 = vld [vmem:[%s449 + $0x10] sm:$0xff]
    %v453 = vld [vmem:[%s449 + $0x18] sm:$0xff]
    %v454 = vld [vmem:[%s449 + $0x20] sm:$0xff]
    %v455 = vld [vmem:[%s449 + $0x28] sm:$0xff]
    %v456 = vld [vmem:[%s449 + $0x30] sm:$0xff]
    %v457 = vld [vmem:[%s449 + $0x38] sm:$0xff]
    %v458 = vld [vmem:[%s449 + $0x40] sm:$0xff]
    %v459 = vld [vmem:[%s449 + $0x48] sm:$0xff]
    %v460 = vld [vmem:[%s449 + $0x50] sm:$0xff]
    %v461 = vld [vmem:[%s449 + $0x58] sm:$0xff]
    %v462 = vld [vmem:[%s449 + $0x60] sm:$0xff]
    %v463 = vld [vmem:[%s449 + $0x68] sm:$0xff]
    %v464 = vld [vmem:[%s449 + $0x70] sm:$0xff]
    %v465 = vld [vmem:[%s449 + $0x78] sm:$0xff]
    %466 = vmatprep.subr.mxu0 0.0
    %467 = vmatpush1.msra.mxu0 %v450
    %468 = vmatprep.subr.mxu0 0.0
    %469 = vmatpush1.msra.mxu0 %v451
    %470 = vmatprep.subr.mxu0 0.0
    %471 = vmatpush1.msra.mxu0 %v452
    %472 = vmatprep.subr.mxu0 0.0
    %473 = vmatpush1.msra.mxu0 %v453
    %474 = vmatprep.subr.mxu0 0.0
    %475 = vmatpush1.msra.mxu0 %v454
    %476 = vmatprep.subr.mxu0 0.0
    %477 = vmatpush1.msra.mxu0 %v455
    %478 = vmatprep.subr.mxu0 0.0
    %479 = vmatpush1.msra.mxu0 %v456
    %480 = vmatprep.subr.mxu0 0.0
    %481 = vmatpush1.msra.mxu0 %v457
    %482 = vmatprep.subr.mxu0 0.0
    %483 = vmatpush1.msra.mxu0 %v458
    %484 = vmatprep.subr.mxu0 0.0
    %485 = vmatpush1.msra.mxu0 %v459
    %486 = vmatprep.subr.mxu0 0.0
    %487 = vmatpush1.msra.mxu0 %v460
    %488 = vmatprep.subr.mxu0 0.0
    %489 = vmatpush1.msra.mxu0 %v461
    %490 = vmatprep.subr.mxu0 0.0
    %491 = vmatpush1.msra.mxu0 %v462
    %492 = vmatprep.subr.mxu0 0.0
    %493 = vmatpush1.msra.mxu0 %v463
    %494 = vmatprep.subr.mxu0 0.0
    %495 = vmatpush1.msra.mxu0 %v464
    %496 = vmatprep.subr.mxu0 0.0
    %497 = vmatpush1.msra.mxu0 %v465
    %498 = vmatprep.subr.mxu0 0.0
    %499 = vmatpush1.msra.mxu0 0.0
    %500 = vmatprep.subr.mxu0 0.0
    %501 = vmatpush1.msra.mxu0 0.0
    %502 = vmatprep.subr.mxu0 0.0
    %503 = vmatpush1.msra.mxu0 0.0
    %504 = vmatprep.subr.mxu0 0.0
    %505 = vmatpush1.msra.mxu0 0.0
    %506 = vmatprep.subr.mxu0 0.0
    %507 = vmatpush1.msra.mxu0 0.0
    %508 = vmatprep.subr.mxu0 0.0
    %509 = vmatpush1.msra.mxu0 0.0
    %510 = vmatprep.subr.mxu0 0.0
    %511 = vmatpush1.msra.mxu0 0.0
    %512 = vmatprep.subr.mxu0 0.0
    %513 = vmatpush1.msra.mxu0 0.0
    %514 = vmatprep.subr.mxu0 0.0
    %515 = vmatpush1.msra.mxu0 0.0
    %516 = vmatprep.subr.mxu0 0.0
    %517 = vmatpush1.msra.mxu0 0.0
    %518 = vmatprep.subr.mxu0 0.0
    %519 = vmatpush1.msra.mxu0 0.0
    %520 = vmatprep.subr.mxu0 0.0
    %521 = vmatpush1.msra.mxu0 0.0
    %522 = vmatprep.subr.mxu0 0.0
    %523 = vmatpush1.msra.mxu0 0.0
    %524 = vmatprep.subr.mxu0 0.0
    %525 = vmatpush1.msra.mxu0 0.0
    %526 = vmatprep.subr.mxu0 0.0
    %527 = vmatpush1.msra.mxu0 0.0
    %528 = vmatprep.subr.mxu0 0.0
    %529 = vmatpush1.msra.mxu0 0.0
    %530 = vmatprep.mubr.f32.mxu0 0.0
    %531 = vmatmul.mubr.f32.gmra.mrb[0].mxu0 %v385
    %v532 = vpop.f32.mrb[0].mxu0
    %v533 = vadd.f32 0.0, %v532
    %v534 = vpop.f32.mrb[0].mxu0
    %535 = vmatprep.mubr.f32.mxu0 0.0
    %536 = vmatmul.mubr.f32.gmra.mrb[0].mxu0 %v386
    %v537 = vpop.f32.mrb[0].mxu0
    %v538 = vadd.f32 0.0, %v537
    %v539 = vpop.f32.mrb[0].mxu0
    %540 = vmatprep.mubr.f32.mxu0 0.0
    %541 = vmatmul.mubr.f32.gmra.mrb[0].mxu0 %v387
    %v542 = vpop.f32.mrb[0].mxu0
    %v543 = vadd.f32 0.0, %v542
    %v544 = vpop.f32.mrb[0].mxu0
    %545 = vmatprep.mubr.f32.mxu0 0.0
    %546 = vmatmul.mubr.f32.gmra.mrb[0].mxu0 %v388
    %v547 = vpop.f32.mrb[0].mxu0
    %v548 = vadd.f32 0.0, %v547
    %v549 = vpop.f32.mrb[0].mxu0
    %550 = vmatprep.mubr.f32.mxu0 0.0
    %551 = vmatmul.mubr.f32.gmra.mrb[0].mxu0 %v389
    %v552 = vpop.f32.mrb[0].mxu0
    %v553 = vadd.f32 0.0, %v552
    %v554 = vpop.f32.mrb[0].mxu0
    %555 = vmatprep.mubr.f32.mxu0 0.0
    %556 = vmatmul.mubr.f32.gmra.mrb[0].mxu0 %v390
    %v557 = vpop.f32.mrb[0].mxu0
    %v558 = vadd.f32 0.0, %v557
    %v559 = vpop.f32.mrb[0].mxu0
    %560 = vmatprep.mubr.f32.mxu0 0.0
    %561 = vmatmul.mubr.f32.gmra.mrb[0].mxu0 %v391
    %v562 = vpop.f32.mrb[0].mxu0
    %v563 = vadd.f32 0.0, %v562
    %v564 = vpop.f32.mrb[0].mxu0
    %565 = vmatprep.mubr.f32.mxu0 0.0
    %566 = vmatmul.mubr.f32.gmra.mrb[0].mxu0 %v392
    %v567 = vpop.f32.mrb[0].mxu0
    %v568 = vadd.f32 0.0, %v567
    %v569 = vpop.f32.mrb[0].mxu0
    %570 = vmatprep.mubr.f32.mxu0 0.0
    %571 = vmatmul.mubr.f32.gmra.mrb[0].mxu0 %v393
    %v572 = vpop.f32.mrb[0].mxu0
    %v573 = vadd.f32 0.0, %v572
    %v574 = vpop.f32.mrb[0].mxu0
    %575 = vmatprep.mubr.f32.mxu0 0.0
    %576 = vmatmul.mubr.f32.gmra.mrb[0].mxu0 %v394
    %v577 = vpop.f32.mrb[0].mxu0
    %v578 = vadd.f32 0.0, %v577
    %v579 = vpop.f32.mrb[0].mxu0
    %580 = vmatprep.mubr.f32.mxu0 0.0
    %581 = vmatmul.mubr.f32.gmra.mrb[0].mxu0 %v395
    %v582 = vpop.f32.mrb[0].mxu0
    %v583 = vadd.f32 0.0, %v582
    %v584 = vpop.f32.mrb[0].mxu0
    %585 = vmatprep.mubr.f32.mxu0 0.0
    %586 = vmatmul.mubr.f32.gmra.mrb[0].mxu0 %v396
    %v587 = vpop.f32.mrb[0].mxu0
    %v588 = vadd.f32 0.0, %v587
    %v589 = vpop.f32.mrb[0].mxu0
    %590 = vmatprep.mubr.f32.mxu0 0.0
    %591 = vmatmul.mubr.f32.gmra.mrb[0].mxu0 %v397
    %v592 = vpop.f32.mrb[0].mxu0
    %v593 = vadd.f32 0.0, %v592
    %v594 = vpop.f32.mrb[0].mxu0
    %595 = vmatprep.mubr.f32.mxu0 0.0
    %596 = vmatmul.mubr.f32.gmra.mrb[0].mxu0 %v398
    %v597 = vpop.f32.mrb[0].mxu0
    %v598 = vadd.f32 0.0, %v597
    %v599 = vpop.f32.mrb[0].mxu0
    %600 = vmatprep.mubr.f32.mxu0 0.0
    %601 = vmatmul.mubr.f32.gmra.mrb[0].mxu0 %v399
    %v602 = vpop.f32.mrb[0].mxu0
    %v603 = vadd.f32 0.0, %v602
    %v604 = vpop.f32.mrb[0].mxu0
    %605 = vmatprep.mubr.f32.mxu0 0.0
    %606 = vmatmul.mubr.f32.gmra.mrb[0].mxu0 %v400
    %v607 = vpop.f32.mrb[0].mxu0
    %v608 = vadd.f32 0.0, %v607
    %v609 = vpop.f32.mrb[0].mxu0
    %610 = vmatprep.mubr.f32.mxu0 0.0
    %611 = vmatmul.mubr.f32.gmra.mrb[0].mxu0 %v401
    %v612 = vpop.f32.mrb[0].mxu0
    %v613 = vadd.f32 0.0, %v612
    %v614 = vpop.f32.mrb[0].mxu0
    %615 = vmatprep.mubr.f32.mxu0 0.0
    %616 = vmatmul.mubr.f32.gmra.mrb[0].mxu0 %v402
    %v617 = vpop.f32.mrb[0].mxu0
    %v618 = vadd.f32 0.0, %v617
    %v619 = vpop.f32.mrb[0].mxu0
    %620 = vmatprep.mubr.f32.mxu0 0.0
    %621 = vmatmul.mubr.f32.gmra.mrb[0].mxu0 %v403
    %v622 = vpop.f32.mrb[0].mxu0
    %v623 = vadd.f32 0.0, %v622
    %v624 = vpop.f32.mrb[0].mxu0
    %625 = vmatprep.mubr.f32.mxu0 0.0
    %626 = vmatmul.mubr.f32.gmra.mrb[0].mxu0 %v404
    %v627 = vpop.f32.mrb[0].mxu0
    %v628 = vadd.f32 0.0, %v627
    %v629 = vpop.f32.mrb[0].mxu0
    %630 = vmatprep.mubr.f32.mxu0 0.0
    %631 = vmatmul.mubr.f32.gmra.mrb[0].mxu0 %v405
    %v632 = vpop.f32.mrb[0].mxu0
    %v633 = vadd.f32 0.0, %v632
    %v634 = vpop.f32.mrb[0].mxu0
    %635 = vmatprep.mubr.f32.mxu0 0.0
    %636 = vmatmul.mubr.f32.gmra.mrb[0].mxu0 %v406
    %v637 = vpop.f32.mrb[0].mxu0
    %v638 = vadd.f32 0.0, %v637
    %v639 = vpop.f32.mrb[0].mxu0
    %640 = vmatprep.mubr.f32.mxu0 0.0
    %641 = vmatmul.mubr.f32.gmra.mrb[0].mxu0 %v407
    %v642 = vpop.f32.mrb[0].mxu0
    %v643 = vadd.f32 0.0, %v642
    %v644 = vpop.f32.mrb[0].mxu0
    %645 = vmatprep.mubr.f32.mxu0 0.0
    %646 = vmatmul.mubr.f32.gmra.mrb[0].mxu0 %v408
    %v647 = vpop.f32.mrb[0].mxu0
    %v648 = vadd.f32 0.0, %v647
    %v649 = vpop.f32.mrb[0].mxu0
    %650 = vmatprep.mubr.f32.mxu0 0.0
    %651 = vmatmul.mubr.f32.gmra.mrb[0].mxu0 %v409
    %v652 = vpop.f32.mrb[0].mxu0
    %v653 = vadd.f32 0.0, %v652
    %v654 = vpop.f32.mrb[0].mxu0
    %655 = vmatprep.mubr.f32.mxu0 0.0
    %656 = vmatmul.mubr.f32.gmra.mrb[0].mxu0 %v410
    %v657 = vpop.f32.mrb[0].mxu0
    %v658 = vadd.f32 0.0, %v657
    %v659 = vpop.f32.mrb[0].mxu0
    %660 = vmatprep.mubr.f32.mxu0 0.0
    %661 = vmatmul.mubr.f32.gmra.mrb[0].mxu0 %v411
    %v662 = vpop.f32.mrb[0].mxu0
    %v663 = vadd.f32 0.0, %v662
    %v664 = vpop.f32.mrb[0].mxu0
    %665 = vmatprep.mubr.f32.mxu0 0.0
    %666 = vmatmul.mubr.f32.gmra.mrb[0].mxu0 %v412
    %v667 = vpop.f32.mrb[0].mxu0
    %v668 = vadd.f32 0.0, %v667
    %v669 = vpop.f32.mrb[0].mxu0
    %670 = vmatprep.mubr.f32.mxu0 0.0
    %671 = vmatmul.mubr.f32.gmra.mrb[0].mxu0 %v413
    %v672 = vpop.f32.mrb[0].mxu0
    %v673 = vadd.f32 0.0, %v672
    %v674 = vpop.f32.mrb[0].mxu0
    %675 = vmatprep.mubr.f32.mxu0 0.0
    %676 = vmatmul.mubr.f32.gmra.mrb[0].mxu0 %v414
    %v677 = vpop.f32.mrb[0].mxu0
    %v678 = vadd.f32 0.0, %v677
    %v679 = vpop.f32.mrb[0].mxu0
    %680 = vmatprep.mubr.f32.mxu0 0.0
    %681 = vmatmul.mubr.f32.gmra.mrb[0].mxu0 %v415
    %v682 = vpop.f32.mrb[0].mxu0
    %v683 = vadd.f32 0.0, %v682
    %v684 = vpop.f32.mrb[0].mxu0
    %685 = vmatprep.mubr.f32.mxu0 0.0
    %686 = vmatmul.mubr.f32.gmra.mrb[0].mxu0 %v416
    %v687 = vpop.f32.mrb[0].mxu0
    %v688 = vadd.f32 0.0, %v687
    %v689 = vpop.f32.mrb[0].mxu0
    %690 = vmatprep.mubr.f32.mxu0 0.0
    %691 = vmatmul.mubr.f32.gmra.mrb[0].mxu0 %v417
    %v692 = vpop.f32.mrb[0].mxu0
    %v693 = vadd.f32 0.0, %v692
    %v694 = vpop.f32.mrb[0].mxu0
    %695 = vmatprep.mubr.f32.mxu0 0.0
    %696 = vmatmul.mubr.f32.gmra.mrb[0].mxu0 %v418
    %v697 = vpop.f32.mrb[0].mxu0
    %v698 = vadd.f32 0.0, %v697
    %v699 = vpop.f32.mrb[0].mxu0
    %700 = vmatprep.mubr.f32.mxu0 0.0
    %701 = vmatmul.mubr.f32.gmra.mrb[0].mxu0 %v419
    %v702 = vpop.f32.mrb[0].mxu0
    %v703 = vadd.f32 0.0, %v702
    %v704 = vpop.f32.mrb[0].mxu0
    %705 = vmatprep.mubr.f32.mxu0 0.0
    %706 = vmatmul.mubr.f32.gmra.mrb[0].mxu0 %v420
    %v707 = vpop.f32.mrb[0].mxu0
    %v708 = vadd.f32 0.0, %v707
    %v709 = vpop.f32.mrb[0].mxu0
    %710 = vmatprep.mubr.f32.mxu0 0.0
    %711 = vmatmul.mubr.f32.gmra.mrb[0].mxu0 %v421
    %v712 = vpop.f32.mrb[0].mxu0
    %v713 = vadd.f32 0.0, %v712
    %v714 = vpop.f32.mrb[0].mxu0
    %715 = vmatprep.mubr.f32.mxu0 0.0
    %716 = vmatmul.mubr.f32.gmra.mrb[0].mxu0 %v422
    %v717 = vpop.f32.mrb[0].mxu0
    %v718 = vadd.f32 0.0, %v717
    %v719 = vpop.f32.mrb[0].mxu0
    %720 = vmatprep.mubr.f32.mxu0 0.0
    %721 = vmatmul.mubr.f32.gmra.mrb[0].mxu0 %v423
    %v722 = vpop.f32.mrb[0].mxu0
    %v723 = vadd.f32 0.0, %v722
    %v724 = vpop.f32.mrb[0].mxu0
    %725 = vmatprep.mubr.f32.mxu0 0.0
    %726 = vmatmul.mubr.f32.gmra.mrb[0].mxu0 %v424
    %v727 = vpop.f32.mrb[0].mxu0
    %v728 = vadd.f32 0.0, %v727
    %v729 = vpop.f32.mrb[0].mxu0
    %730 = vmatprep.mubr.f32.mxu0 0.0
    %731 = vmatmul.mubr.f32.gmra.mrb[0].mxu0 %v425
    %v732 = vpop.f32.mrb[0].mxu0
    %v733 = vadd.f32 0.0, %v732
    %v734 = vpop.f32.mrb[0].mxu0
    %735 = vmatprep.mubr.f32.mxu0 0.0
    %736 = vmatmul.mubr.f32.gmra.mrb[0].mxu0 %v426
    %v737 = vpop.f32.mrb[0].mxu0
    %v738 = vadd.f32 0.0, %v737
    %v739 = vpop.f32.mrb[0].mxu0
    %740 = vmatprep.mubr.f32.mxu0 0.0
    %741 = vmatmul.mubr.f32.gmra.mrb[0].mxu0 %v427
    %v742 = vpop.f32.mrb[0].mxu0
    %v743 = vadd.f32 0.0, %v742
    %v744 = vpop.f32.mrb[0].mxu0
    %745 = vmatprep.mubr.f32.mxu0 0.0
    %746 = vmatmul.mubr.f32.gmra.mrb[0].mxu0 %v428
    %v747 = vpop.f32.mrb[0].mxu0
    %v748 = vadd.f32 0.0, %v747
    %v749 = vpop.f32.mrb[0].mxu0
    %750 = vmatprep.mubr.f32.mxu0 0.0
    %751 = vmatmul.mubr.f32.gmra.mrb[0].mxu0 %v429
    %v752 = vpop.f32.mrb[0].mxu0
    %v753 = vadd.f32 0.0, %v752
    %v754 = vpop.f32.mrb[0].mxu0
    %755 = vmatprep.mubr.f32.mxu0 0.0
    %756 = vmatmul.mubr.f32.gmra.mrb[0].mxu0 %v430
    %v757 = vpop.f32.mrb[0].mxu0
    %v758 = vadd.f32 0.0, %v757
    %v759 = vpop.f32.mrb[0].mxu0
    %760 = vmatprep.mubr.f32.mxu0 0.0
    %761 = vmatmul.mubr.f32.gmra.mrb[0].mxu0 %v431
    %v762 = vpop.f32.mrb[0].mxu0
    %v763 = vadd.f32 0.0, %v762
    %v764 = vpop.f32.mrb[0].mxu0
    %765 = vmatprep.mubr.f32.mxu0 0.0
    %766 = vmatmul.mubr.f32.gmra.mrb[0].mxu0 %v432
    %v767 = vpop.f32.mrb[0].mxu0
    %v768 = vadd.f32 0.0, %v767
    %v769 = vpop.f32.mrb[0].mxu0
    %770 = vmatprep.mubr.f32.mxu0 0.0
    %771 = vmatmul.mubr.f32.gmra.mrb[0].mxu0 %v433
    %v772 = vpop.f32.mrb[0].mxu0
    %v773 = vadd.f32 0.0, %v772
    %v774 = vpop.f32.mrb[0].mxu0
    %775 = vmatprep.mubr.f32.mxu0 0.0
    %776 = vmatmul.mubr.f32.gmra.mrb[0].mxu0 %v434
    %v777 = vpop.f32.mrb[0].mxu0
    %v778 = vadd.f32 0.0, %v777
    %v779 = vpop.f32.mrb[0].mxu0
    %780 = vmatprep.mubr.f32.mxu0 0.0
    %781 = vmatmul.mubr.f32.gmra.mrb[0].mxu0 %v435
    %v782 = vpop.f32.mrb[0].mxu0
    %v783 = vadd.f32 0.0, %v782
    %v784 = vpop.f32.mrb[0].mxu0
    %785 = vmatprep.mubr.f32.mxu0 0.0
    %786 = vmatmul.mubr.f32.gmra.mrb[0].mxu0 %v436
    %v787 = vpop.f32.mrb[0].mxu0
    %v788 = vadd.f32 0.0, %v787
    %v789 = vpop.f32.mrb[0].mxu0
    %790 = vmatprep.mubr.f32.mxu0 0.0
    %791 = vmatmul.mubr.f32.gmra.mrb[0].mxu0 %v437
    %v792 = vpop.f32.mrb[0].mxu0
    %v793 = vadd.f32 0.0, %v792
    %v794 = vpop.f32.mrb[0].mxu0
    %795 = vmatprep.mubr.f32.mxu0 0.0
    %796 = vmatmul.mubr.f32.gmra.mrb[0].mxu0 %v438
    %v797 = vpop.f32.mrb[0].mxu0
    %v798 = vadd.f32 0.0, %v797
    %v799 = vpop.f32.mrb[0].mxu0
    %800 = vmatprep.mubr.f32.mxu0 0.0
    %801 = vmatmul.mubr.f32.gmra.mrb[0].mxu0 %v439
    %v802 = vpop.f32.mrb[0].mxu0
    %v803 = vadd.f32 0.0, %v802
    %v804 = vpop.f32.mrb[0].mxu0
    %805 = vmatprep.mubr.f32.mxu0 0.0
    %806 = vmatmul.mubr.f32.gmra.mrb[0].mxu0 %v440
    %v807 = vpop.f32.mrb[0].mxu0
    %v808 = vadd.f32 0.0, %v807
    %v809 = vpop.f32.mrb[0].mxu0
    %810 = vmatprep.mubr.f32.mxu0 0.0
    %811 = vmatmul.mubr.f32.gmra.mrb[0].mxu0 %v441
    %v812 = vpop.f32.mrb[0].mxu0
    %v813 = vadd.f32 0.0, %v812
    %v814 = vpop.f32.mrb[0].mxu0
    %815 = vmatprep.mubr.f32.mxu0 0.0
    %816 = vmatmul.mubr.f32.gmra.mrb[0].mxu0 %v442
    %v817 = vpop.f32.mrb[0].mxu0
    %v818 = vadd.f32 0.0, %v817
    %v819 = vpop.f32.mrb[0].mxu0
    %820 = vmatprep.mubr.f32.mxu0 0.0
    %821 = vmatmul.mubr.f32.gmra.mrb[0].mxu0 %v443
    %v822 = vpop.f32.mrb[0].mxu0
    %v823 = vadd.f32 0.0, %v822
    %v824 = vpop.f32.mrb[0].mxu0
    %825 = vmatprep.mubr.f32.mxu0 0.0
    %826 = vmatmul.mubr.f32.gmra.mrb[0].mxu0 %v444
    %v827 = vpop.f32.mrb[0].mxu0
    %v828 = vadd.f32 0.0, %v827
    %v829 = vpop.f32.mrb[0].mxu0
    %830 = vmatprep.mubr.f32.mxu0 0.0
    %831 = vmatmul.mubr.f32.gmra.mrb[0].mxu0 %v445
    %v832 = vpop.f32.mrb[0].mxu0
    %v833 = vadd.f32 0.0, %v832
    %v834 = vpop.f32.mrb[0].mxu0
    %835 = vmatprep.mubr.f32.mxu0 0.0
    %836 = vmatmul.mubr.f32.gmra.mrb[0].mxu0 %v446
    %v837 = vpop.f32.mrb[0].mxu0
    %v838 = vadd.f32 0.0, %v837
    %v839 = vpop.f32.mrb[0].mxu0
    %840 = vmatprep.mubr.f32.mxu0 0.0
    %841 = vmatmul.mubr.f32.gmra.mrb[0].mxu0 %v447
    %v842 = vpop.f32.mrb[0].mxu0
    %v843 = vadd.f32 0.0, %v842
    %v844 = vpop.f32.mrb[0].mxu0
    %845 = vmatprep.mubr.f32.mxu0 0.0
    %846 = vmatmul.mubr.f32.gmra.mrb[0].mxu0 %v448
    %v847 = vpop.f32.mrb[0].mxu0
    %v848 = vadd.f32 0.0, %v847
    %v849 = vpop.f32.mrb[0].mxu0
    %850 = vdwg.mxu0
    %851 = vmatprep.subr.mxu0 0.0
    %852 = vmatpush1.msra.mxu0 %v369
    %853 = vmatprep.subr.mxu0 0.0
    %854 = vmatpush1.msra.mxu0 %v370
    %855 = vmatprep.subr.mxu0 0.0
    %856 = vmatpush1.msra.mxu0 %v371
    %857 = vmatprep.subr.mxu0 0.0
    %858 = vmatpush1.msra.mxu0 %v372
    %859 = vmatprep.subr.mxu0 0.0
    %860 = vmatpush1.msra.mxu0 %v373
    %861 = vmatprep.subr.mxu0 0.0
    %862 = vmatpush1.msra.mxu0 %v374
    %863 = vmatprep.subr.mxu0 0.0
    %864 = vmatpush1.msra.mxu0 %v375
    %865 = vmatprep.subr.mxu0 0.0
    %866 = vmatpush1.msra.mxu0 %v376
    %867 = vmatprep.subr.mxu0 0.0
    %868 = vmatpush1.msra.mxu0 %v377
    %869 = vmatprep.subr.mxu0 0.0
    %870 = vmatpush1.msra.mxu0 %v378
    %871 = vmatprep.subr.mxu0 0.0
    %872 = vmatpush1.msra.mxu0 %v379
    %873 = vmatprep.subr.mxu0 0.0
    %874 = vmatpush1.msra.mxu0 %v380
    %875 = vmatprep.subr.mxu0 0.0
    %876 = vmatpush1.msra.mxu0 %v381
    %877 = vmatprep.subr.mxu0 0.0
    %878 = vmatpush1.msra.mxu0 %v382
    %879 = vmatprep.subr.mxu0 0.0
    %880 = vmatpush1.msra.mxu0 %v383
    %881 = vmatprep.subr.mxu0 0.0
    %882 = vmatpush1.msra.mxu0 %v384
    %883 = vmatprep.subr.mxu0 0.0
    %884 = vmatpush1.msra.mxu0 0.0
    %885 = vmatprep.subr.mxu0 0.0
    %886 = vmatpush1.msra.mxu0 0.0
    %887 = vmatprep.subr.mxu0 0.0
    %888 = vmatpush1.msra.mxu0 0.0
    %889 = vmatprep.subr.mxu0 0.0
    %890 = vmatpush1.msra.mxu0 0.0
    %891 = vmatprep.subr.mxu0 0.0
    %892 = vmatpush1.msra.mxu0 0.0
    %893 = vmatprep.subr.mxu0 0.0
    %894 = vmatpush1.msra.mxu0 0.0
    %895 = vmatprep.subr.mxu0 0.0
    %896 = vmatpush1.msra.mxu0 0.0
    %897 = vmatprep.subr.mxu0 0.0
    %898 = vmatpush1.msra.mxu0 0.0
    %899 = vmatprep.subr.mxu0 0.0
    %900 = vmatpush1.msra.mxu0 0.0
    %901 = vmatprep.subr.mxu0 0.0
    %902 = vmatpush1.msra.mxu0 0.0
    %903 = vmatprep.subr.mxu0 0.0
    %904 = vmatpush1.msra.mxu0 0.0
    %905 = vmatprep.subr.mxu0 0.0
    %906 = vmatpush1.msra.mxu0 0.0
    %907 = vmatprep.subr.mxu0 0.0
    %908 = vmatpush1.msra.mxu0 0.0
    %909 = vmatprep.subr.mxu0 0.0
    %910 = vmatpush1.msra.mxu0 0.0
    %911 = vmatprep.subr.mxu0 0.0
    %912 = vmatpush1.msra.mxu0 0.0
    %913 = vmatprep.subr.mxu0 0.0
    %914 = vmatpush1.msra.mxu0 0.0
    %915 = vmatprep.mubr.f32.mxu0 0.0
    %916 = vmatmul.mubr.f32.gmra.mrb[0].mxu0 %v305
    %v917 = vpop.f32.mrb[0].mxu0
    %v918 = vadd.f32 %v533, %v917
    %v919 = vpop.f32.mrb[0].mxu0
    %920 = vmatprep.mubr.f32.mxu0 0.0
    %921 = vmatmul.mubr.f32.gmra.mrb[0].mxu0 %v306
    %v922 = vpop.f32.mrb[0].mxu0
    %v923 = vadd.f32 %v538, %v922
    %v924 = vpop.f32.mrb[0].mxu0
    %925 = vmatprep.mubr.f32.mxu0 0.0
    %926 = vmatmul.mubr.f32.gmra.mrb[0].mxu0 %v307
    %v927 = vpop.f32.mrb[0].mxu0
    %v928 = vadd.f32 %v543, %v927
    %v929 = vpop.f32.mrb[0].mxu0
    %930 = vmatprep.mubr.f32.mxu0 0.0
    %931 = vmatmul.mubr.f32.gmra.mrb[0].mxu0 %v308
    %v932 = vpop.f32.mrb[0].mxu0
    %v933 = vadd.f32 %v548, %v932
    %v934 = vpop.f32.mrb[0].mxu0
    %935 = vmatprep.mubr.f32.mxu0 0.0
    %936 = vmatmul.mubr.f32.gmra.mrb[0].mxu0 %v309
    %v937 = vpop.f32.mrb[0].mxu0
    %v938 = vadd.f32 %v553, %v937
    %v939 = vpop.f32.mrb[0].mxu0
    %940 = vmatprep.mubr.f32.mxu0 0.0
    %941 = vmatmul.mubr.f32.gmra.mrb[0].mxu0 %v310
    %v942 = vpop.f32.mrb[0].mxu0
    %v943 = vadd.f32 %v558, %v942
    %v944 = vpop.f32.mrb[0].mxu0
    %945 = vmatprep.mubr.f32.mxu0 0.0
    %946 = vmatmul.mubr.f32.gmra.mrb[0].mxu0 %v311
    %v947 = vpop.f32.mrb[0].mxu0
    %v948 = vadd.f32 %v563, %v947
    %v949 = vpop.f32.mrb[0].mxu0
    %950 = vmatprep.mubr.f32.mxu0 0.0
    %951 = vmatmul.mubr.f32.gmra.mrb[0].mxu0 %v312
    %v952 = vpop.f32.mrb[0].mxu0
    %v953 = vadd.f32 %v568, %v952
    %v954 = vpop.f32.mrb[0].mxu0
    %955 = vmatprep.mubr.f32.mxu0 0.0
    %956 = vmatmul.mubr.f32.gmra.mrb[0].mxu0 %v313
    %v957 = vpop.f32.mrb[0].mxu0
    %v958 = vadd.f32 %v573, %v957
    %v959 = vpop.f32.mrb[0].mxu0
    %960 = vmatprep.mubr.f32.mxu0 0.0
    %961 = vmatmul.mubr.f32.gmra.mrb[0].mxu0 %v314
    %v962 = vpop.f32.mrb[0].mxu0
    %v963 = vadd.f32 %v578, %v962
    %v964 = vpop.f32.mrb[0].mxu0
    %965 = vmatprep.mubr.f32.mxu0 0.0
    %966 = vmatmul.mubr.f32.gmra.mrb[0].mxu0 %v315
    %v967 = vpop.f32.mrb[0].mxu0
    %v968 = vadd.f32 %v583, %v967
    %v969 = vpop.f32.mrb[0].mxu0
    %970 = vmatprep.mubr.f32.mxu0 0.0
    %971 = vmatmul.mubr.f32.gmra.mrb[0].mxu0 %v316
    %v972 = vpop.f32.mrb[0].mxu0
    %v973 = vadd.f32 %v588, %v972
    %v974 = vpop.f32.mrb[0].mxu0
    %975 = vmatprep.mubr.f32.mxu0 0.0
    %976 = vmatmul.mubr.f32.gmra.mrb[0].mxu0 %v317
    %v977 = vpop.f32.mrb[0].mxu0
    %v978 = vadd.f32 %v593, %v977
    %v979 = vpop.f32.mrb[0].mxu0
    %980 = vmatprep.mubr.f32.mxu0 0.0
    %981 = vmatmul.mubr.f32.gmra.mrb[0].mxu0 %v318
    %v982 = vpop.f32.mrb[0].mxu0
    %v983 = vadd.f32 %v598, %v982
    %v984 = vpop.f32.mrb[0].mxu0
    %985 = vmatprep.mubr.f32.mxu0 0.0
    %986 = vmatmul.mubr.f32.gmra.mrb[0].mxu0 %v319
    %v987 = vpop.f32.mrb[0].mxu0
    %v988 = vadd.f32 %v603, %v987
    %v989 = vpop.f32.mrb[0].mxu0
    %990 = vmatprep.mubr.f32.mxu0 0.0
    %991 = vmatmul.mubr.f32.gmra.mrb[0].mxu0 %v320
    %v992 = vpop.f32.mrb[0].mxu0
    %v993 = vadd.f32 %v608, %v992
    %v994 = vpop.f32.mrb[0].mxu0
    %995 = vmatprep.mubr.f32.mxu0 0.0
    %996 = vmatmul.mubr.f32.gmra.mrb[0].mxu0 %v321
    %v997 = vpop.f32.mrb[0].mxu0
    %v998 = vadd.f32 %v613, %v997
    %v999 = vpop.f32.mrb[0].mxu0
    %1000 = vmatprep.mubr.f32.mxu0 0.0
    %1001 = vmatmul.mubr.f32.gmra.mrb[0].mxu0 %v322
    %v1002 = vpop.f32.mrb[0].mxu0
    %v1003 = vadd.f32 %v618, %v1002
    %v1004 = vpop.f32.mrb[0].mxu0
    %1005 = vmatprep.mubr.f32.mxu0 0.0
    %1006 = vmatmul.mubr.f32.gmra.mrb[0].mxu0 %v323
    %v1007 = vpop.f32.mrb[0].mxu0
    %v1008 = vadd.f32 %v623, %v1007
    %v1009 = vpop.f32.mrb[0].mxu0
    %1010 = vmatprep.mubr.f32.mxu0 0.0
    %1011 = vmatmul.mubr.f32.gmra.mrb[0].mxu0 %v324
    %v1012 = vpop.f32.mrb[0].mxu0
    %v1013 = vadd.f32 %v628, %v1012
    %v1014 = vpop.f32.mrb[0].mxu0
    %1015 = vmatprep.mubr.f32.mxu0 0.0
    %1016 = vmatmul.mubr.f32.gmra.mrb[0].mxu0 %v325
    %v1017 = vpop.f32.mrb[0].mxu0
    %v1018 = vadd.f32 %v633, %v1017
    %v1019 = vpop.f32.mrb[0].mxu0
    %1020 = vmatprep.mubr.f32.mxu0 0.0
    %1021 = vmatmul.mubr.f32.gmra.mrb[0].mxu0 %v326
    %v1022 = vpop.f32.mrb[0].mxu0
    %v1023 = vadd.f32 %v638, %v1022
    %v1024 = vpop.f32.mrb[0].mxu0
    %1025 = vmatprep.mubr.f32.mxu0 0.0
    %1026 = vmatmul.mubr.f32.gmra.mrb[0].mxu0 %v327
    %v1027 = vpop.f32.mrb[0].mxu0
    %v1028 = vadd.f32 %v643, %v1027
    %v1029 = vpop.f32.mrb[0].mxu0
    %1030 = vmatprep.mubr.f32.mxu0 0.0
    %1031 = vmatmul.mubr.f32.gmra.mrb[0].mxu0 %v328
    %v1032 = vpop.f32.mrb[0].mxu0
    %v1033 = vadd.f32 %v648, %v1032
    %v1034 = vpop.f32.mrb[0].mxu0
    %1035 = vmatprep.mubr.f32.mxu0 0.0
    %1036 = vmatmul.mubr.f32.gmra.mrb[0].mxu0 %v329
    %v1037 = vpop.f32.mrb[0].mxu0
    %v1038 = vadd.f32 %v653, %v1037
    %v1039 = vpop.f32.mrb[0].mxu0
    %1040 = vmatprep.mubr.f32.mxu0 0.0
    %1041 = vmatmul.mubr.f32.gmra.mrb[0].mxu0 %v330
    %v1042 = vpop.f32.mrb[0].mxu0
    %v1043 = vadd.f32 %v658, %v1042
    %v1044 = vpop.f32.mrb[0].mxu0
    %1045 = vmatprep.mubr.f32.mxu0 0.0
    %1046 = vmatmul.mubr.f32.gmra.mrb[0].mxu0 %v331
    %v1047 = vpop.f32.mrb[0].mxu0
    %v1048 = vadd.f32 %v663, %v1047
    %v1049 = vpop.f32.mrb[0].mxu0
    %1050 = vmatprep.mubr.f32.mxu0 0.0
    %1051 = vmatmul.mubr.f32.gmra.mrb[0].mxu0 %v332
    %v1052 = vpop.f32.mrb[0].mxu0
    %v1053 = vadd.f32 %v668, %v1052
    %v1054 = vpop.f32.mrb[0].mxu0
    %1055 = vmatprep.mubr.f32.mxu0 0.0
    %1056 = vmatmul.mubr.f32.gmra.mrb[0].mxu0 %v333
    %v1057 = vpop.f32.mrb[0].mxu0
    %v1058 = vadd.f32 %v673, %v1057
    %v1059 = vpop.f32.mrb[0].mxu0
    %1060 = vmatprep.mubr.f32.mxu0 0.0
    %1061 = vmatmul.mubr.f32.gmra.mrb[0].mxu0 %v334
    %v1062 = vpop.f32.mrb[0].mxu0
    %v1063 = vadd.f32 %v678, %v1062
    %v1064 = vpop.f32.mrb[0].mxu0
    %1065 = vmatprep.mubr.f32.mxu0 0.0
    %1066 = vmatmul.mubr.f32.gmra.mrb[0].mxu0 %v335
    %v1067 = vpop.f32.mrb[0].mxu0
    %v1068 = vadd.f32 %v683, %v1067
    %v1069 = vpop.f32.mrb[0].mxu0
    %1070 = vmatprep.mubr.f32.mxu0 0.0
    %1071 = vmatmul.mubr.f32.gmra.mrb[0].mxu0 %v336
    %v1072 = vpop.f32.mrb[0].mxu0
    %v1073 = vadd.f32 %v688, %v1072
    %v1074 = vpop.f32.mrb[0].mxu0
    %1075 = vmatprep.mubr.f32.mxu0 0.0
    %1076 = vmatmul.mubr.f32.gmra.mrb[0].mxu0 %v337
    %v1077 = vpop.f32.mrb[0].mxu0
    %v1078 = vadd.f32 %v693, %v1077
    %v1079 = vpop.f32.mrb[0].mxu0
    %1080 = vmatprep.mubr.f32.mxu0 0.0
    %1081 = vmatmul.mubr.f32.gmra.mrb[0].mxu0 %v338
    %v1082 = vpop.f32.mrb[0].mxu0
    %v1083 = vadd.f32 %v698, %v1082
    %v1084 = vpop.f32.mrb[0].mxu0
    %1085 = vmatprep.mubr.f32.mxu0 0.0
    %1086 = vmatmul.mubr.f32.gmra.mrb[0].mxu0 %v339
    %v1087 = vpop.f32.mrb[0].mxu0
    %v1088 = vadd.f32 %v703, %v1087
    %v1089 = vpop.f32.mrb[0].mxu0
    %1090 = vmatprep.mubr.f32.mxu0 0.0
    %1091 = vmatmul.mubr.f32.gmra.mrb[0].mxu0 %v340
    %v1092 = vpop.f32.mrb[0].mxu0
    %v1093 = vadd.f32 %v708, %v1092
    %v1094 = vpop.f32.mrb[0].mxu0
    %1095 = vmatprep.mubr.f32.mxu0 0.0
    %1096 = vmatmul.mubr.f32.gmra.mrb[0].mxu0 %v341
    %v1097 = vpop.f32.mrb[0].mxu0
    %v1098 = vadd.f32 %v713, %v1097
    %v1099 = vpop.f32.mrb[0].mxu0
    %1100 = vmatprep.mubr.f32.mxu0 0.0
    %1101 = vmatmul.mubr.f32.gmra.mrb[0].mxu0 %v342
    %v1102 = vpop.f32.mrb[0].mxu0
    %v1103 = vadd.f32 %v718, %v1102
    %v1104 = vpop.f32.mrb[0].mxu0
    %1105 = vmatprep.mubr.f32.mxu0 0.0
    %1106 = vmatmul.mubr.f32.gmra.mrb[0].mxu0 %v343
    %v1107 = vpop.f32.mrb[0].mxu0
    %v1108 = vadd.f32 %v723, %v1107
    %v1109 = vpop.f32.mrb[0].mxu0
    %1110 = vmatprep.mubr.f32.mxu0 0.0
    %1111 = vmatmul.mubr.f32.gmra.mrb[0].mxu0 %v344
    %v1112 = vpop.f32.mrb[0].mxu0
    %v1113 = vadd.f32 %v728, %v1112
    %v1114 = vpop.f32.mrb[0].mxu0
    %1115 = vmatprep.mubr.f32.mxu0 0.0
    %1116 = vmatmul.mubr.f32.gmra.mrb[0].mxu0 %v345
    %v1117 = vpop.f32.mrb[0].mxu0
    %v1118 = vadd.f32 %v733, %v1117
    %v1119 = vpop.f32.mrb[0].mxu0
    %1120 = vmatprep.mubr.f32.mxu0 0.0
    %1121 = vmatmul.mubr.f32.gmra.mrb[0].mxu0 %v346
    %v1122 = vpop.f32.mrb[0].mxu0
    %v1123 = vadd.f32 %v738, %v1122
    %v1124 = vpop.f32.mrb[0].mxu0
    %1125 = vmatprep.mubr.f32.mxu0 0.0
    %1126 = vmatmul.mubr.f32.gmra.mrb[0].mxu0 %v347
    %v1127 = vpop.f32.mrb[0].mxu0
    %v1128 = vadd.f32 %v743, %v1127
    %v1129 = vpop.f32.mrb[0].mxu0
    %1130 = vmatprep.mubr.f32.mxu0 0.0
    %1131 = vmatmul.mubr.f32.gmra.mrb[0].mxu0 %v348
    %v1132 = vpop.f32.mrb[0].mxu0
    %v1133 = vadd.f32 %v748, %v1132
    %v1134 = vpop.f32.mrb[0].mxu0
    %1135 = vmatprep.mubr.f32.mxu0 0.0
    %1136 = vmatmul.mubr.f32.gmra.mrb[0].mxu0 %v349
    %v1137 = vpop.f32.mrb[0].mxu0
    %v1138 = vadd.f32 %v753, %v1137
    %v1139 = vpop.f32.mrb[0].mxu0
    %1140 = vmatprep.mubr.f32.mxu0 0.0
    %1141 = vmatmul.mubr.f32.gmra.mrb[0].mxu0 %v350
    %v1142 = vpop.f32.mrb[0].mxu0
    %v1143 = vadd.f32 %v758, %v1142
    %v1144 = vpop.f32.mrb[0].mxu0
    %1145 = vmatprep.mubr.f32.mxu0 0.0
    %1146 = vmatmul.mubr.f32.gmra.mrb[0].mxu0 %v351
    %v1147 = vpop.f32.mrb[0].mxu0
    %v1148 = vadd.f32 %v763, %v1147
    %v1149 = vpop.f32.mrb[0].mxu0
    %1150 = vmatprep.mubr.f32.mxu0 0.0
    %1151 = vmatmul.mubr.f32.gmra.mrb[0].mxu0 %v352
    %v1152 = vpop.f32.mrb[0].mxu0
    %v1153 = vadd.f32 %v768, %v1152
    %v1154 = vpop.f32.mrb[0].mxu0
    %1155 = vmatprep.mubr.f32.mxu0 0.0
    %1156 = vmatmul.mubr.f32.gmra.mrb[0].mxu0 %v353
    %v1157 = vpop.f32.mrb[0].mxu0
    %v1158 = vadd.f32 %v773, %v1157
    %v1159 = vpop.f32.mrb[0].mxu0
    %1160 = vmatprep.mubr.f32.mxu0 0.0
    %1161 = vmatmul.mubr.f32.gmra.mrb[0].mxu0 %v354
    %v1162 = vpop.f32.mrb[0].mxu0
    %v1163 = vadd.f32 %v778, %v1162
    %v1164 = vpop.f32.mrb[0].mxu0
    %1165 = vmatprep.mubr.f32.mxu0 0.0
    %1166 = vmatmul.mubr.f32.gmra.mrb[0].mxu0 %v355
    %v1167 = vpop.f32.mrb[0].mxu0
    %v1168 = vadd.f32 %v783, %v1167
    %v1169 = vpop.f32.mrb[0].mxu0
    %1170 = vmatprep.mubr.f32.mxu0 0.0
    %1171 = vmatmul.mubr.f32.gmra.mrb[0].mxu0 %v356
    %v1172 = vpop.f32.mrb[0].mxu0
    %v1173 = vadd.f32 %v788, %v1172
    %v1174 = vpop.f32.mrb[0].mxu0
    %1175 = vmatprep.mubr.f32.mxu0 0.0
    %1176 = vmatmul.mubr.f32.gmra.mrb[0].mxu0 %v357
    %v1177 = vpop.f32.mrb[0].mxu0
    %v1178 = vadd.f32 %v793, %v1177
    %v1179 = vpop.f32.mrb[0].mxu0
    %1180 = vmatprep.mubr.f32.mxu0 0.0
    %1181 = vmatmul.mubr.f32.gmra.mrb[0].mxu0 %v358
    %v1182 = vpop.f32.mrb[0].mxu0
    %v1183 = vadd.f32 %v798, %v1182
    %v1184 = vpop.f32.mrb[0].mxu0
    %1185 = vmatprep.mubr.f32.mxu0 0.0
    %1186 = vmatmul.mubr.f32.gmra.mrb[0].mxu0 %v359
    %v1187 = vpop.f32.mrb[0].mxu0
    %v1188 = vadd.f32 %v803, %v1187
    %v1189 = vpop.f32.mrb[0].mxu0
    %1190 = vmatprep.mubr.f32.mxu0 0.0
    %1191 = vmatmul.mubr.f32.gmra.mrb[0].mxu0 %v360
    %v1192 = vpop.f32.mrb[0].mxu0
    %v1193 = vadd.f32 %v808, %v1192
    %v1194 = vpop.f32.mrb[0].mxu0
    %1195 = vmatprep.mubr.f32.mxu0 0.0
    %1196 = vmatmul.mubr.f32.gmra.mrb[0].mxu0 %v361
    %v1197 = vpop.f32.mrb[0].mxu0
    %v1198 = vadd.f32 %v813, %v1197
    %v1199 = vpop.f32.mrb[0].mxu0
    %1200 = vmatprep.mubr.f32.mxu0 0.0
    %1201 = vmatmul.mubr.f32.gmra.mrb[0].mxu0 %v362
    %v1202 = vpop.f32.mrb[0].mxu0
    %v1203 = vadd.f32 %v818, %v1202
    %v1204 = vpop.f32.mrb[0].mxu0
    %1205 = vmatprep.mubr.f32.mxu0 0.0
    %1206 = vmatmul.mubr.f32.gmra.mrb[0].mxu0 %v363
    %v1207 = vpop.f32.mrb[0].mxu0
    %v1208 = vadd.f32 %v823, %v1207
    %v1209 = vpop.f32.mrb[0].mxu0
    %1210 = vmatprep.mubr.f32.mxu0 0.0
    %1211 = vmatmul.mubr.f32.gmra.mrb[0].mxu0 %v364
    %v1212 = vpop.f32.mrb[0].mxu0
    %v1213 = vadd.f32 %v828, %v1212
    %v1214 = vpop.f32.mrb[0].mxu0
    %1215 = vmatprep.mubr.f32.mxu0 0.0
    %1216 = vmatmul.mubr.f32.gmra.mrb[0].mxu0 %v365
    %v1217 = vpop.f32.mrb[0].mxu0
    %v1218 = vadd.f32 %v833, %v1217
    %v1219 = vpop.f32.mrb[0].mxu0
    %1220 = vmatprep.mubr.f32.mxu0 0.0
    %1221 = vmatmul.mubr.f32.gmra.mrb[0].mxu0 %v366
    %v1222 = vpop.f32.mrb[0].mxu0
    %v1223 = vadd.f32 %v838, %v1222
    %v1224 = vpop.f32.mrb[0].mxu0
    %1225 = vmatprep.mubr.f32.mxu0 0.0
    %1226 = vmatmul.mubr.f32.gmra.mrb[0].mxu0 %v367
    %v1227 = vpop.f32.mrb[0].mxu0
    %v1228 = vadd.f32 %v843, %v1227
    %v1229 = vpop.f32.mrb[0].mxu0
    %1230 = vmatprep.mubr.f32.mxu0 0.0
    %1231 = vmatmul.mubr.f32.gmra.mrb[0].mxu0 %v368
    %v1232 = vpop.f32.mrb[0].mxu0
    %v1233 = vadd.f32 %v848, %v1232
    %v1234 = vpop.f32.mrb[0].mxu0
    %1235 = vdwg.mxu0
    %v1236 = vld [vmem:[#allocation2 + $0x2] sm:$0xff]
    %v1237 = vld [vmem:[#allocation2 + $0xa] sm:$0xff]
    %v1238 = vld [vmem:[#allocation2 + $0x1a] sm:$0xff]
    %v1239 = vld [vmem:[#allocation2 + $0x22] sm:$0xff]
    %v1240 = vld [vmem:[#allocation2 + $0x32] sm:$0xff]
    %v1241 = vld [vmem:[#allocation2 + $0x3a] sm:$0xff]
    %v1242 = vld [vmem:[#allocation2 + $0x4a] sm:$0xff]
    %v1243 = vld [vmem:[#allocation2 + $0x52] sm:$0xff]
    %v1244 = vld [vmem:[#allocation2 + $0x62] sm:$0xff]
    %v1245 = vld [vmem:[#allocation2 + $0x6a] sm:$0xff]
    %v1246 = vld [vmem:[#allocation2 + $0x7a] sm:$0xff]
    %v1247 = vld [vmem:[#allocation2 + $0x82] sm:$0xff]
    %v1248 = vld [vmem:[#allocation2 + $0x92] sm:$0xff]
    %v1249 = vld [vmem:[#allocation2 + $0x9a] sm:$0xff]
    %v1250 = vld [vmem:[#allocation2 + $0xaa] sm:$0xff]
    %v1251 = vld [vmem:[#allocation2 + $0xb2] sm:$0xff]
    %v1252 = vld [vmem:[#allocation2 + $0xc2] sm:$0xff]
    %v1253 = vld [vmem:[#allocation2 + $0xca] sm:$0xff]
    %v1254 = vld [vmem:[#allocation2 + $0xda] sm:$0xff]
    %v1255 = vld [vmem:[#allocation2 + $0xe2] sm:$0xff]
    %v1256 = vld [vmem:[#allocation2 + $0xf2] sm:$0xff]
    %v1257 = vld [vmem:[#allocation2 + $0xfa] sm:$0xff]
    %v1258 = vld [vmem:[#allocation2 + $0x10a] sm:$0xff]
    %v1259 = vld [vmem:[#allocation2 + $0x112] sm:$0xff]
    %v1260 = vld [vmem:[#allocation2 + $0x122] sm:$0xff]
    %v1261 = vld [vmem:[#allocation2 + $0x12a] sm:$0xff]
    %v1262 = vld [vmem:[#allocation2 + $0x13a] sm:$0xff]
    %v1263 = vld [vmem:[#allocation2 + $0x142] sm:$0xff]
    %v1264 = vld [vmem:[#allocation2 + $0x152] sm:$0xff]
    %v1265 = vld [vmem:[#allocation2 + $0x15a] sm:$0xff]
    %v1266 = vld [vmem:[#allocation2 + $0x16a] sm:$0xff]
    %v1267 = vld [vmem:[#allocation2 + $0x172] sm:$0xff]
    %v1268 = vld [vmem:[#allocation2 + $0x1b2] sm:$0xff]
    %v1269 = vld [vmem:[#allocation2 + $0x1ba] sm:$0xff]
    %v1270 = vld [vmem:[#allocation2 + $0x1ca] sm:$0xff]
    %v1271 = vld [vmem:[#allocation2 + $0x1d2] sm:$0xff]
    %v1272 = vld [vmem:[#allocation2 + $0x1e2] sm:$0xff]
    %v1273 = vld [vmem:[#allocation2 + $0x1ea] sm:$0xff]
    %v1274 = vld [vmem:[#allocation2 + $0x1fa] sm:$0xff]
    %v1275 = vld [vmem:[#allocation2 + $0x202] sm:$0xff]
    %v1276 = vld [vmem:[#allocation2 + $0x212] sm:$0xff]
    %v1277 = vld [vmem:[#allocation2 + $0x21a] sm:$0xff]
    %v1278 = vld [vmem:[#allocation2 + $0x22a] sm:$0xff]
    %v1279 = vld [vmem:[#allocation2 + $0x232] sm:$0xff]
    %v1280 = vld [vmem:[#allocation2 + $0x242] sm:$0xff]
    %v1281 = vld [vmem:[#allocation2 + $0x24a] sm:$0xff]
    %v1282 = vld [vmem:[#allocation2 + $0x25a] sm:$0xff]
    %v1283 = vld [vmem:[#allocation2 + $0x262] sm:$0xff]
    %v1284 = vld [vmem:[#allocation2 + $0x272] sm:$0xff]
    %v1285 = vld [vmem:[#allocation2 + $0x27a] sm:$0xff]
    %v1286 = vld [vmem:[#allocation2 + $0x28a] sm:$0xff]
    %v1287 = vld [vmem:[#allocation2 + $0x292] sm:$0xff]
    %v1288 = vld [vmem:[#allocation2 + $0x2a2] sm:$0xff]
    %v1289 = vld [vmem:[#allocation2 + $0x2aa] sm:$0xff]
    %v1290 = vld [vmem:[#allocation2 + $0x2ba] sm:$0xff]
    %v1291 = vld [vmem:[#allocation2 + $0x2c2] sm:$0xff]
    %v1292 = vld [vmem:[#allocation2 + $0x2d2] sm:$0xff]
    %v1293 = vld [vmem:[#allocation2 + $0x2da] sm:$0xff]
    %v1294 = vld [vmem:[#allocation2 + $0x2ea] sm:$0xff]
    %v1295 = vld [vmem:[#allocation2 + $0x2f2] sm:$0xff]
    %v1296 = vld [vmem:[#allocation2 + $0x302] sm:$0xff]
    %v1297 = vld [vmem:[#allocation2 + $0x30a] sm:$0xff]
    %v1298 = vld [vmem:[#allocation2 + $0x31a] sm:$0xff]
    %v1299 = vld [vmem:[#allocation2 + $0x322] sm:$0xff]
    %s1300 = scalar_lea.vmem [#allocation6], 256
    %v1301 = vld [vmem:[%s1300] sm:$0xff]
    %v1302 = vld [vmem:[%s1300 + $0x8] sm:$0xff]
    %v1303 = vld [vmem:[%s1300 + $0x10] sm:$0xff]
    %v1304 = vld [vmem:[%s1300 + $0x18] sm:$0xff]
    %v1305 = vld [vmem:[%s1300 + $0x20] sm:$0xff]
    %v1306 = vld [vmem:[%s1300 + $0x28] sm:$0xff]
    %v1307 = vld [vmem:[%s1300 + $0x30] sm:$0xff]
    %v1308 = vld [vmem:[%s1300 + $0x38] sm:$0xff]
    %v1309 = vld [vmem:[%s1300 + $0x40] sm:$0xff]
    %v1310 = vld [vmem:[%s1300 + $0x48] sm:$0xff]
    %v1311 = vld [vmem:[%s1300 + $0x50] sm:$0xff]
    %v1312 = vld [vmem:[%s1300 + $0x58] sm:$0xff]
    %v1313 = vld [vmem:[%s1300 + $0x60] sm:$0xff]
    %v1314 = vld [vmem:[%s1300 + $0x68] sm:$0xff]
    %v1315 = vld [vmem:[%s1300 + $0x70] sm:$0xff]
    %v1316 = vld [vmem:[%s1300 + $0x78] sm:$0xff]
    %1317 = vmatprep.subr.mxu0 0.0
    %1318 = vmatpush1.msra.mxu0 %v1301
    %1319 = vmatprep.subr.mxu0 0.0
    %1320 = vmatpush1.msra.mxu0 %v1302
    %1321 = vmatprep.subr.mxu0 0.0
    %1322 = vmatpush1.msra.mxu0 %v1303
    %1323 = vmatprep.subr.mxu0 0.0
    %1324 = vmatpush1.msra.mxu0 %v1304
    %1325 = vmatprep.subr.mxu0 0.0
    %1326 = vmatpush1.msra.mxu0 %v1305
    %1327 = vmatprep.subr.mxu0 0.0
    %1328 = vmatpush1.msra.mxu0 %v1306
    %1329 = vmatprep.subr.mxu0 0.0
    %1330 = vmatpush1.msra.mxu0 %v1307
    %1331 = vmatprep.subr.mxu0 0.0
    %1332 = vmatpush1.msra.mxu0 %v1308
    %1333 = vmatprep.subr.mxu0 0.0
    %1334 = vmatpush1.msra.mxu0 %v1309
    %1335 = vmatprep.subr.mxu0 0.0
    %1336 = vmatpush1.msra.mxu0 %v1310
    %1337 = vmatprep.subr.mxu0 0.0
    %1338 = vmatpush1.msra.mxu0 %v1311
    %1339 = vmatprep.subr.mxu0 0.0
    %1340 = vmatpush1.msra.mxu0 %v1312
    %1341 = vmatprep.subr.mxu0 0.0
    %1342 = vmatpush1.msra.mxu0 %v1313
    %1343 = vmatprep.subr.mxu0 0.0
    %1344 = vmatpush1.msra.mxu0 %v1314
    %1345 = vmatprep.subr.mxu0 0.0
    %1346 = vmatpush1.msra.mxu0 %v1315
    %1347 = vmatprep.subr.mxu0 0.0
    %1348 = vmatpush1.msra.mxu0 %v1316
    %1349 = vmatprep.subr.mxu0 0.0
    %1350 = vmatpush1.msra.mxu0 0.0
    %1351 = vmatprep.subr.mxu0 0.0
    %1352 = vmatpush1.msra.mxu0 0.0
    %1353 = vmatprep.subr.mxu0 0.0
    %1354 = vmatpush1.msra.mxu0 0.0
    %1355 = vmatprep.subr.mxu0 0.0
    %1356 = vmatpush1.msra.mxu0 0.0
    %1357 = vmatprep.subr.mxu0 0.0
    %1358 = vmatpush1.msra.mxu0 0.0
    %1359 = vmatprep.subr.mxu0 0.0
    %1360 = vmatpush1.msra.mxu0 0.0
    %1361 = vmatprep.subr.mxu0 0.0
    %1362 = vmatpush1.msra.mxu0 0.0
    %1363 = vmatprep.subr.mxu0 0.0
    %1364 = vmatpush1.msra.mxu0 0.0
    %1365 = vmatprep.subr.mxu0 0.0
    %1366 = vmatpush1.msra.mxu0 0.0
    %1367 = vmatprep.subr.mxu0 0.0
    %1368 = vmatpush1.msra.mxu0 0.0
    %1369 = vmatprep.subr.mxu0 0.0
    %1370 = vmatpush1.msra.mxu0 0.0
    %1371 = vmatprep.subr.mxu0 0.0
    %1372 = vmatpush1.msra.mxu0 0.0
    %1373 = vmatprep.subr.mxu0 0.0
    %1374 = vmatpush1.msra.mxu0 0.0
    %1375 = vmatprep.subr.mxu0 0.0
    %1376 = vmatpush1.msra.mxu0 0.0
    %1377 = vmatprep.subr.mxu0 0.0
    %1378 = vmatpush1.msra.mxu0 0.0
    %1379 = vmatprep.subr.mxu0 0.0
    %1380 = vmatpush1.msra.mxu0 0.0
    %1381 = vmatprep.mubr.f32.mxu0 0.0
    %1382 = vmatmul.mubr.f32.gmra.mrb[0].mxu0 %v1236
    %v1383 = vpop.f32.mrb[0].mxu0
    %v1384 = vadd.f32 0.0, %v1383
    %v1385 = vpop.f32.mrb[0].mxu0
    %1386 = vmatprep.mubr.f32.mxu0 0.0
    %1387 = vmatmul.mubr.f32.gmra.mrb[0].mxu0 %v1237
    %v1388 = vpop.f32.mrb[0].mxu0
    %v1389 = vadd.f32 0.0, %v1388
    %v1390 = vpop.f32.mrb[0].mxu0
    %1391 = vmatprep.mubr.f32.mxu0 0.0
    %1392 = vmatmul.mubr.f32.gmra.mrb[0].mxu0 %v1238
    %v1393 = vpop.f32.mrb[0].mxu0
    %v1394 = vadd.f32 0.0, %v1393
    %v1395 = vpop.f32.mrb[0].mxu0
    %1396 = vmatprep.mubr.f32.mxu0 0.0
    %1397 = vmatmul.mubr.f32.gmra.mrb[0].mxu0 %v1239
    %v1398 = vpop.f32.mrb[0].mxu0
    %v1399 = vadd.f32 0.0, %v1398
    %v1400 = vpop.f32.mrb[0].mxu0
    %1401 = vmatprep.mubr.f32.mxu0 0.0
    %1402 = vmatmul.mubr.f32.gmra.mrb[0].mxu0 %v1240
    %v1403 = vpop.f32.mrb[0].mxu0
    %v1404 = vadd.f32 0.0, %v1403
    %v1405 = vpop.f32.mrb[0].mxu0
    %1406 = vmatprep.mubr.f32.mxu0 0.0
    %1407 = vmatmul.mubr.f32.gmra.mrb[0].mxu0 %v1241
    %v1408 = vpop.f32.mrb[0].mxu0
    %v1409 = vadd.f32 0.0, %v1408
    %v1410 = vpop.f32.mrb[0].mxu0
    %1411 = vmatprep.mubr.f32.mxu0 0.0
    %1412 = vmatmul.mubr.f32.gmra.mrb[0].mxu0 %v1242
    %v1413 = vpop.f32.mrb[0].mxu0
    %v1414 = vadd.f32 0.0, %v1413
    %v1415 = vpop.f32.mrb[0].mxu0
    %1416 = vmatprep.mubr.f32.mxu0 0.0
    %1417 = vmatmul.mubr.f32.gmra.mrb[0].mxu0 %v1243
    %v1418 = vpop.f32.mrb[0].mxu0
    %v1419 = vadd.f32 0.0, %v1418
    %v1420 = vpop.f32.mrb[0].mxu0
    %1421 = vmatprep.mubr.f32.mxu0 0.0
    %1422 = vmatmul.mubr.f32.gmra.mrb[0].mxu0 %v1244
    %v1423 = vpop.f32.mrb[0].mxu0
    %v1424 = vadd.f32 0.0, %v1423
    %v1425 = vpop.f32.mrb[0].mxu0
    %1426 = vmatprep.mubr.f32.mxu0 0.0
    %1427 = vmatmul.mubr.f32.gmra.mrb[0].mxu0 %v1245
    %v1428 = vpop.f32.mrb[0].mxu0
    %v1429 = vadd.f32 0.0, %v1428
    %v1430 = vpop.f32.mrb[0].mxu0
    %1431 = vmatprep.mubr.f32.mxu0 0.0
    %1432 = vmatmul.mubr.f32.gmra.mrb[0].mxu0 %v1246
    %v1433 = vpop.f32.mrb[0].mxu0
    %v1434 = vadd.f32 0.0, %v1433
    %v1435 = vpop.f32.mrb[0].mxu0
    %1436 = vmatprep.mubr.f32.mxu0 0.0
    %1437 = vmatmul.mubr.f32.gmra.mrb[0].mxu0 %v1247
    %v1438 = vpop.f32.mrb[0].mxu0
    %v1439 = vadd.f32 0.0, %v1438
    %v1440 = vpop.f32.mrb[0].mxu0
    %1441 = vmatprep.mubr.f32.mxu0 0.0
    %1442 = vmatmul.mubr.f32.gmra.mrb[0].mxu0 %v1248
    %v1443 = vpop.f32.mrb[0].mxu0
    %v1444 = vadd.f32 0.0, %v1443
    %v1445 = vpop.f32.mrb[0].mxu0
    %1446 = vmatprep.mubr.f32.mxu0 0.0
    %1447 = vmatmul.mubr.f32.gmra.mrb[0].mxu0 %v1249
    %v1448 = vpop.f32.mrb[0].mxu0
    %v1449 = vadd.f32 0.0, %v1448
    %v1450 = vpop.f32.mrb[0].mxu0
    %1451 = vmatprep.mubr.f32.mxu0 0.0
    %1452 = vmatmul.mubr.f32.gmra.mrb[0].mxu0 %v1250
    %v1453 = vpop.f32.mrb[0].mxu0
    %v1454 = vadd.f32 0.0, %v1453
    %v1455 = vpop.f32.mrb[0].mxu0
    %1456 = vmatprep.mubr.f32.mxu0 0.0
    %1457 = vmatmul.mubr.f32.gmra.mrb[0].mxu0 %v1251
    %v1458 = vpop.f32.mrb[0].mxu0
    %v1459 = vadd.f32 0.0, %v1458
    %v1460 = vpop.f32.mrb[0].mxu0
    %1461 = vmatprep.mubr.f32.mxu0 0.0
    %1462 = vmatmul.mubr.f32.gmra.mrb[0].mxu0 %v1252
    %v1463 = vpop.f32.mrb[0].mxu0
    %v1464 = vadd.f32 0.0, %v1463
    %v1465 = vpop.f32.mrb[0].mxu0
    %1466 = vmatprep.mubr.f32.mxu0 0.0
    %1467 = vmatmul.mubr.f32.gmra.mrb[0].mxu0 %v1253
    %v1468 = vpop.f32.mrb[0].mxu0
    %v1469 = vadd.f32 0.0, %v1468
    %v1470 = vpop.f32.mrb[0].mxu0
    %1471 = vmatprep.mubr.f32.mxu0 0.0
    %1472 = vmatmul.mubr.f32.gmra.mrb[0].mxu0 %v1254
    %v1473 = vpop.f32.mrb[0].mxu0
    %v1474 = vadd.f32 0.0, %v1473
    %v1475 = vpop.f32.mrb[0].mxu0
    %1476 = vmatprep.mubr.f32.mxu0 0.0
    %1477 = vmatmul.mubr.f32.gmra.mrb[0].mxu0 %v1255
    %v1478 = vpop.f32.mrb[0].mxu0
    %v1479 = vadd.f32 0.0, %v1478
    %v1480 = vpop.f32.mrb[0].mxu0
    %1481 = vmatprep.mubr.f32.mxu0 0.0
    %1482 = vmatmul.mubr.f32.gmra.mrb[0].mxu0 %v1256
    %v1483 = vpop.f32.mrb[0].mxu0
    %v1484 = vadd.f32 0.0, %v1483
    %v1485 = vpop.f32.mrb[0].mxu0
    %1486 = vmatprep.mubr.f32.mxu0 0.0
    %1487 = vmatmul.mubr.f32.gmra.mrb[0].mxu0 %v1257
    %v1488 = vpop.f32.mrb[0].mxu0
    %v1489 = vadd.f32 0.0, %v1488
    %v1490 = vpop.f32.mrb[0].mxu0
    %1491 = vmatprep.mubr.f32.mxu0 0.0
    %1492 = vmatmul.mubr.f32.gmra.mrb[0].mxu0 %v1258
    %v1493 = vpop.f32.mrb[0].mxu0
    %v1494 = vadd.f32 0.0, %v1493
    %v1495 = vpop.f32.mrb[0].mxu0
    %1496 = vmatprep.mubr.f32.mxu0 0.0
    %1497 = vmatmul.mubr.f32.gmra.mrb[0].mxu0 %v1259
    %v1498 = vpop.f32.mrb[0].mxu0
    %v1499 = vadd.f32 0.0, %v1498
    %v1500 = vpop.f32.mrb[0].mxu0
    %1501 = vmatprep.mubr.f32.mxu0 0.0
    %1502 = vmatmul.mubr.f32.gmra.mrb[0].mxu0 %v1260
    %v1503 = vpop.f32.mrb[0].mxu0
    %v1504 = vadd.f32 0.0, %v1503
    %v1505 = vpop.f32.mrb[0].mxu0
    %1506 = vmatprep.mubr.f32.mxu0 0.0
    %1507 = vmatmul.mubr.f32.gmra.mrb[0].mxu0 %v1261
    %v1508 = vpop.f32.mrb[0].mxu0
    %v1509 = vadd.f32 0.0, %v1508
    %v1510 = vpop.f32.mrb[0].mxu0
    %1511 = vmatprep.mubr.f32.mxu0 0.0
    %1512 = vmatmul.mubr.f32.gmra.mrb[0].mxu0 %v1262
    %v1513 = vpop.f32.mrb[0].mxu0
    %v1514 = vadd.f32 0.0, %v1513
    %v1515 = vpop.f32.mrb[0].mxu0
    %1516 = vmatprep.mubr.f32.mxu0 0.0
    %1517 = vmatmul.mubr.f32.gmra.mrb[0].mxu0 %v1263
    %v1518 = vpop.f32.mrb[0].mxu0
    %v1519 = vadd.f32 0.0, %v1518
    %v1520 = vpop.f32.mrb[0].mxu0
    %1521 = vmatprep.mubr.f32.mxu0 0.0
    %1522 = vmatmul.mubr.f32.gmra.mrb[0].mxu0 %v1264
    %v1523 = vpop.f32.mrb[0].mxu0
    %v1524 = vadd.f32 0.0, %v1523
    %v1525 = vpop.f32.mrb[0].mxu0
    %1526 = vmatprep.mubr.f32.mxu0 0.0
    %1527 = vmatmul.mubr.f32.gmra.mrb[0].mxu0 %v1265
    %v1528 = vpop.f32.mrb[0].mxu0
    %v1529 = vadd.f32 0.0, %v1528
    %v1530 = vpop.f32.mrb[0].mxu0
    %1531 = vmatprep.mubr.f32.mxu0 0.0
    %1532 = vmatmul.mubr.f32.gmra.mrb[0].mxu0 %v1266
    %v1533 = vpop.f32.mrb[0].mxu0
    %v1534 = vadd.f32 0.0, %v1533
    %v1535 = vpop.f32.mrb[0].mxu0
    %1536 = vmatprep.mubr.f32.mxu0 0.0
    %1537 = vmatmul.mubr.f32.gmra.mrb[0].mxu0 %v1267
    %v1538 = vpop.f32.mrb[0].mxu0
    %v1539 = vadd.f32 0.0, %v1538
    %v1540 = vpop.f32.mrb[0].mxu0
    %1541 = vmatprep.mubr.f32.mxu0 0.0
    %1542 = vmatmul.mubr.f32.gmra.mrb[0].mxu0 %v1268
    %v1543 = vpop.f32.mrb[0].mxu0
    %v1544 = vadd.f32 0.0, %v1543
    %v1545 = vpop.f32.mrb[0].mxu0
    %1546 = vmatprep.mubr.f32.mxu0 0.0
    %1547 = vmatmul.mubr.f32.gmra.mrb[0].mxu0 %v1269
    %v1548 = vpop.f32.mrb[0].mxu0
    %v1549 = vadd.f32 0.0, %v1548
    %v1550 = vpop.f32.mrb[0].mxu0
    %1551 = vmatprep.mubr.f32.mxu0 0.0
    %1552 = vmatmul.mubr.f32.gmra.mrb[0].mxu0 %v1270
    %v1553 = vpop.f32.mrb[0].mxu0
    %v1554 = vadd.f32 0.0, %v1553
    %v1555 = vpop.f32.mrb[0].mxu0
    %1556 = vmatprep.mubr.f32.mxu0 0.0
    %1557 = vmatmul.mubr.f32.gmra.mrb[0].mxu0 %v1271
    %v1558 = vpop.f32.mrb[0].mxu0
    %v1559 = vadd.f32 0.0, %v1558
    %v1560 = vpop.f32.mrb[0].mxu0
    %1561 = vmatprep.mubr.f32.mxu0 0.0
    %1562 = vmatmul.mubr.f32.gmra.mrb[0].mxu0 %v1272
    %v1563 = vpop.f32.mrb[0].mxu0
    %v1564 = vadd.f32 0.0, %v1563
    %v1565 = vpop.f32.mrb[0].mxu0
    %1566 = vmatprep.mubr.f32.mxu0 0.0
    %1567 = vmatmul.mubr.f32.gmra.mrb[0].mxu0 %v1273
    %v1568 = vpop.f32.mrb[0].mxu0
    %v1569 = vadd.f32 0.0, %v1568
    %v1570 = vpop.f32.mrb[0].mxu0
    %1571 = vmatprep.mubr.f32.mxu0 0.0
    %1572 = vmatmul.mubr.f32.gmra.mrb[0].mxu0 %v1274
    %v1573 = vpop.f32.mrb[0].mxu0
    %v1574 = vadd.f32 0.0, %v1573
    %v1575 = vpop.f32.mrb[0].mxu0
    %1576 = vmatprep.mubr.f32.mxu0 0.0
    %1577 = vmatmul.mubr.f32.gmra.mrb[0].mxu0 %v1275
    %v1578 = vpop.f32.mrb[0].mxu0
    %v1579 = vadd.f32 0.0, %v1578
    %v1580 = vpop.f32.mrb[0].mxu0
    %1581 = vmatprep.mubr.f32.mxu0 0.0
    %1582 = vmatmul.mubr.f32.gmra.mrb[0].mxu0 %v1276
    %v1583 = vpop.f32.mrb[0].mxu0
    %v1584 = vadd.f32 0.0, %v1583
    %v1585 = vpop.f32.mrb[0].mxu0
    %1586 = vmatprep.mubr.f32.mxu0 0.0
    %1587 = vmatmul.mubr.f32.gmra.mrb[0].mxu0 %v1277
    %v1588 = vpop.f32.mrb[0].mxu0
    %v1589 = vadd.f32 0.0, %v1588
    %v1590 = vpop.f32.mrb[0].mxu0
    %1591 = vmatprep.mubr.f32.mxu0 0.0
    %1592 = vmatmul.mubr.f32.gmra.mrb[0].mxu0 %v1278
    %v1593 = vpop.f32.mrb[0].mxu0
    %v1594 = vadd.f32 0.0, %v1593
    %v1595 = vpop.f32.mrb[0].mxu0
    %1596 = vmatprep.mubr.f32.mxu0 0.0
    %1597 = vmatmul.mubr.f32.gmra.mrb[0].mxu0 %v1279
    %v1598 = vpop.f32.mrb[0].mxu0
    %v1599 = vadd.f32 0.0, %v1598
    %v1600 = vpop.f32.mrb[0].mxu0
    %1601 = vmatprep.mubr.f32.mxu0 0.0
    %1602 = vmatmul.mubr.f32.gmra.mrb[0].mxu0 %v1280
    %v1603 = vpop.f32.mrb[0].mxu0
    %v1604 = vadd.f32 0.0, %v1603
    %v1605 = vpop.f32.mrb[0].mxu0
    %1606 = vmatprep.mubr.f32.mxu0 0.0
    %1607 = vmatmul.mubr.f32.gmra.mrb[0].mxu0 %v1281
    %v1608 = vpop.f32.mrb[0].mxu0
    %v1609 = vadd.f32 0.0, %v1608
    %v1610 = vpop.f32.mrb[0].mxu0
    %1611 = vmatprep.mubr.f32.mxu0 0.0
    %1612 = vmatmul.mubr.f32.gmra.mrb[0].mxu0 %v1282
    %v1613 = vpop.f32.mrb[0].mxu0
    %v1614 = vadd.f32 0.0, %v1613
    %v1615 = vpop.f32.mrb[0].mxu0
    %1616 = vmatprep.mubr.f32.mxu0 0.0
    %1617 = vmatmul.mubr.f32.gmra.mrb[0].mxu0 %v1283
    %v1618 = vpop.f32.mrb[0].mxu0
    %v1619 = vadd.f32 0.0, %v1618
    %v1620 = vpop.f32.mrb[0].mxu0
    %1621 = vmatprep.mubr.f32.mxu0 0.0
    %1622 = vmatmul.mubr.f32.gmra.mrb[0].mxu0 %v1284
    %v1623 = vpop.f32.mrb[0].mxu0
    %v1624 = vadd.f32 0.0, %v1623
    %v1625 = vpop.f32.mrb[0].mxu0
    %1626 = vmatprep.mubr.f32.mxu0 0.0
    %1627 = vmatmul.mubr.f32.gmra.mrb[0].mxu0 %v1285
    %v1628 = vpop.f32.mrb[0].mxu0
    %v1629 = vadd.f32 0.0, %v1628
    %v1630 = vpop.f32.mrb[0].mxu0
    %1631 = vmatprep.mubr.f32.mxu0 0.0
    %1632 = vmatmul.mubr.f32.gmra.mrb[0].mxu0 %v1286
    %v1633 = vpop.f32.mrb[0].mxu0
    %v1634 = vadd.f32 0.0, %v1633
    %v1635 = vpop.f32.mrb[0].mxu0
    %1636 = vmatprep.mubr.f32.mxu0 0.0
    %1637 = vmatmul.mubr.f32.gmra.mrb[0].mxu0 %v1287
    %v1638 = vpop.f32.mrb[0].mxu0
    %v1639 = vadd.f32 0.0, %v1638
    %v1640 = vpop.f32.mrb[0].mxu0
    %1641 = vmatprep.mubr.f32.mxu0 0.0
    %1642 = vmatmul.mubr.f32.gmra.mrb[0].mxu0 %v1288
    %v1643 = vpop.f32.mrb[0].mxu0
    %v1644 = vadd.f32 0.0, %v1643
    %v1645 = vpop.f32.mrb[0].mxu0
    %1646 = vmatprep.mubr.f32.mxu0 0.0
    %1647 = vmatmul.mubr.f32.gmra.mrb[0].mxu0 %v1289
    %v1648 = vpop.f32.mrb[0].mxu0
    %v1649 = vadd.f32 0.0, %v1648
    %v1650 = vpop.f32.mrb[0].mxu0
    %1651 = vmatprep.mubr.f32.mxu0 0.0
    %1652 = vmatmul.mubr.f32.gmra.mrb[0].mxu0 %v1290
    %v1653 = vpop.f32.mrb[0].mxu0
    %v1654 = vadd.f32 0.0, %v1653
    %v1655 = vpop.f32.mrb[0].mxu0
    %1656 = vmatprep.mubr.f32.mxu0 0.0
    %1657 = vmatmul.mubr.f32.gmra.mrb[0].mxu0 %v1291
    %v1658 = vpop.f32.mrb[0].mxu0
    %v1659 = vadd.f32 0.0, %v1658
    %v1660 = vpop.f32.mrb[0].mxu0
    %1661 = vmatprep.mubr.f32.mxu0 0.0
    %1662 = vmatmul.mubr.f32.gmra.mrb[0].mxu0 %v1292
    %v1663 = vpop.f32.mrb[0].mxu0
    %v1664 = vadd.f32 0.0, %v1663
    %v1665 = vpop.f32.mrb[0].mxu0
    %1666 = vmatprep.mubr.f32.mxu0 0.0
    %1667 = vmatmul.mubr.f32.gmra.mrb[0].mxu0 %v1293
    %v1668 = vpop.f32.mrb[0].mxu0
    %v1669 = vadd.f32 0.0, %v1668
    %v1670 = vpop.f32.mrb[0].mxu0
    %1671 = vmatprep.mubr.f32.mxu0 0.0
    %1672 = vmatmul.mubr.f32.gmra.mrb[0].mxu0 %v1294
    %v1673 = vpop.f32.mrb[0].mxu0
    %v1674 = vadd.f32 0.0, %v1673
    %v1675 = vpop.f32.mrb[0].mxu0
    %1676 = vmatprep.mubr.f32.mxu0 0.0
    %1677 = vmatmul.mubr.f32.gmra.mrb[0].mxu0 %v1295
    %v1678 = vpop.f32.mrb[0].mxu0
    %v1679 = vadd.f32 0.0, %v1678
    %v1680 = vpop.f32.mrb[0].mxu0
    %1681 = vmatprep.mubr.f32.mxu0 0.0
    %1682 = vmatmul.mubr.f32.gmra.mrb[0].mxu0 %v1296
    %v1683 = vpop.f32.mrb[0].mxu0
    %v1684 = vadd.f32 0.0, %v1683
    %v1685 = vpop.f32.mrb[0].mxu0
    %1686 = vmatprep.mubr.f32.mxu0 0.0
    %1687 = vmatmul.mubr.f32.gmra.mrb[0].mxu0 %v1297
    %v1688 = vpop.f32.mrb[0].mxu0
    %v1689 = vadd.f32 0.0, %v1688
    %v1690 = vpop.f32.mrb[0].mxu0
    %1691 = vmatprep.mubr.f32.mxu0 0.0
    %1692 = vmatmul.mubr.f32.gmra.mrb[0].mxu0 %v1298
    %v1693 = vpop.f32.mrb[0].mxu0
    %v1694 = vadd.f32 0.0, %v1693
    %v1695 = vpop.f32.mrb[0].mxu0
    %1696 = vmatprep.mubr.f32.mxu0 0.0
    %1697 = vmatmul.mubr.f32.gmra.mrb[0].mxu0 %v1299
    %v1698 = vpop.f32.mrb[0].mxu0
    %v1699 = vadd.f32 0.0, %v1698
    %v1700 = vpop.f32.mrb[0].mxu0
    %1701 = vdwg.mxu0
    %v1702 = vadd.f32 %v918, %v1384
    %v1703 = vadd.f32 %v923, %v1389
    %v1704 = vadd.f32 %v928, %v1394
    %v1705 = vadd.f32 %v933, %v1399
    %v1706 = vadd.f32 %v938, %v1404
    %v1707 = vadd.f32 %v943, %v1409
    %v1708 = vadd.f32 %v948, %v1414
    %v1709 = vadd.f32 %v953, %v1419
    %v1710 = vadd.f32 %v958, %v1424
    %v1711 = vadd.f32 %v963, %v1429
    %v1712 = vadd.f32 %v968, %v1434
    %v1713 = vadd.f32 %v973, %v1439
    %v1714 = vadd.f32 %v978, %v1444
    %v1715 = vadd.f32 %v983, %v1449
    %v1716 = vadd.f32 %v988, %v1454
    %v1717 = vadd.f32 %v993, %v1459
    %v1718 = vadd.f32 %v998, %v1464
    %v1719 = vadd.f32 %v1003, %v1469
    %v1720 = vadd.f32 %v1008, %v1474
    %v1721 = vadd.f32 %v1013, %v1479
    %v1722 = vadd.f32 %v1018, %v1484
    %v1723 = vadd.f32 %v1023, %v1489
    %v1724 = vadd.f32 %v1028, %v1494
    %v1725 = vadd.f32 %v1033, %v1499
    %v1726 = vadd.f32 %v1038, %v1504
    %v1727 = vadd.f32 %v1043, %v1509
    %v1728 = vadd.f32 %v1048, %v1514
    %v1729 = vadd.f32 %v1053, %v1519
    %v1730 = vadd.f32 %v1058, %v1524
    %v1731 = vadd.f32 %v1063, %v1529
    %v1732 = vadd.f32 %v1068, %v1534
    %v1733 = vadd.f32 %v1073, %v1539
    %v1734 = vadd.f32 %v1078, %v1544
    %v1735 = vadd.f32 %v1083, %v1549
    %v1736 = vadd.f32 %v1088, %v1554
    %v1737 = vadd.f32 %v1093, %v1559
    %v1738 = vadd.f32 %v1098, %v1564
    %v1739 = vadd.f32 %v1103, %v1569
    %v1740 = vadd.f32 %v1108, %v1574
    %v1741 = vadd.f32 %v1113, %v1579
    %v1742 = vadd.f32 %v1118, %v1584
    %v1743 = vadd.f32 %v1123, %v1589
    %v1744 = vadd.f32 %v1128, %v1594
    %v1745 = vadd.f32 %v1133, %v1599
    %v1746 = vadd.f32 %v1138, %v1604
    %v1747 = vadd.f32 %v1143, %v1609
    %v1748 = vadd.f32 %v1148, %v1614
    %v1749 = vadd.f32 %v1153, %v1619
    %v1750 = vadd.f32 %v1158, %v1624
    %v1751 = vadd.f32 %v1163, %v1629
    %v1752 = vadd.f32 %v1168, %v1634
    %v1753 = vadd.f32 %v1173, %v1639
    %v1754 = vadd.f32 %v1178, %v1644
    %v1755 = vadd.f32 %v1183, %v1649
    %v1756 = vadd.f32 %v1188, %v1654
    %v1757 = vadd.f32 %v1193, %v1659
    %v1758 = vadd.f32 %v1198, %v1664
    %v1759 = vadd.f32 %v1203, %v1669
    %v1760 = vadd.f32 %v1208, %v1674
    %v1761 = vadd.f32 %v1213, %v1679
    %v1762 = vadd.f32 %v1218, %v1684
    %v1763 = vadd.f32 %v1223, %v1689
    %v1764 = vadd.f32 %v1228, %v1694
    %v1765 = vadd.f32 %v1233, %v1699
    %v1766 = vld [vmem:[%s240] sm:$0xff]
    %v1767 = vld [vmem:[%s240 + $0x8] sm:$0xff]
    %v1768 = vld [vmem:[%s240 + $0x18] sm:$0xff]
    %v1769 = vld [vmem:[%s240 + $0x20] sm:$0xff]
    %v1770 = vld [vmem:[%s240 + $0x30] sm:$0xff]
    %v1771 = vld [vmem:[%s240 + $0x38] sm:$0xff]
    %v1772 = vld [vmem:[%s240 + $0x48] sm:$0xff]
    %v1773 = vld [vmem:[%s240 + $0x50] sm:$0xff]
    %v1774 = vld [vmem:[%s240 + $0x60] sm:$0xff]
    %v1775 = vld [vmem:[%s240 + $0x68] sm:$0xff]
    %v1776 = vld [vmem:[%s240 + $0x78] sm:$0xff]
    %v1777 = vld [vmem:[%s240 + $0x80] sm:$0xff]
    %v1778 = vld [vmem:[%s240 + $0x90] sm:$0xff]
    %v1779 = vld [vmem:[%s240 + $0x98] sm:$0xff]
    %v1780 = vld [vmem:[%s240 + $0xa8] sm:$0xff]
    %v1781 = vld [vmem:[%s240 + $0xb0] sm:$0xff]
    %v1782 = vld [vmem:[%s240 + $0xc0] sm:$0xff]
    %v1783 = vld [vmem:[%s240 + $0xc8] sm:$0xff]
    %v1784 = vld [vmem:[%s240 + $0xd8] sm:$0xff]
    %v1785 = vld [vmem:[%s240 + $0xe0] sm:$0xff]
    %v1786 = vld [vmem:[%s240 + $0xf0] sm:$0xff]
    %v1787 = vld [vmem:[%s240 + $0xf8] sm:$0xff]
    %v1788 = vld [vmem:[%s240 + $0x108] sm:$0xff]
    %v1789 = vld [vmem:[%s240 + $0x110] sm:$0xff]
    %v1790 = vld [vmem:[%s240 + $0x120] sm:$0xff]
    %v1791 = vld [vmem:[%s240 + $0x128] sm:$0xff]
    %v1792 = vld [vmem:[%s240 + $0x138] sm:$0xff]
    %v1793 = vld [vmem:[%s240 + $0x140] sm:$0xff]
    %v1794 = vld [vmem:[%s240 + $0x150] sm:$0xff]
    %v1795 = vld [vmem:[%s240 + $0x158] sm:$0xff]
    %v1796 = vld [vmem:[%s240 + $0x168] sm:$0xff]
    %v1797 = vld [vmem:[%s240 + $0x170] sm:$0xff]
    %v1798 = vld [vmem:[%s240 + $0x1b0] sm:$0xff]
    %v1799 = vld [vmem:[%s240 + $0x1b8] sm:$0xff]
    %v1800 = vld [vmem:[%s240 + $0x1c8] sm:$0xff]
    %v1801 = vld [vmem:[%s240 + $0x1d0] sm:$0xff]
    %v1802 = vld [vmem:[%s240 + $0x1e0] sm:$0xff]
    %v1803 = vld [vmem:[%s240 + $0x1e8] sm:$0xff]
    %v1804 = vld [vmem:[%s240 + $0x1f8] sm:$0xff]
    %v1805 = vld [vmem:[%s240 + $0x200] sm:$0xff]
    %v1806 = vld [vmem:[%s240 + $0x210] sm:$0xff]
    %v1807 = vld [vmem:[%s240 + $0x218] sm:$0xff]
    %v1808 = vld [vmem:[%s240 + $0x228] sm:$0xff]
    %v1809 = vld [vmem:[%s240 + $0x230] sm:$0xff]
    %v1810 = vld [vmem:[%s240 + $0x240] sm:$0xff]
    %v1811 = vld [vmem:[%s240 + $0x248] sm:$0xff]
    %v1812 = vld [vmem:[%s240 + $0x258] sm:$0xff]
    %v1813 = vld [vmem:[%s240 + $0x260] sm:$0xff]
    %v1814 = vld [vmem:[%s240 + $0x270] sm:$0xff]
    %v1815 = vld [vmem:[%s240 + $0x278] sm:$0xff]
    %v1816 = vld [vmem:[%s240 + $0x288] sm:$0xff]
    %v1817 = vld [vmem:[%s240 + $0x290] sm:$0xff]
    %v1818 = vld [vmem:[%s240 + $0x2a0] sm:$0xff]
    %v1819 = vld [vmem:[%s240 + $0x2a8] sm:$0xff]
    %v1820 = vld [vmem:[%s240 + $0x2b8] sm:$0xff]
    %v1821 = vld [vmem:[%s240 + $0x2c0] sm:$0xff]
    %v1822 = vld [vmem:[%s240 + $0x2d0] sm:$0xff]
    %v1823 = vld [vmem:[%s240 + $0x2d8] sm:$0xff]
    %v1824 = vld [vmem:[%s240 + $0x2e8] sm:$0xff]
    %v1825 = vld [vmem:[%s240 + $0x2f0] sm:$0xff]
    %v1826 = vld [vmem:[%s240 + $0x300] sm:$0xff]
    %v1827 = vld [vmem:[%s240 + $0x308] sm:$0xff]
    %v1828 = vld [vmem:[%s240 + $0x318] sm:$0xff]
    %v1829 = vld [vmem:[%s240 + $0x320] sm:$0xff]
    %s1830 = scalar_lea.vmem [#allocation6], 384
    %v1831 = vld [vmem:[%s1830] sm:$0xff]
    %v1832 = vld [vmem:[%s1830 + $0x8] sm:$0xff]
    %v1833 = vld [vmem:[%s1830 + $0x10] sm:$0xff]
    %v1834 = vld [vmem:[%s1830 + $0x18] sm:$0xff]
    %v1835 = vld [vmem:[%s1830 + $0x20] sm:$0xff]
    %v1836 = vld [vmem:[%s1830 + $0x28] sm:$0xff]
    %v1837 = vld [vmem:[%s1830 + $0x30] sm:$0xff]
    %v1838 = vld [vmem:[%s1830 + $0x38] sm:$0xff]
    %v1839 = vld [vmem:[%s1830 + $0x40] sm:$0xff]
    %v1840 = vld [vmem:[%s1830 + $0x48] sm:$0xff]
    %v1841 = vld [vmem:[%s1830 + $0x50] sm:$0xff]
    %v1842 = vld [vmem:[%s1830 + $0x58] sm:$0xff]
    %v1843 = vld [vmem:[%s1830 + $0x60] sm:$0xff]
    %v1844 = vld [vmem:[%s1830 + $0x68] sm:$0xff]
    %v1845 = vld [vmem:[%s1830 + $0x70] sm:$0xff]
    %v1846 = vld [vmem:[%s1830 + $0x78] sm:$0xff]
    %1847 = vmatprep.subr.mxu0 0.0
    %1848 = vmatpush1.msra.mxu0 %v1831
    %1849 = vmatprep.subr.mxu0 0.0
    %1850 = vmatpush1.msra.mxu0 %v1832
    %1851 = vmatprep.subr.mxu0 0.0
    %1852 = vmatpush1.msra.mxu0 %v1833
    %1853 = vmatprep.subr.mxu0 0.0
    %1854 = vmatpush1.msra.mxu0 %v1834
    %1855 = vmatprep.subr.mxu0 0.0
    %1856 = vmatpush1.msra.mxu0 %v1835
    %1857 = vmatprep.subr.mxu0 0.0
    %1858 = vmatpush1.msra.mxu0 %v1836
    %1859 = vmatprep.subr.mxu0 0.0
    %1860 = vmatpush1.msra.mxu0 %v1837
    %1861 = vmatprep.subr.mxu0 0.0
    %1862 = vmatpush1.msra.mxu0 %v1838
    %1863 = vmatprep.subr.mxu0 0.0
    %1864 = vmatpush1.msra.mxu0 %v1839
    %1865 = vmatprep.subr.mxu0 0.0
    %1866 = vmatpush1.msra.mxu0 %v1840
    %1867 = vmatprep.subr.mxu0 0.0
    %1868 = vmatpush1.msra.mxu0 %v1841
    %1869 = vmatprep.subr.mxu0 0.0
    %1870 = vmatpush1.msra.mxu0 %v1842
    %1871 = vmatprep.subr.mxu0 0.0
    %1872 = vmatpush1.msra.mxu0 %v1843
    %1873 = vmatprep.subr.mxu0 0.0
    %1874 = vmatpush1.msra.mxu0 %v1844
    %1875 = vmatprep.subr.mxu0 0.0
    %1876 = vmatpush1.msra.mxu0 %v1845
    %1877 = vmatprep.subr.mxu0 0.0
    %1878 = vmatpush1.msra.mxu0 %v1846
    %1879 = vmatprep.subr.mxu0 0.0
    %1880 = vmatpush1.msra.mxu0 0.0
    %1881 = vmatprep.subr.mxu0 0.0
    %1882 = vmatpush1.msra.mxu0 0.0
    %1883 = vmatprep.subr.mxu0 0.0
    %1884 = vmatpush1.msra.mxu0 0.0
    %1885 = vmatprep.subr.mxu0 0.0
    %1886 = vmatpush1.msra.mxu0 0.0
    %1887 = vmatprep.subr.mxu0 0.0
    %1888 = vmatpush1.msra.mxu0 0.0
    %1889 = vmatprep.subr.mxu0 0.0
    %1890 = vmatpush1.msra.mxu0 0.0
    %1891 = vmatprep.subr.mxu0 0.0
    %1892 = vmatpush1.msra.mxu0 0.0
    %1893 = vmatprep.subr.mxu0 0.0
    %1894 = vmatpush1.msra.mxu0 0.0
    %1895 = vmatprep.subr.mxu0 0.0
    %1896 = vmatpush1.msra.mxu0 0.0
    %1897 = vmatprep.subr.mxu0 0.0
    %1898 = vmatpush1.msra.mxu0 0.0
    %1899 = vmatprep.subr.mxu0 0.0
    %1900 = vmatpush1.msra.mxu0 0.0
    %1901 = vmatprep.subr.mxu0 0.0
    %1902 = vmatpush1.msra.mxu0 0.0
    %1903 = vmatprep.subr.mxu0 0.0
    %1904 = vmatpush1.msra.mxu0 0.0
    %1905 = vmatprep.subr.mxu0 0.0
    %1906 = vmatpush1.msra.mxu0 0.0
    %1907 = vmatprep.subr.mxu0 0.0
    %1908 = vmatpush1.msra.mxu0 0.0
    %1909 = vmatprep.subr.mxu0 0.0
    %1910 = vmatpush1.msra.mxu0 0.0
    %1911 = vmatprep.mubr.f32.mxu0 0.0
    %1912 = vmatmul.mubr.f32.gmra.mrb[0].mxu0 %v1766
    %v1913 = vpop.f32.mrb[0].mxu0
    %v1914 = vadd.f32 0.0, %v1913
    %v1915 = vpop.f32.mrb[0].mxu0
    %1916 = vmatprep.mubr.f32.mxu0 0.0
    %1917 = vmatmul.mubr.f32.gmra.mrb[0].mxu0 %v1767
    %v1918 = vpop.f32.mrb[0].mxu0
    %v1919 = vadd.f32 0.0, %v1918
    %v1920 = vpop.f32.mrb[0].mxu0
    %1921 = vmatprep.mubr.f32.mxu0 0.0
    %1922 = vmatmul.mubr.f32.gmra.mrb[0].mxu0 %v1768
    %v1923 = vpop.f32.mrb[0].mxu0
    %v1924 = vadd.f32 0.0, %v1923
    %v1925 = vpop.f32.mrb[0].mxu0
    %1926 = vmatprep.mubr.f32.mxu0 0.0
    %1927 = vmatmul.mubr.f32.gmra.mrb[0].mxu0 %v1769
    %v1928 = vpop.f32.mrb[0].mxu0
    %v1929 = vadd.f32 0.0, %v1928
    %v1930 = vpop.f32.mrb[0].mxu0
    %1931 = vmatprep.mubr.f32.mxu0 0.0
    %1932 = vmatmul.mubr.f32.gmra.mrb[0].mxu0 %v1770
    %v1933 = vpop.f32.mrb[0].mxu0
    %v1934 = vadd.f32 0.0, %v1933
    %v1935 = vpop.f32.mrb[0].mxu0
    %1936 = vmatprep.mubr.f32.mxu0 0.0
    %1937 = vmatmul.mubr.f32.gmra.mrb[0].mxu0 %v1771
    %v1938 = vpop.f32.mrb[0].mxu0
    %v1939 = vadd.f32 0.0, %v1938
    %v1940 = vpop.f32.mrb[0].mxu0
    %1941 = vmatprep.mubr.f32.mxu0 0.0
    %1942 = vmatmul.mubr.f32.gmra.mrb[0].mxu0 %v1772
    %v1943 = vpop.f32.mrb[0].mxu0
    %v1944 = vadd.f32 0.0, %v1943
    %v1945 = vpop.f32.mrb[0].mxu0
    %1946 = vmatprep.mubr.f32.mxu0 0.0
    %1947 = vmatmul.mubr.f32.gmra.mrb[0].mxu0 %v1773
    %v1948 = vpop.f32.mrb[0].mxu0
    %v1949 = vadd.f32 0.0, %v1948
    %v1950 = vpop.f32.mrb[0].mxu0
    %1951 = vmatprep.mubr.f32.mxu0 0.0
    %1952 = vmatmul.mubr.f32.gmra.mrb[0].mxu0 %v1774
    %v1953 = vpop.f32.mrb[0].mxu0
    %v1954 = vadd.f32 0.0, %v1953
    %v1955 = vpop.f32.mrb[0].mxu0
    %1956 = vmatprep.mubr.f32.mxu0 0.0
    %1957 = vmatmul.mubr.f32.gmra.mrb[0].mxu0 %v1775
    %v1958 = vpop.f32.mrb[0].mxu0
    %v1959 = vadd.f32 0.0, %v1958
    %v1960 = vpop.f32.mrb[0].mxu0
    %1961 = vmatprep.mubr.f32.mxu0 0.0
    %1962 = vmatmul.mubr.f32.gmra.mrb[0].mxu0 %v1776
    %v1963 = vpop.f32.mrb[0].mxu0
    %v1964 = vadd.f32 0.0, %v1963
    %v1965 = vpop.f32.mrb[0].mxu0
    %1966 = vmatprep.mubr.f32.mxu0 0.0
    %1967 = vmatmul.mubr.f32.gmra.mrb[0].mxu0 %v1777
    %v1968 = vpop.f32.mrb[0].mxu0
    %v1969 = vadd.f32 0.0, %v1968
    %v1970 = vpop.f32.mrb[0].mxu0
    %1971 = vmatprep.mubr.f32.mxu0 0.0
    %1972 = vmatmul.mubr.f32.gmra.mrb[0].mxu0 %v1778
    %v1973 = vpop.f32.mrb[0].mxu0
    %v1974 = vadd.f32 0.0, %v1973
    %v1975 = vpop.f32.mrb[0].mxu0
    %1976 = vmatprep.mubr.f32.mxu0 0.0
    %1977 = vmatmul.mubr.f32.gmra.mrb[0].mxu0 %v1779
    %v1978 = vpop.f32.mrb[0].mxu0
    %v1979 = vadd.f32 0.0, %v1978
    %v1980 = vpop.f32.mrb[0].mxu0
    %1981 = vmatprep.mubr.f32.mxu0 0.0
    %1982 = vmatmul.mubr.f32.gmra.mrb[0].mxu0 %v1780
    %v1983 = vpop.f32.mrb[0].mxu0
    %v1984 = vadd.f32 0.0, %v1983
    %v1985 = vpop.f32.mrb[0].mxu0
    %1986 = vmatprep.mubr.f32.mxu0 0.0
    %1987 = vmatmul.mubr.f32.gmra.mrb[0].mxu0 %v1781
    %v1988 = vpop.f32.mrb[0].mxu0
    %v1989 = vadd.f32 0.0, %v1988
    %v1990 = vpop.f32.mrb[0].mxu0
    %1991 = vmatprep.mubr.f32.mxu0 0.0
    %1992 = vmatmul.mubr.f32.gmra.mrb[0].mxu0 %v1782
    %v1993 = vpop.f32.mrb[0].mxu0
    %v1994 = vadd.f32 0.0, %v1993
    %v1995 = vpop.f32.mrb[0].mxu0
    %1996 = vmatprep.mubr.f32.mxu0 0.0
    %1997 = vmatmul.mubr.f32.gmra.mrb[0].mxu0 %v1783
    %v1998 = vpop.f32.mrb[0].mxu0
    %v1999 = vadd.f32 0.0, %v1998
    %v2000 = vpop.f32.mrb[0].mxu0
    %2001 = vmatprep.mubr.f32.mxu0 0.0
    %2002 = vmatmul.mubr.f32.gmra.mrb[0].mxu0 %v1784
    %v2003 = vpop.f32.mrb[0].mxu0
    %v2004 = vadd.f32 0.0, %v2003
    %v2005 = vpop.f32.mrb[0].mxu0
    %2006 = vmatprep.mubr.f32.mxu0 0.0
    %2007 = vmatmul.mubr.f32.gmra.mrb[0].mxu0 %v1785
    %v2008 = vpop.f32.mrb[0].mxu0
    %v2009 = vadd.f32 0.0, %v2008
    %v2010 = vpop.f32.mrb[0].mxu0
    %2011 = vmatprep.mubr.f32.mxu0 0.0
    %2012 = vmatmul.mubr.f32.gmra.mrb[0].mxu0 %v1786
    %v2013 = vpop.f32.mrb[0].mxu0
    %v2014 = vadd.f32 0.0, %v2013
    %v2015 = vpop.f32.mrb[0].mxu0
    %2016 = vmatprep.mubr.f32.mxu0 0.0
    %2017 = vmatmul.mubr.f32.gmra.mrb[0].mxu0 %v1787
    %v2018 = vpop.f32.mrb[0].mxu0
    %v2019 = vadd.f32 0.0, %v2018
    %v2020 = vpop.f32.mrb[0].mxu0
    %2021 = vmatprep.mubr.f32.mxu0 0.0
    %2022 = vmatmul.mubr.f32.gmra.mrb[0].mxu0 %v1788
    %v2023 = vpop.f32.mrb[0].mxu0
    %v2024 = vadd.f32 0.0, %v2023
    %v2025 = vpop.f32.mrb[0].mxu0
    %2026 = vmatprep.mubr.f32.mxu0 0.0
    %2027 = vmatmul.mubr.f32.gmra.mrb[0].mxu0 %v1789
    %v2028 = vpop.f32.mrb[0].mxu0
    %v2029 = vadd.f32 0.0, %v2028
    %v2030 = vpop.f32.mrb[0].mxu0
    %2031 = vmatprep.mubr.f32.mxu0 0.0
    %2032 = vmatmul.mubr.f32.gmra.mrb[0].mxu0 %v1790
    %v2033 = vpop.f32.mrb[0].mxu0
    %v2034 = vadd.f32 0.0, %v2033
    %v2035 = vpop.f32.mrb[0].mxu0
    %2036 = vmatprep.mubr.f32.mxu0 0.0
    %2037 = vmatmul.mubr.f32.gmra.mrb[0].mxu0 %v1791
    %v2038 = vpop.f32.mrb[0].mxu0
    %v2039 = vadd.f32 0.0, %v2038
    %v2040 = vpop.f32.mrb[0].mxu0
    %2041 = vmatprep.mubr.f32.mxu0 0.0
    %2042 = vmatmul.mubr.f32.gmra.mrb[0].mxu0 %v1792
    %v2043 = vpop.f32.mrb[0].mxu0
    %v2044 = vadd.f32 0.0, %v2043
    %v2045 = vpop.f32.mrb[0].mxu0
    %2046 = vmatprep.mubr.f32.mxu0 0.0
    %2047 = vmatmul.mubr.f32.gmra.mrb[0].mxu0 %v1793
    %v2048 = vpop.f32.mrb[0].mxu0
    %v2049 = vadd.f32 0.0, %v2048
    %v2050 = vpop.f32.mrb[0].mxu0
    %2051 = vmatprep.mubr.f32.mxu0 0.0
    %2052 = vmatmul.mubr.f32.gmra.mrb[0].mxu0 %v1794
    %v2053 = vpop.f32.mrb[0].mxu0
    %v2054 = vadd.f32 0.0, %v2053
    %v2055 = vpop.f32.mrb[0].mxu0
    %2056 = vmatprep.mubr.f32.mxu0 0.0
    %2057 = vmatmul.mubr.f32.gmra.mrb[0].mxu0 %v1795
    %v2058 = vpop.f32.mrb[0].mxu0
    %v2059 = vadd.f32 0.0, %v2058
    %v2060 = vpop.f32.mrb[0].mxu0
    %2061 = vmatprep.mubr.f32.mxu0 0.0
    %2062 = vmatmul.mubr.f32.gmra.mrb[0].mxu0 %v1796
    %v2063 = vpop.f32.mrb[0].mxu0
    %v2064 = vadd.f32 0.0, %v2063
    %v2065 = vpop.f32.mrb[0].mxu0
    %2066 = vmatprep.mubr.f32.mxu0 0.0
    %2067 = vmatmul.mubr.f32.gmra.mrb[0].mxu0 %v1797
    %v2068 = vpop.f32.mrb[0].mxu0
    %v2069 = vadd.f32 0.0, %v2068
    %v2070 = vpop.f32.mrb[0].mxu0
    %2071 = vmatprep.mubr.f32.mxu0 0.0
    %2072 = vmatmul.mubr.f32.gmra.mrb[0].mxu0 %v1798
    %v2073 = vpop.f32.mrb[0].mxu0
    %v2074 = vadd.f32 0.0, %v2073
    %v2075 = vpop.f32.mrb[0].mxu0
    %2076 = vmatprep.mubr.f32.mxu0 0.0
    %2077 = vmatmul.mubr.f32.gmra.mrb[0].mxu0 %v1799
    %v2078 = vpop.f32.mrb[0].mxu0
    %v2079 = vadd.f32 0.0, %v2078
    %v2080 = vpop.f32.mrb[0].mxu0
    %2081 = vmatprep.mubr.f32.mxu0 0.0
    %2082 = vmatmul.mubr.f32.gmra.mrb[0].mxu0 %v1800
    %v2083 = vpop.f32.mrb[0].mxu0
    %v2084 = vadd.f32 0.0, %v2083
    %v2085 = vpop.f32.mrb[0].mxu0
    %2086 = vmatprep.mubr.f32.mxu0 0.0
    %2087 = vmatmul.mubr.f32.gmra.mrb[0].mxu0 %v1801
    %v2088 = vpop.f32.mrb[0].mxu0
    %v2089 = vadd.f32 0.0, %v2088
    %v2090 = vpop.f32.mrb[0].mxu0
    %2091 = vmatprep.mubr.f32.mxu0 0.0
    %2092 = vmatmul.mubr.f32.gmra.mrb[0].mxu0 %v1802
    %v2093 = vpop.f32.mrb[0].mxu0
    %v2094 = vadd.f32 0.0, %v2093
    %v2095 = vpop.f32.mrb[0].mxu0
    %2096 = vmatprep.mubr.f32.mxu0 0.0
    %2097 = vmatmul.mubr.f32.gmra.mrb[0].mxu0 %v1803
    %v2098 = vpop.f32.mrb[0].mxu0
    %v2099 = vadd.f32 0.0, %v2098
    %v2100 = vpop.f32.mrb[0].mxu0
    %2101 = vmatprep.mubr.f32.mxu0 0.0
    %2102 = vmatmul.mubr.f32.gmra.mrb[0].mxu0 %v1804
    %v2103 = vpop.f32.mrb[0].mxu0
    %v2104 = vadd.f32 0.0, %v2103
    %v2105 = vpop.f32.mrb[0].mxu0
    %2106 = vmatprep.mubr.f32.mxu0 0.0
    %2107 = vmatmul.mubr.f32.gmra.mrb[0].mxu0 %v1805
    %v2108 = vpop.f32.mrb[0].mxu0
    %v2109 = vadd.f32 0.0, %v2108
    %v2110 = vpop.f32.mrb[0].mxu0
    %2111 = vmatprep.mubr.f32.mxu0 0.0
    %2112 = vmatmul.mubr.f32.gmra.mrb[0].mxu0 %v1806
    %v2113 = vpop.f32.mrb[0].mxu0
    %v2114 = vadd.f32 0.0, %v2113
    %v2115 = vpop.f32.mrb[0].mxu0
    %2116 = vmatprep.mubr.f32.mxu0 0.0
    %2117 = vmatmul.mubr.f32.gmra.mrb[0].mxu0 %v1807
    %v2118 = vpop.f32.mrb[0].mxu0
    %v2119 = vadd.f32 0.0, %v2118
    %v2120 = vpop.f32.mrb[0].mxu0
    %2121 = vmatprep.mubr.f32.mxu0 0.0
    %2122 = vmatmul.mubr.f32.gmra.mrb[0].mxu0 %v1808
    %v2123 = vpop.f32.mrb[0].mxu0
    %v2124 = vadd.f32 0.0, %v2123
    %v2125 = vpop.f32.mrb[0].mxu0
    %2126 = vmatprep.mubr.f32.mxu0 0.0
    %2127 = vmatmul.mubr.f32.gmra.mrb[0].mxu0 %v1809
    %v2128 = vpop.f32.mrb[0].mxu0
    %v2129 = vadd.f32 0.0, %v2128
    %v2130 = vpop.f32.mrb[0].mxu0
    %2131 = vmatprep.mubr.f32.mxu0 0.0
    %2132 = vmatmul.mubr.f32.gmra.mrb[0].mxu0 %v1810
    %v2133 = vpop.f32.mrb[0].mxu0
    %v2134 = vadd.f32 0.0, %v2133
    %v2135 = vpop.f32.mrb[0].mxu0
    %2136 = vmatprep.mubr.f32.mxu0 0.0
    %2137 = vmatmul.mubr.f32.gmra.mrb[0].mxu0 %v1811
    %v2138 = vpop.f32.mrb[0].mxu0
    %v2139 = vadd.f32 0.0, %v2138
    %v2140 = vpop.f32.mrb[0].mxu0
    %2141 = vmatprep.mubr.f32.mxu0 0.0
    %2142 = vmatmul.mubr.f32.gmra.mrb[0].mxu0 %v1812
    %v2143 = vpop.f32.mrb[0].mxu0
    %v2144 = vadd.f32 0.0, %v2143
    %v2145 = vpop.f32.mrb[0].mxu0
    %2146 = vmatprep.mubr.f32.mxu0 0.0
    %2147 = vmatmul.mubr.f32.gmra.mrb[0].mxu0 %v1813
    %v2148 = vpop.f32.mrb[0].mxu0
    %v2149 = vadd.f32 0.0, %v2148
    %v2150 = vpop.f32.mrb[0].mxu0
    %2151 = vmatprep.mubr.f32.mxu0 0.0
    %2152 = vmatmul.mubr.f32.gmra.mrb[0].mxu0 %v1814
    %v2153 = vpop.f32.mrb[0].mxu0
    %v2154 = vadd.f32 0.0, %v2153
    %v2155 = vpop.f32.mrb[0].mxu0
    %2156 = vmatprep.mubr.f32.mxu0 0.0
    %2157 = vmatmul.mubr.f32.gmra.mrb[0].mxu0 %v1815
    %v2158 = vpop.f32.mrb[0].mxu0
    %v2159 = vadd.f32 0.0, %v2158
    %v2160 = vpop.f32.mrb[0].mxu0
    %2161 = vmatprep.mubr.f32.mxu0 0.0
    %2162 = vmatmul.mubr.f32.gmra.mrb[0].mxu0 %v1816
    %v2163 = vpop.f32.mrb[0].mxu0
    %v2164 = vadd.f32 0.0, %v2163
    %v2165 = vpop.f32.mrb[0].mxu0
    %2166 = vmatprep.mubr.f32.mxu0 0.0
    %2167 = vmatmul.mubr.f32.gmra.mrb[0].mxu0 %v1817
    %v2168 = vpop.f32.mrb[0].mxu0
    %v2169 = vadd.f32 0.0, %v2168
    %v2170 = vpop.f32.mrb[0].mxu0
    %2171 = vmatprep.mubr.f32.mxu0 0.0
    %2172 = vmatmul.mubr.f32.gmra.mrb[0].mxu0 %v1818
    %v2173 = vpop.f32.mrb[0].mxu0
    %v2174 = vadd.f32 0.0, %v2173
    %v2175 = vpop.f32.mrb[0].mxu0
    %2176 = vmatprep.mubr.f32.mxu0 0.0
    %2177 = vmatmul.mubr.f32.gmra.mrb[0].mxu0 %v1819
    %v2178 = vpop.f32.mrb[0].mxu0
    %v2179 = vadd.f32 0.0, %v2178
    %v2180 = vpop.f32.mrb[0].mxu0
    %2181 = vmatprep.mubr.f32.mxu0 0.0
    %2182 = vmatmul.mubr.f32.gmra.mrb[0].mxu0 %v1820
    %v2183 = vpop.f32.mrb[0].mxu0
    %v2184 = vadd.f32 0.0, %v2183
    %v2185 = vpop.f32.mrb[0].mxu0
    %2186 = vmatprep.mubr.f32.mxu0 0.0
    %2187 = vmatmul.mubr.f32.gmra.mrb[0].mxu0 %v1821
    %v2188 = vpop.f32.mrb[0].mxu0
    %v2189 = vadd.f32 0.0, %v2188
    %v2190 = vpop.f32.mrb[0].mxu0
    %2191 = vmatprep.mubr.f32.mxu0 0.0
    %2192 = vmatmul.mubr.f32.gmra.mrb[0].mxu0 %v1822
    %v2193 = vpop.f32.mrb[0].mxu0
    %v2194 = vadd.f32 0.0, %v2193
    %v2195 = vpop.f32.mrb[0].mxu0
    %2196 = vmatprep.mubr.f32.mxu0 0.0
    %2197 = vmatmul.mubr.f32.gmra.mrb[0].mxu0 %v1823
    %v2198 = vpop.f32.mrb[0].mxu0
    %v2199 = vadd.f32 0.0, %v2198
    %v2200 = vpop.f32.mrb[0].mxu0
    %2201 = vmatprep.mubr.f32.mxu0 0.0
    %2202 = vmatmul.mubr.f32.gmra.mrb[0].mxu0 %v1824
    %v2203 = vpop.f32.mrb[0].mxu0
    %v2204 = vadd.f32 0.0, %v2203
    %v2205 = vpop.f32.mrb[0].mxu0
    %2206 = vmatprep.mubr.f32.mxu0 0.0
    %2207 = vmatmul.mubr.f32.gmra.mrb[0].mxu0 %v1825
    %v2208 = vpop.f32.mrb[0].mxu0
    %v2209 = vadd.f32 0.0, %v2208
    %v2210 = vpop.f32.mrb[0].mxu0
    %2211 = vmatprep.mubr.f32.mxu0 0.0
    %2212 = vmatmul.mubr.f32.gmra.mrb[0].mxu0 %v1826
    %v2213 = vpop.f32.mrb[0].mxu0
    %v2214 = vadd.f32 0.0, %v2213
    %v2215 = vpop.f32.mrb[0].mxu0
    %2216 = vmatprep.mubr.f32.mxu0 0.0
    %2217 = vmatmul.mubr.f32.gmra.mrb[0].mxu0 %v1827
    %v2218 = vpop.f32.mrb[0].mxu0
    %v2219 = vadd.f32 0.0, %v2218
    %v2220 = vpop.f32.mrb[0].mxu0
    %2221 = vmatprep.mubr.f32.mxu0 0.0
    %2222 = vmatmul.mubr.f32.gmra.mrb[0].mxu0 %v1828
    %v2223 = vpop.f32.mrb[0].mxu0
    %v2224 = vadd.f32 0.0, %v2223
    %v2225 = vpop.f32.mrb[0].mxu0
    %2226 = vmatprep.mubr.f32.mxu0 0.0
    %2227 = vmatmul.mubr.f32.gmra.mrb[0].mxu0 %v1829
    %v2228 = vpop.f32.mrb[0].mxu0
    %v2229 = vadd.f32 0.0, %v2228
    %v2230 = vpop.f32.mrb[0].mxu0
    %2231 = vdwg.mxu0
    %v2232 = vadd.f32 %v1702, %v1914
    %v2233 = vadd.f32 %v1703, %v1919
    %v2234 = vadd.f32 %v1704, %v1924
    %v2235 = vadd.f32 %v1705, %v1929
    %v2236 = vadd.f32 %v1706, %v1934
    %v2237 = vadd.f32 %v1707, %v1939
    %v2238 = vadd.f32 %v1708, %v1944
    %v2239 = vadd.f32 %v1709, %v1949
    %v2240 = vadd.f32 %v1710, %v1954
    %v2241 = vadd.f32 %v1711, %v1959
    %v2242 = vadd.f32 %v1712, %v1964
    %v2243 = vadd.f32 %v1713, %v1969
    %v2244 = vadd.f32 %v1714, %v1974
    %v2245 = vadd.f32 %v1715, %v1979
    %v2246 = vadd.f32 %v1716, %v1984
    %v2247 = vadd.f32 %v1717, %v1989
    %v2248 = vadd.f32 %v1718, %v1994
    %v2249 = vadd.f32 %v1719, %v1999
    %v2250 = vadd.f32 %v1720, %v2004
    %v2251 = vadd.f32 %v1721, %v2009
    %v2252 = vadd.f32 %v1722, %v2014
    %v2253 = vadd.f32 %v1723, %v2019
    %v2254 = vadd.f32 %v1724, %v2024
    %v2255 = vadd.f32 %v1725, %v2029
    %v2256 = vadd.f32 %v1726, %v2034
    %v2257 = vadd.f32 %v1727, %v2039
    %v2258 = vadd.f32 %v1728, %v2044
    %v2259 = vadd.f32 %v1729, %v2049
    %v2260 = vadd.f32 %v1730, %v2054
    %v2261 = vadd.f32 %v1731, %v2059
    %v2262 = vadd.f32 %v1732, %v2064
    %v2263 = vadd.f32 %v1733, %v2069
    %v2264 = vadd.f32 %v1734, %v2074
    %v2265 = vadd.f32 %v1735, %v2079
    %v2266 = vadd.f32 %v1736, %v2084
    %v2267 = vadd.f32 %v1737, %v2089
    %v2268 = vadd.f32 %v1738, %v2094
    %v2269 = vadd.f32 %v1739, %v2099
    %v2270 = vadd.f32 %v1740, %v2104
    %v2271 = vadd.f32 %v1741, %v2109
    %v2272 = vadd.f32 %v1742, %v2114
    %v2273 = vadd.f32 %v1743, %v2119
    %v2274 = vadd.f32 %v1744, %v2124
    %v2275 = vadd.f32 %v1745, %v2129
    %v2276 = vadd.f32 %v1746, %v2134
    %v2277 = vadd.f32 %v1747, %v2139
    %v2278 = vadd.f32 %v1748, %v2144
    %v2279 = vadd.f32 %v1749, %v2149
    %v2280 = vadd.f32 %v1750, %v2154
    %v2281 = vadd.f32 %v1751, %v2159
    %v2282 = vadd.f32 %v1752, %v2164
    %v2283 = vadd.f32 %v1753, %v2169
    %v2284 = vadd.f32 %v1754, %v2174
    %v2285 = vadd.f32 %v1755, %v2179
    %v2286 = vadd.f32 %v1756, %v2184
    %v2287 = vadd.f32 %v1757, %v2189
    %v2288 = vadd.f32 %v1758, %v2194
    %v2289 = vadd.f32 %v1759, %v2199
    %v2290 = vadd.f32 %v1760, %v2204
    %v2291 = vadd.f32 %v1761, %v2209
    %v2292 = vadd.f32 %v1762, %v2214
    %v2293 = vadd.f32 %v1763, %v2219
    %v2294 = vadd.f32 %v1764, %v2224
    %v2295 = vadd.f32 %v1765, %v2229
    %v2296 = vld [vmem:[%s240 + $0x1] sm:$0xff]
    %v2297 = vld [vmem:[%s240 + $0x9] sm:$0xff]
    %v2298 = vld [vmem:[%s240 + $0x19] sm:$0xff]
    %v2299 = vld [vmem:[%s240 + $0x21] sm:$0xff]
    %v2300 = vld [vmem:[%s240 + $0x31] sm:$0xff]
    %v2301 = vld [vmem:[%s240 + $0x39] sm:$0xff]
    %v2302 = vld [vmem:[%s240 + $0x49] sm:$0xff]
    %v2303 = vld [vmem:[%s240 + $0x51] sm:$0xff]
    %v2304 = vld [vmem:[%s240 + $0x61] sm:$0xff]
    %v2305 = vld [vmem:[%s240 + $0x69] sm:$0xff]
    %v2306 = vld [vmem:[%s240 + $0x79] sm:$0xff]
    %v2307 = vld [vmem:[%s240 + $0x81] sm:$0xff]
    %v2308 = vld [vmem:[%s240 + $0x91] sm:$0xff]
    %v2309 = vld [vmem:[%s240 + $0x99] sm:$0xff]
    %v2310 = vld [vmem:[%s240 + $0xa9] sm:$0xff]
    %v2311 = vld [vmem:[%s240 + $0xb1] sm:$0xff]
    %v2312 = vld [vmem:[%s240 + $0xc1] sm:$0xff]
    %v2313 = vld [vmem:[%s240 + $0xc9] sm:$0xff]
    %v2314 = vld [vmem:[%s240 + $0xd9] sm:$0xff]
    %v2315 = vld [vmem:[%s240 + $0xe1] sm:$0xff]
    %v2316 = vld [vmem:[%s240 + $0xf1] sm:$0xff]
    %v2317 = vld [vmem:[%s240 + $0xf9] sm:$0xff]
    %v2318 = vld [vmem:[%s240 + $0x109] sm:$0xff]
    %v2319 = vld [vmem:[%s240 + $0x111] sm:$0xff]
    %v2320 = vld [vmem:[%s240 + $0x121] sm:$0xff]
    %v2321 = vld [vmem:[%s240 + $0x129] sm:$0xff]
    %v2322 = vld [vmem:[%s240 + $0x139] sm:$0xff]
    %v2323 = vld [vmem:[%s240 + $0x141] sm:$0xff]
    %v2324 = vld [vmem:[%s240 + $0x151] sm:$0xff]
    %v2325 = vld [vmem:[%s240 + $0x159] sm:$0xff]
    %v2326 = vld [vmem:[%s240 + $0x169] sm:$0xff]
    %v2327 = vld [vmem:[%s240 + $0x171] sm:$0xff]
    %v2328 = vld [vmem:[%s240 + $0x1b1] sm:$0xff]
    %v2329 = vld [vmem:[%s240 + $0x1b9] sm:$0xff]
    %v2330 = vld [vmem:[%s240 + $0x1c9] sm:$0xff]
    %v2331 = vld [vmem:[%s240 + $0x1d1] sm:$0xff]
    %v2332 = vld [vmem:[%s240 + $0x1e1] sm:$0xff]
    %v2333 = vld [vmem:[%s240 + $0x1e9] sm:$0xff]
    %v2334 = vld [vmem:[%s240 + $0x1f9] sm:$0xff]
    %v2335 = vld [vmem:[%s240 + $0x201] sm:$0xff]
    %v2336 = vld [vmem:[%s240 + $0x211] sm:$0xff]
    %v2337 = vld [vmem:[%s240 + $0x219] sm:$0xff]
    %v2338 = vld [vmem:[%s240 + $0x229] sm:$0xff]
    %v2339 = vld [vmem:[%s240 + $0x231] sm:$0xff]
    %v2340 = vld [vmem:[%s240 + $0x241] sm:$0xff]
    %v2341 = vld [vmem:[%s240 + $0x249] sm:$0xff]
    %v2342 = vld [vmem:[%s240 + $0x259] sm:$0xff]
    %v2343 = vld [vmem:[%s240 + $0x261] sm:$0xff]
    %v2344 = vld [vmem:[%s240 + $0x271] sm:$0xff]
    %v2345 = vld [vmem:[%s240 + $0x279] sm:$0xff]
    %v2346 = vld [vmem:[%s240 + $0x289] sm:$0xff]
    %v2347 = vld [vmem:[%s240 + $0x291] sm:$0xff]
    %v2348 = vld [vmem:[%s240 + $0x2a1] sm:$0xff]
    %v2349 = vld [vmem:[%s240 + $0x2a9] sm:$0xff]
    %v2350 = vld [vmem:[%s240 + $0x2b9] sm:$0xff]
    %v2351 = vld [vmem:[%s240 + $0x2c1] sm:$0xff]
    %v2352 = vld [vmem:[%s240 + $0x2d1] sm:$0xff]
    %v2353 = vld [vmem:[%s240 + $0x2d9] sm:$0xff]
    %v2354 = vld [vmem:[%s240 + $0x2e9] sm:$0xff]
    %v2355 = vld [vmem:[%s240 + $0x2f1] sm:$0xff]
    %v2356 = vld [vmem:[%s240 + $0x301] sm:$0xff]
    %v2357 = vld [vmem:[%s240 + $0x309] sm:$0xff]
    %v2358 = vld [vmem:[%s240 + $0x319] sm:$0xff]
    %v2359 = vld [vmem:[%s240 + $0x321] sm:$0xff]
    %s2360 = scalar_lea.vmem [#allocation6], 512
    %v2361 = vld [vmem:[%s2360] sm:$0xff]
    %v2362 = vld [vmem:[%s2360 + $0x8] sm:$0xff]
    %v2363 = vld [vmem:[%s2360 + $0x10] sm:$0xff]
    %v2364 = vld [vmem:[%s2360 + $0x18] sm:$0xff]
    %v2365 = vld [vmem:[%s2360 + $0x20] sm:$0xff]
    %v2366 = vld [vmem:[%s2360 + $0x28] sm:$0xff]
    %v2367 = vld [vmem:[%s2360 + $0x30] sm:$0xff]
    %v2368 = vld [vmem:[%s2360 + $0x38] sm:$0xff]
    %v2369 = vld [vmem:[%s2360 + $0x40] sm:$0xff]
    %v2370 = vld [vmem:[%s2360 + $0x48] sm:$0xff]
    %v2371 = vld [vmem:[%s2360 + $0x50] sm:$0xff]
    %v2372 = vld [vmem:[%s2360 + $0x58] sm:$0xff]
    %v2373 = vld [vmem:[%s2360 + $0x60] sm:$0xff]
    %v2374 = vld [vmem:[%s2360 + $0x68] sm:$0xff]
    %v2375 = vld [vmem:[%s2360 + $0x70] sm:$0xff]
    %v2376 = vld [vmem:[%s2360 + $0x78] sm:$0xff]
    %2377 = vmatprep.subr.mxu0 0.0
    %2378 = vmatpush1.msra.mxu0 %v2361
    %2379 = vmatprep.subr.mxu0 0.0
    %2380 = vmatpush1.msra.mxu0 %v2362
    %2381 = vmatprep.subr.mxu0 0.0
    %2382 = vmatpush1.msra.mxu0 %v2363
    %2383 = vmatprep.subr.mxu0 0.0
    %2384 = vmatpush1.msra.mxu0 %v2364
    %2385 = vmatprep.subr.mxu0 0.0
    %2386 = vmatpush1.msra.mxu0 %v2365
    %2387 = vmatprep.subr.mxu0 0.0
    %2388 = vmatpush1.msra.mxu0 %v2366
    %2389 = vmatprep.subr.mxu0 0.0
    %2390 = vmatpush1.msra.mxu0 %v2367
    %2391 = vmatprep.subr.mxu0 0.0
    %2392 = vmatpush1.msra.mxu0 %v2368
    %2393 = vmatprep.subr.mxu0 0.0
    %2394 = vmatpush1.msra.mxu0 %v2369
    %2395 = vmatprep.subr.mxu0 0.0
    %2396 = vmatpush1.msra.mxu0 %v2370
    %2397 = vmatprep.subr.mxu0 0.0
    %2398 = vmatpush1.msra.mxu0 %v2371
    %2399 = vmatprep.subr.mxu0 0.0
    %2400 = vmatpush1.msra.mxu0 %v2372
    %2401 = vmatprep.subr.mxu0 0.0
    %2402 = vmatpush1.msra.mxu0 %v2373
    %2403 = vmatprep.subr.mxu0 0.0
    %2404 = vmatpush1.msra.mxu0 %v2374
    %2405 = vmatprep.subr.mxu0 0.0
    %2406 = vmatpush1.msra.mxu0 %v2375
    %2407 = vmatprep.subr.mxu0 0.0
    %2408 = vmatpush1.msra.mxu0 %v2376
    %2409 = vmatprep.subr.mxu0 0.0
    %2410 = vmatpush1.msra.mxu0 0.0
    %2411 = vmatprep.subr.mxu0 0.0
    %2412 = vmatpush1.msra.mxu0 0.0
    %2413 = vmatprep.subr.mxu0 0.0
    %2414 = vmatpush1.msra.mxu0 0.0
    %2415 = vmatprep.subr.mxu0 0.0
    %2416 = vmatpush1.msra.mxu0 0.0
    %2417 = vmatprep.subr.mxu0 0.0
    %2418 = vmatpush1.msra.mxu0 0.0
    %2419 = vmatprep.subr.mxu0 0.0
    %2420 = vmatpush1.msra.mxu0 0.0
    %2421 = vmatprep.subr.mxu0 0.0
    %2422 = vmatpush1.msra.mxu0 0.0
    %2423 = vmatprep.subr.mxu0 0.0
    %2424 = vmatpush1.msra.mxu0 0.0
    %2425 = vmatprep.subr.mxu0 0.0
    %2426 = vmatpush1.msra.mxu0 0.0
    %2427 = vmatprep.subr.mxu0 0.0
    %2428 = vmatpush1.msra.mxu0 0.0
    %2429 = vmatprep.subr.mxu0 0.0
    %2430 = vmatpush1.msra.mxu0 0.0
    %2431 = vmatprep.subr.mxu0 0.0
    %2432 = vmatpush1.msra.mxu0 0.0
    %2433 = vmatprep.subr.mxu0 0.0
    %2434 = vmatpush1.msra.mxu0 0.0
    %2435 = vmatprep.subr.mxu0 0.0
    %2436 = vmatpush1.msra.mxu0 0.0
    %2437 = vmatprep.subr.mxu0 0.0
    %2438 = vmatpush1.msra.mxu0 0.0
    %2439 = vmatprep.subr.mxu0 0.0
    %2440 = vmatpush1.msra.mxu0 0.0
    %2441 = vmatprep.mubr.f32.mxu0 0.0
    %2442 = vmatmul.mubr.f32.gmra.mrb[0].mxu0 %v2296
    %v2443 = vpop.f32.mrb[0].mxu0
    %v2444 = vadd.f32 0.0, %v2443
    %v2445 = vpop.f32.mrb[0].mxu0
    %2446 = vmatprep.mubr.f32.mxu0 0.0
    %2447 = vmatmul.mubr.f32.gmra.mrb[0].mxu0 %v2297
    %v2448 = vpop.f32.mrb[0].mxu0
    %v2449 = vadd.f32 0.0, %v2448
    %v2450 = vpop.f32.mrb[0].mxu0
    %2451 = vmatprep.mubr.f32.mxu0 0.0
    %2452 = vmatmul.mubr.f32.gmra.mrb[0].mxu0 %v2298
    %v2453 = vpop.f32.mrb[0].mxu0
    %v2454 = vadd.f32 0.0, %v2453
    %v2455 = vpop.f32.mrb[0].mxu0
    %2456 = vmatprep.mubr.f32.mxu0 0.0
    %2457 = vmatmul.mubr.f32.gmra.mrb[0].mxu0 %v2299
    %v2458 = vpop.f32.mrb[0].mxu0
    %v2459 = vadd.f32 0.0, %v2458
    %v2460 = vpop.f32.mrb[0].mxu0
    %2461 = vmatprep.mubr.f32.mxu0 0.0
    %2462 = vmatmul.mubr.f32.gmra.mrb[0].mxu0 %v2300
    %v2463 = vpop.f32.mrb[0].mxu0
    %v2464 = vadd.f32 0.0, %v2463
    %v2465 = vpop.f32.mrb[0].mxu0
    %2466 = vmatprep.mubr.f32.mxu0 0.0
    %2467 = vmatmul.mubr.f32.gmra.mrb[0].mxu0 %v2301
    %v2468 = vpop.f32.mrb[0].mxu0
    %v2469 = vadd.f32 0.0, %v2468
    %v2470 = vpop.f32.mrb[0].mxu0
    %2471 = vmatprep.mubr.f32.mxu0 0.0
    %2472 = vmatmul.mubr.f32.gmra.mrb[0].mxu0 %v2302
    %v2473 = vpop.f32.mrb[0].mxu0
    %v2474 = vadd.f32 0.0, %v2473
    %v2475 = vpop.f32.mrb[0].mxu0
    %2476 = vmatprep.mubr.f32.mxu0 0.0
    %2477 = vmatmul.mubr.f32.gmra.mrb[0].mxu0 %v2303
    %v2478 = vpop.f32.mrb[0].mxu0
    %v2479 = vadd.f32 0.0, %v2478
    %v2480 = vpop.f32.mrb[0].mxu0
    %2481 = vmatprep.mubr.f32.mxu0 0.0
    %2482 = vmatmul.mubr.f32.gmra.mrb[0].mxu0 %v2304
    %v2483 = vpop.f32.mrb[0].mxu0
    %v2484 = vadd.f32 0.0, %v2483
    %v2485 = vpop.f32.mrb[0].mxu0
    %2486 = vmatprep.mubr.f32.mxu0 0.0
    %2487 = vmatmul.mubr.f32.gmra.mrb[0].mxu0 %v2305
    %v2488 = vpop.f32.mrb[0].mxu0
    %v2489 = vadd.f32 0.0, %v2488
    %v2490 = vpop.f32.mrb[0].mxu0
    %2491 = vmatprep.mubr.f32.mxu0 0.0
    %2492 = vmatmul.mubr.f32.gmra.mrb[0].mxu0 %v2306
    %v2493 = vpop.f32.mrb[0].mxu0
    %v2494 = vadd.f32 0.0, %v2493
    %v2495 = vpop.f32.mrb[0].mxu0
    %2496 = vmatprep.mubr.f32.mxu0 0.0
    %2497 = vmatmul.mubr.f32.gmra.mrb[0].mxu0 %v2307
    %v2498 = vpop.f32.mrb[0].mxu0
    %v2499 = vadd.f32 0.0, %v2498
    %v2500 = vpop.f32.mrb[0].mxu0
    %2501 = vmatprep.mubr.f32.mxu0 0.0
    %2502 = vmatmul.mubr.f32.gmra.mrb[0].mxu0 %v2308
    %v2503 = vpop.f32.mrb[0].mxu0
    %v2504 = vadd.f32 0.0, %v2503
    %v2505 = vpop.f32.mrb[0].mxu0
    %2506 = vmatprep.mubr.f32.mxu0 0.0
    %2507 = vmatmul.mubr.f32.gmra.mrb[0].mxu0 %v2309
    %v2508 = vpop.f32.mrb[0].mxu0
    %v2509 = vadd.f32 0.0, %v2508
    %v2510 = vpop.f32.mrb[0].mxu0
    %2511 = vmatprep.mubr.f32.mxu0 0.0
    %2512 = vmatmul.mubr.f32.gmra.mrb[0].mxu0 %v2310
    %v2513 = vpop.f32.mrb[0].mxu0
    %v2514 = vadd.f32 0.0, %v2513
    %v2515 = vpop.f32.mrb[0].mxu0
    %2516 = vmatprep.mubr.f32.mxu0 0.0
    %2517 = vmatmul.mubr.f32.gmra.mrb[0].mxu0 %v2311
    %v2518 = vpop.f32.mrb[0].mxu0
    %v2519 = vadd.f32 0.0, %v2518
    %v2520 = vpop.f32.mrb[0].mxu0
    %2521 = vmatprep.mubr.f32.mxu0 0.0
    %2522 = vmatmul.mubr.f32.gmra.mrb[0].mxu0 %v2312
    %v2523 = vpop.f32.mrb[0].mxu0
    %v2524 = vadd.f32 0.0, %v2523
    %v2525 = vpop.f32.mrb[0].mxu0
    %2526 = vmatprep.mubr.f32.mxu0 0.0
    %2527 = vmatmul.mubr.f32.gmra.mrb[0].mxu0 %v2313
    %v2528 = vpop.f32.mrb[0].mxu0
    %v2529 = vadd.f32 0.0, %v2528
    %v2530 = vpop.f32.mrb[0].mxu0
    %2531 = vmatprep.mubr.f32.mxu0 0.0
    %2532 = vmatmul.mubr.f32.gmra.mrb[0].mxu0 %v2314
    %v2533 = vpop.f32.mrb[0].mxu0
    %v2534 = vadd.f32 0.0, %v2533
    %v2535 = vpop.f32.mrb[0].mxu0
    %2536 = vmatprep.mubr.f32.mxu0 0.0
    %2537 = vmatmul.mubr.f32.gmra.mrb[0].mxu0 %v2315
    %v2538 = vpop.f32.mrb[0].mxu0
    %v2539 = vadd.f32 0.0, %v2538
    %v2540 = vpop.f32.mrb[0].mxu0
    %2541 = vmatprep.mubr.f32.mxu0 0.0
    %2542 = vmatmul.mubr.f32.gmra.mrb[0].mxu0 %v2316
    %v2543 = vpop.f32.mrb[0].mxu0
    %v2544 = vadd.f32 0.0, %v2543
    %v2545 = vpop.f32.mrb[0].mxu0
    %2546 = vmatprep.mubr.f32.mxu0 0.0
    %2547 = vmatmul.mubr.f32.gmra.mrb[0].mxu0 %v2317
    %v2548 = vpop.f32.mrb[0].mxu0
    %v2549 = vadd.f32 0.0, %v2548
    %v2550 = vpop.f32.mrb[0].mxu0
    %2551 = vmatprep.mubr.f32.mxu0 0.0
    %2552 = vmatmul.mubr.f32.gmra.mrb[0].mxu0 %v2318
    %v2553 = vpop.f32.mrb[0].mxu0
    %v2554 = vadd.f32 0.0, %v2553
    %v2555 = vpop.f32.mrb[0].mxu0
    %2556 = vmatprep.mubr.f32.mxu0 0.0
    %2557 = vmatmul.mubr.f32.gmra.mrb[0].mxu0 %v2319
    %v2558 = vpop.f32.mrb[0].mxu0
    %v2559 = vadd.f32 0.0, %v2558
    %v2560 = vpop.f32.mrb[0].mxu0
    %2561 = vmatprep.mubr.f32.mxu0 0.0
    %2562 = vmatmul.mubr.f32.gmra.mrb[0].mxu0 %v2320
    %v2563 = vpop.f32.mrb[0].mxu0
    %v2564 = vadd.f32 0.0, %v2563
    %v2565 = vpop.f32.mrb[0].mxu0
    %2566 = vmatprep.mubr.f32.mxu0 0.0
    %2567 = vmatmul.mubr.f32.gmra.mrb[0].mxu0 %v2321
    %v2568 = vpop.f32.mrb[0].mxu0
    %v2569 = vadd.f32 0.0, %v2568
    %v2570 = vpop.f32.mrb[0].mxu0
    %2571 = vmatprep.mubr.f32.mxu0 0.0
    %2572 = vmatmul.mubr.f32.gmra.mrb[0].mxu0 %v2322
    %v2573 = vpop.f32.mrb[0].mxu0
    %v2574 = vadd.f32 0.0, %v2573
    %v2575 = vpop.f32.mrb[0].mxu0
    %2576 = vmatprep.mubr.f32.mxu0 0.0
    %2577 = vmatmul.mubr.f32.gmra.mrb[0].mxu0 %v2323
    %v2578 = vpop.f32.mrb[0].mxu0
    %v2579 = vadd.f32 0.0, %v2578
    %v2580 = vpop.f32.mrb[0].mxu0
    %2581 = vmatprep.mubr.f32.mxu0 0.0
    %2582 = vmatmul.mubr.f32.gmra.mrb[0].mxu0 %v2324
    %v2583 = vpop.f32.mrb[0].mxu0
    %v2584 = vadd.f32 0.0, %v2583
    %v2585 = vpop.f32.mrb[0].mxu0
    %2586 = vmatprep.mubr.f32.mxu0 0.0
    %2587 = vmatmul.mubr.f32.gmra.mrb[0].mxu0 %v2325
    %v2588 = vpop.f32.mrb[0].mxu0
    %v2589 = vadd.f32 0.0, %v2588
    %v2590 = vpop.f32.mrb[0].mxu0
    %2591 = vmatprep.mubr.f32.mxu0 0.0
    %2592 = vmatmul.mubr.f32.gmra.mrb[0].mxu0 %v2326
    %v2593 = vpop.f32.mrb[0].mxu0
    %v2594 = vadd.f32 0.0, %v2593
    %v2595 = vpop.f32.mrb[0].mxu0
    %2596 = vmatprep.mubr.f32.mxu0 0.0
    %2597 = vmatmul.mubr.f32.gmra.mrb[0].mxu0 %v2327
    %v2598 = vpop.f32.mrb[0].mxu0
    %v2599 = vadd.f32 0.0, %v2598
    %v2600 = vpop.f32.mrb[0].mxu0
    %2601 = vmatprep.mubr.f32.mxu0 0.0
    %2602 = vmatmul.mubr.f32.gmra.mrb[0].mxu0 %v2328
    %v2603 = vpop.f32.mrb[0].mxu0
    %v2604 = vadd.f32 0.0, %v2603
    %v2605 = vpop.f32.mrb[0].mxu0
    %2606 = vmatprep.mubr.f32.mxu0 0.0
    %2607 = vmatmul.mubr.f32.gmra.mrb[0].mxu0 %v2329
    %v2608 = vpop.f32.mrb[0].mxu0
    %v2609 = vadd.f32 0.0, %v2608
    %v2610 = vpop.f32.mrb[0].mxu0
    %2611 = vmatprep.mubr.f32.mxu0 0.0
    %2612 = vmatmul.mubr.f32.gmra.mrb[0].mxu0 %v2330
    %v2613 = vpop.f32.mrb[0].mxu0
    %v2614 = vadd.f32 0.0, %v2613
    %v2615 = vpop.f32.mrb[0].mxu0
    %2616 = vmatprep.mubr.f32.mxu0 0.0
    %2617 = vmatmul.mubr.f32.gmra.mrb[0].mxu0 %v2331
    %v2618 = vpop.f32.mrb[0].mxu0
    %v2619 = vadd.f32 0.0, %v2618
    %v2620 = vpop.f32.mrb[0].mxu0
    %2621 = vmatprep.mubr.f32.mxu0 0.0
    %2622 = vmatmul.mubr.f32.gmra.mrb[0].mxu0 %v2332
    %v2623 = vpop.f32.mrb[0].mxu0
    %v2624 = vadd.f32 0.0, %v2623
    %v2625 = vpop.f32.mrb[0].mxu0
    %2626 = vmatprep.mubr.f32.mxu0 0.0
    %2627 = vmatmul.mubr.f32.gmra.mrb[0].mxu0 %v2333
    %v2628 = vpop.f32.mrb[0].mxu0
    %v2629 = vadd.f32 0.0, %v2628
    %v2630 = vpop.f32.mrb[0].mxu0
    %2631 = vmatprep.mubr.f32.mxu0 0.0
    %2632 = vmatmul.mubr.f32.gmra.mrb[0].mxu0 %v2334
    %v2633 = vpop.f32.mrb[0].mxu0
    %v2634 = vadd.f32 0.0, %v2633
    %v2635 = vpop.f32.mrb[0].mxu0
    %2636 = vmatprep.mubr.f32.mxu0 0.0
    %2637 = vmatmul.mubr.f32.gmra.mrb[0].mxu0 %v2335
    %v2638 = vpop.f32.mrb[0].mxu0
    %v2639 = vadd.f32 0.0, %v2638
    %v2640 = vpop.f32.mrb[0].mxu0
    %2641 = vmatprep.mubr.f32.mxu0 0.0
    %2642 = vmatmul.mubr.f32.gmra.mrb[0].mxu0 %v2336
    %v2643 = vpop.f32.mrb[0].mxu0
    %v2644 = vadd.f32 0.0, %v2643
    %v2645 = vpop.f32.mrb[0].mxu0
    %2646 = vmatprep.mubr.f32.mxu0 0.0
    %2647 = vmatmul.mubr.f32.gmra.mrb[0].mxu0 %v2337
    %v2648 = vpop.f32.mrb[0].mxu0
    %v2649 = vadd.f32 0.0, %v2648
    %v2650 = vpop.f32.mrb[0].mxu0
    %2651 = vmatprep.mubr.f32.mxu0 0.0
    %2652 = vmatmul.mubr.f32.gmra.mrb[0].mxu0 %v2338
    %v2653 = vpop.f32.mrb[0].mxu0
    %v2654 = vadd.f32 0.0, %v2653
    %v2655 = vpop.f32.mrb[0].mxu0
    %2656 = vmatprep.mubr.f32.mxu0 0.0
    %2657 = vmatmul.mubr.f32.gmra.mrb[0].mxu0 %v2339
    %v2658 = vpop.f32.mrb[0].mxu0
    %v2659 = vadd.f32 0.0, %v2658
    %v2660 = vpop.f32.mrb[0].mxu0
    %2661 = vmatprep.mubr.f32.mxu0 0.0
    %2662 = vmatmul.mubr.f32.gmra.mrb[0].mxu0 %v2340
    %v2663 = vpop.f32.mrb[0].mxu0
    %v2664 = vadd.f32 0.0, %v2663
    %v2665 = vpop.f32.mrb[0].mxu0
    %2666 = vmatprep.mubr.f32.mxu0 0.0
    %2667 = vmatmul.mubr.f32.gmra.mrb[0].mxu0 %v2341
    %v2668 = vpop.f32.mrb[0].mxu0
    %v2669 = vadd.f32 0.0, %v2668
    %v2670 = vpop.f32.mrb[0].mxu0
    %2671 = vmatprep.mubr.f32.mxu0 0.0
    %2672 = vmatmul.mubr.f32.gmra.mrb[0].mxu0 %v2342
    %v2673 = vpop.f32.mrb[0].mxu0
    %v2674 = vadd.f32 0.0, %v2673
    %v2675 = vpop.f32.mrb[0].mxu0
    %2676 = vmatprep.mubr.f32.mxu0 0.0
    %2677 = vmatmul.mubr.f32.gmra.mrb[0].mxu0 %v2343
    %v2678 = vpop.f32.mrb[0].mxu0
    %v2679 = vadd.f32 0.0, %v2678
    %v2680 = vpop.f32.mrb[0].mxu0
    %2681 = vmatprep.mubr.f32.mxu0 0.0
    %2682 = vmatmul.mubr.f32.gmra.mrb[0].mxu0 %v2344
    %v2683 = vpop.f32.mrb[0].mxu0
    %v2684 = vadd.f32 0.0, %v2683
    %v2685 = vpop.f32.mrb[0].mxu0
    %2686 = vmatprep.mubr.f32.mxu0 0.0
    %2687 = vmatmul.mubr.f32.gmra.mrb[0].mxu0 %v2345
    %v2688 = vpop.f32.mrb[0].mxu0
    %v2689 = vadd.f32 0.0, %v2688
    %v2690 = vpop.f32.mrb[0].mxu0
    %2691 = vmatprep.mubr.f32.mxu0 0.0
    %2692 = vmatmul.mubr.f32.gmra.mrb[0].mxu0 %v2346
    %v2693 = vpop.f32.mrb[0].mxu0
    %v2694 = vadd.f32 0.0, %v2693
    %v2695 = vpop.f32.mrb[0].mxu0
    %2696 = vmatprep.mubr.f32.mxu0 0.0
    %2697 = vmatmul.mubr.f32.gmra.mrb[0].mxu0 %v2347
    %v2698 = vpop.f32.mrb[0].mxu0
    %v2699 = vadd.f32 0.0, %v2698
    %v2700 = vpop.f32.mrb[0].mxu0
    %2701 = vmatprep.mubr.f32.mxu0 0.0
    %2702 = vmatmul.mubr.f32.gmra.mrb[0].mxu0 %v2348
    %v2703 = vpop.f32.mrb[0].mxu0
    %v2704 = vadd.f32 0.0, %v2703
    %v2705 = vpop.f32.mrb[0].mxu0
    %2706 = vmatprep.mubr.f32.mxu0 0.0
    %2707 = vmatmul.mubr.f32.gmra.mrb[0].mxu0 %v2349
    %v2708 = vpop.f32.mrb[0].mxu0
    %v2709 = vadd.f32 0.0, %v2708
    %v2710 = vpop.f32.mrb[0].mxu0
    %2711 = vmatprep.mubr.f32.mxu0 0.0
    %2712 = vmatmul.mubr.f32.gmra.mrb[0].mxu0 %v2350
    %v2713 = vpop.f32.mrb[0].mxu0
    %v2714 = vadd.f32 0.0, %v2713
    %v2715 = vpop.f32.mrb[0].mxu0
    %2716 = vmatprep.mubr.f32.mxu0 0.0
    %2717 = vmatmul.mubr.f32.gmra.mrb[0].mxu0 %v2351
    %v2718 = vpop.f32.mrb[0].mxu0
    %v2719 = vadd.f32 0.0, %v2718
    %v2720 = vpop.f32.mrb[0].mxu0
    %2721 = vmatprep.mubr.f32.mxu0 0.0
    %2722 = vmatmul.mubr.f32.gmra.mrb[0].mxu0 %v2352
    %v2723 = vpop.f32.mrb[0].mxu0
    %v2724 = vadd.f32 0.0, %v2723
    %v2725 = vpop.f32.mrb[0].mxu0
    %2726 = vmatprep.mubr.f32.mxu0 0.0
    %2727 = vmatmul.mubr.f32.gmra.mrb[0].mxu0 %v2353
    %v2728 = vpop.f32.mrb[0].mxu0
    %v2729 = vadd.f32 0.0, %v2728
    %v2730 = vpop.f32.mrb[0].mxu0
    %2731 = vmatprep.mubr.f32.mxu0 0.0
    %2732 = vmatmul.mubr.f32.gmra.mrb[0].mxu0 %v2354
    %v2733 = vpop.f32.mrb[0].mxu0
    %v2734 = vadd.f32 0.0, %v2733
    %v2735 = vpop.f32.mrb[0].mxu0
    %2736 = vmatprep.mubr.f32.mxu0 0.0
    %2737 = vmatmul.mubr.f32.gmra.mrb[0].mxu0 %v2355
    %v2738 = vpop.f32.mrb[0].mxu0
    %v2739 = vadd.f32 0.0, %v2738
    %v2740 = vpop.f32.mrb[0].mxu0
    %2741 = vmatprep.mubr.f32.mxu0 0.0
    %2742 = vmatmul.mubr.f32.gmra.mrb[0].mxu0 %v2356
    %v2743 = vpop.f32.mrb[0].mxu0
    %v2744 = vadd.f32 0.0, %v2743
    %v2745 = vpop.f32.mrb[0].mxu0
    %2746 = vmatprep.mubr.f32.mxu0 0.0
    %2747 = vmatmul.mubr.f32.gmra.mrb[0].mxu0 %v2357
    %v2748 = vpop.f32.mrb[0].mxu0
    %v2749 = vadd.f32 0.0, %v2748
    %v2750 = vpop.f32.mrb[0].mxu0
    %2751 = vmatprep.mubr.f32.mxu0 0.0
    %2752 = vmatmul.mubr.f32.gmra.mrb[0].mxu0 %v2358
    %v2753 = vpop.f32.mrb[0].mxu0
    %v2754 = vadd.f32 0.0, %v2753
    %v2755 = vpop.f32.mrb[0].mxu0
    %2756 = vmatprep.mubr.f32.mxu0 0.0
    %2757 = vmatmul.mubr.f32.gmra.mrb[0].mxu0 %v2359
    %v2758 = vpop.f32.mrb[0].mxu0
    %v2759 = vadd.f32 0.0, %v2758
    %v2760 = vpop.f32.mrb[0].mxu0
    %2761 = vdwg.mxu0
    %v2762 = vadd.f32 %v2232, %v2444
    %v2763 = vadd.f32 %v2233, %v2449
    %v2764 = vadd.f32 %v2234, %v2454
    %v2765 = vadd.f32 %v2235, %v2459
    %v2766 = vadd.f32 %v2236, %v2464
    %v2767 = vadd.f32 %v2237, %v2469
    %v2768 = vadd.f32 %v2238, %v2474
    %v2769 = vadd.f32 %v2239, %v2479
    %v2770 = vadd.f32 %v2240, %v2484
    %v2771 = vadd.f32 %v2241, %v2489
    %v2772 = vadd.f32 %v2242, %v2494
    %v2773 = vadd.f32 %v2243, %v2499
    %v2774 = vadd.f32 %v2244, %v2504
    %v2775 = vadd.f32 %v2245, %v2509
    %v2776 = vadd.f32 %v2246, %v2514
    %v2777 = vadd.f32 %v2247, %v2519
    %v2778 = vadd.f32 %v2248, %v2524
    %v2779 = vadd.f32 %v2249, %v2529
    %v2780 = vadd.f32 %v2250, %v2534
    %v2781 = vadd.f32 %v2251, %v2539
    %v2782 = vadd.f32 %v2252, %v2544
    %v2783 = vadd.f32 %v2253, %v2549
    %v2784 = vadd.f32 %v2254, %v2554
    %v2785 = vadd.f32 %v2255, %v2559
    %v2786 = vadd.f32 %v2256, %v2564
    %v2787 = vadd.f32 %v2257, %v2569
    %v2788 = vadd.f32 %v2258, %v2574
    %v2789 = vadd.f32 %v2259, %v2579
    %v2790 = vadd.f32 %v2260, %v2584
    %v2791 = vadd.f32 %v2261, %v2589
    %v2792 = vadd.f32 %v2262, %v2594
    %v2793 = vadd.f32 %v2263, %v2599
    %v2794 = vadd.f32 %v2264, %v2604
    %v2795 = vadd.f32 %v2265, %v2609
    %v2796 = vadd.f32 %v2266, %v2614
    %v2797 = vadd.f32 %v2267, %v2619
    %v2798 = vadd.f32 %v2268, %v2624
    %v2799 = vadd.f32 %v2269, %v2629
    %v2800 = vadd.f32 %v2270, %v2634
    %v2801 = vadd.f32 %v2271, %v2639
    %v2802 = vadd.f32 %v2272, %v2644
    %v2803 = vadd.f32 %v2273, %v2649
    %v2804 = vadd.f32 %v2274, %v2654
    %v2805 = vadd.f32 %v2275, %v2659
    %v2806 = vadd.f32 %v2276, %v2664
    %v2807 = vadd.f32 %v2277, %v2669
    %v2808 = vadd.f32 %v2278, %v2674
    %v2809 = vadd.f32 %v2279, %v2679
    %v2810 = vadd.f32 %v2280, %v2684
    %v2811 = vadd.f32 %v2281, %v2689
    %v2812 = vadd.f32 %v2282, %v2694
    %v2813 = vadd.f32 %v2283, %v2699
    %v2814 = vadd.f32 %v2284, %v2704
    %v2815 = vadd.f32 %v2285, %v2709
    %v2816 = vadd.f32 %v2286, %v2714
    %v2817 = vadd.f32 %v2287, %v2719
    %v2818 = vadd.f32 %v2288, %v2724
    %v2819 = vadd.f32 %v2289, %v2729
    %v2820 = vadd.f32 %v2290, %v2734
    %v2821 = vadd.f32 %v2291, %v2739
    %v2822 = vadd.f32 %v2292, %v2744
    %v2823 = vadd.f32 %v2293, %v2749
    %v2824 = vadd.f32 %v2294, %v2754
    %v2825 = vadd.f32 %v2295, %v2759
    %v2826 = vld [vmem:[%s240 + $0x2] sm:$0xff]
    %v2827 = vld [vmem:[%s240 + $0xa] sm:$0xff]
    %v2828 = vld [vmem:[%s240 + $0x1a] sm:$0xff]
    %v2829 = vld [vmem:[%s240 + $0x22] sm:$0xff]
    %v2830 = vld [vmem:[%s240 + $0x32] sm:$0xff]
    %v2831 = vld [vmem:[%s240 + $0x3a] sm:$0xff]
    %v2832 = vld [vmem:[%s240 + $0x4a] sm:$0xff]
    %v2833 = vld [vmem:[%s240 + $0x52] sm:$0xff]
    %v2834 = vld [vmem:[%s240 + $0x62] sm:$0xff]
    %v2835 = vld [vmem:[%s240 + $0x6a] sm:$0xff]
    %v2836 = vld [vmem:[%s240 + $0x7a] sm:$0xff]
    %v2837 = vld [vmem:[%s240 + $0x82] sm:$0xff]
    %v2838 = vld [vmem:[%s240 + $0x92] sm:$0xff]
    %v2839 = vld [vmem:[%s240 + $0x9a] sm:$0xff]
    %v2840 = vld [vmem:[%s240 + $0xaa] sm:$0xff]
    %v2841 = vld [vmem:[%s240 + $0xb2] sm:$0xff]
    %v2842 = vld [vmem:[%s240 + $0xc2] sm:$0xff]
    %v2843 = vld [vmem:[%s240 + $0xca] sm:$0xff]
    %v2844 = vld [vmem:[%s240 + $0xda] sm:$0xff]
    %v2845 = vld [vmem:[%s240 + $0xe2] sm:$0xff]
    %v2846 = vld [vmem:[%s240 + $0xf2] sm:$0xff]
    %v2847 = vld [vmem:[%s240 + $0xfa] sm:$0xff]
    %v2848 = vld [vmem:[%s240 + $0x10a] sm:$0xff]
    %v2849 = vld [vmem:[%s240 + $0x112] sm:$0xff]
    %v2850 = vld [vmem:[%s240 + $0x122] sm:$0xff]
    %v2851 = vld [vmem:[%s240 + $0x12a] sm:$0xff]
    %v2852 = vld [vmem:[%s240 + $0x13a] sm:$0xff]
    %v2853 = vld [vmem:[%s240 + $0x142] sm:$0xff]
    %v2854 = vld [vmem:[%s240 + $0x152] sm:$0xff]
    %v2855 = vld [vmem:[%s240 + $0x15a] sm:$0xff]
    %v2856 = vld [vmem:[%s240 + $0x16a] sm:$0xff]
    %v2857 = vld [vmem:[%s240 + $0x172] sm:$0xff]
    %v2858 = vld [vmem:[%s240 + $0x1b2] sm:$0xff]
    %v2859 = vld [vmem:[%s240 + $0x1ba] sm:$0xff]
    %v2860 = vld [vmem:[%s240 + $0x1ca] sm:$0xff]
    %v2861 = vld [vmem:[%s240 + $0x1d2] sm:$0xff]
    %v2862 = vld [vmem:[%s240 + $0x1e2] sm:$0xff]
    %v2863 = vld [vmem:[%s240 + $0x1ea] sm:$0xff]
    %v2864 = vld [vmem:[%s240 + $0x1fa] sm:$0xff]
    %v2865 = vld [vmem:[%s240 + $0x202] sm:$0xff]
    %v2866 = vld [vmem:[%s240 + $0x212] sm:$0xff]
    %v2867 = vld [vmem:[%s240 + $0x21a] sm:$0xff]
    %v2868 = vld [vmem:[%s240 + $0x22a] sm:$0xff]
    %v2869 = vld [vmem:[%s240 + $0x232] sm:$0xff]
    %v2870 = vld [vmem:[%s240 + $0x242] sm:$0xff]
    %v2871 = vld [vmem:[%s240 + $0x24a] sm:$0xff]
    %v2872 = vld [vmem:[%s240 + $0x25a] sm:$0xff]
    %v2873 = vld [vmem:[%s240 + $0x262] sm:$0xff]
    %v2874 = vld [vmem:[%s240 + $0x272] sm:$0xff]
    %v2875 = vld [vmem:[%s240 + $0x27a] sm:$0xff]
    %v2876 = vld [vmem:[%s240 + $0x28a] sm:$0xff]
    %v2877 = vld [vmem:[%s240 + $0x292] sm:$0xff]
    %v2878 = vld [vmem:[%s240 + $0x2a2] sm:$0xff]
    %v2879 = vld [vmem:[%s240 + $0x2aa] sm:$0xff]
    %v2880 = vld [vmem:[%s240 + $0x2ba] sm:$0xff]
    %v2881 = vld [vmem:[%s240 + $0x2c2] sm:$0xff]
    %v2882 = vld [vmem:[%s240 + $0x2d2] sm:$0xff]
    %v2883 = vld [vmem:[%s240 + $0x2da] sm:$0xff]
    %v2884 = vld [vmem:[%s240 + $0x2ea] sm:$0xff]
    %v2885 = vld [vmem:[%s240 + $0x2f2] sm:$0xff]
    %v2886 = vld [vmem:[%s240 + $0x302] sm:$0xff]
    %v2887 = vld [vmem:[%s240 + $0x30a] sm:$0xff]
    %v2888 = vld [vmem:[%s240 + $0x31a] sm:$0xff]
    %v2889 = vld [vmem:[%s240 + $0x322] sm:$0xff]
    %s2890 = scalar_lea.vmem [#allocation6], 640
    %v2891 = vld [vmem:[%s2890] sm:$0xff]
    %v2892 = vld [vmem:[%s2890 + $0x8] sm:$0xff]
    %v2893 = vld [vmem:[%s2890 + $0x10] sm:$0xff]
    %v2894 = vld [vmem:[%s2890 + $0x18] sm:$0xff]
    %v2895 = vld [vmem:[%s2890 + $0x20] sm:$0xff]
    %v2896 = vld [vmem:[%s2890 + $0x28] sm:$0xff]
    %v2897 = vld [vmem:[%s2890 + $0x30] sm:$0xff]
    %v2898 = vld [vmem:[%s2890 + $0x38] sm:$0xff]
    %v2899 = vld [vmem:[%s2890 + $0x40] sm:$0xff]
    %v2900 = vld [vmem:[%s2890 + $0x48] sm:$0xff]
    %v2901 = vld [vmem:[%s2890 + $0x50] sm:$0xff]
    %v2902 = vld [vmem:[%s2890 + $0x58] sm:$0xff]
    %v2903 = vld [vmem:[%s2890 + $0x60] sm:$0xff]
    %v2904 = vld [vmem:[%s2890 + $0x68] sm:$0xff]
    %v2905 = vld [vmem:[%s2890 + $0x70] sm:$0xff]
    %v2906 = vld [vmem:[%s2890 + $0x78] sm:$0xff]
    %2907 = vmatprep.subr.mxu0 0.0
    %2908 = vmatpush1.msra.mxu0 %v2891
    %2909 = vmatprep.subr.mxu0 0.0
    %2910 = vmatpush1.msra.mxu0 %v2892
    %2911 = vmatprep.subr.mxu0 0.0
    %2912 = vmatpush1.msra.mxu0 %v2893
    %2913 = vmatprep.subr.mxu0 0.0
    %2914 = vmatpush1.msra.mxu0 %v2894
    %2915 = vmatprep.subr.mxu0 0.0
    %2916 = vmatpush1.msra.mxu0 %v2895
    %2917 = vmatprep.subr.mxu0 0.0
    %2918 = vmatpush1.msra.mxu0 %v2896
    %2919 = vmatprep.subr.mxu0 0.0
    %2920 = vmatpush1.msra.mxu0 %v2897
    %2921 = vmatprep.subr.mxu0 0.0
    %2922 = vmatpush1.msra.mxu0 %v2898
    %2923 = vmatprep.subr.mxu0 0.0
    %2924 = vmatpush1.msra.mxu0 %v2899
    %2925 = vmatprep.subr.mxu0 0.0
    %2926 = vmatpush1.msra.mxu0 %v2900
    %2927 = vmatprep.subr.mxu0 0.0
    %2928 = vmatpush1.msra.mxu0 %v2901
    %2929 = vmatprep.subr.mxu0 0.0
    %2930 = vmatpush1.msra.mxu0 %v2902
    %2931 = vmatprep.subr.mxu0 0.0
    %2932 = vmatpush1.msra.mxu0 %v2903
    %2933 = vmatprep.subr.mxu0 0.0
    %2934 = vmatpush1.msra.mxu0 %v2904
    %2935 = vmatprep.subr.mxu0 0.0
    %2936 = vmatpush1.msra.mxu0 %v2905
    %2937 = vmatprep.subr.mxu0 0.0
    %2938 = vmatpush1.msra.mxu0 %v2906
    %2939 = vmatprep.subr.mxu0 0.0
    %2940 = vmatpush1.msra.mxu0 0.0
    %2941 = vmatprep.subr.mxu0 0.0
    %2942 = vmatpush1.msra.mxu0 0.0
    %2943 = vmatprep.subr.mxu0 0.0
    %2944 = vmatpush1.msra.mxu0 0.0
    %2945 = vmatprep.subr.mxu0 0.0
    %2946 = vmatpush1.msra.mxu0 0.0
    %2947 = vmatprep.subr.mxu0 0.0
    %2948 = vmatpush1.msra.mxu0 0.0
    %2949 = vmatprep.subr.mxu0 0.0
    %2950 = vmatpush1.msra.mxu0 0.0
    %2951 = vmatprep.subr.mxu0 0.0
    %2952 = vmatpush1.msra.mxu0 0.0
    %2953 = vmatprep.subr.mxu0 0.0
    %2954 = vmatpush1.msra.mxu0 0.0
    %2955 = vmatprep.subr.mxu0 0.0
    %2956 = vmatpush1.msra.mxu0 0.0
    %2957 = vmatprep.subr.mxu0 0.0
    %2958 = vmatpush1.msra.mxu0 0.0
    %2959 = vmatprep.subr.mxu0 0.0
    %2960 = vmatpush1.msra.mxu0 0.0
    %2961 = vmatprep.subr.mxu0 0.0
    %2962 = vmatpush1.msra.mxu0 0.0
    %2963 = vmatprep.subr.mxu0 0.0
    %2964 = vmatpush1.msra.mxu0 0.0
    %2965 = vmatprep.subr.mxu0 0.0
    %2966 = vmatpush1.msra.mxu0 0.0
    %2967 = vmatprep.subr.mxu0 0.0
    %2968 = vmatpush1.msra.mxu0 0.0
    %2969 = vmatprep.subr.mxu0 0.0
    %2970 = vmatpush1.msra.mxu0 0.0
    %2971 = vmatprep.mubr.f32.mxu0 0.0
    %2972 = vmatmul.mubr.f32.gmra.mrb[0].mxu0 %v2826
    %v2973 = vpop.f32.mrb[0].mxu0
    %v2974 = vadd.f32 0.0, %v2973
    %v2975 = vpop.f32.mrb[0].mxu0
    %2976 = vmatprep.mubr.f32.mxu0 0.0
    %2977 = vmatmul.mubr.f32.gmra.mrb[0].mxu0 %v2827
    %v2978 = vpop.f32.mrb[0].mxu0
    %v2979 = vadd.f32 0.0, %v2978
    %v2980 = vpop.f32.mrb[0].mxu0
    %2981 = vmatprep.mubr.f32.mxu0 0.0
    %2982 = vmatmul.mubr.f32.gmra.mrb[0].mxu0 %v2828
    %v2983 = vpop.f32.mrb[0].mxu0
    %v2984 = vadd.f32 0.0, %v2983
    %v2985 = vpop.f32.mrb[0].mxu0
    %2986 = vmatprep.mubr.f32.mxu0 0.0
    %2987 = vmatmul.mubr.f32.gmra.mrb[0].mxu0 %v2829
    %v2988 = vpop.f32.mrb[0].mxu0
    %v2989 = vadd.f32 0.0, %v2988
    %v2990 = vpop.f32.mrb[0].mxu0
    %2991 = vmatprep.mubr.f32.mxu0 0.0
    %2992 = vmatmul.mubr.f32.gmra.mrb[0].mxu0 %v2830
    %v2993 = vpop.f32.mrb[0].mxu0
    %v2994 = vadd.f32 0.0, %v2993
    %v2995 = vpop.f32.mrb[0].mxu0
    %2996 = vmatprep.mubr.f32.mxu0 0.0
    %2997 = vmatmul.mubr.f32.gmra.mrb[0].mxu0 %v2831
    %v2998 = vpop.f32.mrb[0].mxu0
    %v2999 = vadd.f32 0.0, %v2998
    %v3000 = vpop.f32.mrb[0].mxu0
    %3001 = vmatprep.mubr.f32.mxu0 0.0
    %3002 = vmatmul.mubr.f32.gmra.mrb[0].mxu0 %v2832
    %v3003 = vpop.f32.mrb[0].mxu0
    %v3004 = vadd.f32 0.0, %v3003
    %v3005 = vpop.f32.mrb[0].mxu0
    %3006 = vmatprep.mubr.f32.mxu0 0.0
    %3007 = vmatmul.mubr.f32.gmra.mrb[0].mxu0 %v2833
    %v3008 = vpop.f32.mrb[0].mxu0
    %v3009 = vadd.f32 0.0, %v3008
    %v3010 = vpop.f32.mrb[0].mxu0
    %3011 = vmatprep.mubr.f32.mxu0 0.0
    %3012 = vmatmul.mubr.f32.gmra.mrb[0].mxu0 %v2834
    %v3013 = vpop.f32.mrb[0].mxu0
    %v3014 = vadd.f32 0.0, %v3013
    %v3015 = vpop.f32.mrb[0].mxu0
    %3016 = vmatprep.mubr.f32.mxu0 0.0
    %3017 = vmatmul.mubr.f32.gmra.mrb[0].mxu0 %v2835
    %v3018 = vpop.f32.mrb[0].mxu0
    %v3019 = vadd.f32 0.0, %v3018
    %v3020 = vpop.f32.mrb[0].mxu0
    %3021 = vmatprep.mubr.f32.mxu0 0.0
    %3022 = vmatmul.mubr.f32.gmra.mrb[0].mxu0 %v2836
    %v3023 = vpop.f32.mrb[0].mxu0
    %v3024 = vadd.f32 0.0, %v3023
    %v3025 = vpop.f32.mrb[0].mxu0
    %3026 = vmatprep.mubr.f32.mxu0 0.0
    %3027 = vmatmul.mubr.f32.gmra.mrb[0].mxu0 %v2837
    %v3028 = vpop.f32.mrb[0].mxu0
    %v3029 = vadd.f32 0.0, %v3028
    %v3030 = vpop.f32.mrb[0].mxu0
    %3031 = vmatprep.mubr.f32.mxu0 0.0
    %3032 = vmatmul.mubr.f32.gmra.mrb[0].mxu0 %v2838
    %v3033 = vpop.f32.mrb[0].mxu0
    %v3034 = vadd.f32 0.0, %v3033
    %v3035 = vpop.f32.mrb[0].mxu0
    %3036 = vmatprep.mubr.f32.mxu0 0.0
    %3037 = vmatmul.mubr.f32.gmra.mrb[0].mxu0 %v2839
    %v3038 = vpop.f32.mrb[0].mxu0
    %v3039 = vadd.f32 0.0, %v3038
    %v3040 = vpop.f32.mrb[0].mxu0
    %3041 = vmatprep.mubr.f32.mxu0 0.0
    %3042 = vmatmul.mubr.f32.gmra.mrb[0].mxu0 %v2840
    %v3043 = vpop.f32.mrb[0].mxu0
    %v3044 = vadd.f32 0.0, %v3043
    %v3045 = vpop.f32.mrb[0].mxu0
    %3046 = vmatprep.mubr.f32.mxu0 0.0
    %3047 = vmatmul.mubr.f32.gmra.mrb[0].mxu0 %v2841
    %v3048 = vpop.f32.mrb[0].mxu0
    %v3049 = vadd.f32 0.0, %v3048
    %v3050 = vpop.f32.mrb[0].mxu0
    %3051 = vmatprep.mubr.f32.mxu0 0.0
    %3052 = vmatmul.mubr.f32.gmra.mrb[0].mxu0 %v2842
    %v3053 = vpop.f32.mrb[0].mxu0
    %v3054 = vadd.f32 0.0, %v3053
    %v3055 = vpop.f32.mrb[0].mxu0
    %3056 = vmatprep.mubr.f32.mxu0 0.0
    %3057 = vmatmul.mubr.f32.gmra.mrb[0].mxu0 %v2843
    %v3058 = vpop.f32.mrb[0].mxu0
    %v3059 = vadd.f32 0.0, %v3058
    %v3060 = vpop.f32.mrb[0].mxu0
    %3061 = vmatprep.mubr.f32.mxu0 0.0
    %3062 = vmatmul.mubr.f32.gmra.mrb[0].mxu0 %v2844
    %v3063 = vpop.f32.mrb[0].mxu0
    %v3064 = vadd.f32 0.0, %v3063
    %v3065 = vpop.f32.mrb[0].mxu0
    %3066 = vmatprep.mubr.f32.mxu0 0.0
    %3067 = vmatmul.mubr.f32.gmra.mrb[0].mxu0 %v2845
    %v3068 = vpop.f32.mrb[0].mxu0
    %v3069 = vadd.f32 0.0, %v3068
    %v3070 = vpop.f32.mrb[0].mxu0
    %3071 = vmatprep.mubr.f32.mxu0 0.0
    %3072 = vmatmul.mubr.f32.gmra.mrb[0].mxu0 %v2846
    %v3073 = vpop.f32.mrb[0].mxu0
    %v3074 = vadd.f32 0.0, %v3073
    %v3075 = vpop.f32.mrb[0].mxu0
    %3076 = vmatprep.mubr.f32.mxu0 0.0
    %3077 = vmatmul.mubr.f32.gmra.mrb[0].mxu0 %v2847
    %v3078 = vpop.f32.mrb[0].mxu0
    %v3079 = vadd.f32 0.0, %v3078
    %v3080 = vpop.f32.mrb[0].mxu0
    %3081 = vmatprep.mubr.f32.mxu0 0.0
    %3082 = vmatmul.mubr.f32.gmra.mrb[0].mxu0 %v2848
    %v3083 = vpop.f32.mrb[0].mxu0
    %v3084 = vadd.f32 0.0, %v3083
    %v3085 = vpop.f32.mrb[0].mxu0
    %3086 = vmatprep.mubr.f32.mxu0 0.0
    %3087 = vmatmul.mubr.f32.gmra.mrb[0].mxu0 %v2849
    %v3088 = vpop.f32.mrb[0].mxu0
    %v3089 = vadd.f32 0.0, %v3088
    %v3090 = vpop.f32.mrb[0].mxu0
    %3091 = vmatprep.mubr.f32.mxu0 0.0
    %3092 = vmatmul.mubr.f32.gmra.mrb[0].mxu0 %v2850
    %v3093 = vpop.f32.mrb[0].mxu0
    %v3094 = vadd.f32 0.0, %v3093
    %v3095 = vpop.f32.mrb[0].mxu0
    %3096 = vmatprep.mubr.f32.mxu0 0.0
    %3097 = vmatmul.mubr.f32.gmra.mrb[0].mxu0 %v2851
    %v3098 = vpop.f32.mrb[0].mxu0
    %v3099 = vadd.f32 0.0, %v3098
    %v3100 = vpop.f32.mrb[0].mxu0
    %3101 = vmatprep.mubr.f32.mxu0 0.0
    %3102 = vmatmul.mubr.f32.gmra.mrb[0].mxu0 %v2852
    %v3103 = vpop.f32.mrb[0].mxu0
    %v3104 = vadd.f32 0.0, %v3103
    %v3105 = vpop.f32.mrb[0].mxu0
    %3106 = vmatprep.mubr.f32.mxu0 0.0
    %3107 = vmatmul.mubr.f32.gmra.mrb[0].mxu0 %v2853
    %v3108 = vpop.f32.mrb[0].mxu0
    %v3109 = vadd.f32 0.0, %v3108
    %v3110 = vpop.f32.mrb[0].mxu0
    %3111 = vmatprep.mubr.f32.mxu0 0.0
    %3112 = vmatmul.mubr.f32.gmra.mrb[0].mxu0 %v2854
    %v3113 = vpop.f32.mrb[0].mxu0
    %v3114 = vadd.f32 0.0, %v3113
    %v3115 = vpop.f32.mrb[0].mxu0
    %3116 = vmatprep.mubr.f32.mxu0 0.0
    %3117 = vmatmul.mubr.f32.gmra.mrb[0].mxu0 %v2855
    %v3118 = vpop.f32.mrb[0].mxu0
    %v3119 = vadd.f32 0.0, %v3118
    %v3120 = vpop.f32.mrb[0].mxu0
    %3121 = vmatprep.mubr.f32.mxu0 0.0
    %3122 = vmatmul.mubr.f32.gmra.mrb[0].mxu0 %v2856
    %v3123 = vpop.f32.mrb[0].mxu0
    %v3124 = vadd.f32 0.0, %v3123
    %v3125 = vpop.f32.mrb[0].mxu0
    %3126 = vmatprep.mubr.f32.mxu0 0.0
    %3127 = vmatmul.mubr.f32.gmra.mrb[0].mxu0 %v2857
    %v3128 = vpop.f32.mrb[0].mxu0
    %v3129 = vadd.f32 0.0, %v3128
    %v3130 = vpop.f32.mrb[0].mxu0
    %3131 = vmatprep.mubr.f32.mxu0 0.0
    %3132 = vmatmul.mubr.f32.gmra.mrb[0].mxu0 %v2858
    %v3133 = vpop.f32.mrb[0].mxu0
    %v3134 = vadd.f32 0.0, %v3133
    %v3135 = vpop.f32.mrb[0].mxu0
    %3136 = vmatprep.mubr.f32.mxu0 0.0
    %3137 = vmatmul.mubr.f32.gmra.mrb[0].mxu0 %v2859
    %v3138 = vpop.f32.mrb[0].mxu0
    %v3139 = vadd.f32 0.0, %v3138
    %v3140 = vpop.f32.mrb[0].mxu0
    %3141 = vmatprep.mubr.f32.mxu0 0.0
    %3142 = vmatmul.mubr.f32.gmra.mrb[0].mxu0 %v2860
    %v3143 = vpop.f32.mrb[0].mxu0
    %v3144 = vadd.f32 0.0, %v3143
    %v3145 = vpop.f32.mrb[0].mxu0
    %3146 = vmatprep.mubr.f32.mxu0 0.0
    %3147 = vmatmul.mubr.f32.gmra.mrb[0].mxu0 %v2861
    %v3148 = vpop.f32.mrb[0].mxu0
    %v3149 = vadd.f32 0.0, %v3148
    %v3150 = vpop.f32.mrb[0].mxu0
    %3151 = vmatprep.mubr.f32.mxu0 0.0
    %3152 = vmatmul.mubr.f32.gmra.mrb[0].mxu0 %v2862
    %v3153 = vpop.f32.mrb[0].mxu0
    %v3154 = vadd.f32 0.0, %v3153
    %v3155 = vpop.f32.mrb[0].mxu0
    %3156 = vmatprep.mubr.f32.mxu0 0.0
    %3157 = vmatmul.mubr.f32.gmra.mrb[0].mxu0 %v2863
    %v3158 = vpop.f32.mrb[0].mxu0
    %v3159 = vadd.f32 0.0, %v3158
    %v3160 = vpop.f32.mrb[0].mxu0
    %3161 = vmatprep.mubr.f32.mxu0 0.0
    %3162 = vmatmul.mubr.f32.gmra.mrb[0].mxu0 %v2864
    %v3163 = vpop.f32.mrb[0].mxu0
    %v3164 = vadd.f32 0.0, %v3163
    %v3165 = vpop.f32.mrb[0].mxu0
    %3166 = vmatprep.mubr.f32.mxu0 0.0
    %3167 = vmatmul.mubr.f32.gmra.mrb[0].mxu0 %v2865
    %v3168 = vpop.f32.mrb[0].mxu0
    %v3169 = vadd.f32 0.0, %v3168
    %v3170 = vpop.f32.mrb[0].mxu0
    %3171 = vmatprep.mubr.f32.mxu0 0.0
    %3172 = vmatmul.mubr.f32.gmra.mrb[0].mxu0 %v2866
    %v3173 = vpop.f32.mrb[0].mxu0
    %v3174 = vadd.f32 0.0, %v3173
    %v3175 = vpop.f32.mrb[0].mxu0
    %3176 = vmatprep.mubr.f32.mxu0 0.0
    %3177 = vmatmul.mubr.f32.gmra.mrb[0].mxu0 %v2867
    %v3178 = vpop.f32.mrb[0].mxu0
    %v3179 = vadd.f32 0.0, %v3178
    %v3180 = vpop.f32.mrb[0].mxu0
    %3181 = vmatprep.mubr.f32.mxu0 0.0
    %3182 = vmatmul.mubr.f32.gmra.mrb[0].mxu0 %v2868
    %v3183 = vpop.f32.mrb[0].mxu0
    %v3184 = vadd.f32 0.0, %v3183
    %v3185 = vpop.f32.mrb[0].mxu0
    %3186 = vmatprep.mubr.f32.mxu0 0.0
    %3187 = vmatmul.mubr.f32.gmra.mrb[0].mxu0 %v2869
    %v3188 = vpop.f32.mrb[0].mxu0
    %v3189 = vadd.f32 0.0, %v3188
    %v3190 = vpop.f32.mrb[0].mxu0
    %3191 = vmatprep.mubr.f32.mxu0 0.0
    %3192 = vmatmul.mubr.f32.gmra.mrb[0].mxu0 %v2870
    %v3193 = vpop.f32.mrb[0].mxu0
    %v3194 = vadd.f32 0.0, %v3193
    %v3195 = vpop.f32.mrb[0].mxu0
    %3196 = vmatprep.mubr.f32.mxu0 0.0
    %3197 = vmatmul.mubr.f32.gmra.mrb[0].mxu0 %v2871
    %v3198 = vpop.f32.mrb[0].mxu0
    %v3199 = vadd.f32 0.0, %v3198
    %v3200 = vpop.f32.mrb[0].mxu0
    %3201 = vmatprep.mubr.f32.mxu0 0.0
    %3202 = vmatmul.mubr.f32.gmra.mrb[0].mxu0 %v2872
    %v3203 = vpop.f32.mrb[0].mxu0
    %v3204 = vadd.f32 0.0, %v3203
    %v3205 = vpop.f32.mrb[0].mxu0
    %3206 = vmatprep.mubr.f32.mxu0 0.0
    %3207 = vmatmul.mubr.f32.gmra.mrb[0].mxu0 %v2873
    %v3208 = vpop.f32.mrb[0].mxu0
    %v3209 = vadd.f32 0.0, %v3208
    %v3210 = vpop.f32.mrb[0].mxu0
    %3211 = vmatprep.mubr.f32.mxu0 0.0
    %3212 = vmatmul.mubr.f32.gmra.mrb[0].mxu0 %v2874
    %v3213 = vpop.f32.mrb[0].mxu0
    %v3214 = vadd.f32 0.0, %v3213
    %v3215 = vpop.f32.mrb[0].mxu0
    %3216 = vmatprep.mubr.f32.mxu0 0.0
    %3217 = vmatmul.mubr.f32.gmra.mrb[0].mxu0 %v2875
    %v3218 = vpop.f32.mrb[0].mxu0
    %v3219 = vadd.f32 0.0, %v3218
    %v3220 = vpop.f32.mrb[0].mxu0
    %3221 = vmatprep.mubr.f32.mxu0 0.0
    %3222 = vmatmul.mubr.f32.gmra.mrb[0].mxu0 %v2876
    %v3223 = vpop.f32.mrb[0].mxu0
    %v3224 = vadd.f32 0.0, %v3223
    %v3225 = vpop.f32.mrb[0].mxu0
    %3226 = vmatprep.mubr.f32.mxu0 0.0
    %3227 = vmatmul.mubr.f32.gmra.mrb[0].mxu0 %v2877
    %v3228 = vpop.f32.mrb[0].mxu0
    %v3229 = vadd.f32 0.0, %v3228
    %v3230 = vpop.f32.mrb[0].mxu0
    %3231 = vmatprep.mubr.f32.mxu0 0.0
    %3232 = vmatmul.mubr.f32.gmra.mrb[0].mxu0 %v2878
    %v3233 = vpop.f32.mrb[0].mxu0
    %v3234 = vadd.f32 0.0, %v3233
    %v3235 = vpop.f32.mrb[0].mxu0
    %3236 = vmatprep.mubr.f32.mxu0 0.0
    %3237 = vmatmul.mubr.f32.gmra.mrb[0].mxu0 %v2879
    %v3238 = vpop.f32.mrb[0].mxu0
    %v3239 = vadd.f32 0.0, %v3238
    %v3240 = vpop.f32.mrb[0].mxu0
    %3241 = vmatprep.mubr.f32.mxu0 0.0
    %3242 = vmatmul.mubr.f32.gmra.mrb[0].mxu0 %v2880
    %v3243 = vpop.f32.mrb[0].mxu0
    %v3244 = vadd.f32 0.0, %v3243
    %v3245 = vpop.f32.mrb[0].mxu0
    %3246 = vmatprep.mubr.f32.mxu0 0.0
    %3247 = vmatmul.mubr.f32.gmra.mrb[0].mxu0 %v2881
    %v3248 = vpop.f32.mrb[0].mxu0
    %v3249 = vadd.f32 0.0, %v3248
    %v3250 = vpop.f32.mrb[0].mxu0
    %3251 = vmatprep.mubr.f32.mxu0 0.0
    %3252 = vmatmul.mubr.f32.gmra.mrb[0].mxu0 %v2882
    %v3253 = vpop.f32.mrb[0].mxu0
    %v3254 = vadd.f32 0.0, %v3253
    %v3255 = vpop.f32.mrb[0].mxu0
    %3256 = vmatprep.mubr.f32.mxu0 0.0
    %3257 = vmatmul.mubr.f32.gmra.mrb[0].mxu0 %v2883
    %v3258 = vpop.f32.mrb[0].mxu0
    %v3259 = vadd.f32 0.0, %v3258
    %v3260 = vpop.f32.mrb[0].mxu0
    %3261 = vmatprep.mubr.f32.mxu0 0.0
    %3262 = vmatmul.mubr.f32.gmra.mrb[0].mxu0 %v2884
    %v3263 = vpop.f32.mrb[0].mxu0
    %v3264 = vadd.f32 0.0, %v3263
    %v3265 = vpop.f32.mrb[0].mxu0
    %3266 = vmatprep.mubr.f32.mxu0 0.0
    %3267 = vmatmul.mubr.f32.gmra.mrb[0].mxu0 %v2885
    %v3268 = vpop.f32.mrb[0].mxu0
    %v3269 = vadd.f32 0.0, %v3268
    %v3270 = vpop.f32.mrb[0].mxu0
    %3271 = vmatprep.mubr.f32.mxu0 0.0
    %3272 = vmatmul.mubr.f32.gmra.mrb[0].mxu0 %v2886
    %v3273 = vpop.f32.mrb[0].mxu0
    %v3274 = vadd.f32 0.0, %v3273
    %v3275 = vpop.f32.mrb[0].mxu0
    %3276 = vmatprep.mubr.f32.mxu0 0.0
    %3277 = vmatmul.mubr.f32.gmra.mrb[0].mxu0 %v2887
    %v3278 = vpop.f32.mrb[0].mxu0
    %v3279 = vadd.f32 0.0, %v3278
    %v3280 = vpop.f32.mrb[0].mxu0
    %3281 = vmatprep.mubr.f32.mxu0 0.0
    %3282 = vmatmul.mubr.f32.gmra.mrb[0].mxu0 %v2888
    %v3283 = vpop.f32.mrb[0].mxu0
    %v3284 = vadd.f32 0.0, %v3283
    %v3285 = vpop.f32.mrb[0].mxu0
    %3286 = vmatprep.mubr.f32.mxu0 0.0
    %3287 = vmatmul.mubr.f32.gmra.mrb[0].mxu0 %v2889
    %v3288 = vpop.f32.mrb[0].mxu0
    %v3289 = vadd.f32 0.0, %v3288
    %v3290 = vpop.f32.mrb[0].mxu0
    %3291 = vdwg.mxu0
    %v3292 = vadd.f32 %v2762, %v2974
    %v3293 = vadd.f32 %v2763, %v2979
    %v3294 = vadd.f32 %v2764, %v2984
    %v3295 = vadd.f32 %v2765, %v2989
    %v3296 = vadd.f32 %v2766, %v2994
    %v3297 = vadd.f32 %v2767, %v2999
    %v3298 = vadd.f32 %v2768, %v3004
    %v3299 = vadd.f32 %v2769, %v3009
    %v3300 = vadd.f32 %v2770, %v3014
    %v3301 = vadd.f32 %v2771, %v3019
    %v3302 = vadd.f32 %v2772, %v3024
    %v3303 = vadd.f32 %v2773, %v3029
    %v3304 = vadd.f32 %v2774, %v3034
    %v3305 = vadd.f32 %v2775, %v3039
    %v3306 = vadd.f32 %v2776, %v3044
    %v3307 = vadd.f32 %v2777, %v3049
    %v3308 = vadd.f32 %v2778, %v3054
    %v3309 = vadd.f32 %v2779, %v3059
    %v3310 = vadd.f32 %v2780, %v3064
    %v3311 = vadd.f32 %v2781, %v3069
    %v3312 = vadd.f32 %v2782, %v3074
    %v3313 = vadd.f32 %v2783, %v3079
    %v3314 = vadd.f32 %v2784, %v3084
    %v3315 = vadd.f32 %v2785, %v3089
    %v3316 = vadd.f32 %v2786, %v3094
    %v3317 = vadd.f32 %v2787, %v3099
    %v3318 = vadd.f32 %v2788, %v3104
    %v3319 = vadd.f32 %v2789, %v3109
    %v3320 = vadd.f32 %v2790, %v3114
    %v3321 = vadd.f32 %v2791, %v3119
    %v3322 = vadd.f32 %v2792, %v3124
    %v3323 = vadd.f32 %v2793, %v3129
    %v3324 = vadd.f32 %v2794, %v3134
    %v3325 = vadd.f32 %v2795, %v3139
    %v3326 = vadd.f32 %v2796, %v3144
    %v3327 = vadd.f32 %v2797, %v3149
    %v3328 = vadd.f32 %v2798, %v3154
    %v3329 = vadd.f32 %v2799, %v3159
    %v3330 = vadd.f32 %v2800, %v3164
    %v3331 = vadd.f32 %v2801, %v3169
    %v3332 = vadd.f32 %v2802, %v3174
    %v3333 = vadd.f32 %v2803, %v3179
    %v3334 = vadd.f32 %v2804, %v3184
    %v3335 = vadd.f32 %v2805, %v3189
    %v3336 = vadd.f32 %v2806, %v3194
    %v3337 = vadd.f32 %v2807, %v3199
    %v3338 = vadd.f32 %v2808, %v3204
    %v3339 = vadd.f32 %v2809, %v3209
    %v3340 = vadd.f32 %v2810, %v3214
    %v3341 = vadd.f32 %v2811, %v3219
    %v3342 = vadd.f32 %v2812, %v3224
    %v3343 = vadd.f32 %v2813, %v3229
    %v3344 = vadd.f32 %v2814, %v3234
    %v3345 = vadd.f32 %v2815, %v3239
    %v3346 = vadd.f32 %v2816, %v3244
    %v3347 = vadd.f32 %v2817, %v3249
    %v3348 = vadd.f32 %v2818, %v3254
    %v3349 = vadd.f32 %v2819, %v3259
    %v3350 = vadd.f32 %v2820, %v3264
    %v3351 = vadd.f32 %v2821, %v3269
    %v3352 = vadd.f32 %v2822, %v3274
    %v3353 = vadd.f32 %v2823, %v3279
    %v3354 = vadd.f32 %v2824, %v3284
    %v3355 = vadd.f32 %v2825, %v3289
    %s3356 = scalar_lea.vmem [#allocation2], 48
    %v3357 = vld [vmem:[%s3356] sm:$0xff]
    %v3358 = vld [vmem:[%s3356 + $0x8] sm:$0xff]
    %v3359 = vld [vmem:[%s3356 + $0x18] sm:$0xff]
    %v3360 = vld [vmem:[%s3356 + $0x20] sm:$0xff]
    %v3361 = vld [vmem:[%s3356 + $0x30] sm:$0xff]
    %v3362 = vld [vmem:[%s3356 + $0x38] sm:$0xff]
    %v3363 = vld [vmem:[%s3356 + $0x48] sm:$0xff]
    %v3364 = vld [vmem:[%s3356 + $0x50] sm:$0xff]
    %v3365 = vld [vmem:[%s3356 + $0x60] sm:$0xff]
    %v3366 = vld [vmem:[%s3356 + $0x68] sm:$0xff]
    %v3367 = vld [vmem:[%s3356 + $0x78] sm:$0xff]
    %v3368 = vld [vmem:[%s3356 + $0x80] sm:$0xff]
    %v3369 = vld [vmem:[%s3356 + $0x90] sm:$0xff]
    %v3370 = vld [vmem:[%s3356 + $0x98] sm:$0xff]
    %v3371 = vld [vmem:[%s3356 + $0xa8] sm:$0xff]
    %v3372 = vld [vmem:[%s3356 + $0xb0] sm:$0xff]
    %v3373 = vld [vmem:[%s3356 + $0xc0] sm:$0xff]
    %v3374 = vld [vmem:[%s3356 + $0xc8] sm:$0xff]
    %v3375 = vld [vmem:[%s3356 + $0xd8] sm:$0xff]
    %v3376 = vld [vmem:[%s3356 + $0xe0] sm:$0xff]
    %v3377 = vld [vmem:[%s3356 + $0xf0] sm:$0xff]
    %v3378 = vld [vmem:[%s3356 + $0xf8] sm:$0xff]
    %v3379 = vld [vmem:[%s3356 + $0x108] sm:$0xff]
    %v3380 = vld [vmem:[%s3356 + $0x110] sm:$0xff]
    %v3381 = vld [vmem:[%s3356 + $0x120] sm:$0xff]
    %v3382 = vld [vmem:[%s3356 + $0x128] sm:$0xff]
    %v3383 = vld [vmem:[%s3356 + $0x138] sm:$0xff]
    %v3384 = vld [vmem:[%s3356 + $0x140] sm:$0xff]
    %v3385 = vld [vmem:[%s3356 + $0x150] sm:$0xff]
    %v3386 = vld [vmem:[%s3356 + $0x158] sm:$0xff]
    %v3387 = vld [vmem:[%s3356 + $0x168] sm:$0xff]
    %v3388 = vld [vmem:[%s3356 + $0x170] sm:$0xff]
    %v3389 = vld [vmem:[%s3356 + $0x1b0] sm:$0xff]
    %v3390 = vld [vmem:[%s3356 + $0x1b8] sm:$0xff]
    %v3391 = vld [vmem:[%s3356 + $0x1c8] sm:$0xff]
    %v3392 = vld [vmem:[%s3356 + $0x1d0] sm:$0xff]
    %v3393 = vld [vmem:[%s3356 + $0x1e0] sm:$0xff]
    %v3394 = vld [vmem:[%s3356 + $0x1e8] sm:$0xff]
    %v3395 = vld [vmem:[%s3356 + $0x1f8] sm:$0xff]
    %v3396 = vld [vmem:[%s3356 + $0x200] sm:$0xff]
    %v3397 = vld [vmem:[%s3356 + $0x210] sm:$0xff]
    %v3398 = vld [vmem:[%s3356 + $0x218] sm:$0xff]
    %v3399 = vld [vmem:[%s3356 + $0x228] sm:$0xff]
    %v3400 = vld [vmem:[%s3356 + $0x230] sm:$0xff]
    %v3401 = vld [vmem:[%s3356 + $0x240] sm:$0xff]
    %v3402 = vld [vmem:[%s3356 + $0x248] sm:$0xff]
    %v3403 = vld [vmem:[%s3356 + $0x258] sm:$0xff]
    %v3404 = vld [vmem:[%s3356 + $0x260] sm:$0xff]
    %v3405 = vld [vmem:[%s3356 + $0x270] sm:$0xff]
    %v3406 = vld [vmem:[%s3356 + $0x278] sm:$0xff]
    %v3407 = vld [vmem:[%s3356 + $0x288] sm:$0xff]
    %v3408 = vld [vmem:[%s3356 + $0x290] sm:$0xff]
    %v3409 = vld [vmem:[%s3356 + $0x2a0] sm:$0xff]
    %v3410 = vld [vmem:[%s3356 + $0x2a8] sm:$0xff]
    %v3411 = vld [vmem:[%s3356 + $0x2b8] sm:$0xff]
    %v3412 = vld [vmem:[%s3356 + $0x2c0] sm:$0xff]
    %v3413 = vld [vmem:[%s3356 + $0x2d0] sm:$0xff]
    %v3414 = vld [vmem:[%s3356 + $0x2d8] sm:$0xff]
    %v3415 = vld [vmem:[%s3356 + $0x2e8] sm:$0xff]
    %v3416 = vld [vmem:[%s3356 + $0x2f0] sm:$0xff]
    %v3417 = vld [vmem:[%s3356 + $0x300] sm:$0xff]
    %v3418 = vld [vmem:[%s3356 + $0x308] sm:$0xff]
    %v3419 = vld [vmem:[%s3356 + $0x318] sm:$0xff]
    %v3420 = vld [vmem:[%s3356 + $0x320] sm:$0xff]
    %s3421 = scalar_lea.vmem [#allocation6], 768
    %v3422 = vld [vmem:[%s3421] sm:$0xff]
    %v3423 = vld [vmem:[%s3421 + $0x8] sm:$0xff]
    %v3424 = vld [vmem:[%s3421 + $0x10] sm:$0xff]
    %v3425 = vld [vmem:[%s3421 + $0x18] sm:$0xff]
    %v3426 = vld [vmem:[%s3421 + $0x20] sm:$0xff]
    %v3427 = vld [vmem:[%s3421 + $0x28] sm:$0xff]
    %v3428 = vld [vmem:[%s3421 + $0x30] sm:$0xff]
    %v3429 = vld [vmem:[%s3421 + $0x38] sm:$0xff]
    %v3430 = vld [vmem:[%s3421 + $0x40] sm:$0xff]
    %v3431 = vld [vmem:[%s3421 + $0x48] sm:$0xff]
    %v3432 = vld [vmem:[%s3421 + $0x50] sm:$0xff]
    %v3433 = vld [vmem:[%s3421 + $0x58] sm:$0xff]
    %v3434 = vld [vmem:[%s3421 + $0x60] sm:$0xff]
    %v3435 = vld [vmem:[%s3421 + $0x68] sm:$0xff]
    %v3436 = vld [vmem:[%s3421 + $0x70] sm:$0xff]
    %v3437 = vld [vmem:[%s3421 + $0x78] sm:$0xff]
    %3438 = vmatprep.subr.mxu0 0.0
    %3439 = vmatpush1.msra.mxu0 %v3422
    %3440 = vmatprep.subr.mxu0 0.0
    %3441 = vmatpush1.msra.mxu0 %v3423
    %3442 = vmatprep.subr.mxu0 0.0
    %3443 = vmatpush1.msra.mxu0 %v3424
    %3444 = vmatprep.subr.mxu0 0.0
    %3445 = vmatpush1.msra.mxu0 %v3425
    %3446 = vmatprep.subr.mxu0 0.0
    %3447 = vmatpush1.msra.mxu0 %v3426
    %3448 = vmatprep.subr.mxu0 0.0
    %3449 = vmatpush1.msra.mxu0 %v3427
    %3450 = vmatprep.subr.mxu0 0.0
    %3451 = vmatpush1.msra.mxu0 %v3428
    %3452 = vmatprep.subr.mxu0 0.0
    %3453 = vmatpush1.msra.mxu0 %v3429
    %3454 = vmatprep.subr.mxu0 0.0
    %3455 = vmatpush1.msra.mxu0 %v3430
    %3456 = vmatprep.subr.mxu0 0.0
    %3457 = vmatpush1.msra.mxu0 %v3431
    %3458 = vmatprep.subr.mxu0 0.0
    %3459 = vmatpush1.msra.mxu0 %v3432
    %3460 = vmatprep.subr.mxu0 0.0
    %3461 = vmatpush1.msra.mxu0 %v3433
    %3462 = vmatprep.subr.mxu0 0.0
    %3463 = vmatpush1.msra.mxu0 %v3434
    %3464 = vmatprep.subr.mxu0 0.0
    %3465 = vmatpush1.msra.mxu0 %v3435
    %3466 = vmatprep.subr.mxu0 0.0
    %3467 = vmatpush1.msra.mxu0 %v3436
    %3468 = vmatprep.subr.mxu0 0.0
    %3469 = vmatpush1.msra.mxu0 %v3437
    %3470 = vmatprep.subr.mxu0 0.0
    %3471 = vmatpush1.msra.mxu0 0.0
    %3472 = vmatprep.subr.mxu0 0.0
    %3473 = vmatpush1.msra.mxu0 0.0
    %3474 = vmatprep.subr.mxu0 0.0
    %3475 = vmatpush1.msra.mxu0 0.0
    %3476 = vmatprep.subr.mxu0 0.0
    %3477 = vmatpush1.msra.mxu0 0.0
    %3478 = vmatprep.subr.mxu0 0.0
    %3479 = vmatpush1.msra.mxu0 0.0
    %3480 = vmatprep.subr.mxu0 0.0
    %3481 = vmatpush1.msra.mxu0 0.0
    %3482 = vmatprep.subr.mxu0 0.0
    %3483 = vmatpush1.msra.mxu0 0.0
    %3484 = vmatprep.subr.mxu0 0.0
    %3485 = vmatpush1.msra.mxu0 0.0
    %3486 = vmatprep.subr.mxu0 0.0
    %3487 = vmatpush1.msra.mxu0 0.0
    %3488 = vmatprep.subr.mxu0 0.0
    %3489 = vmatpush1.msra.mxu0 0.0
    %3490 = vmatprep.subr.mxu0 0.0
    %3491 = vmatpush1.msra.mxu0 0.0
    %3492 = vmatprep.subr.mxu0 0.0
    %3493 = vmatpush1.msra.mxu0 0.0
    %3494 = vmatprep.subr.mxu0 0.0
    %3495 = vmatpush1.msra.mxu0 0.0
    %3496 = vmatprep.subr.mxu0 0.0
    %3497 = vmatpush1.msra.mxu0 0.0
    %3498 = vmatprep.subr.mxu0 0.0
    %3499 = vmatpush1.msra.mxu0 0.0
    %3500 = vmatprep.subr.mxu0 0.0
    %3501 = vmatpush1.msra.mxu0 0.0
    %3502 = vmatprep.mubr.f32.mxu0 0.0
    %3503 = vmatmul.mubr.f32.gmra.mrb[0].mxu0 %v3357
    %v3504 = vpop.f32.mrb[0].mxu0
    %v3505 = vadd.f32 0.0, %v3504
    %v3506 = vpop.f32.mrb[0].mxu0
    %3507 = vmatprep.mubr.f32.mxu0 0.0
    %3508 = vmatmul.mubr.f32.gmra.mrb[0].mxu0 %v3358
    %v3509 = vpop.f32.mrb[0].mxu0
    %v3510 = vadd.f32 0.0, %v3509
    %v3511 = vpop.f32.mrb[0].mxu0
    %3512 = vmatprep.mubr.f32.mxu0 0.0
    %3513 = vmatmul.mubr.f32.gmra.mrb[0].mxu0 %v3359
    %v3514 = vpop.f32.mrb[0].mxu0
    %v3515 = vadd.f32 0.0, %v3514
    %v3516 = vpop.f32.mrb[0].mxu0
    %3517 = vmatprep.mubr.f32.mxu0 0.0
    %3518 = vmatmul.mubr.f32.gmra.mrb[0].mxu0 %v3360
    %v3519 = vpop.f32.mrb[0].mxu0
    %v3520 = vadd.f32 0.0, %v3519
    %v3521 = vpop.f32.mrb[0].mxu0
    %3522 = vmatprep.mubr.f32.mxu0 0.0
    %3523 = vmatmul.mubr.f32.gmra.mrb[0].mxu0 %v3361
    %v3524 = vpop.f32.mrb[0].mxu0
    %v3525 = vadd.f32 0.0, %v3524
    %v3526 = vpop.f32.mrb[0].mxu0
    %3527 = vmatprep.mubr.f32.mxu0 0.0
    %3528 = vmatmul.mubr.f32.gmra.mrb[0].mxu0 %v3362
    %v3529 = vpop.f32.mrb[0].mxu0
    %v3530 = vadd.f32 0.0, %v3529
    %v3531 = vpop.f32.mrb[0].mxu0
    %3532 = vmatprep.mubr.f32.mxu0 0.0
    %3533 = vmatmul.mubr.f32.gmra.mrb[0].mxu0 %v3363
    %v3534 = vpop.f32.mrb[0].mxu0
    %v3535 = vadd.f32 0.0, %v3534
    %v3536 = vpop.f32.mrb[0].mxu0
    %3537 = vmatprep.mubr.f32.mxu0 0.0
    %3538 = vmatmul.mubr.f32.gmra.mrb[0].mxu0 %v3364
    %v3539 = vpop.f32.mrb[0].mxu0
    %v3540 = vadd.f32 0.0, %v3539
    %v3541 = vpop.f32.mrb[0].mxu0
    %3542 = vmatprep.mubr.f32.mxu0 0.0
    %3543 = vmatmul.mubr.f32.gmra.mrb[0].mxu0 %v3365
    %v3544 = vpop.f32.mrb[0].mxu0
    %v3545 = vadd.f32 0.0, %v3544
    %v3546 = vpop.f32.mrb[0].mxu0
    %3547 = vmatprep.mubr.f32.mxu0 0.0
    %3548 = vmatmul.mubr.f32.gmra.mrb[0].mxu0 %v3366
    %v3549 = vpop.f32.mrb[0].mxu0
    %v3550 = vadd.f32 0.0, %v3549
    %v3551 = vpop.f32.mrb[0].mxu0
    %3552 = vmatprep.mubr.f32.mxu0 0.0
    %3553 = vmatmul.mubr.f32.gmra.mrb[0].mxu0 %v3367
    %v3554 = vpop.f32.mrb[0].mxu0
    %v3555 = vadd.f32 0.0, %v3554
    %v3556 = vpop.f32.mrb[0].mxu0
    %3557 = vmatprep.mubr.f32.mxu0 0.0
    %3558 = vmatmul.mubr.f32.gmra.mrb[0].mxu0 %v3368
    %v3559 = vpop.f32.mrb[0].mxu0
    %v3560 = vadd.f32 0.0, %v3559
    %v3561 = vpop.f32.mrb[0].mxu0
    %3562 = vmatprep.mubr.f32.mxu0 0.0
    %3563 = vmatmul.mubr.f32.gmra.mrb[0].mxu0 %v3369
    %v3564 = vpop.f32.mrb[0].mxu0
    %v3565 = vadd.f32 0.0, %v3564
    %v3566 = vpop.f32.mrb[0].mxu0
    %3567 = vmatprep.mubr.f32.mxu0 0.0
    %3568 = vmatmul.mubr.f32.gmra.mrb[0].mxu0 %v3370
    %v3569 = vpop.f32.mrb[0].mxu0
    %v3570 = vadd.f32 0.0, %v3569
    %v3571 = vpop.f32.mrb[0].mxu0
    %3572 = vmatprep.mubr.f32.mxu0 0.0
    %3573 = vmatmul.mubr.f32.gmra.mrb[0].mxu0 %v3371
    %v3574 = vpop.f32.mrb[0].mxu0
    %v3575 = vadd.f32 0.0, %v3574
    %v3576 = vpop.f32.mrb[0].mxu0
    %3577 = vmatprep.mubr.f32.mxu0 0.0
    %3578 = vmatmul.mubr.f32.gmra.mrb[0].mxu0 %v3372
    %v3579 = vpop.f32.mrb[0].mxu0
    %v3580 = vadd.f32 0.0, %v3579
    %v3581 = vpop.f32.mrb[0].mxu0
    %3582 = vmatprep.mubr.f32.mxu0 0.0
    %3583 = vmatmul.mubr.f32.gmra.mrb[0].mxu0 %v3373
    %v3584 = vpop.f32.mrb[0].mxu0
    %v3585 = vadd.f32 0.0, %v3584
    %v3586 = vpop.f32.mrb[0].mxu0
    %3587 = vmatprep.mubr.f32.mxu0 0.0
    %3588 = vmatmul.mubr.f32.gmra.mrb[0].mxu0 %v3374
    %v3589 = vpop.f32.mrb[0].mxu0
    %v3590 = vadd.f32 0.0, %v3589
    %v3591 = vpop.f32.mrb[0].mxu0
    %3592 = vmatprep.mubr.f32.mxu0 0.0
    %3593 = vmatmul.mubr.f32.gmra.mrb[0].mxu0 %v3375
    %v3594 = vpop.f32.mrb[0].mxu0
    %v3595 = vadd.f32 0.0, %v3594
    %v3596 = vpop.f32.mrb[0].mxu0
    %3597 = vmatprep.mubr.f32.mxu0 0.0
    %3598 = vmatmul.mubr.f32.gmra.mrb[0].mxu0 %v3376
    %v3599 = vpop.f32.mrb[0].mxu0
    %v3600 = vadd.f32 0.0, %v3599
    %v3601 = vpop.f32.mrb[0].mxu0
    %3602 = vmatprep.mubr.f32.mxu0 0.0
    %3603 = vmatmul.mubr.f32.gmra.mrb[0].mxu0 %v3377
    %v3604 = vpop.f32.mrb[0].mxu0
    %v3605 = vadd.f32 0.0, %v3604
    %v3606 = vpop.f32.mrb[0].mxu0
    %3607 = vmatprep.mubr.f32.mxu0 0.0
    %3608 = vmatmul.mubr.f32.gmra.mrb[0].mxu0 %v3378
    %v3609 = vpop.f32.mrb[0].mxu0
    %v3610 = vadd.f32 0.0, %v3609
    %v3611 = vpop.f32.mrb[0].mxu0
    %3612 = vmatprep.mubr.f32.mxu0 0.0
    %3613 = vmatmul.mubr.f32.gmra.mrb[0].mxu0 %v3379
    %v3614 = vpop.f32.mrb[0].mxu0
    %v3615 = vadd.f32 0.0, %v3614
    %v3616 = vpop.f32.mrb[0].mxu0
    %3617 = vmatprep.mubr.f32.mxu0 0.0
    %3618 = vmatmul.mubr.f32.gmra.mrb[0].mxu0 %v3380
    %v3619 = vpop.f32.mrb[0].mxu0
    %v3620 = vadd.f32 0.0, %v3619
    %v3621 = vpop.f32.mrb[0].mxu0
    %3622 = vmatprep.mubr.f32.mxu0 0.0
    %3623 = vmatmul.mubr.f32.gmra.mrb[0].mxu0 %v3381
    %v3624 = vpop.f32.mrb[0].mxu0
    %v3625 = vadd.f32 0.0, %v3624
    %v3626 = vpop.f32.mrb[0].mxu0
    %3627 = vmatprep.mubr.f32.mxu0 0.0
    %3628 = vmatmul.mubr.f32.gmra.mrb[0].mxu0 %v3382
    %v3629 = vpop.f32.mrb[0].mxu0
    %v3630 = vadd.f32 0.0, %v3629
    %v3631 = vpop.f32.mrb[0].mxu0
    %3632 = vmatprep.mubr.f32.mxu0 0.0
    %3633 = vmatmul.mubr.f32.gmra.mrb[0].mxu0 %v3383
    %v3634 = vpop.f32.mrb[0].mxu0
    %v3635 = vadd.f32 0.0, %v3634
    %v3636 = vpop.f32.mrb[0].mxu0
    %3637 = vmatprep.mubr.f32.mxu0 0.0
    %3638 = vmatmul.mubr.f32.gmra.mrb[0].mxu0 %v3384
    %v3639 = vpop.f32.mrb[0].mxu0
    %v3640 = vadd.f32 0.0, %v3639
    %v3641 = vpop.f32.mrb[0].mxu0
    %3642 = vmatprep.mubr.f32.mxu0 0.0
    %3643 = vmatmul.mubr.f32.gmra.mrb[0].mxu0 %v3385
    %v3644 = vpop.f32.mrb[0].mxu0
    %v3645 = vadd.f32 0.0, %v3644
    %v3646 = vpop.f32.mrb[0].mxu0
    %3647 = vmatprep.mubr.f32.mxu0 0.0
    %3648 = vmatmul.mubr.f32.gmra.mrb[0].mxu0 %v3386
    %v3649 = vpop.f32.mrb[0].mxu0
    %v3650 = vadd.f32 0.0, %v3649
    %v3651 = vpop.f32.mrb[0].mxu0
    %3652 = vmatprep.mubr.f32.mxu0 0.0
    %3653 = vmatmul.mubr.f32.gmra.mrb[0].mxu0 %v3387
    %v3654 = vpop.f32.mrb[0].mxu0
    %v3655 = vadd.f32 0.0, %v3654
    %v3656 = vpop.f32.mrb[0].mxu0
    %3657 = vmatprep.mubr.f32.mxu0 0.0
    %3658 = vmatmul.mubr.f32.gmra.mrb[0].mxu0 %v3388
    %v3659 = vpop.f32.mrb[0].mxu0
    %v3660 = vadd.f32 0.0, %v3659
    %v3661 = vpop.f32.mrb[0].mxu0
    %3662 = vmatprep.mubr.f32.mxu0 0.0
    %3663 = vmatmul.mubr.f32.gmra.mrb[0].mxu0 %v3389
    %v3664 = vpop.f32.mrb[0].mxu0
    %v3665 = vadd.f32 0.0, %v3664
    %v3666 = vpop.f32.mrb[0].mxu0
    %3667 = vmatprep.mubr.f32.mxu0 0.0
    %3668 = vmatmul.mubr.f32.gmra.mrb[0].mxu0 %v3390
    %v3669 = vpop.f32.mrb[0].mxu0
    %v3670 = vadd.f32 0.0, %v3669
    %v3671 = vpop.f32.mrb[0].mxu0
    %3672 = vmatprep.mubr.f32.mxu0 0.0
    %3673 = vmatmul.mubr.f32.gmra.mrb[0].mxu0 %v3391
    %v3674 = vpop.f32.mrb[0].mxu0
    %v3675 = vadd.f32 0.0, %v3674
    %v3676 = vpop.f32.mrb[0].mxu0
    %3677 = vmatprep.mubr.f32.mxu0 0.0
    %3678 = vmatmul.mubr.f32.gmra.mrb[0].mxu0 %v3392
    %v3679 = vpop.f32.mrb[0].mxu0
    %v3680 = vadd.f32 0.0, %v3679
    %v3681 = vpop.f32.mrb[0].mxu0
    %3682 = vmatprep.mubr.f32.mxu0 0.0
    %3683 = vmatmul.mubr.f32.gmra.mrb[0].mxu0 %v3393
    %v3684 = vpop.f32.mrb[0].mxu0
    %v3685 = vadd.f32 0.0, %v3684
    %v3686 = vpop.f32.mrb[0].mxu0
    %3687 = vmatprep.mubr.f32.mxu0 0.0
    %3688 = vmatmul.mubr.f32.gmra.mrb[0].mxu0 %v3394
    %v3689 = vpop.f32.mrb[0].mxu0
    %v3690 = vadd.f32 0.0, %v3689
    %v3691 = vpop.f32.mrb[0].mxu0
    %3692 = vmatprep.mubr.f32.mxu0 0.0
    %3693 = vmatmul.mubr.f32.gmra.mrb[0].mxu0 %v3395
    %v3694 = vpop.f32.mrb[0].mxu0
    %v3695 = vadd.f32 0.0, %v3694
    %v3696 = vpop.f32.mrb[0].mxu0
    %3697 = vmatprep.mubr.f32.mxu0 0.0
    %3698 = vmatmul.mubr.f32.gmra.mrb[0].mxu0 %v3396
    %v3699 = vpop.f32.mrb[0].mxu0
    %v3700 = vadd.f32 0.0, %v3699
    %v3701 = vpop.f32.mrb[0].mxu0
    %3702 = vmatprep.mubr.f32.mxu0 0.0
    %3703 = vmatmul.mubr.f32.gmra.mrb[0].mxu0 %v3397
    %v3704 = vpop.f32.mrb[0].mxu0
    %v3705 = vadd.f32 0.0, %v3704
    %v3706 = vpop.f32.mrb[0].mxu0
    %3707 = vmatprep.mubr.f32.mxu0 0.0
    %3708 = vmatmul.mubr.f32.gmra.mrb[0].mxu0 %v3398
    %v3709 = vpop.f32.mrb[0].mxu0
    %v3710 = vadd.f32 0.0, %v3709
    %v3711 = vpop.f32.mrb[0].mxu0
    %3712 = vmatprep.mubr.f32.mxu0 0.0
    %3713 = vmatmul.mubr.f32.gmra.mrb[0].mxu0 %v3399
    %v3714 = vpop.f32.mrb[0].mxu0
    %v3715 = vadd.f32 0.0, %v3714
    %v3716 = vpop.f32.mrb[0].mxu0
    %3717 = vmatprep.mubr.f32.mxu0 0.0
    %3718 = vmatmul.mubr.f32.gmra.mrb[0].mxu0 %v3400
    %v3719 = vpop.f32.mrb[0].mxu0
    %v3720 = vadd.f32 0.0, %v3719
    %v3721 = vpop.f32.mrb[0].mxu0
    %3722 = vmatprep.mubr.f32.mxu0 0.0
    %3723 = vmatmul.mubr.f32.gmra.mrb[0].mxu0 %v3401
    %v3724 = vpop.f32.mrb[0].mxu0
    %v3725 = vadd.f32 0.0, %v3724
    %v3726 = vpop.f32.mrb[0].mxu0
    %3727 = vmatprep.mubr.f32.mxu0 0.0
    %3728 = vmatmul.mubr.f32.gmra.mrb[0].mxu0 %v3402
    %v3729 = vpop.f32.mrb[0].mxu0
    %v3730 = vadd.f32 0.0, %v3729
    %v3731 = vpop.f32.mrb[0].mxu0
    %3732 = vmatprep.mubr.f32.mxu0 0.0
    %3733 = vmatmul.mubr.f32.gmra.mrb[0].mxu0 %v3403
    %v3734 = vpop.f32.mrb[0].mxu0
    %v3735 = vadd.f32 0.0, %v3734
    %v3736 = vpop.f32.mrb[0].mxu0
    %3737 = vmatprep.mubr.f32.mxu0 0.0
    %3738 = vmatmul.mubr.f32.gmra.mrb[0].mxu0 %v3404
    %v3739 = vpop.f32.mrb[0].mxu0
    %v3740 = vadd.f32 0.0, %v3739
    %v3741 = vpop.f32.mrb[0].mxu0
    %3742 = vmatprep.mubr.f32.mxu0 0.0
    %3743 = vmatmul.mubr.f32.gmra.mrb[0].mxu0 %v3405
    %v3744 = vpop.f32.mrb[0].mxu0
    %v3745 = vadd.f32 0.0, %v3744
    %v3746 = vpop.f32.mrb[0].mxu0
    %3747 = vmatprep.mubr.f32.mxu0 0.0
    %3748 = vmatmul.mubr.f32.gmra.mrb[0].mxu0 %v3406
    %v3749 = vpop.f32.mrb[0].mxu0
    %v3750 = vadd.f32 0.0, %v3749
    %v3751 = vpop.f32.mrb[0].mxu0
    %3752 = vmatprep.mubr.f32.mxu0 0.0
    %3753 = vmatmul.mubr.f32.gmra.mrb[0].mxu0 %v3407
    %v3754 = vpop.f32.mrb[0].mxu0
    %v3755 = vadd.f32 0.0, %v3754
    %v3756 = vpop.f32.mrb[0].mxu0
    %3757 = vmatprep.mubr.f32.mxu0 0.0
    %3758 = vmatmul.mubr.f32.gmra.mrb[0].mxu0 %v3408
    %v3759 = vpop.f32.mrb[0].mxu0
    %v3760 = vadd.f32 0.0, %v3759
    %v3761 = vpop.f32.mrb[0].mxu0
    %3762 = vmatprep.mubr.f32.mxu0 0.0
    %3763 = vmatmul.mubr.f32.gmra.mrb[0].mxu0 %v3409
    %v3764 = vpop.f32.mrb[0].mxu0
    %v3765 = vadd.f32 0.0, %v3764
    %v3766 = vpop.f32.mrb[0].mxu0
    %3767 = vmatprep.mubr.f32.mxu0 0.0
    %3768 = vmatmul.mubr.f32.gmra.mrb[0].mxu0 %v3410
    %v3769 = vpop.f32.mrb[0].mxu0
    %v3770 = vadd.f32 0.0, %v3769
    %v3771 = vpop.f32.mrb[0].mxu0
    %3772 = vmatprep.mubr.f32.mxu0 0.0
    %3773 = vmatmul.mubr.f32.gmra.mrb[0].mxu0 %v3411
    %v3774 = vpop.f32.mrb[0].mxu0
    %v3775 = vadd.f32 0.0, %v3774
    %v3776 = vpop.f32.mrb[0].mxu0
    %3777 = vmatprep.mubr.f32.mxu0 0.0
    %3778 = vmatmul.mubr.f32.gmra.mrb[0].mxu0 %v3412
    %v3779 = vpop.f32.mrb[0].mxu0
    %v3780 = vadd.f32 0.0, %v3779
    %v3781 = vpop.f32.mrb[0].mxu0
    %3782 = vmatprep.mubr.f32.mxu0 0.0
    %3783 = vmatmul.mubr.f32.gmra.mrb[0].mxu0 %v3413
    %v3784 = vpop.f32.mrb[0].mxu0
    %v3785 = vadd.f32 0.0, %v3784
    %v3786 = vpop.f32.mrb[0].mxu0
    %3787 = vmatprep.mubr.f32.mxu0 0.0
    %3788 = vmatmul.mubr.f32.gmra.mrb[0].mxu0 %v3414
    %v3789 = vpop.f32.mrb[0].mxu0
    %v3790 = vadd.f32 0.0, %v3789
    %v3791 = vpop.f32.mrb[0].mxu0
    %3792 = vmatprep.mubr.f32.mxu0 0.0
    %3793 = vmatmul.mubr.f32.gmra.mrb[0].mxu0 %v3415
    %v3794 = vpop.f32.mrb[0].mxu0
    %v3795 = vadd.f32 0.0, %v3794
    %v3796 = vpop.f32.mrb[0].mxu0
    %3797 = vmatprep.mubr.f32.mxu0 0.0
    %3798 = vmatmul.mubr.f32.gmra.mrb[0].mxu0 %v3416
    %v3799 = vpop.f32.mrb[0].mxu0
    %v3800 = vadd.f32 0.0, %v3799
    %v3801 = vpop.f32.mrb[0].mxu0
    %3802 = vmatprep.mubr.f32.mxu0 0.0
    %3803 = vmatmul.mubr.f32.gmra.mrb[0].mxu0 %v3417
    %v3804 = vpop.f32.mrb[0].mxu0
    %v3805 = vadd.f32 0.0, %v3804
    %v3806 = vpop.f32.mrb[0].mxu0
    %3807 = vmatprep.mubr.f32.mxu0 0.0
    %3808 = vmatmul.mubr.f32.gmra.mrb[0].mxu0 %v3418
    %v3809 = vpop.f32.mrb[0].mxu0
    %v3810 = vadd.f32 0.0, %v3809
    %v3811 = vpop.f32.mrb[0].mxu0
    %3812 = vmatprep.mubr.f32.mxu0 0.0
    %3813 = vmatmul.mubr.f32.gmra.mrb[0].mxu0 %v3419
    %v3814 = vpop.f32.mrb[0].mxu0
    %v3815 = vadd.f32 0.0, %v3814
    %v3816 = vpop.f32.mrb[0].mxu0
    %3817 = vmatprep.mubr.f32.mxu0 0.0
    %3818 = vmatmul.mubr.f32.gmra.mrb[0].mxu0 %v3420
    %v3819 = vpop.f32.mrb[0].mxu0
    %v3820 = vadd.f32 0.0, %v3819
    %v3821 = vpop.f32.mrb[0].mxu0
    %3822 = vdwg.mxu0
    %v3823 = vadd.f32 %v3292, %v3505
    %v3824 = vadd.f32 %v3293, %v3510
    %v3825 = vadd.f32 %v3294, %v3515
    %v3826 = vadd.f32 %v3295, %v3520
    %v3827 = vadd.f32 %v3296, %v3525
    %v3828 = vadd.f32 %v3297, %v3530
    %v3829 = vadd.f32 %v3298, %v3535
    %v3830 = vadd.f32 %v3299, %v3540
    %v3831 = vadd.f32 %v3300, %v3545
    %v3832 = vadd.f32 %v3301, %v3550
    %v3833 = vadd.f32 %v3302, %v3555
    %v3834 = vadd.f32 %v3303, %v3560
    %v3835 = vadd.f32 %v3304, %v3565
    %v3836 = vadd.f32 %v3305, %v3570
    %v3837 = vadd.f32 %v3306, %v3575
    %v3838 = vadd.f32 %v3307, %v3580
    %v3839 = vadd.f32 %v3308, %v3585
    %v3840 = vadd.f32 %v3309, %v3590
    %v3841 = vadd.f32 %v3310, %v3595
    %v3842 = vadd.f32 %v3311, %v3600
    %v3843 = vadd.f32 %v3312, %v3605
    %v3844 = vadd.f32 %v3313, %v3610
    %v3845 = vadd.f32 %v3314, %v3615
    %v3846 = vadd.f32 %v3315, %v3620
    %v3847 = vadd.f32 %v3316, %v3625
    %v3848 = vadd.f32 %v3317, %v3630
    %v3849 = vadd.f32 %v3318, %v3635
    %v3850 = vadd.f32 %v3319, %v3640
    %v3851 = vadd.f32 %v3320, %v3645
    %v3852 = vadd.f32 %v3321, %v3650
    %v3853 = vadd.f32 %v3322, %v3655
    %v3854 = vadd.f32 %v3323, %v3660
    %v3855 = vadd.f32 %v3324, %v3665
    %v3856 = vadd.f32 %v3325, %v3670
    %v3857 = vadd.f32 %v3326, %v3675
    %v3858 = vadd.f32 %v3327, %v3680
    %v3859 = vadd.f32 %v3328, %v3685
    %v3860 = vadd.f32 %v3329, %v3690
    %v3861 = vadd.f32 %v3330, %v3695
    %v3862 = vadd.f32 %v3331, %v3700
    %v3863 = vadd.f32 %v3332, %v3705
    %v3864 = vadd.f32 %v3333, %v3710
    %v3865 = vadd.f32 %v3334, %v3715
    %v3866 = vadd.f32 %v3335, %v3720
    %v3867 = vadd.f32 %v3336, %v3725
    %v3868 = vadd.f32 %v3337, %v3730
    %v3869 = vadd.f32 %v3338, %v3735
    %v3870 = vadd.f32 %v3339, %v3740
    %v3871 = vadd.f32 %v3340, %v3745
    %v3872 = vadd.f32 %v3341, %v3750
    %v3873 = vadd.f32 %v3342, %v3755
    %v3874 = vadd.f32 %v3343, %v3760
    %v3875 = vadd.f32 %v3344, %v3765
    %v3876 = vadd.f32 %v3345, %v3770
    %v3877 = vadd.f32 %v3346, %v3775
    %v3878 = vadd.f32 %v3347, %v3780
    %v3879 = vadd.f32 %v3348, %v3785
    %v3880 = vadd.f32 %v3349, %v3790
    %v3881 = vadd.f32 %v3350, %v3795
    %v3882 = vadd.f32 %v3351, %v3800
    %v3883 = vadd.f32 %v3352, %v3805
    %v3884 = vadd.f32 %v3353, %v3810
    %v3885 = vadd.f32 %v3354, %v3815
    %v3886 = vadd.f32 %v3355, %v3820
    %v3887 = vld [vmem:[%s3356 + $0x1] sm:$0xff]
    %v3888 = vld [vmem:[%s3356 + $0x9] sm:$0xff]
    %v3889 = vld [vmem:[%s3356 + $0x19] sm:$0xff]
    %v3890 = vld [vmem:[%s3356 + $0x21] sm:$0xff]
    %v3891 = vld [vmem:[%s3356 + $0x31] sm:$0xff]
    %v3892 = vld [vmem:[%s3356 + $0x39] sm:$0xff]
    %v3893 = vld [vmem:[%s3356 + $0x49] sm:$0xff]
    %v3894 = vld [vmem:[%s3356 + $0x51] sm:$0xff]
    %v3895 = vld [vmem:[%s3356 + $0x61] sm:$0xff]
    %v3896 = vld [vmem:[%s3356 + $0x69] sm:$0xff]
    %v3897 = vld [vmem:[%s3356 + $0x79] sm:$0xff]
    %v3898 = vld [vmem:[%s3356 + $0x81] sm:$0xff]
    %v3899 = vld [vmem:[%s3356 + $0x91] sm:$0xff]
    %v3900 = vld [vmem:[%s3356 + $0x99] sm:$0xff]
    %v3901 = vld [vmem:[%s3356 + $0xa9] sm:$0xff]
    %v3902 = vld [vmem:[%s3356 + $0xb1] sm:$0xff]
    %v3903 = vld [vmem:[%s3356 + $0xc1] sm:$0xff]
    %v3904 = vld [vmem:[%s3356 + $0xc9] sm:$0xff]
    %v3905 = vld [vmem:[%s3356 + $0xd9] sm:$0xff]
    %v3906 = vld [vmem:[%s3356 + $0xe1] sm:$0xff]
    %v3907 = vld [vmem:[%s3356 + $0xf1] sm:$0xff]
    %v3908 = vld [vmem:[%s3356 + $0xf9] sm:$0xff]
    %v3909 = vld [vmem:[%s3356 + $0x109] sm:$0xff]
    %v3910 = vld [vmem:[%s3356 + $0x111] sm:$0xff]
    %v3911 = vld [vmem:[%s3356 + $0x121] sm:$0xff]
    %v3912 = vld [vmem:[%s3356 + $0x129] sm:$0xff]
    %v3913 = vld [vmem:[%s3356 + $0x139] sm:$0xff]
    %v3914 = vld [vmem:[%s3356 + $0x141] sm:$0xff]
    %v3915 = vld [vmem:[%s3356 + $0x151] sm:$0xff]
    %v3916 = vld [vmem:[%s3356 + $0x159] sm:$0xff]
    %v3917 = vld [vmem:[%s3356 + $0x169] sm:$0xff]
    %v3918 = vld [vmem:[%s3356 + $0x171] sm:$0xff]
    %v3919 = vld [vmem:[%s3356 + $0x1b1] sm:$0xff]
    %v3920 = vld [vmem:[%s3356 + $0x1b9] sm:$0xff]
    %v3921 = vld [vmem:[%s3356 + $0x1c9] sm:$0xff]
    %v3922 = vld [vmem:[%s3356 + $0x1d1] sm:$0xff]
    %v3923 = vld [vmem:[%s3356 + $0x1e1] sm:$0xff]
    %v3924 = vld [vmem:[%s3356 + $0x1e9] sm:$0xff]
    %v3925 = vld [vmem:[%s3356 + $0x1f9] sm:$0xff]
    %v3926 = vld [vmem:[%s3356 + $0x201] sm:$0xff]
    %v3927 = vld [vmem:[%s3356 + $0x211] sm:$0xff]
    %v3928 = vld [vmem:[%s3356 + $0x219] sm:$0xff]
    %v3929 = vld [vmem:[%s3356 + $0x229] sm:$0xff]
    %v3930 = vld [vmem:[%s3356 + $0x231] sm:$0xff]
    %v3931 = vld [vmem:[%s3356 + $0x241] sm:$0xff]
    %v3932 = vld [vmem:[%s3356 + $0x249] sm:$0xff]
    %v3933 = vld [vmem:[%s3356 + $0x259] sm:$0xff]
    %v3934 = vld [vmem:[%s3356 + $0x261] sm:$0xff]
    %v3935 = vld [vmem:[%s3356 + $0x271] sm:$0xff]
    %v3936 = vld [vmem:[%s3356 + $0x279] sm:$0xff]
    %v3937 = vld [vmem:[%s3356 + $0x289] sm:$0xff]
    %v3938 = vld [vmem:[%s3356 + $0x291] sm:$0xff]
    %v3939 = vld [vmem:[%s3356 + $0x2a1] sm:$0xff]
    %v3940 = vld [vmem:[%s3356 + $0x2a9] sm:$0xff]
    %v3941 = vld [vmem:[%s3356 + $0x2b9] sm:$0xff]
    %v3942 = vld [vmem:[%s3356 + $0x2c1] sm:$0xff]
    %v3943 = vld [vmem:[%s3356 + $0x2d1] sm:$0xff]
    %v3944 = vld [vmem:[%s3356 + $0x2d9] sm:$0xff]
    %v3945 = vld [vmem:[%s3356 + $0x2e9] sm:$0xff]
    %v3946 = vld [vmem:[%s3356 + $0x2f1] sm:$0xff]
    %v3947 = vld [vmem:[%s3356 + $0x301] sm:$0xff]
    %v3948 = vld [vmem:[%s3356 + $0x309] sm:$0xff]
    %v3949 = vld [vmem:[%s3356 + $0x319] sm:$0xff]
    %v3950 = vld [vmem:[%s3356 + $0x321] sm:$0xff]
    %s3951 = scalar_lea.vmem [#allocation6], 896
    %v3952 = vld [vmem:[%s3951] sm:$0xff]
    %v3953 = vld [vmem:[%s3951 + $0x8] sm:$0xff]
    %v3954 = vld [vmem:[%s3951 + $0x10] sm:$0xff]
    %v3955 = vld [vmem:[%s3951 + $0x18] sm:$0xff]
    %v3956 = vld [vmem:[%s3951 + $0x20] sm:$0xff]
    %v3957 = vld [vmem:[%s3951 + $0x28] sm:$0xff]
    %v3958 = vld [vmem:[%s3951 + $0x30] sm:$0xff]
    %v3959 = vld [vmem:[%s3951 + $0x38] sm:$0xff]
    %v3960 = vld [vmem:[%s3951 + $0x40] sm:$0xff]
    %v3961 = vld [vmem:[%s3951 + $0x48] sm:$0xff]
    %v3962 = vld [vmem:[%s3951 + $0x50] sm:$0xff]
    %v3963 = vld [vmem:[%s3951 + $0x58] sm:$0xff]
    %v3964 = vld [vmem:[%s3951 + $0x60] sm:$0xff]
    %v3965 = vld [vmem:[%s3951 + $0x68] sm:$0xff]
    %v3966 = vld [vmem:[%s3951 + $0x70] sm:$0xff]
    %v3967 = vld [vmem:[%s3951 + $0x78] sm:$0xff]
    %3968 = vmatprep.subr.mxu0 0.0
    %3969 = vmatpush1.msra.mxu0 %v3952
    %3970 = vmatprep.subr.mxu0 0.0
    %3971 = vmatpush1.msra.mxu0 %v3953
    %3972 = vmatprep.subr.mxu0 0.0
    %3973 = vmatpush1.msra.mxu0 %v3954
    %3974 = vmatprep.subr.mxu0 0.0
    %3975 = vmatpush1.msra.mxu0 %v3955
    %3976 = vmatprep.subr.mxu0 0.0
    %3977 = vmatpush1.msra.mxu0 %v3956
    %3978 = vmatprep.subr.mxu0 0.0
    %3979 = vmatpush1.msra.mxu0 %v3957
    %3980 = vmatprep.subr.mxu0 0.0
    %3981 = vmatpush1.msra.mxu0 %v3958
    %3982 = vmatprep.subr.mxu0 0.0
    %3983 = vmatpush1.msra.mxu0 %v3959
    %3984 = vmatprep.subr.mxu0 0.0
    %3985 = vmatpush1.msra.mxu0 %v3960
    %3986 = vmatprep.subr.mxu0 0.0
    %3987 = vmatpush1.msra.mxu0 %v3961
    %3988 = vmatprep.subr.mxu0 0.0
    %3989 = vmatpush1.msra.mxu0 %v3962
    %3990 = vmatprep.subr.mxu0 0.0
    %3991 = vmatpush1.msra.mxu0 %v3963
    %3992 = vmatprep.subr.mxu0 0.0
    %3993 = vmatpush1.msra.mxu0 %v3964
    %3994 = vmatprep.subr.mxu0 0.0
    %3995 = vmatpush1.msra.mxu0 %v3965
    %3996 = vmatprep.subr.mxu0 0.0
    %3997 = vmatpush1.msra.mxu0 %v3966
    %3998 = vmatprep.subr.mxu0 0.0
    %3999 = vmatpush1.msra.mxu0 %v3967
    %4000 = vmatprep.subr.mxu0 0.0
    %4001 = vmatpush1.msra.mxu0 0.0
    %4002 = vmatprep.subr.mxu0 0.0
    %4003 = vmatpush1.msra.mxu0 0.0
    %4004 = vmatprep.subr.mxu0 0.0
    %4005 = vmatpush1.msra.mxu0 0.0
    %4006 = vmatprep.subr.mxu0 0.0
    %4007 = vmatpush1.msra.mxu0 0.0
    %4008 = vmatprep.subr.mxu0 0.0
    %4009 = vmatpush1.msra.mxu0 0.0
    %4010 = vmatprep.subr.mxu0 0.0
    %4011 = vmatpush1.msra.mxu0 0.0
    %4012 = vmatprep.subr.mxu0 0.0
    %4013 = vmatpush1.msra.mxu0 0.0
    %4014 = vmatprep.subr.mxu0 0.0
    %4015 = vmatpush1.msra.mxu0 0.0
    %4016 = vmatprep.subr.mxu0 0.0
    %4017 = vmatpush1.msra.mxu0 0.0
    %4018 = vmatprep.subr.mxu0 0.0
    %4019 = vmatpush1.msra.mxu0 0.0
    %4020 = vmatprep.subr.mxu0 0.0
    %4021 = vmatpush1.msra.mxu0 0.0
    %4022 = vmatprep.subr.mxu0 0.0
    %4023 = vmatpush1.msra.mxu0 0.0
    %4024 = vmatprep.subr.mxu0 0.0
    %4025 = vmatpush1.msra.mxu0 0.0
    %4026 = vmatprep.subr.mxu0 0.0
    %4027 = vmatpush1.msra.mxu0 0.0
    %4028 = vmatprep.subr.mxu0 0.0
    %4029 = vmatpush1.msra.mxu0 0.0
    %4030 = vmatprep.subr.mxu0 0.0
    %4031 = vmatpush1.msra.mxu0 0.0
    %4032 = vmatprep.mubr.f32.mxu0 0.0
    %4033 = vmatmul.mubr.f32.gmra.mrb[0].mxu0 %v3887
    %v4034 = vpop.f32.mrb[0].mxu0
    %v4035 = vadd.f32 0.0, %v4034
    %v4036 = vpop.f32.mrb[0].mxu0
    %4037 = vmatprep.mubr.f32.mxu0 0.0
    %4038 = vmatmul.mubr.f32.gmra.mrb[0].mxu0 %v3888
    %v4039 = vpop.f32.mrb[0].mxu0
    %v4040 = vadd.f32 0.0, %v4039
    %v4041 = vpop.f32.mrb[0].mxu0
    %4042 = vmatprep.mubr.f32.mxu0 0.0
    %4043 = vmatmul.mubr.f32.gmra.mrb[0].mxu0 %v3889
    %v4044 = vpop.f32.mrb[0].mxu0
    %v4045 = vadd.f32 0.0, %v4044
    %v4046 = vpop.f32.mrb[0].mxu0
    %4047 = vmatprep.mubr.f32.mxu0 0.0
    %4048 = vmatmul.mubr.f32.gmra.mrb[0].mxu0 %v3890
    %v4049 = vpop.f32.mrb[0].mxu0
    %v4050 = vadd.f32 0.0, %v4049
    %v4051 = vpop.f32.mrb[0].mxu0
    %4052 = vmatprep.mubr.f32.mxu0 0.0
    %4053 = vmatmul.mubr.f32.gmra.mrb[0].mxu0 %v3891
    %v4054 = vpop.f32.mrb[0].mxu0
    %v4055 = vadd.f32 0.0, %v4054
    %v4056 = vpop.f32.mrb[0].mxu0
    %4057 = vmatprep.mubr.f32.mxu0 0.0
    %4058 = vmatmul.mubr.f32.gmra.mrb[0].mxu0 %v3892
    %v4059 = vpop.f32.mrb[0].mxu0
    %v4060 = vadd.f32 0.0, %v4059
    %v4061 = vpop.f32.mrb[0].mxu0
    %4062 = vmatprep.mubr.f32.mxu0 0.0
    %4063 = vmatmul.mubr.f32.gmra.mrb[0].mxu0 %v3893
    %v4064 = vpop.f32.mrb[0].mxu0
    %v4065 = vadd.f32 0.0, %v4064
    %v4066 = vpop.f32.mrb[0].mxu0
    %4067 = vmatprep.mubr.f32.mxu0 0.0
    %4068 = vmatmul.mubr.f32.gmra.mrb[0].mxu0 %v3894
    %v4069 = vpop.f32.mrb[0].mxu0
    %v4070 = vadd.f32 0.0, %v4069
    %v4071 = vpop.f32.mrb[0].mxu0
    %4072 = vmatprep.mubr.f32.mxu0 0.0
    %4073 = vmatmul.mubr.f32.gmra.mrb[0].mxu0 %v3895
    %v4074 = vpop.f32.mrb[0].mxu0
    %v4075 = vadd.f32 0.0, %v4074
    %v4076 = vpop.f32.mrb[0].mxu0
    %4077 = vmatprep.mubr.f32.mxu0 0.0
    %4078 = vmatmul.mubr.f32.gmra.mrb[0].mxu0 %v3896
    %v4079 = vpop.f32.mrb[0].mxu0
    %v4080 = vadd.f32 0.0, %v4079
    %v4081 = vpop.f32.mrb[0].mxu0
    %4082 = vmatprep.mubr.f32.mxu0 0.0
    %4083 = vmatmul.mubr.f32.gmra.mrb[0].mxu0 %v3897
    %v4084 = vpop.f32.mrb[0].mxu0
    %v4085 = vadd.f32 0.0, %v4084
    %v4086 = vpop.f32.mrb[0].mxu0
    %4087 = vmatprep.mubr.f32.mxu0 0.0
    %4088 = vmatmul.mubr.f32.gmra.mrb[0].mxu0 %v3898
    %v4089 = vpop.f32.mrb[0].mxu0
    %v4090 = vadd.f32 0.0, %v4089
    %v4091 = vpop.f32.mrb[0].mxu0
    %4092 = vmatprep.mubr.f32.mxu0 0.0
    %4093 = vmatmul.mubr.f32.gmra.mrb[0].mxu0 %v3899
    %v4094 = vpop.f32.mrb[0].mxu0
    %v4095 = vadd.f32 0.0, %v4094
    %v4096 = vpop.f32.mrb[0].mxu0
    %4097 = vmatprep.mubr.f32.mxu0 0.0
    %4098 = vmatmul.mubr.f32.gmra.mrb[0].mxu0 %v3900
    %v4099 = vpop.f32.mrb[0].mxu0
    %v4100 = vadd.f32 0.0, %v4099
    %v4101 = vpop.f32.mrb[0].mxu0
    %4102 = vmatprep.mubr.f32.mxu0 0.0
    %4103 = vmatmul.mubr.f32.gmra.mrb[0].mxu0 %v3901
    %v4104 = vpop.f32.mrb[0].mxu0
    %v4105 = vadd.f32 0.0, %v4104
    %v4106 = vpop.f32.mrb[0].mxu0
    %4107 = vmatprep.mubr.f32.mxu0 0.0
    %4108 = vmatmul.mubr.f32.gmra.mrb[0].mxu0 %v3902
    %v4109 = vpop.f32.mrb[0].mxu0
    %v4110 = vadd.f32 0.0, %v4109
    %v4111 = vpop.f32.mrb[0].mxu0
    %4112 = vmatprep.mubr.f32.mxu0 0.0
    %4113 = vmatmul.mubr.f32.gmra.mrb[0].mxu0 %v3903
    %v4114 = vpop.f32.mrb[0].mxu0
    %v4115 = vadd.f32 0.0, %v4114
    %v4116 = vpop.f32.mrb[0].mxu0
    %4117 = vmatprep.mubr.f32.mxu0 0.0
    %4118 = vmatmul.mubr.f32.gmra.mrb[0].mxu0 %v3904
    %v4119 = vpop.f32.mrb[0].mxu0
    %v4120 = vadd.f32 0.0, %v4119
    %v4121 = vpop.f32.mrb[0].mxu0
    %4122 = vmatprep.mubr.f32.mxu0 0.0
    %4123 = vmatmul.mubr.f32.gmra.mrb[0].mxu0 %v3905
    %v4124 = vpop.f32.mrb[0].mxu0
    %v4125 = vadd.f32 0.0, %v4124
    %v4126 = vpop.f32.mrb[0].mxu0
    %4127 = vmatprep.mubr.f32.mxu0 0.0
    %4128 = vmatmul.mubr.f32.gmra.mrb[0].mxu0 %v3906
    %v4129 = vpop.f32.mrb[0].mxu0
    %v4130 = vadd.f32 0.0, %v4129
    %v4131 = vpop.f32.mrb[0].mxu0
    %4132 = vmatprep.mubr.f32.mxu0 0.0
    %4133 = vmatmul.mubr.f32.gmra.mrb[0].mxu0 %v3907
    %v4134 = vpop.f32.mrb[0].mxu0
    %v4135 = vadd.f32 0.0, %v4134
    %v4136 = vpop.f32.mrb[0].mxu0
    %4137 = vmatprep.mubr.f32.mxu0 0.0
    %4138 = vmatmul.mubr.f32.gmra.mrb[0].mxu0 %v3908
    %v4139 = vpop.f32.mrb[0].mxu0
    %v4140 = vadd.f32 0.0, %v4139
    %v4141 = vpop.f32.mrb[0].mxu0
    %4142 = vmatprep.mubr.f32.mxu0 0.0
    %4143 = vmatmul.mubr.f32.gmra.mrb[0].mxu0 %v3909
    %v4144 = vpop.f32.mrb[0].mxu0
    %v4145 = vadd.f32 0.0, %v4144
    %v4146 = vpop.f32.mrb[0].mxu0
    %4147 = vmatprep.mubr.f32.mxu0 0.0
    %4148 = vmatmul.mubr.f32.gmra.mrb[0].mxu0 %v3910
    %v4149 = vpop.f32.mrb[0].mxu0
    %v4150 = vadd.f32 0.0, %v4149
    %v4151 = vpop.f32.mrb[0].mxu0
    %4152 = vmatprep.mubr.f32.mxu0 0.0
    %4153 = vmatmul.mubr.f32.gmra.mrb[0].mxu0 %v3911
    %v4154 = vpop.f32.mrb[0].mxu0
    %v4155 = vadd.f32 0.0, %v4154
    %v4156 = vpop.f32.mrb[0].mxu0
    %4157 = vmatprep.mubr.f32.mxu0 0.0
    %4158 = vmatmul.mubr.f32.gmra.mrb[0].mxu0 %v3912
    %v4159 = vpop.f32.mrb[0].mxu0
    %v4160 = vadd.f32 0.0, %v4159
    %v4161 = vpop.f32.mrb[0].mxu0
    %4162 = vmatprep.mubr.f32.mxu0 0.0
    %4163 = vmatmul.mubr.f32.gmra.mrb[0].mxu0 %v3913
    %v4164 = vpop.f32.mrb[0].mxu0
    %v4165 = vadd.f32 0.0, %v4164
    %v4166 = vpop.f32.mrb[0].mxu0
    %4167 = vmatprep.mubr.f32.mxu0 0.0
    %4168 = vmatmul.mubr.f32.gmra.mrb[0].mxu0 %v3914
    %v4169 = vpop.f32.mrb[0].mxu0
    %v4170 = vadd.f32 0.0, %v4169
    %v4171 = vpop.f32.mrb[0].mxu0
    %4172 = vmatprep.mubr.f32.mxu0 0.0
    %4173 = vmatmul.mubr.f32.gmra.mrb[0].mxu0 %v3915
    %v4174 = vpop.f32.mrb[0].mxu0
    %v4175 = vadd.f32 0.0, %v4174
    %v4176 = vpop.f32.mrb[0].mxu0
    %4177 = vmatprep.mubr.f32.mxu0 0.0
    %4178 = vmatmul.mubr.f32.gmra.mrb[0].mxu0 %v3916
    %v4179 = vpop.f32.mrb[0].mxu0
    %v4180 = vadd.f32 0.0, %v4179
    %v4181 = vpop.f32.mrb[0].mxu0
    %4182 = vmatprep.mubr.f32.mxu0 0.0
    %4183 = vmatmul.mubr.f32.gmra.mrb[0].mxu0 %v3917
    %v4184 = vpop.f32.mrb[0].mxu0
    %v4185 = vadd.f32 0.0, %v4184
    %v4186 = vpop.f32.mrb[0].mxu0
    %4187 = vmatprep.mubr.f32.mxu0 0.0
    %4188 = vmatmul.mubr.f32.gmra.mrb[0].mxu0 %v3918
    %v4189 = vpop.f32.mrb[0].mxu0
    %v4190 = vadd.f32 0.0, %v4189
    %v4191 = vpop.f32.mrb[0].mxu0
    %4192 = vmatprep.mubr.f32.mxu0 0.0
    %4193 = vmatmul.mubr.f32.gmra.mrb[0].mxu0 %v3919
    %v4194 = vpop.f32.mrb[0].mxu0
    %v4195 = vadd.f32 0.0, %v4194
    %v4196 = vpop.f32.mrb[0].mxu0
    %4197 = vmatprep.mubr.f32.mxu0 0.0
    %4198 = vmatmul.mubr.f32.gmra.mrb[0].mxu0 %v3920
    %v4199 = vpop.f32.mrb[0].mxu0
    %v4200 = vadd.f32 0.0, %v4199
    %v4201 = vpop.f32.mrb[0].mxu0
    %4202 = vmatprep.mubr.f32.mxu0 0.0
    %4203 = vmatmul.mubr.f32.gmra.mrb[0].mxu0 %v3921
    %v4204 = vpop.f32.mrb[0].mxu0
    %v4205 = vadd.f32 0.0, %v4204
    %v4206 = vpop.f32.mrb[0].mxu0
    %4207 = vmatprep.mubr.f32.mxu0 0.0
    %4208 = vmatmul.mubr.f32.gmra.mrb[0].mxu0 %v3922
    %v4209 = vpop.f32.mrb[0].mxu0
    %v4210 = vadd.f32 0.0, %v4209
    %v4211 = vpop.f32.mrb[0].mxu0
    %4212 = vmatprep.mubr.f32.mxu0 0.0
    %4213 = vmatmul.mubr.f32.gmra.mrb[0].mxu0 %v3923
    %v4214 = vpop.f32.mrb[0].mxu0
    %v4215 = vadd.f32 0.0, %v4214
    %v4216 = vpop.f32.mrb[0].mxu0
    %4217 = vmatprep.mubr.f32.mxu0 0.0
    %4218 = vmatmul.mubr.f32.gmra.mrb[0].mxu0 %v3924
    %v4219 = vpop.f32.mrb[0].mxu0
    %v4220 = vadd.f32 0.0, %v4219
    %v4221 = vpop.f32.mrb[0].mxu0
    %4222 = vmatprep.mubr.f32.mxu0 0.0
    %4223 = vmatmul.mubr.f32.gmra.mrb[0].mxu0 %v3925
    %v4224 = vpop.f32.mrb[0].mxu0
    %v4225 = vadd.f32 0.0, %v4224
    %v4226 = vpop.f32.mrb[0].mxu0
    %4227 = vmatprep.mubr.f32.mxu0 0.0
    %4228 = vmatmul.mubr.f32.gmra.mrb[0].mxu0 %v3926
    %v4229 = vpop.f32.mrb[0].mxu0
    %v4230 = vadd.f32 0.0, %v4229
    %v4231 = vpop.f32.mrb[0].mxu0
    %4232 = vmatprep.mubr.f32.mxu0 0.0
    %4233 = vmatmul.mubr.f32.gmra.mrb[0].mxu0 %v3927
    %v4234 = vpop.f32.mrb[0].mxu0
    %v4235 = vadd.f32 0.0, %v4234
    %v4236 = vpop.f32.mrb[0].mxu0
    %4237 = vmatprep.mubr.f32.mxu0 0.0
    %4238 = vmatmul.mubr.f32.gmra.mrb[0].mxu0 %v3928
    %v4239 = vpop.f32.mrb[0].mxu0
    %v4240 = vadd.f32 0.0, %v4239
    %v4241 = vpop.f32.mrb[0].mxu0
    %4242 = vmatprep.mubr.f32.mxu0 0.0
    %4243 = vmatmul.mubr.f32.gmra.mrb[0].mxu0 %v3929
    %v4244 = vpop.f32.mrb[0].mxu0
    %v4245 = vadd.f32 0.0, %v4244
    %v4246 = vpop.f32.mrb[0].mxu0
    %4247 = vmatprep.mubr.f32.mxu0 0.0
    %4248 = vmatmul.mubr.f32.gmra.mrb[0].mxu0 %v3930
    %v4249 = vpop.f32.mrb[0].mxu0
    %v4250 = vadd.f32 0.0, %v4249
    %v4251 = vpop.f32.mrb[0].mxu0
    %4252 = vmatprep.mubr.f32.mxu0 0.0
    %4253 = vmatmul.mubr.f32.gmra.mrb[0].mxu0 %v3931
    %v4254 = vpop.f32.mrb[0].mxu0
    %v4255 = vadd.f32 0.0, %v4254
    %v4256 = vpop.f32.mrb[0].mxu0
    %4257 = vmatprep.mubr.f32.mxu0 0.0
    %4258 = vmatmul.mubr.f32.gmra.mrb[0].mxu0 %v3932
    %v4259 = vpop.f32.mrb[0].mxu0
    %v4260 = vadd.f32 0.0, %v4259
    %v4261 = vpop.f32.mrb[0].mxu0
    %4262 = vmatprep.mubr.f32.mxu0 0.0
    %4263 = vmatmul.mubr.f32.gmra.mrb[0].mxu0 %v3933
    %v4264 = vpop.f32.mrb[0].mxu0
    %v4265 = vadd.f32 0.0, %v4264
    %v4266 = vpop.f32.mrb[0].mxu0
    %4267 = vmatprep.mubr.f32.mxu0 0.0
    %4268 = vmatmul.mubr.f32.gmra.mrb[0].mxu0 %v3934
    %v4269 = vpop.f32.mrb[0].mxu0
    %v4270 = vadd.f32 0.0, %v4269
    %v4271 = vpop.f32.mrb[0].mxu0
    %4272 = vmatprep.mubr.f32.mxu0 0.0
    %4273 = vmatmul.mubr.f32.gmra.mrb[0].mxu0 %v3935
    %v4274 = vpop.f32.mrb[0].mxu0
    %v4275 = vadd.f32 0.0, %v4274
    %v4276 = vpop.f32.mrb[0].mxu0
    %4277 = vmatprep.mubr.f32.mxu0 0.0
    %4278 = vmatmul.mubr.f32.gmra.mrb[0].mxu0 %v3936
    %v4279 = vpop.f32.mrb[0].mxu0
    %v4280 = vadd.f32 0.0, %v4279
    %v4281 = vpop.f32.mrb[0].mxu0
    %4282 = vmatprep.mubr.f32.mxu0 0.0
    %4283 = vmatmul.mubr.f32.gmra.mrb[0].mxu0 %v3937
    %v4284 = vpop.f32.mrb[0].mxu0
    %v4285 = vadd.f32 0.0, %v4284
    %v4286 = vpop.f32.mrb[0].mxu0
    %4287 = vmatprep.mubr.f32.mxu0 0.0
    %4288 = vmatmul.mubr.f32.gmra.mrb[0].mxu0 %v3938
    %v4289 = vpop.f32.mrb[0].mxu0
    %v4290 = vadd.f32 0.0, %v4289
    %v4291 = vpop.f32.mrb[0].mxu0
    %4292 = vmatprep.mubr.f32.mxu0 0.0
    %4293 = vmatmul.mubr.f32.gmra.mrb[0].mxu0 %v3939
    %v4294 = vpop.f32.mrb[0].mxu0
    %v4295 = vadd.f32 0.0, %v4294
    %v4296 = vpop.f32.mrb[0].mxu0
    %4297 = vmatprep.mubr.f32.mxu0 0.0
    %4298 = vmatmul.mubr.f32.gmra.mrb[0].mxu0 %v3940
    %v4299 = vpop.f32.mrb[0].mxu0
    %v4300 = vadd.f32 0.0, %v4299
    %v4301 = vpop.f32.mrb[0].mxu0
    %4302 = vmatprep.mubr.f32.mxu0 0.0
    %4303 = vmatmul.mubr.f32.gmra.mrb[0].mxu0 %v3941
    %v4304 = vpop.f32.mrb[0].mxu0
    %v4305 = vadd.f32 0.0, %v4304
    %v4306 = vpop.f32.mrb[0].mxu0
    %4307 = vmatprep.mubr.f32.mxu0 0.0
    %4308 = vmatmul.mubr.f32.gmra.mrb[0].mxu0 %v3942
    %v4309 = vpop.f32.mrb[0].mxu0
    %v4310 = vadd.f32 0.0, %v4309
    %v4311 = vpop.f32.mrb[0].mxu0
    %4312 = vmatprep.mubr.f32.mxu0 0.0
    %4313 = vmatmul.mubr.f32.gmra.mrb[0].mxu0 %v3943
    %v4314 = vpop.f32.mrb[0].mxu0
    %v4315 = vadd.f32 0.0, %v4314
    %v4316 = vpop.f32.mrb[0].mxu0
    %4317 = vmatprep.mubr.f32.mxu0 0.0
    %4318 = vmatmul.mubr.f32.gmra.mrb[0].mxu0 %v3944
    %v4319 = vpop.f32.mrb[0].mxu0
    %v4320 = vadd.f32 0.0, %v4319
    %v4321 = vpop.f32.mrb[0].mxu0
    %4322 = vmatprep.mubr.f32.mxu0 0.0
    %4323 = vmatmul.mubr.f32.gmra.mrb[0].mxu0 %v3945
    %v4324 = vpop.f32.mrb[0].mxu0
    %v4325 = vadd.f32 0.0, %v4324
    %v4326 = vpop.f32.mrb[0].mxu0
    %4327 = vmatprep.mubr.f32.mxu0 0.0
    %4328 = vmatmul.mubr.f32.gmra.mrb[0].mxu0 %v3946
    %v4329 = vpop.f32.mrb[0].mxu0
    %v4330 = vadd.f32 0.0, %v4329
    %v4331 = vpop.f32.mrb[0].mxu0
    %4332 = vmatprep.mubr.f32.mxu0 0.0
    %4333 = vmatmul.mubr.f32.gmra.mrb[0].mxu0 %v3947
    %v4334 = vpop.f32.mrb[0].mxu0
    %v4335 = vadd.f32 0.0, %v4334
    %v4336 = vpop.f32.mrb[0].mxu0
    %4337 = vmatprep.mubr.f32.mxu0 0.0
    %4338 = vmatmul.mubr.f32.gmra.mrb[0].mxu0 %v3948
    %v4339 = vpop.f32.mrb[0].mxu0
    %v4340 = vadd.f32 0.0, %v4339
    %v4341 = vpop.f32.mrb[0].mxu0
    %4342 = vmatprep.mubr.f32.mxu0 0.0
    %4343 = vmatmul.mubr.f32.gmra.mrb[0].mxu0 %v3949
    %v4344 = vpop.f32.mrb[0].mxu0
    %v4345 = vadd.f32 0.0, %v4344
    %v4346 = vpop.f32.mrb[0].mxu0
    %4347 = vmatprep.mubr.f32.mxu0 0.0
    %4348 = vmatmul.mubr.f32.gmra.mrb[0].mxu0 %v3950
    %v4349 = vpop.f32.mrb[0].mxu0
    %v4350 = vadd.f32 0.0, %v4349
    %v4351 = vpop.f32.mrb[0].mxu0
    %4352 = vdwg.mxu0
    %v4353 = vadd.f32 %v3823, %v4035
    %v4354 = vadd.f32 %v3824, %v4040
    %v4355 = vadd.f32 %v3825, %v4045
    %v4356 = vadd.f32 %v3826, %v4050
    %v4357 = vadd.f32 %v3827, %v4055
    %v4358 = vadd.f32 %v3828, %v4060
    %v4359 = vadd.f32 %v3829, %v4065
    %v4360 = vadd.f32 %v3830, %v4070
    %v4361 = vadd.f32 %v3831, %v4075
    %v4362 = vadd.f32 %v3832, %v4080
    %v4363 = vadd.f32 %v3833, %v4085
    %v4364 = vadd.f32 %v3834, %v4090
    %v4365 = vadd.f32 %v3835, %v4095
    %v4366 = vadd.f32 %v3836, %v4100
    %v4367 = vadd.f32 %v3837, %v4105
    %v4368 = vadd.f32 %v3838, %v4110
    %v4369 = vadd.f32 %v3839, %v4115
    %v4370 = vadd.f32 %v3840, %v4120
    %v4371 = vadd.f32 %v3841, %v4125
    %v4372 = vadd.f32 %v3842, %v4130
    %v4373 = vadd.f32 %v3843, %v4135
    %v4374 = vadd.f32 %v3844, %v4140
    %v4375 = vadd.f32 %v3845, %v4145
    %v4376 = vadd.f32 %v3846, %v4150
    %v4377 = vadd.f32 %v3847, %v4155
    %v4378 = vadd.f32 %v3848, %v4160
    %v4379 = vadd.f32 %v3849, %v4165
    %v4380 = vadd.f32 %v3850, %v4170
    %v4381 = vadd.f32 %v3851, %v4175
    %v4382 = vadd.f32 %v3852, %v4180
    %v4383 = vadd.f32 %v3853, %v4185
    %v4384 = vadd.f32 %v3854, %v4190
    %v4385 = vadd.f32 %v3855, %v4195
    %v4386 = vadd.f32 %v3856, %v4200
    %v4387 = vadd.f32 %v3857, %v4205
    %v4388 = vadd.f32 %v3858, %v4210
    %v4389 = vadd.f32 %v3859, %v4215
    %v4390 = vadd.f32 %v3860, %v4220
    %v4391 = vadd.f32 %v3861, %v4225
    %v4392 = vadd.f32 %v3862, %v4230
    %v4393 = vadd.f32 %v3863, %v4235
    %v4394 = vadd.f32 %v3864, %v4240
    %v4395 = vadd.f32 %v3865, %v4245
    %v4396 = vadd.f32 %v3866, %v4250
    %v4397 = vadd.f32 %v3867, %v4255
    %v4398 = vadd.f32 %v3868, %v4260
    %v4399 = vadd.f32 %v3869, %v4265
    %v4400 = vadd.f32 %v3870, %v4270
    %v4401 = vadd.f32 %v3871, %v4275
    %v4402 = vadd.f32 %v3872, %v4280
    %v4403 = vadd.f32 %v3873, %v4285
    %v4404 = vadd.f32 %v3874, %v4290
    %v4405 = vadd.f32 %v3875, %v4295
    %v4406 = vadd.f32 %v3876, %v4300
    %v4407 = vadd.f32 %v3877, %v4305
    %v4408 = vadd.f32 %v3878, %v4310
    %v4409 = vadd.f32 %v3879, %v4315
    %v4410 = vadd.f32 %v3880, %v4320
    %v4411 = vadd.f32 %v3881, %v4325
    %v4412 = vadd.f32 %v3882, %v4330
    %v4413 = vadd.f32 %v3883, %v4335
    %v4414 = vadd.f32 %v3884, %v4340
    %v4415 = vadd.f32 %v3885, %v4345
    %v4416 = vadd.f32 %v3886, %v4350
    %v4417 = vld [vmem:[%s3356 + $0x2] sm:$0xff]
    %v4418 = vld [vmem:[%s3356 + $0xa] sm:$0xff]
    %v4419 = vld [vmem:[%s3356 + $0x1a] sm:$0xff]
    %v4420 = vld [vmem:[%s3356 + $0x22] sm:$0xff]
    %v4421 = vld [vmem:[%s3356 + $0x32] sm:$0xff]
    %v4422 = vld [vmem:[%s3356 + $0x3a] sm:$0xff]
    %v4423 = vld [vmem:[%s3356 + $0x4a] sm:$0xff]
    %v4424 = vld [vmem:[%s3356 + $0x52] sm:$0xff]
    %v4425 = vld [vmem:[%s3356 + $0x62] sm:$0xff]
    %v4426 = vld [vmem:[%s3356 + $0x6a] sm:$0xff]
    %v4427 = vld [vmem:[%s3356 + $0x7a] sm:$0xff]
    %v4428 = vld [vmem:[%s3356 + $0x82] sm:$0xff]
    %v4429 = vld [vmem:[%s3356 + $0x92] sm:$0xff]
    %v4430 = vld [vmem:[%s3356 + $0x9a] sm:$0xff]
    %v4431 = vld [vmem:[%s3356 + $0xaa] sm:$0xff]
    %v4432 = vld [vmem:[%s3356 + $0xb2] sm:$0xff]
    %v4433 = vld [vmem:[%s3356 + $0xc2] sm:$0xff]
    %v4434 = vld [vmem:[%s3356 + $0xca] sm:$0xff]
    %v4435 = vld [vmem:[%s3356 + $0xda] sm:$0xff]
    %v4436 = vld [vmem:[%s3356 + $0xe2] sm:$0xff]
    %v4437 = vld [vmem:[%s3356 + $0xf2] sm:$0xff]
    %v4438 = vld [vmem:[%s3356 + $0xfa] sm:$0xff]
    %v4439 = vld [vmem:[%s3356 + $0x10a] sm:$0xff]
    %v4440 = vld [vmem:[%s3356 + $0x112] sm:$0xff]
    %v4441 = vld [vmem:[%s3356 + $0x122] sm:$0xff]
    %v4442 = vld [vmem:[%s3356 + $0x12a] sm:$0xff]
    %v4443 = vld [vmem:[%s3356 + $0x13a] sm:$0xff]
    %v4444 = vld [vmem:[%s3356 + $0x142] sm:$0xff]
    %v4445 = vld [vmem:[%s3356 + $0x152] sm:$0xff]
    %v4446 = vld [vmem:[%s3356 + $0x15a] sm:$0xff]
    %v4447 = vld [vmem:[%s3356 + $0x16a] sm:$0xff]
    %v4448 = vld [vmem:[%s3356 + $0x172] sm:$0xff]
    %v4449 = vld [vmem:[%s3356 + $0x1b2] sm:$0xff]
    %v4450 = vld [vmem:[%s3356 + $0x1ba] sm:$0xff]
    %v4451 = vld [vmem:[%s3356 + $0x1ca] sm:$0xff]
    %v4452 = vld [vmem:[%s3356 + $0x1d2] sm:$0xff]
    %v4453 = vld [vmem:[%s3356 + $0x1e2] sm:$0xff]
    %v4454 = vld [vmem:[%s3356 + $0x1ea] sm:$0xff]
    %v4455 = vld [vmem:[%s3356 + $0x1fa] sm:$0xff]
    %v4456 = vld [vmem:[%s3356 + $0x202] sm:$0xff]
    %v4457 = vld [vmem:[%s3356 + $0x212] sm:$0xff]
    %v4458 = vld [vmem:[%s3356 + $0x21a] sm:$0xff]
    %v4459 = vld [vmem:[%s3356 + $0x22a] sm:$0xff]
    %v4460 = vld [vmem:[%s3356 + $0x232] sm:$0xff]
    %v4461 = vld [vmem:[%s3356 + $0x242] sm:$0xff]
    %v4462 = vld [vmem:[%s3356 + $0x24a] sm:$0xff]
    %v4463 = vld [vmem:[%s3356 + $0x25a] sm:$0xff]
    %v4464 = vld [vmem:[%s3356 + $0x262] sm:$0xff]
    %v4465 = vld [vmem:[%s3356 + $0x272] sm:$0xff]
    %v4466 = vld [vmem:[%s3356 + $0x27a] sm:$0xff]
    %v4467 = vld [vmem:[%s3356 + $0x28a] sm:$0xff]
    %v4468 = vld [vmem:[%s3356 + $0x292] sm:$0xff]
    %v4469 = vld [vmem:[%s3356 + $0x2a2] sm:$0xff]
    %v4470 = vld [vmem:[%s3356 + $0x2aa] sm:$0xff]
    %v4471 = vld [vmem:[%s3356 + $0x2ba] sm:$0xff]
    %v4472 = vld [vmem:[%s3356 + $0x2c2] sm:$0xff]
    %v4473 = vld [vmem:[%s3356 + $0x2d2] sm:$0xff]
    %v4474 = vld [vmem:[%s3356 + $0x2da] sm:$0xff]
    %v4475 = vld [vmem:[%s3356 + $0x2ea] sm:$0xff]
    %v4476 = vld [vmem:[%s3356 + $0x2f2] sm:$0xff]
    %v4477 = vld [vmem:[%s3356 + $0x302] sm:$0xff]
    %v4478 = vld [vmem:[%s3356 + $0x30a] sm:$0xff]
    %v4479 = vld [vmem:[%s3356 + $0x31a] sm:$0xff]
    %v4480 = vld [vmem:[%s3356 + $0x322] sm:$0xff]
    %s4481 = scalar_lea.vmem [#allocation6], 1024
    %v4482 = vld [vmem:[%s4481] sm:$0xff]
    %v4483 = vld [vmem:[%s4481 + $0x8] sm:$0xff]
    %v4484 = vld [vmem:[%s4481 + $0x10] sm:$0xff]
    %v4485 = vld [vmem:[%s4481 + $0x18] sm:$0xff]
    %v4486 = vld [vmem:[%s4481 + $0x20] sm:$0xff]
    %v4487 = vld [vmem:[%s4481 + $0x28] sm:$0xff]
    %v4488 = vld [vmem:[%s4481 + $0x30] sm:$0xff]
    %v4489 = vld [vmem:[%s4481 + $0x38] sm:$0xff]
    %v4490 = vld [vmem:[%s4481 + $0x40] sm:$0xff]
    %v4491 = vld [vmem:[%s4481 + $0x48] sm:$0xff]
    %v4492 = vld [vmem:[%s4481 + $0x50] sm:$0xff]
    %v4493 = vld [vmem:[%s4481 + $0x58] sm:$0xff]
    %v4494 = vld [vmem:[%s4481 + $0x60] sm:$0xff]
    %v4495 = vld [vmem:[%s4481 + $0x68] sm:$0xff]
    %v4496 = vld [vmem:[%s4481 + $0x70] sm:$0xff]
    %v4497 = vld [vmem:[%s4481 + $0x78] sm:$0xff]
    %4498 = vmatprep.subr.mxu0 0.0
    %4499 = vmatpush1.msra.mxu0 %v4482
    %4500 = vmatprep.subr.mxu0 0.0
    %4501 = vmatpush1.msra.mxu0 %v4483
    %4502 = vmatprep.subr.mxu0 0.0
    %4503 = vmatpush1.msra.mxu0 %v4484
    %4504 = vmatprep.subr.mxu0 0.0
    %4505 = vmatpush1.msra.mxu0 %v4485
    %4506 = vmatprep.subr.mxu0 0.0
    %4507 = vmatpush1.msra.mxu0 %v4486
    %4508 = vmatprep.subr.mxu0 0.0
    %4509 = vmatpush1.msra.mxu0 %v4487
    %4510 = vmatprep.subr.mxu0 0.0
    %4511 = vmatpush1.msra.mxu0 %v4488
    %4512 = vmatprep.subr.mxu0 0.0
    %4513 = vmatpush1.msra.mxu0 %v4489
    %4514 = vmatprep.subr.mxu0 0.0
    %4515 = vmatpush1.msra.mxu0 %v4490
    %4516 = vmatprep.subr.mxu0 0.0
    %4517 = vmatpush1.msra.mxu0 %v4491
    %4518 = vmatprep.subr.mxu0 0.0
    %4519 = vmatpush1.msra.mxu0 %v4492
    %4520 = vmatprep.subr.mxu0 0.0
    %4521 = vmatpush1.msra.mxu0 %v4493
    %4522 = vmatprep.subr.mxu0 0.0
    %4523 = vmatpush1.msra.mxu0 %v4494
    %4524 = vmatprep.subr.mxu0 0.0
    %4525 = vmatpush1.msra.mxu0 %v4495
    %4526 = vmatprep.subr.mxu0 0.0
    %4527 = vmatpush1.msra.mxu0 %v4496
    %4528 = vmatprep.subr.mxu0 0.0
    %4529 = vmatpush1.msra.mxu0 %v4497
    %4530 = vmatprep.subr.mxu0 0.0
    %4531 = vmatpush1.msra.mxu0 0.0
    %4532 = vmatprep.subr.mxu0 0.0
    %4533 = vmatpush1.msra.mxu0 0.0
    %4534 = vmatprep.subr.mxu0 0.0
    %4535 = vmatpush1.msra.mxu0 0.0
    %4536 = vmatprep.subr.mxu0 0.0
    %4537 = vmatpush1.msra.mxu0 0.0
    %4538 = vmatprep.subr.mxu0 0.0
    %4539 = vmatpush1.msra.mxu0 0.0
    %4540 = vmatprep.subr.mxu0 0.0
    %4541 = vmatpush1.msra.mxu0 0.0
    %4542 = vmatprep.subr.mxu0 0.0
    %4543 = vmatpush1.msra.mxu0 0.0
    %4544 = vmatprep.subr.mxu0 0.0
    %4545 = vmatpush1.msra.mxu0 0.0
    %4546 = vmatprep.subr.mxu0 0.0
    %4547 = vmatpush1.msra.mxu0 0.0
    %4548 = vmatprep.subr.mxu0 0.0
    %4549 = vmatpush1.msra.mxu0 0.0
    %4550 = vmatprep.subr.mxu0 0.0
    %4551 = vmatpush1.msra.mxu0 0.0
    %4552 = vmatprep.subr.mxu0 0.0
    %4553 = vmatpush1.msra.mxu0 0.0
    %4554 = vmatprep.subr.mxu0 0.0
    %4555 = vmatpush1.msra.mxu0 0.0
    %4556 = vmatprep.subr.mxu0 0.0
    %4557 = vmatpush1.msra.mxu0 0.0
    %4558 = vmatprep.subr.mxu0 0.0
    %4559 = vmatpush1.msra.mxu0 0.0
    %4560 = vmatprep.subr.mxu0 0.0
    %4561 = vmatpush1.msra.mxu0 0.0
    %4562 = vmatprep.mubr.f32.mxu0 0.0
    %4563 = vmatmul.mubr.f32.gmra.mrb[0].mxu0 %v4417
    %v4564 = vpop.f32.mrb[0].mxu0
    %v4565 = vadd.f32 0.0, %v4564
    %v4566 = vpop.f32.mrb[0].mxu0
    %4567 = vmatprep.mubr.f32.mxu0 0.0
    %4568 = vmatmul.mubr.f32.gmra.mrb[0].mxu0 %v4418
    %v4569 = vpop.f32.mrb[0].mxu0
    %v4570 = vadd.f32 0.0, %v4569
    %v4571 = vpop.f32.mrb[0].mxu0
    %4572 = vmatprep.mubr.f32.mxu0 0.0
    %4573 = vmatmul.mubr.f32.gmra.mrb[0].mxu0 %v4419
    %v4574 = vpop.f32.mrb[0].mxu0
    %v4575 = vadd.f32 0.0, %v4574
    %v4576 = vpop.f32.mrb[0].mxu0
    %4577 = vmatprep.mubr.f32.mxu0 0.0
    %4578 = vmatmul.mubr.f32.gmra.mrb[0].mxu0 %v4420
    %v4579 = vpop.f32.mrb[0].mxu0
    %v4580 = vadd.f32 0.0, %v4579
    %v4581 = vpop.f32.mrb[0].mxu0
    %4582 = vmatprep.mubr.f32.mxu0 0.0
    %4583 = vmatmul.mubr.f32.gmra.mrb[0].mxu0 %v4421
    %v4584 = vpop.f32.mrb[0].mxu0
    %v4585 = vadd.f32 0.0, %v4584
    %v4586 = vpop.f32.mrb[0].mxu0
    %4587 = vmatprep.mubr.f32.mxu0 0.0
    %4588 = vmatmul.mubr.f32.gmra.mrb[0].mxu0 %v4422
    %v4589 = vpop.f32.mrb[0].mxu0
    %v4590 = vadd.f32 0.0, %v4589
    %v4591 = vpop.f32.mrb[0].mxu0
    %4592 = vmatprep.mubr.f32.mxu0 0.0
    %4593 = vmatmul.mubr.f32.gmra.mrb[0].mxu0 %v4423
    %v4594 = vpop.f32.mrb[0].mxu0
    %v4595 = vadd.f32 0.0, %v4594
    %v4596 = vpop.f32.mrb[0].mxu0
    %4597 = vmatprep.mubr.f32.mxu0 0.0
    %4598 = vmatmul.mubr.f32.gmra.mrb[0].mxu0 %v4424
    %v4599 = vpop.f32.mrb[0].mxu0
    %v4600 = vadd.f32 0.0, %v4599
    %v4601 = vpop.f32.mrb[0].mxu0
    %4602 = vmatprep.mubr.f32.mxu0 0.0
    %4603 = vmatmul.mubr.f32.gmra.mrb[0].mxu0 %v4425
    %v4604 = vpop.f32.mrb[0].mxu0
    %v4605 = vadd.f32 0.0, %v4604
    %v4606 = vpop.f32.mrb[0].mxu0
    %4607 = vmatprep.mubr.f32.mxu0 0.0
    %4608 = vmatmul.mubr.f32.gmra.mrb[0].mxu0 %v4426
    %v4609 = vpop.f32.mrb[0].mxu0
    %v4610 = vadd.f32 0.0, %v4609
    %v4611 = vpop.f32.mrb[0].mxu0
    %4612 = vmatprep.mubr.f32.mxu0 0.0
    %4613 = vmatmul.mubr.f32.gmra.mrb[0].mxu0 %v4427
    %v4614 = vpop.f32.mrb[0].mxu0
    %v4615 = vadd.f32 0.0, %v4614
    %v4616 = vpop.f32.mrb[0].mxu0
    %4617 = vmatprep.mubr.f32.mxu0 0.0
    %4618 = vmatmul.mubr.f32.gmra.mrb[0].mxu0 %v4428
    %v4619 = vpop.f32.mrb[0].mxu0
    %v4620 = vadd.f32 0.0, %v4619
    %v4621 = vpop.f32.mrb[0].mxu0
    %4622 = vmatprep.mubr.f32.mxu0 0.0
    %4623 = vmatmul.mubr.f32.gmra.mrb[0].mxu0 %v4429
    %v4624 = vpop.f32.mrb[0].mxu0
    %v4625 = vadd.f32 0.0, %v4624
    %v4626 = vpop.f32.mrb[0].mxu0
    %4627 = vmatprep.mubr.f32.mxu0 0.0
    %4628 = vmatmul.mubr.f32.gmra.mrb[0].mxu0 %v4430
    %v4629 = vpop.f32.mrb[0].mxu0
    %v4630 = vadd.f32 0.0, %v4629
    %v4631 = vpop.f32.mrb[0].mxu0
    %4632 = vmatprep.mubr.f32.mxu0 0.0
    %4633 = vmatmul.mubr.f32.gmra.mrb[0].mxu0 %v4431
    %v4634 = vpop.f32.mrb[0].mxu0
    %v4635 = vadd.f32 0.0, %v4634
    %v4636 = vpop.f32.mrb[0].mxu0
    %4637 = vmatprep.mubr.f32.mxu0 0.0
    %4638 = vmatmul.mubr.f32.gmra.mrb[0].mxu0 %v4432
    %v4639 = vpop.f32.mrb[0].mxu0
    %v4640 = vadd.f32 0.0, %v4639
    %v4641 = vpop.f32.mrb[0].mxu0
    %4642 = vmatprep.mubr.f32.mxu0 0.0
    %4643 = vmatmul.mubr.f32.gmra.mrb[0].mxu0 %v4433
    %v4644 = vpop.f32.mrb[0].mxu0
    %v4645 = vadd.f32 0.0, %v4644
    %v4646 = vpop.f32.mrb[0].mxu0
    %4647 = vmatprep.mubr.f32.mxu0 0.0
    %4648 = vmatmul.mubr.f32.gmra.mrb[0].mxu0 %v4434
    %v4649 = vpop.f32.mrb[0].mxu0
    %v4650 = vadd.f32 0.0, %v4649
    %v4651 = vpop.f32.mrb[0].mxu0
    %4652 = vmatprep.mubr.f32.mxu0 0.0
    %4653 = vmatmul.mubr.f32.gmra.mrb[0].mxu0 %v4435
    %v4654 = vpop.f32.mrb[0].mxu0
    %v4655 = vadd.f32 0.0, %v4654
    %v4656 = vpop.f32.mrb[0].mxu0
    %4657 = vmatprep.mubr.f32.mxu0 0.0
    %4658 = vmatmul.mubr.f32.gmra.mrb[0].mxu0 %v4436
    %v4659 = vpop.f32.mrb[0].mxu0
    %v4660 = vadd.f32 0.0, %v4659
    %v4661 = vpop.f32.mrb[0].mxu0
    %4662 = vmatprep.mubr.f32.mxu0 0.0
    %4663 = vmatmul.mubr.f32.gmra.mrb[0].mxu0 %v4437
    %v4664 = vpop.f32.mrb[0].mxu0
    %v4665 = vadd.f32 0.0, %v4664
    %v4666 = vpop.f32.mrb[0].mxu0
    %4667 = vmatprep.mubr.f32.mxu0 0.0
    %4668 = vmatmul.mubr.f32.gmra.mrb[0].mxu0 %v4438
    %v4669 = vpop.f32.mrb[0].mxu0
    %v4670 = vadd.f32 0.0, %v4669
    %v4671 = vpop.f32.mrb[0].mxu0
    %4672 = vmatprep.mubr.f32.mxu0 0.0
    %4673 = vmatmul.mubr.f32.gmra.mrb[0].mxu0 %v4439
    %v4674 = vpop.f32.mrb[0].mxu0
    %v4675 = vadd.f32 0.0, %v4674
    %v4676 = vpop.f32.mrb[0].mxu0
    %4677 = vmatprep.mubr.f32.mxu0 0.0
    %4678 = vmatmul.mubr.f32.gmra.mrb[0].mxu0 %v4440
    %v4679 = vpop.f32.mrb[0].mxu0
    %v4680 = vadd.f32 0.0, %v4679
    %v4681 = vpop.f32.mrb[0].mxu0
    %4682 = vmatprep.mubr.f32.mxu0 0.0
    %4683 = vmatmul.mubr.f32.gmra.mrb[0].mxu0 %v4441
    %v4684 = vpop.f32.mrb[0].mxu0
    %v4685 = vadd.f32 0.0, %v4684
    %v4686 = vpop.f32.mrb[0].mxu0
    %4687 = vmatprep.mubr.f32.mxu0 0.0
    %4688 = vmatmul.mubr.f32.gmra.mrb[0].mxu0 %v4442
    %v4689 = vpop.f32.mrb[0].mxu0
    %v4690 = vadd.f32 0.0, %v4689
    %v4691 = vpop.f32.mrb[0].mxu0
    %4692 = vmatprep.mubr.f32.mxu0 0.0
    %4693 = vmatmul.mubr.f32.gmra.mrb[0].mxu0 %v4443
    %v4694 = vpop.f32.mrb[0].mxu0
    %v4695 = vadd.f32 0.0, %v4694
    %v4696 = vpop.f32.mrb[0].mxu0
    %4697 = vmatprep.mubr.f32.mxu0 0.0
    %4698 = vmatmul.mubr.f32.gmra.mrb[0].mxu0 %v4444
    %v4699 = vpop.f32.mrb[0].mxu0
    %v4700 = vadd.f32 0.0, %v4699
    %v4701 = vpop.f32.mrb[0].mxu0
    %4702 = vmatprep.mubr.f32.mxu0 0.0
    %4703 = vmatmul.mubr.f32.gmra.mrb[0].mxu0 %v4445
    %v4704 = vpop.f32.mrb[0].mxu0
    %v4705 = vadd.f32 0.0, %v4704
    %v4706 = vpop.f32.mrb[0].mxu0
    %4707 = vmatprep.mubr.f32.mxu0 0.0
    %4708 = vmatmul.mubr.f32.gmra.mrb[0].mxu0 %v4446
    %v4709 = vpop.f32.mrb[0].mxu0
    %v4710 = vadd.f32 0.0, %v4709
    %v4711 = vpop.f32.mrb[0].mxu0
    %4712 = vmatprep.mubr.f32.mxu0 0.0
    %4713 = vmatmul.mubr.f32.gmra.mrb[0].mxu0 %v4447
    %v4714 = vpop.f32.mrb[0].mxu0
    %v4715 = vadd.f32 0.0, %v4714
    %v4716 = vpop.f32.mrb[0].mxu0
    %4717 = vmatprep.mubr.f32.mxu0 0.0
    %4718 = vmatmul.mubr.f32.gmra.mrb[0].mxu0 %v4448
    %v4719 = vpop.f32.mrb[0].mxu0
    %v4720 = vadd.f32 0.0, %v4719
    %v4721 = vpop.f32.mrb[0].mxu0
    %4722 = vmatprep.mubr.f32.mxu0 0.0
    %4723 = vmatmul.mubr.f32.gmra.mrb[0].mxu0 %v4449
    %v4724 = vpop.f32.mrb[0].mxu0
    %v4725 = vadd.f32 0.0, %v4724
    %v4726 = vpop.f32.mrb[0].mxu0
    %4727 = vmatprep.mubr.f32.mxu0 0.0
    %4728 = vmatmul.mubr.f32.gmra.mrb[0].mxu0 %v4450
    %v4729 = vpop.f32.mrb[0].mxu0
    %v4730 = vadd.f32 0.0, %v4729
    %v4731 = vpop.f32.mrb[0].mxu0
    %4732 = vmatprep.mubr.f32.mxu0 0.0
    %4733 = vmatmul.mubr.f32.gmra.mrb[0].mxu0 %v4451
    %v4734 = vpop.f32.mrb[0].mxu0
    %v4735 = vadd.f32 0.0, %v4734
    %v4736 = vpop.f32.mrb[0].mxu0
    %4737 = vmatprep.mubr.f32.mxu0 0.0
    %4738 = vmatmul.mubr.f32.gmra.mrb[0].mxu0 %v4452
    %v4739 = vpop.f32.mrb[0].mxu0
    %v4740 = vadd.f32 0.0, %v4739
    %v4741 = vpop.f32.mrb[0].mxu0
    %4742 = vmatprep.mubr.f32.mxu0 0.0
    %4743 = vmatmul.mubr.f32.gmra.mrb[0].mxu0 %v4453
    %v4744 = vpop.f32.mrb[0].mxu0
    %v4745 = vadd.f32 0.0, %v4744
    %v4746 = vpop.f32.mrb[0].mxu0
    %4747 = vmatprep.mubr.f32.mxu0 0.0
    %4748 = vmatmul.mubr.f32.gmra.mrb[0].mxu0 %v4454
    %v4749 = vpop.f32.mrb[0].mxu0
    %v4750 = vadd.f32 0.0, %v4749
    %v4751 = vpop.f32.mrb[0].mxu0
    %4752 = vmatprep.mubr.f32.mxu0 0.0
    %4753 = vmatmul.mubr.f32.gmra.mrb[0].mxu0 %v4455
    %v4754 = vpop.f32.mrb[0].mxu0
    %v4755 = vadd.f32 0.0, %v4754
    %v4756 = vpop.f32.mrb[0].mxu0
    %4757 = vmatprep.mubr.f32.mxu0 0.0
    %4758 = vmatmul.mubr.f32.gmra.mrb[0].mxu0 %v4456
    %v4759 = vpop.f32.mrb[0].mxu0
    %v4760 = vadd.f32 0.0, %v4759
    %v4761 = vpop.f32.mrb[0].mxu0
    %4762 = vmatprep.mubr.f32.mxu0 0.0
    %4763 = vmatmul.mubr.f32.gmra.mrb[0].mxu0 %v4457
    %v4764 = vpop.f32.mrb[0].mxu0
    %v4765 = vadd.f32 0.0, %v4764
    %v4766 = vpop.f32.mrb[0].mxu0
    %4767 = vmatprep.mubr.f32.mxu0 0.0
    %4768 = vmatmul.mubr.f32.gmra.mrb[0].mxu0 %v4458
    %v4769 = vpop.f32.mrb[0].mxu0
    %v4770 = vadd.f32 0.0, %v4769
    %v4771 = vpop.f32.mrb[0].mxu0
    %4772 = vmatprep.mubr.f32.mxu0 0.0
    %4773 = vmatmul.mubr.f32.gmra.mrb[0].mxu0 %v4459
    %v4774 = vpop.f32.mrb[0].mxu0
    %v4775 = vadd.f32 0.0, %v4774
    %v4776 = vpop.f32.mrb[0].mxu0
    %4777 = vmatprep.mubr.f32.mxu0 0.0
    %4778 = vmatmul.mubr.f32.gmra.mrb[0].mxu0 %v4460
    %v4779 = vpop.f32.mrb[0].mxu0
    %v4780 = vadd.f32 0.0, %v4779
    %v4781 = vpop.f32.mrb[0].mxu0
    %4782 = vmatprep.mubr.f32.mxu0 0.0
    %4783 = vmatmul.mubr.f32.gmra.mrb[0].mxu0 %v4461
    %v4784 = vpop.f32.mrb[0].mxu0
    %v4785 = vadd.f32 0.0, %v4784
    %v4786 = vpop.f32.mrb[0].mxu0
    %4787 = vmatprep.mubr.f32.mxu0 0.0
    %4788 = vmatmul.mubr.f32.gmra.mrb[0].mxu0 %v4462
    %v4789 = vpop.f32.mrb[0].mxu0
    %v4790 = vadd.f32 0.0, %v4789
    %v4791 = vpop.f32.mrb[0].mxu0
    %4792 = vmatprep.mubr.f32.mxu0 0.0
    %4793 = vmatmul.mubr.f32.gmra.mrb[0].mxu0 %v4463
    %v4794 = vpop.f32.mrb[0].mxu0
    %v4795 = vadd.f32 0.0, %v4794
    %v4796 = vpop.f32.mrb[0].mxu0
    %4797 = vmatprep.mubr.f32.mxu0 0.0
    %4798 = vmatmul.mubr.f32.gmra.mrb[0].mxu0 %v4464
    %v4799 = vpop.f32.mrb[0].mxu0
    %v4800 = vadd.f32 0.0, %v4799
    %v4801 = vpop.f32.mrb[0].mxu0
    %4802 = vmatprep.mubr.f32.mxu0 0.0
    %4803 = vmatmul.mubr.f32.gmra.mrb[0].mxu0 %v4465
    %v4804 = vpop.f32.mrb[0].mxu0
    %v4805 = vadd.f32 0.0, %v4804
    %v4806 = vpop.f32.mrb[0].mxu0
    %4807 = vmatprep.mubr.f32.mxu0 0.0
    %4808 = vmatmul.mubr.f32.gmra.mrb[0].mxu0 %v4466
    %v4809 = vpop.f32.mrb[0].mxu0
    %v4810 = vadd.f32 0.0, %v4809
    %v4811 = vpop.f32.mrb[0].mxu0
    %4812 = vmatprep.mubr.f32.mxu0 0.0
    %4813 = vmatmul.mubr.f32.gmra.mrb[0].mxu0 %v4467
    %v4814 = vpop.f32.mrb[0].mxu0
    %v4815 = vadd.f32 0.0, %v4814
    %v4816 = vpop.f32.mrb[0].mxu0
    %4817 = vmatprep.mubr.f32.mxu0 0.0
    %4818 = vmatmul.mubr.f32.gmra.mrb[0].mxu0 %v4468
    %v4819 = vpop.f32.mrb[0].mxu0
    %v4820 = vadd.f32 0.0, %v4819
    %v4821 = vpop.f32.mrb[0].mxu0
    %4822 = vmatprep.mubr.f32.mxu0 0.0
    %4823 = vmatmul.mubr.f32.gmra.mrb[0].mxu0 %v4469
    %v4824 = vpop.f32.mrb[0].mxu0
    %v4825 = vadd.f32 0.0, %v4824
    %v4826 = vpop.f32.mrb[0].mxu0
    %4827 = vmatprep.mubr.f32.mxu0 0.0
    %4828 = vmatmul.mubr.f32.gmra.mrb[0].mxu0 %v4470
    %v4829 = vpop.f32.mrb[0].mxu0
    %v4830 = vadd.f32 0.0, %v4829
    %v4831 = vpop.f32.mrb[0].mxu0
    %4832 = vmatprep.mubr.f32.mxu0 0.0
    %4833 = vmatmul.mubr.f32.gmra.mrb[0].mxu0 %v4471
    %v4834 = vpop.f32.mrb[0].mxu0
    %v4835 = vadd.f32 0.0, %v4834
    %v4836 = vpop.f32.mrb[0].mxu0
    %4837 = vmatprep.mubr.f32.mxu0 0.0
    %4838 = vmatmul.mubr.f32.gmra.mrb[0].mxu0 %v4472
    %v4839 = vpop.f32.mrb[0].mxu0
    %v4840 = vadd.f32 0.0, %v4839
    %v4841 = vpop.f32.mrb[0].mxu0
    %4842 = vmatprep.mubr.f32.mxu0 0.0
    %4843 = vmatmul.mubr.f32.gmra.mrb[0].mxu0 %v4473
    %v4844 = vpop.f32.mrb[0].mxu0
    %v4845 = vadd.f32 0.0, %v4844
    %v4846 = vpop.f32.mrb[0].mxu0
    %4847 = vmatprep.mubr.f32.mxu0 0.0
    %4848 = vmatmul.mubr.f32.gmra.mrb[0].mxu0 %v4474
    %v4849 = vpop.f32.mrb[0].mxu0
    %v4850 = vadd.f32 0.0, %v4849
    %v4851 = vpop.f32.mrb[0].mxu0
    %4852 = vmatprep.mubr.f32.mxu0 0.0
    %4853 = vmatmul.mubr.f32.gmra.mrb[0].mxu0 %v4475
    %v4854 = vpop.f32.mrb[0].mxu0
    %v4855 = vadd.f32 0.0, %v4854
    %v4856 = vpop.f32.mrb[0].mxu0
    %4857 = vmatprep.mubr.f32.mxu0 0.0
    %4858 = vmatmul.mubr.f32.gmra.mrb[0].mxu0 %v4476
    %v4859 = vpop.f32.mrb[0].mxu0
    %v4860 = vadd.f32 0.0, %v4859
    %v4861 = vpop.f32.mrb[0].mxu0
    %4862 = vmatprep.mubr.f32.mxu0 0.0
    %4863 = vmatmul.mubr.f32.gmra.mrb[0].mxu0 %v4477
    %v4864 = vpop.f32.mrb[0].mxu0
    %v4865 = vadd.f32 0.0, %v4864
    %v4866 = vpop.f32.mrb[0].mxu0
    %4867 = vmatprep.mubr.f32.mxu0 0.0
    %4868 = vmatmul.mubr.f32.gmra.mrb[0].mxu0 %v4478
    %v4869 = vpop.f32.mrb[0].mxu0
    %v4870 = vadd.f32 0.0, %v4869
    %v4871 = vpop.f32.mrb[0].mxu0
    %4872 = vmatprep.mubr.f32.mxu0 0.0
    %4873 = vmatmul.mubr.f32.gmra.mrb[0].mxu0 %v4479
    %v4874 = vpop.f32.mrb[0].mxu0
    %v4875 = vadd.f32 0.0, %v4874
    %v4876 = vpop.f32.mrb[0].mxu0
    %4877 = vmatprep.mubr.f32.mxu0 0.0
    %4878 = vmatmul.mubr.f32.gmra.mrb[0].mxu0 %v4480
    %v4879 = vpop.f32.mrb[0].mxu0
    %v4880 = vadd.f32 0.0, %v4879
    %v4881 = vpop.f32.mrb[0].mxu0
    %4882 = vdwg.mxu0
    %v4883 = vadd.f32 %v4353, %v4565
    %v4884 = vadd.f32 %v4354, %v4570
    %v4885 = vadd.f32 %v4355, %v4575
    %v4886 = vadd.f32 %v4356, %v4580
    %v4887 = vadd.f32 %v4357, %v4585
    %v4888 = vadd.f32 %v4358, %v4590
    %v4889 = vadd.f32 %v4359, %v4595
    %v4890 = vadd.f32 %v4360, %v4600
    %v4891 = vadd.f32 %v4361, %v4605
    %v4892 = vadd.f32 %v4362, %v4610
    %v4893 = vadd.f32 %v4363, %v4615
    %v4894 = vadd.f32 %v4364, %v4620
    %v4895 = vadd.f32 %v4365, %v4625
    %v4896 = vadd.f32 %v4366, %v4630
    %v4897 = vadd.f32 %v4367, %v4635
    %v4898 = vadd.f32 %v4368, %v4640
    %v4899 = vadd.f32 %v4369, %v4645
    %v4900 = vadd.f32 %v4370, %v4650
    %v4901 = vadd.f32 %v4371, %v4655
    %v4902 = vadd.f32 %v4372, %v4660
    %v4903 = vadd.f32 %v4373, %v4665
    %v4904 = vadd.f32 %v4374, %v4670
    %v4905 = vadd.f32 %v4375, %v4675
    %v4906 = vadd.f32 %v4376, %v4680
    %v4907 = vadd.f32 %v4377, %v4685
    %v4908 = vadd.f32 %v4378, %v4690
    %v4909 = vadd.f32 %v4379, %v4695
    %v4910 = vadd.f32 %v4380, %v4700
    %v4911 = vadd.f32 %v4381, %v4705
    %v4912 = vadd.f32 %v4382, %v4710
    %v4913 = vadd.f32 %v4383, %v4715
    %v4914 = vadd.f32 %v4384, %v4720
    %v4915 = vadd.f32 %v4385, %v4725
    %v4916 = vadd.f32 %v4386, %v4730
    %v4917 = vadd.f32 %v4387, %v4735
    %v4918 = vadd.f32 %v4388, %v4740
    %v4919 = vadd.f32 %v4389, %v4745
    %v4920 = vadd.f32 %v4390, %v4750
    %v4921 = vadd.f32 %v4391, %v4755
    %v4922 = vadd.f32 %v4392, %v4760
    %v4923 = vadd.f32 %v4393, %v4765
    %v4924 = vadd.f32 %v4394, %v4770
    %v4925 = vadd.f32 %v4395, %v4775
    %v4926 = vadd.f32 %v4396, %v4780
    %v4927 = vadd.f32 %v4397, %v4785
    %v4928 = vadd.f32 %v4398, %v4790
    %v4929 = vadd.f32 %v4399, %v4795
    %v4930 = vadd.f32 %v4400, %v4800
    %v4931 = vadd.f32 %v4401, %v4805
    %v4932 = vadd.f32 %v4402, %v4810
    %v4933 = vadd.f32 %v4403, %v4815
    %v4934 = vadd.f32 %v4404, %v4820
    %v4935 = vadd.f32 %v4405, %v4825
    %v4936 = vadd.f32 %v4406, %v4830
    %v4937 = vadd.f32 %v4407, %v4835
    %v4938 = vadd.f32 %v4408, %v4840
    %v4939 = vadd.f32 %v4409, %v4845
    %v4940 = vadd.f32 %v4410, %v4850
    %v4941 = vadd.f32 %v4411, %v4855
    %v4942 = vadd.f32 %v4412, %v4860
    %v4943 = vadd.f32 %v4413, %v4865
    %v4944 = vadd.f32 %v4414, %v4870
    %v4945 = vadd.f32 %v4415, %v4875
    %v4946 = vadd.f32 %v4416, %v4880
    %v4947 = vadd.f32 %v4883, %v4884
    %v4948 = vadd.f32 %v4947, %v4885
    %v4949 = vadd.f32 %v4948, %v4886
    %v4950 = vadd.f32 %v4949, %v4887
    %v4951 = vadd.f32 %v4950, %v4888
    %v4952 = vadd.f32 %v4951, %v4889
    %v4953 = vadd.f32 %v4952, %v4890
    %v4954 = vadd.f32 %v4953, %v4891
    %v4955 = vadd.f32 %v4954, %v4892
    %v4956 = vadd.f32 %v4955, %v4893
    %v4957 = vadd.f32 %v4956, %v4894
    %v4958 = vadd.f32 %v4957, %v4895
    %v4959 = vadd.f32 %v4958, %v4896
    %v4960 = vadd.f32 %v4959, %v4897
    %v4961 = vadd.f32 %v4960, %v4898
    %v4962 = vadd.f32 %v4961, %v4899
    %v4963 = vadd.f32 %v4962, %v4900
    %v4964 = vadd.f32 %v4963, %v4901
    %v4965 = vadd.f32 %v4964, %v4902
    %v4966 = vadd.f32 %v4965, %v4903
    %v4967 = vadd.f32 %v4966, %v4904
    %v4968 = vadd.f32 %v4967, %v4905
    %v4969 = vadd.f32 %v4968, %v4906
    %v4970 = vadd.f32 %v4969, %v4907
    %v4971 = vadd.f32 %v4970, %v4908
    %v4972 = vadd.f32 %v4971, %v4909
    %v4973 = vadd.f32 %v4972, %v4910
    %v4974 = vadd.f32 %v4973, %v4911
    %v4975 = vadd.f32 %v4974, %v4912
    %v4976 = vadd.f32 %v4975, %v4913
    %v4977 = vadd.f32 %v4976, %v4914
    %v4978 = vadd.f32 %v4977, %v4915
    %v4979 = vadd.f32 %v4978, %v4916
    %v4980 = vadd.f32 %v4979, %v4917
    %v4981 = vadd.f32 %v4980, %v4918
    %v4982 = vadd.f32 %v4981, %v4919
    %v4983 = vadd.f32 %v4982, %v4920
    %v4984 = vadd.f32 %v4983, %v4921
    %v4985 = vadd.f32 %v4984, %v4922
    %v4986 = vadd.f32 %v4985, %v4923
    %v4987 = vadd.f32 %v4986, %v4924
    %v4988 = vadd.f32 %v4987, %v4925
    %v4989 = vadd.f32 %v4988, %v4926
    %v4990 = vadd.f32 %v4989, %v4927
    %v4991 = vadd.f32 %v4990, %v4928
    %v4992 = vadd.f32 %v4991, %v4929
    %v4993 = vadd.f32 %v4992, %v4930
    %v4994 = vadd.f32 %v4993, %v4931
    %v4995 = vadd.f32 %v4994, %v4932
    %v4996 = vadd.f32 %v4995, %v4933
    %v4997 = vadd.f32 %v4996, %v4934
    %v4998 = vadd.f32 %v4997, %v4935
    %v4999 = vadd.f32 %v4998, %v4936
    %v5000 = vadd.f32 %v4999, %v4937
    %v5001 = vadd.f32 %v5000, %v4938
    %v5002 = vadd.f32 %v5001, %v4939
    %v5003 = vadd.f32 %v5002, %v4940
    %v5004 = vadd.f32 %v5003, %v4941
    %v5005 = vadd.f32 %v5004, %v4942
    %v5006 = vadd.f32 %v5005, %v4943
    %v5007 = vadd.f32 %v5006, %v4944
    %v5008 = vadd.f32 %v5007, %v4945
    %v5009 = vadd.f32 %v5008, %v4946
    %v5010 = vrot.slane %v5009, 4
    %v5011 = vadd.f32 %v5009, %v5010
    %v5012 = vrot.slane %v5011, 2
    %v5013 = vadd.f32 %v5011, %v5012
    %v5014 = vrot.slane %v5013, 1
    %v5015 = vadd.f32 %v5013, %v5014
    %v5016 = vmul.f32 %v5015, 0.001953125
    %v5017 = vmul.f32 %v4883, %v4883
    %v5018 = vmul.f32 %v4884, %v4884
    %v5019 = vmul.f32 %v4885, %v4885
    %v5020 = vmul.f32 %v4886, %v4886
    %v5021 = vmul.f32 %v4887, %v4887
    %v5022 = vmul.f32 %v4888, %v4888
    %v5023 = vmul.f32 %v4889, %v4889
    %v5024 = vmul.f32 %v4890, %v4890
    %v5025 = vmul.f32 %v4891, %v4891
    %v5026 = vmul.f32 %v4892, %v4892
    %v5027 = vmul.f32 %v4893, %v4893
    %v5028 = vmul.f32 %v4894, %v4894
    %v5029 = vmul.f32 %v4895, %v4895
    %v5030 = vmul.f32 %v4896, %v4896
    %v5031 = vmul.f32 %v4897, %v4897
    %v5032 = vmul.f32 %v4898, %v4898
    %v5033 = vmul.f32 %v4899, %v4899
    %v5034 = vmul.f32 %v4900, %v4900
    %v5035 = vmul.f32 %v4901, %v4901
    %v5036 = vmul.f32 %v4902, %v4902
    %v5037 = vmul.f32 %v4903, %v4903
    %v5038 = vmul.f32 %v4904, %v4904
    %v5039 = vmul.f32 %v4905, %v4905
    %v5040 = vmul.f32 %v4906, %v4906
    %v5041 = vmul.f32 %v4907, %v4907
    %v5042 = vmul.f32 %v4908, %v4908
    %v5043 = vmul.f32 %v4909, %v4909
    %v5044 = vmul.f32 %v4910, %v4910
    %v5045 = vmul.f32 %v4911, %v4911
    %v5046 = vmul.f32 %v4912, %v4912
    %v5047 = vmul.f32 %v4913, %v4913
    %v5048 = vmul.f32 %v4914, %v4914
    %v5049 = vmul.f32 %v4915, %v4915
    %v5050 = vmul.f32 %v4916, %v4916
    %v5051 = vmul.f32 %v4917, %v4917
    %v5052 = vmul.f32 %v4918, %v4918
    %v5053 = vmul.f32 %v4919, %v4919
    %v5054 = vmul.f32 %v4920, %v4920
    %v5055 = vmul.f32 %v4921, %v4921
    %v5056 = vmul.f32 %v4922, %v4922
    %v5057 = vmul.f32 %v4923, %v4923
    %v5058 = vmul.f32 %v4924, %v4924
    %v5059 = vmul.f32 %v4925, %v4925
    %v5060 = vmul.f32 %v4926, %v4926
    %v5061 = vmul.f32 %v4927, %v4927
    %v5062 = vmul.f32 %v4928, %v4928
    %v5063 = vmul.f32 %v4929, %v4929
    %v5064 = vmul.f32 %v4930, %v4930
    %v5065 = vmul.f32 %v4931, %v4931
    %v5066 = vmul.f32 %v4932, %v4932
    %v5067 = vmul.f32 %v4933, %v4933
    %v5068 = vmul.f32 %v4934, %v4934
    %v5069 = vmul.f32 %v4935, %v4935
    %v5070 = vmul.f32 %v4936, %v4936
    %v5071 = vmul.f32 %v4937, %v4937
    %v5072 = vmul.f32 %v4938, %v4938
    %v5073 = vmul.f32 %v4939, %v4939
    %v5074 = vmul.f32 %v4940, %v4940
    %v5075 = vmul.f32 %v4941, %v4941
    %v5076 = vmul.f32 %v4942, %v4942
    %v5077 = vmul.f32 %v4943, %v4943
    %v5078 = vmul.f32 %v4944, %v4944
    %v5079 = vmul.f32 %v4945, %v4945
    %v5080 = vmul.f32 %v4946, %v4946
    %v5081 = vadd.f32 %v5017, %v5018
    %v5082 = vadd.f32 %v5081, %v5019
    %v5083 = vadd.f32 %v5082, %v5020
    %v5084 = vadd.f32 %v5083, %v5021
    %v5085 = vadd.f32 %v5084, %v5022
    %v5086 = vadd.f32 %v5085, %v5023
    %v5087 = vadd.f32 %v5086, %v5024
    %v5088 = vadd.f32 %v5087, %v5025
    %v5089 = vadd.f32 %v5088, %v5026
    %v5090 = vadd.f32 %v5089, %v5027
    %v5091 = vadd.f32 %v5090, %v5028
    %v5092 = vadd.f32 %v5091, %v5029
    %v5093 = vadd.f32 %v5092, %v5030
    %v5094 = vadd.f32 %v5093, %v5031
    %v5095 = vadd.f32 %v5094, %v5032
    %v5096 = vadd.f32 %v5095, %v5033
    %v5097 = vadd.f32 %v5096, %v5034
    %v5098 = vadd.f32 %v5097, %v5035
    %v5099 = vadd.f32 %v5098, %v5036
    %v5100 = vadd.f32 %v5099, %v5037
    %v5101 = vadd.f32 %v5100, %v5038
    %v5102 = vadd.f32 %v5101, %v5039
    %v5103 = vadd.f32 %v5102, %v5040
    %v5104 = vadd.f32 %v5103, %v5041
    %v5105 = vadd.f32 %v5104, %v5042
    %v5106 = vadd.f32 %v5105, %v5043
    %v5107 = vadd.f32 %v5106, %v5044
    %v5108 = vadd.f32 %v5107, %v5045
    %v5109 = vadd.f32 %v5108, %v5046
    %v5110 = vadd.f32 %v5109, %v5047
    %v5111 = vadd.f32 %v5110, %v5048
    %v5112 = vadd.f32 %v5111, %v5049
    %v5113 = vadd.f32 %v5112, %v5050
    %v5114 = vadd.f32 %v5113, %v5051
    %v5115 = vadd.f32 %v5114, %v5052
    %v5116 = vadd.f32 %v5115, %v5053
    %v5117 = vadd.f32 %v5116, %v5054
    %v5118 = vadd.f32 %v5117, %v5055
    %v5119 = vadd.f32 %v5118, %v5056
    %v5120 = vadd.f32 %v5119, %v5057
    %v5121 = vadd.f32 %v5120, %v5058
    %v5122 = vadd.f32 %v5121, %v5059
    %v5123 = vadd.f32 %v5122, %v5060
    %v5124 = vadd.f32 %v5123, %v5061
    %v5125 = vadd.f32 %v5124, %v5062
    %v5126 = vadd.f32 %v5125, %v5063
    %v5127 = vadd.f32 %v5126, %v5064
    %v5128 = vadd.f32 %v5127, %v5065
    %v5129 = vadd.f32 %v5128, %v5066
    %v5130 = vadd.f32 %v5129, %v5067
    %v5131 = vadd.f32 %v5130, %v5068
    %v5132 = vadd.f32 %v5131, %v5069
    %v5133 = vadd.f32 %v5132, %v5070
    %v5134 = vadd.f32 %v5133, %v5071
    %v5135 = vadd.f32 %v5134, %v5072
    %v5136 = vadd.f32 %v5135, %v5073
    %v5137 = vadd.f32 %v5136, %v5074
    %v5138 = vadd.f32 %v5137, %v5075
    %v5139 = vadd.f32 %v5138, %v5076
    %v5140 = vadd.f32 %v5139, %v5077
    %v5141 = vadd.f32 %v5140, %v5078
    %v5142 = vadd.f32 %v5141, %v5079
    %v5143 = vadd.f32 %v5142, %v5080
    %v5144 = vrot.slane %v5143, 4
    %v5145 = vadd.f32 %v5143, %v5144
    %v5146 = vrot.slane %v5145, 2
    %v5147 = vadd.f32 %v5145, %v5146
    %v5148 = vrot.slane %v5147, 1
    %v5149 = vadd.f32 %v5147, %v5148
    %v5150 = vmul.f32 %v5149, 0.001953125
    %v5151 = vmul.f32 %v5016, %v5016
    %v5152 = vsub.f32 %v5150, %v5151
    %v5153 = vld [vmem:[%s2] sm:$0x1]
    %v5154 = vadd.f32 %v5152, 1e-05
    %v5155 = vrsqrt.pop %v5154
    %v5156 = vmul.f32 %v5153, %v5155
    %v5157 = vld [vmem:[%s3] sm:$0x1]
    %v5158 = vmul.f32 %v5016, %v5156
    %v5159 = vsub.f32 %v5157, %v5158
    %v5161 = vlaneseq
    %v5162 = vshrl.u32 %v5161, 7
    %v5163 = vsub.s32 0, %v5162
    %v5164 = vrot.slane %v5156, %v5163
    %v5166 = vmul.f32 %v4883, %v5164
    %v5167 = vmul.f32 %v4884, %v5164
    %v5168 = vmul.f32 %v4885, %v5164
    %v5169 = vmul.f32 %v4886, %v5164
    %v5170 = vmul.f32 %v4887, %v5164
    %v5171 = vmul.f32 %v4888, %v5164
    %v5172 = vmul.f32 %v4889, %v5164
    %v5173 = vmul.f32 %v4890, %v5164
    %v5174 = vmul.f32 %v4891, %v5164
    %v5175 = vmul.f32 %v4892, %v5164
    %v5176 = vmul.f32 %v4893, %v5164
    %v5177 = vmul.f32 %v4894, %v5164
    %v5178 = vmul.f32 %v4895, %v5164
    %v5179 = vmul.f32 %v4896, %v5164
    %v5180 = vmul.f32 %v4897, %v5164
    %v5181 = vmul.f32 %v4898, %v5164
    %v5182 = vmul.f32 %v4899, %v5164
    %v5183 = vmul.f32 %v4900, %v5164
    %v5184 = vmul.f32 %v4901, %v5164
    %v5185 = vmul.f32 %v4902, %v5164
    %v5186 = vmul.f32 %v4903, %v5164
    %v5187 = vmul.f32 %v4904, %v5164
    %v5188 = vmul.f32 %v4905, %v5164
    %v5189 = vmul.f32 %v4906, %v5164
    %v5190 = vmul.f32 %v4907, %v5164
    %v5191 = vmul.f32 %v4908, %v5164
    %v5192 = vmul.f32 %v4909, %v5164
    %v5193 = vmul.f32 %v4910, %v5164
    %v5194 = vmul.f32 %v4911, %v5164
    %v5195 = vmul.f32 %v4912, %v5164
    %v5196 = vmul.f32 %v4913, %v5164
    %v5197 = vmul.f32 %v4914, %v5164
    %v5198 = vmul.f32 %v4915, %v5164
    %v5199 = vmul.f32 %v4916, %v5164
    %v5200 = vmul.f32 %v4917, %v5164
    %v5201 = vmul.f32 %v4918, %v5164
    %v5202 = vmul.f32 %v4919, %v5164
    %v5203 = vmul.f32 %v4920, %v5164
    %v5204 = vmul.f32 %v4921, %v5164
    %v5205 = vmul.f32 %v4922, %v5164
    %v5206 = vmul.f32 %v4923, %v5164
    %v5207 = vmul.f32 %v4924, %v5164
    %v5208 = vmul.f32 %v4925, %v5164
    %v5209 = vmul.f32 %v4926, %v5164
    %v5210 = vmul.f32 %v4927, %v5164
    %v5211 = vmul.f32 %v4928, %v5164
    %v5212 = vmul.f32 %v4929, %v5164
    %v5213 = vmul.f32 %v4930, %v5164
    %v5214 = vmul.f32 %v4931, %v5164
    %v5215 = vmul.f32 %v4932, %v5164
    %v5216 = vmul.f32 %v4933, %v5164
    %v5217 = vmul.f32 %v4934, %v5164
    %v5218 = vmul.f32 %v4935, %v5164
    %v5219 = vmul.f32 %v4936, %v5164
    %v5220 = vmul.f32 %v4937, %v5164
    %v5221 = vmul.f32 %v4938, %v5164
    %v5222 = vmul.f32 %v4939, %v5164
    %v5223 = vmul.f32 %v4940, %v5164
    %v5224 = vmul.f32 %v4941, %v5164
    %v5225 = vmul.f32 %v4942, %v5164
    %v5226 = vmul.f32 %v4943, %v5164
    %v5227 = vmul.f32 %v4944, %v5164
    %v5228 = vmul.f32 %v4945, %v5164
    %v5229 = vmul.f32 %v4946, %v5164
    %v5231 = vlaneseq
    %v5232 = vshrl.u32 %v5231, 7
    %v5233 = vsub.s32 0, %v5232
    %v5234 = vrot.slane %v5159, %v5233
    %v5236 = vadd.f32 %v5166, %v5234
    %v5237 = vadd.f32 %v5167, %v5234
    %v5238 = vadd.f32 %v5168, %v5234
    %v5239 = vadd.f32 %v5169, %v5234
    %v5240 = vadd.f32 %v5170, %v5234
    %v5241 = vadd.f32 %v5171, %v5234
    %v5242 = vadd.f32 %v5172, %v5234
    %v5243 = vadd.f32 %v5173, %v5234
    %v5244 = vadd.f32 %v5174, %v5234
    %v5245 = vadd.f32 %v5175, %v5234
    %v5246 = vadd.f32 %v5176, %v5234
    %v5247 = vadd.f32 %v5177, %v5234
    %v5248 = vadd.f32 %v5178, %v5234
    %v5249 = vadd.f32 %v5179, %v5234
    %v5250 = vadd.f32 %v5180, %v5234
    %v5251 = vadd.f32 %v5181, %v5234
    %v5252 = vadd.f32 %v5182, %v5234
    %v5253 = vadd.f32 %v5183, %v5234
    %v5254 = vadd.f32 %v5184, %v5234
    %v5255 = vadd.f32 %v5185, %v5234
    %v5256 = vadd.f32 %v5186, %v5234
    %v5257 = vadd.f32 %v5187, %v5234
    %v5258 = vadd.f32 %v5188, %v5234
    %v5259 = vadd.f32 %v5189, %v5234
    %v5260 = vadd.f32 %v5190, %v5234
    %v5261 = vadd.f32 %v5191, %v5234
    %v5262 = vadd.f32 %v5192, %v5234
    %v5263 = vadd.f32 %v5193, %v5234
    %v5264 = vadd.f32 %v5194, %v5234
    %v5265 = vadd.f32 %v5195, %v5234
    %v5266 = vadd.f32 %v5196, %v5234
    %v5267 = vadd.f32 %v5197, %v5234
    %v5268 = vadd.f32 %v5198, %v5234
    %v5269 = vadd.f32 %v5199, %v5234
    %v5270 = vadd.f32 %v5200, %v5234
    %v5271 = vadd.f32 %v5201, %v5234
    %v5272 = vadd.f32 %v5202, %v5234
    %v5273 = vadd.f32 %v5203, %v5234
    %v5274 = vadd.f32 %v5204, %v5234
    %v5275 = vadd.f32 %v5205, %v5234
    %v5276 = vadd.f32 %v5206, %v5234
    %v5277 = vadd.f32 %v5207, %v5234
    %v5278 = vadd.f32 %v5208, %v5234
    %v5279 = vadd.f32 %v5209, %v5234
    %v5280 = vadd.f32 %v5210, %v5234
    %v5281 = vadd.f32 %v5211, %v5234
    %v5282 = vadd.f32 %v5212, %v5234
    %v5283 = vadd.f32 %v5213, %v5234
    %v5284 = vadd.f32 %v5214, %v5234
    %v5285 = vadd.f32 %v5215, %v5234
    %v5286 = vadd.f32 %v5216, %v5234
    %v5287 = vadd.f32 %v5217, %v5234
    %v5288 = vadd.f32 %v5218, %v5234
    %v5289 = vadd.f32 %v5219, %v5234
    %v5290 = vadd.f32 %v5220, %v5234
    %v5291 = vadd.f32 %v5221, %v5234
    %v5292 = vadd.f32 %v5222, %v5234
    %v5293 = vadd.f32 %v5223, %v5234
    %v5294 = vadd.f32 %v5224, %v5234
    %v5295 = vadd.f32 %v5225, %v5234
    %v5296 = vadd.f32 %v5226, %v5234
    %v5297 = vadd.f32 %v5227, %v5234
    %v5298 = vadd.f32 %v5228, %v5234
    %v5299 = vadd.f32 %v5229, %v5234
    %v5300 = vmax.f32 %v5236, 0.0
    %v5301 = vmax.f32 %v5237, 0.0
    %v5302 = vmax.f32 %v5238, 0.0
    %v5303 = vmax.f32 %v5239, 0.0
    %v5304 = vmax.f32 %v5240, 0.0
    %v5305 = vmax.f32 %v5241, 0.0
    %v5306 = vmax.f32 %v5242, 0.0
    %v5307 = vmax.f32 %v5243, 0.0
    %v5308 = vmax.f32 %v5244, 0.0
    %v5309 = vmax.f32 %v5245, 0.0
    %v5310 = vmax.f32 %v5246, 0.0
    %v5311 = vmax.f32 %v5247, 0.0
    %v5312 = vmax.f32 %v5248, 0.0
    %v5313 = vmax.f32 %v5249, 0.0
    %v5314 = vmax.f32 %v5250, 0.0
    %v5315 = vmax.f32 %v5251, 0.0
    %v5316 = vmax.f32 %v5252, 0.0
    %v5317 = vmax.f32 %v5253, 0.0
    %v5318 = vmax.f32 %v5254, 0.0
    %v5319 = vmax.f32 %v5255, 0.0
    %v5320 = vmax.f32 %v5256, 0.0
    %v5321 = vmax.f32 %v5257, 0.0
    %v5322 = vmax.f32 %v5258, 0.0
    %v5323 = vmax.f32 %v5259, 0.0
    %v5324 = vmax.f32 %v5260, 0.0
    %v5325 = vmax.f32 %v5261, 0.0
    %v5326 = vmax.f32 %v5262, 0.0
    %v5327 = vmax.f32 %v5263, 0.0
    %v5328 = vmax.f32 %v5264, 0.0
    %v5329 = vmax.f32 %v5265, 0.0
    %v5330 = vmax.f32 %v5266, 0.0
    %v5331 = vmax.f32 %v5267, 0.0
    %v5332 = vmax.f32 %v5268, 0.0
    %v5333 = vmax.f32 %v5269, 0.0
    %v5334 = vmax.f32 %v5270, 0.0
    %v5335 = vmax.f32 %v5271, 0.0
    %v5336 = vmax.f32 %v5272, 0.0
    %v5337 = vmax.f32 %v5273, 0.0
    %v5338 = vmax.f32 %v5274, 0.0
    %v5339 = vmax.f32 %v5275, 0.0
    %v5340 = vmax.f32 %v5276, 0.0
    %v5341 = vmax.f32 %v5277, 0.0
    %v5342 = vmax.f32 %v5278, 0.0
    %v5343 = vmax.f32 %v5279, 0.0
    %v5344 = vmax.f32 %v5280, 0.0
    %v5345 = vmax.f32 %v5281, 0.0
    %v5346 = vmax.f32 %v5282, 0.0
    %v5347 = vmax.f32 %v5283, 0.0
    %v5348 = vmax.f32 %v5284, 0.0
    %v5349 = vmax.f32 %v5285, 0.0
    %v5350 = vmax.f32 %v5286, 0.0
    %v5351 = vmax.f32 %v5287, 0.0
    %v5352 = vmax.f32 %v5288, 0.0
    %v5353 = vmax.f32 %v5289, 0.0
    %v5354 = vmax.f32 %v5290, 0.0
    %v5355 = vmax.f32 %v5291, 0.0
    %v5356 = vmax.f32 %v5292, 0.0
    %v5357 = vmax.f32 %v5293, 0.0
    %v5358 = vmax.f32 %v5294, 0.0
    %v5359 = vmax.f32 %v5295, 0.0
    %v5360 = vmax.f32 %v5296, 0.0
    %v5361 = vmax.f32 %v5297, 0.0
    %v5362 = vmax.f32 %v5298, 0.0
    %v5363 = vmax.f32 %v5299, 0.0
    %5364 = vst [vmem:[%s240 + $0x1] sm:$0xff] %v5300
    %5365 = vst [vmem:[%s240 + $0x9] sm:$0xff] %v5301
    %5366 = vst [vmem:[%s240 + $0x19] sm:$0xff] %v5302
    %5367 = vst [vmem:[%s240 + $0x21] sm:$0xff] %v5303
    %5368 = vst [vmem:[%s240 + $0x31] sm:$0xff] %v5304
    %5369 = vst [vmem:[%s240 + $0x39] sm:$0xff] %v5305
    %5370 = vst [vmem:[%s240 + $0x49] sm:$0xff] %v5306
    %5371 = vst [vmem:[%s240 + $0x51] sm:$0xff] %v5307
    %5372 = vst [vmem:[%s240 + $0x61] sm:$0xff] %v5308
    %5373 = vst [vmem:[%s240 + $0x69] sm:$0xff] %v5309
    %5374 = vst [vmem:[%s240 + $0x79] sm:$0xff] %v5310
    %5375 = vst [vmem:[%s240 + $0x81] sm:$0xff] %v5311
    %5376 = vst [vmem:[%s240 + $0x91] sm:$0xff] %v5312
    %5377 = vst [vmem:[%s240 + $0x99] sm:$0xff] %v5313
    %5378 = vst [vmem:[%s240 + $0xa9] sm:$0xff] %v5314
    %5379 = vst [vmem:[%s240 + $0xb1] sm:$0xff] %v5315
    %5380 = vst [vmem:[%s240 + $0xc1] sm:$0xff] %v5316
    %5381 = vst [vmem:[%s240 + $0xc9] sm:$0xff] %v5317
    %5382 = vst [vmem:[%s240 + $0xd9] sm:$0xff] %v5318
    %5383 = vst [vmem:[%s240 + $0xe1] sm:$0xff] %v5319
    %5384 = vst [vmem:[%s240 + $0xf1] sm:$0xff] %v5320
    %5385 = vst [vmem:[%s240 + $0xf9] sm:$0xff] %v5321
    %5386 = vst [vmem:[%s240 + $0x109] sm:$0xff] %v5322
    %5387 = vst [vmem:[%s240 + $0x111] sm:$0xff] %v5323
    %5388 = vst [vmem:[%s240 + $0x121] sm:$0xff] %v5324
    %5389 = vst [vmem:[%s240 + $0x129] sm:$0xff] %v5325
    %5390 = vst [vmem:[%s240 + $0x139] sm:$0xff] %v5326
    %5391 = vst [vmem:[%s240 + $0x141] sm:$0xff] %v5327
    %5392 = vst [vmem:[%s240 + $0x151] sm:$0xff] %v5328
    %5393 = vst [vmem:[%s240 + $0x159] sm:$0xff] %v5329
    %5394 = vst [vmem:[%s240 + $0x169] sm:$0xff] %v5330
    %5395 = vst [vmem:[%s240 + $0x171] sm:$0xff] %v5331
    %5396 = vst [vmem:[%s240 + $0x1b1] sm:$0xff] %v5332
    %5397 = vst [vmem:[%s240 + $0x1b9] sm:$0xff] %v5333
    %5398 = vst [vmem:[%s240 + $0x1c9] sm:$0xff] %v5334
    %5399 = vst [vmem:[%s240 + $0x1d1] sm:$0xff] %v5335
    %5400 = vst [vmem:[%s240 + $0x1e1] sm:$0xff] %v5336
    %5401 = vst [vmem:[%s240 + $0x1e9] sm:$0xff] %v5337
    %5402 = vst [vmem:[%s240 + $0x1f9] sm:$0xff] %v5338
    %5403 = vst [vmem:[%s240 + $0x201] sm:$0xff] %v5339
    %5404 = vst [vmem:[%s240 + $0x211] sm:$0xff] %v5340
    %5405 = vst [vmem:[%s240 + $0x219] sm:$0xff] %v5341
    %5406 = vst [vmem:[%s240 + $0x229] sm:$0xff] %v5342
    %5407 = vst [vmem:[%s240 + $0x231] sm:$0xff] %v5343
    %5408 = vst [vmem:[%s240 + $0x241] sm:$0xff] %v5344
    %5409 = vst [vmem:[%s240 + $0x249] sm:$0xff] %v5345
    %5410 = vst [vmem:[%s240 + $0x259] sm:$0xff] %v5346
    %5411 = vst [vmem:[%s240 + $0x261] sm:$0xff] %v5347
    %5412 = vst [vmem:[%s240 + $0x271] sm:$0xff] %v5348
    %5413 = vst [vmem:[%s240 + $0x279] sm:$0xff] %v5349
    %5414 = vst [vmem:[%s240 + $0x289] sm:$0xff] %v5350
    %5415 = vst [vmem:[%s240 + $0x291] sm:$0xff] %v5351
    %5416 = vst [vmem:[%s240 + $0x2a1] sm:$0xff] %v5352
    %5417 = vst [vmem:[%s240 + $0x2a9] sm:$0xff] %v5353
    %5418 = vst [vmem:[%s240 + $0x2b9] sm:$0xff] %v5354
    %5419 = vst [vmem:[%s240 + $0x2c1] sm:$0xff] %v5355
    %5420 = vst [vmem:[%s240 + $0x2d1] sm:$0xff] %v5356
    %5421 = vst [vmem:[%s240 + $0x2d9] sm:$0xff] %v5357
    %5422 = vst [vmem:[%s240 + $0x2e9] sm:$0xff] %v5358
    %5423 = vst [vmem:[%s240 + $0x2f1] sm:$0xff] %v5359
    %5424 = vst [vmem:[%s240 + $0x301] sm:$0xff] %v5360
    %5425 = vst [vmem:[%s240 + $0x309] sm:$0xff] %v5361
    %5426 = vst [vmem:[%s240 + $0x319] sm:$0xff] %v5362
    %5427 = vst [vmem:[%s240 + $0x321] sm:$0xff] %v5363
    %v5428 = vld [vmem:[#allocation2] sm:$0xff]
    %v5429 = vld [vmem:[#allocation2 + $0x8] sm:$0xff]
    %v5430 = vld [vmem:[#allocation2 + $0x18] sm:$0xff]
    %v5431 = vld [vmem:[#allocation2 + $0x20] sm:$0xff]
    %v5432 = vld [vmem:[#allocation2 + $0x30] sm:$0xff]
    %v5433 = vld [vmem:[#allocation2 + $0x38] sm:$0xff]
    %v5434 = vld [vmem:[#allocation2 + $0x48] sm:$0xff]
    %v5435 = vld [vmem:[#allocation2 + $0x50] sm:$0xff]
    %v5436 = vld [vmem:[#allocation2 + $0x60] sm:$0xff]
    %v5437 = vld [vmem:[#allocation2 + $0x68] sm:$0xff]
    %v5438 = vld [vmem:[#allocation2 + $0x78] sm:$0xff]
    %v5439 = vld [vmem:[#allocation2 + $0x80] sm:$0xff]
    %v5440 = vld [vmem:[#allocation2 + $0x90] sm:$0xff]
    %v5441 = vld [vmem:[#allocation2 + $0x98] sm:$0xff]
    %v5442 = vld [vmem:[#allocation2 + $0xa8] sm:$0xff]
    %v5443 = vld [vmem:[#allocation2 + $0xb0] sm:$0xff]
    %v5444 = vld [vmem:[#allocation2 + $0xc0] sm:$0xff]
    %v5445 = vld [vmem:[#allocation2 + $0xc8] sm:$0xff]
    %v5446 = vld [vmem:[#allocation2 + $0xd8] sm:$0xff]
    %v5447 = vld [vmem:[#allocation2 + $0xe0] sm:$0xff]
    %v5448 = vld [vmem:[#allocation2 + $0xf0] sm:$0xff]
    %v5449 = vld [vmem:[#allocation2 + $0xf8] sm:$0xff]
    %v5450 = vld [vmem:[#allocation2 + $0x108] sm:$0xff]
    %v5451 = vld [vmem:[#allocation2 + $0x110] sm:$0xff]
    %v5452 = vld [vmem:[#allocation2 + $0x120] sm:$0xff]
    %v5453 = vld [vmem:[#allocation2 + $0x128] sm:$0xff]
    %v5454 = vld [vmem:[#allocation2 + $0x138] sm:$0xff]
    %v5455 = vld [vmem:[#allocation2 + $0x140] sm:$0xff]
    %v5456 = vld [vmem:[#allocation2 + $0x150] sm:$0xff]
    %v5457 = vld [vmem:[#allocation2 + $0x158] sm:$0xff]
    %v5458 = vld [vmem:[#allocation2 + $0x168] sm:$0xff]
    %v5459 = vld [vmem:[#allocation2 + $0x170] sm:$0xff]
    %v5460 = vld [vmem:[#allocation2 + $0x1b0] sm:$0xff]
    %v5461 = vld [vmem:[#allocation2 + $0x1b8] sm:$0xff]
    %v5462 = vld [vmem:[#allocation2 + $0x1c8] sm:$0xff]
    %v5463 = vld [vmem:[#allocation2 + $0x1d0] sm:$0xff]
    %v5464 = vld [vmem:[#allocation2 + $0x1e0] sm:$0xff]
    %v5465 = vld [vmem:[#allocation2 + $0x1e8] sm:$0xff]
    %v5466 = vld [vmem:[#allocation2 + $0x1f8] sm:$0xff]
    %v5467 = vld [vmem:[#allocation2 + $0x200] sm:$0xff]
    %v5468 = vld [vmem:[#allocation2 + $0x210] sm:$0xff]
    %v5469 = vld [vmem:[#allocation2 + $0x218] sm:$0xff]
    %v5470 = vld [vmem:[#allocation2 + $0x228] sm:$0xff]
    %v5471 = vld [vmem:[#allocation2 + $0x230] sm:$0xff]
    %v5472 = vld [vmem:[#allocation2 + $0x240] sm:$0xff]
    %v5473 = vld [vmem:[#allocation2 + $0x248] sm:$0xff]
    %v5474 = vld [vmem:[#allocation2 + $0x258] sm:$0xff]
    %v5475 = vld [vmem:[#allocation2 + $0x260] sm:$0xff]
    %v5476 = vld [vmem:[#allocation2 + $0x270] sm:$0xff]
    %v5477 = vld [vmem:[#allocation2 + $0x278] sm:$0xff]
    %v5478 = vld [vmem:[#allocation2 + $0x288] sm:$0xff]
    %v5479 = vld [vmem:[#allocation2 + $0x290] sm:$0xff]
    %v5480 = vld [vmem:[#allocation2 + $0x2a0] sm:$0xff]
    %v5481 = vld [vmem:[#allocation2 + $0x2a8] sm:$0xff]
    %v5482 = vld [vmem:[#allocation2 + $0x2b8] sm:$0xff]
    %v5483 = vld [vmem:[#allocation2 + $0x2c0] sm:$0xff]
    %v5484 = vld [vmem:[#allocation2 + $0x2d0] sm:$0xff]
    %v5485 = vld [vmem:[#allocation2 + $0x2d8] sm:$0xff]
    %v5486 = vld [vmem:[#allocation2 + $0x2e8] sm:$0xff]
    %v5487 = vld [vmem:[#allocation2 + $0x2f0] sm:$0xff]
    %v5488 = vld [vmem:[#allocation2 + $0x300] sm:$0xff]
    %v5489 = vld [vmem:[#allocation2 + $0x308] sm:$0xff]
    %v5490 = vld [vmem:[#allocation2 + $0x318] sm:$0xff]
    %v5491 = vld [vmem:[#allocation2 + $0x320] sm:$0xff]
    %v5492 = vld [vmem:[#allocation8] sm:$0xff]
    %v5493 = vld [vmem:[#allocation8 + $0x8] sm:$0xff]
    %v5494 = vld [vmem:[#allocation8 + $0x10] sm:$0xff]
    %v5495 = vld [vmem:[#allocation8 + $0x18] sm:$0xff]
    %v5496 = vld [vmem:[#allocation8 + $0x20] sm:$0xff]
    %v5497 = vld [vmem:[#allocation8 + $0x28] sm:$0xff]
    %v5498 = vld [vmem:[#allocation8 + $0x30] sm:$0xff]
    %v5499 = vld [vmem:[#allocation8 + $0x38] sm:$0xff]
    %v5500 = vld [vmem:[#allocation8 + $0x40] sm:$0xff]
    %v5501 = vld [vmem:[#allocation8 + $0x48] sm:$0xff]
    %v5502 = vld [vmem:[#allocation8 + $0x50] sm:$0xff]
    %v5503 = vld [vmem:[#allocation8 + $0x58] sm:$0xff]
    %v5504 = vld [vmem:[#allocation8 + $0x60] sm:$0xff]
    %v5505 = vld [vmem:[#allocation8 + $0x68] sm:$0xff]
    %v5506 = vld [vmem:[#allocation8 + $0x70] sm:$0xff]
    %v5507 = vld [vmem:[#allocation8 + $0x78] sm:$0xff]
    %v5508 = vld [vmem:[#allocation2 + $0x1] sm:$0xff]
    %v5509 = vld [vmem:[#allocation2 + $0x9] sm:$0xff]
    %v5510 = vld [vmem:[#allocation2 + $0x19] sm:$0xff]
    %v5511 = vld [vmem:[#allocation2 + $0x21] sm:$0xff]
    %v5512 = vld [vmem:[#allocation2 + $0x31] sm:$0xff]
    %v5513 = vld [vmem:[#allocation2 + $0x39] sm:$0xff]
    %v5514 = vld [vmem:[#allocation2 + $0x49] sm:$0xff]
    %v5515 = vld [vmem:[#allocation2 + $0x51] sm:$0xff]
    %v5516 = vld [vmem:[#allocation2 + $0x61] sm:$0xff]
    %v5517 = vld [vmem:[#allocation2 + $0x69] sm:$0xff]
    %v5518 = vld [vmem:[#allocation2 + $0x79] sm:$0xff]
    %v5519 = vld [vmem:[#allocation2 + $0x81] sm:$0xff]
    %v5520 = vld [vmem:[#allocation2 + $0x91] sm:$0xff]
    %v5521 = vld [vmem:[#allocation2 + $0x99] sm:$0xff]
    %v5522 = vld [vmem:[#allocation2 + $0xa9] sm:$0xff]
    %v5523 = vld [vmem:[#allocation2 + $0xb1] sm:$0xff]
    %v5524 = vld [vmem:[#allocation2 + $0xc1] sm:$0xff]
    %v5525 = vld [vmem:[#allocation2 + $0xc9] sm:$0xff]
    %v5526 = vld [vmem:[#allocation2 + $0xd9] sm:$0xff]
    %v5527 = vld [vmem:[#allocation2 + $0xe1] sm:$0xff]
    %v5528 = vld [vmem:[#allocation2 + $0xf1] sm:$0xff]
    %v5529 = vld [vmem:[#allocation2 + $0xf9] sm:$0xff]
    %v5530 = vld [vmem:[#allocation2 + $0x109] sm:$0xff]
    %v5531 = vld [vmem:[#allocation2 + $0x111] sm:$0xff]
    %v5532 = vld [vmem:[#allocation2 + $0x121] sm:$0xff]
    %v5533 = vld [vmem:[#allocation2 + $0x129] sm:$0xff]
    %v5534 = vld [vmem:[#allocation2 + $0x139] sm:$0xff]
    %v5535 = vld [vmem:[#allocation2 + $0x141] sm:$0xff]
    %v5536 = vld [vmem:[#allocation2 + $0x151] sm:$0xff]
    %v5537 = vld [vmem:[#allocation2 + $0x159] sm:$0xff]
    %v5538 = vld [vmem:[#allocation2 + $0x169] sm:$0xff]
    %v5539 = vld [vmem:[#allocation2 + $0x171] sm:$0xff]
    %v5540 = vld [vmem:[#allocation2 + $0x1b1] sm:$0xff]
    %v5541 = vld [vmem:[#allocation2 + $0x1b9] sm:$0xff]
    %v5542 = vld [vmem:[#allocation2 + $0x1c9] sm:$0xff]
    %v5543 = vld [vmem:[#allocation2 + $0x1d1] sm:$0xff]
    %v5544 = vld [vmem:[#allocation2 + $0x1e1] sm:$0xff]
    %v5545 = vld [vmem:[#allocation2 + $0x1e9] sm:$0xff]
    %v5546 = vld [vmem:[#allocation2 + $0x1f9] sm:$0xff]
    %v5547 = vld [vmem:[#allocation2 + $0x201] sm:$0xff]
    %v5548 = vld [vmem:[#allocation2 + $0x211] sm:$0xff]
    %v5549 = vld [vmem:[#allocation2 + $0x219] sm:$0xff]
    %v5550 = vld [vmem:[#allocation2 + $0x229] sm:$0xff]
    %v5551 = vld [vmem:[#allocation2 + $0x231] sm:$0xff]
    %v5552 = vld [vmem:[#allocation2 + $0x241] sm:$0xff]
    %v5553 = vld [vmem:[#allocation2 + $0x249] sm:$0xff]
    %v5554 = vld [vmem:[#allocation2 + $0x259] sm:$0xff]
    %v5555 = vld [vmem:[#allocation2 + $0x261] sm:$0xff]
    %v5556 = vld [vmem:[#allocation2 + $0x271] sm:$0xff]
    %v5557 = vld [vmem:[#allocation2 + $0x279] sm:$0xff]
    %v5558 = vld [vmem:[#allocation2 + $0x289] sm:$0xff]
    %v5559 = vld [vmem:[#allocation2 + $0x291] sm:$0xff]
    %v5560 = vld [vmem:[#allocation2 + $0x2a1] sm:$0xff]
    %v5561 = vld [vmem:[#allocation2 + $0x2a9] sm:$0xff]
    %v5562 = vld [vmem:[#allocation2 + $0x2b9] sm:$0xff]
    %v5563 = vld [vmem:[#allocation2 + $0x2c1] sm:$0xff]
    %v5564 = vld [vmem:[#allocation2 + $0x2d1] sm:$0xff]
    %v5565 = vld [vmem:[#allocation2 + $0x2d9] sm:$0xff]
    %v5566 = vld [vmem:[#allocation2 + $0x2e9] sm:$0xff]
    %v5567 = vld [vmem:[#allocation2 + $0x2f1] sm:$0xff]
    %v5568 = vld [vmem:[#allocation2 + $0x301] sm:$0xff]
    %v5569 = vld [vmem:[#allocation2 + $0x309] sm:$0xff]
    %v5570 = vld [vmem:[#allocation2 + $0x319] sm:$0xff]
    %v5571 = vld [vmem:[#allocation2 + $0x321] sm:$0xff]
    %s5572 = scalar_lea.vmem [#allocation8], 128
    %v5573 = vld [vmem:[%s5572] sm:$0xff]
    %v5574 = vld [vmem:[%s5572 + $0x8] sm:$0xff]
    %v5575 = vld [vmem:[%s5572 + $0x10] sm:$0xff]
    %v5576 = vld [vmem:[%s5572 + $0x18] sm:$0xff]
    %v5577 = vld [vmem:[%s5572 + $0x20] sm:$0xff]
    %v5578 = vld [vmem:[%s5572 + $0x28] sm:$0xff]
    %v5579 = vld [vmem:[%s5572 + $0x30] sm:$0xff]
    %v5580 = vld [vmem:[%s5572 + $0x38] sm:$0xff]
    %v5581 = vld [vmem:[%s5572 + $0x40] sm:$0xff]
    %v5582 = vld [vmem:[%s5572 + $0x48] sm:$0xff]
    %v5583 = vld [vmem:[%s5572 + $0x50] sm:$0xff]
    %v5584 = vld [vmem:[%s5572 + $0x58] sm:$0xff]
    %v5585 = vld [vmem:[%s5572 + $0x60] sm:$0xff]
    %v5586 = vld [vmem:[%s5572 + $0x68] sm:$0xff]
    %v5587 = vld [vmem:[%s5572 + $0x70] sm:$0xff]
    %v5588 = vld [vmem:[%s5572 + $0x78] sm:$0xff]
    %5589 = vmatprep.subr.mxu0 0.0
    %5590 = vmatpush1.msra.mxu0 %v5573
    %5591 = vmatprep.subr.mxu0 0.0
    %5592 = vmatpush1.msra.mxu0 %v5574
    %5593 = vmatprep.subr.mxu0 0.0
    %5594 = vmatpush1.msra.mxu0 %v5575
    %5595 = vmatprep.subr.mxu0 0.0
    %5596 = vmatpush1.msra.mxu0 %v5576
    %5597 = vmatprep.subr.mxu0 0.0
    %5598 = vmatpush1.msra.mxu0 %v5577
    %5599 = vmatprep.subr.mxu0 0.0
    %5600 = vmatpush1.msra.mxu0 %v5578
    %5601 = vmatprep.subr.mxu0 0.0
    %5602 = vmatpush1.msra.mxu0 %v5579
    %5603 = vmatprep.subr.mxu0 0.0
    %5604 = vmatpush1.msra.mxu0 %v5580
    %5605 = vmatprep.subr.mxu0 0.0
    %5606 = vmatpush1.msra.mxu0 %v5581
    %5607 = vmatprep.subr.mxu0 0.0
    %5608 = vmatpush1.msra.mxu0 %v5582
    %5609 = vmatprep.subr.mxu0 0.0
    %5610 = vmatpush1.msra.mxu0 %v5583
    %5611 = vmatprep.subr.mxu0 0.0
    %5612 = vmatpush1.msra.mxu0 %v5584
    %5613 = vmatprep.subr.mxu0 0.0
    %5614 = vmatpush1.msra.mxu0 %v5585
    %5615 = vmatprep.subr.mxu0 0.0
    %5616 = vmatpush1.msra.mxu0 %v5586
    %5617 = vmatprep.subr.mxu0 0.0
    %5618 = vmatpush1.msra.mxu0 %v5587
    %5619 = vmatprep.subr.mxu0 0.0
    %5620 = vmatpush1.msra.mxu0 %v5588
    %5621 = vmatprep.subr.mxu0 0.0
    %5622 = vmatpush1.msra.mxu0 0.0
    %5623 = vmatprep.subr.mxu0 0.0
    %5624 = vmatpush1.msra.mxu0 0.0
    %5625 = vmatprep.subr.mxu0 0.0
    %5626 = vmatpush1.msra.mxu0 0.0
    %5627 = vmatprep.subr.mxu0 0.0
    %5628 = vmatpush1.msra.mxu0 0.0
    %5629 = vmatprep.subr.mxu0 0.0
    %5630 = vmatpush1.msra.mxu0 0.0
    %5631 = vmatprep.subr.mxu0 0.0
    %5632 = vmatpush1.msra.mxu0 0.0
    %5633 = vmatprep.subr.mxu0 0.0
    %5634 = vmatpush1.msra.mxu0 0.0
    %5635 = vmatprep.subr.mxu0 0.0
    %5636 = vmatpush1.msra.mxu0 0.0
    %5637 = vmatprep.subr.mxu0 0.0
    %5638 = vmatpush1.msra.mxu0 0.0
    %5639 = vmatprep.subr.mxu0 0.0
    %5640 = vmatpush1.msra.mxu0 0.0
    %5641 = vmatprep.subr.mxu0 0.0
    %5642 = vmatpush1.msra.mxu0 0.0
    %5643 = vmatprep.subr.mxu0 0.0
    %5644 = vmatpush1.msra.mxu0 0.0
    %5645 = vmatprep.subr.mxu0 0.0
    %5646 = vmatpush1.msra.mxu0 0.0
    %5647 = vmatprep.subr.mxu0 0.0
    %5648 = vmatpush1.msra.mxu0 0.0
    %5649 = vmatprep.subr.mxu0 0.0
    %5650 = vmatpush1.msra.mxu0 0.0
    %5651 = vmatprep.subr.mxu0 0.0
    %5652 = vmatpush1.msra.mxu0 0.0
    %5653 = vmatprep.mubr.f32.mxu0 0.0
    %5654 = vmatmul.mubr.f32.gmra.mrb[0].mxu0 %v5508
    %v5655 = vpop.f32.mrb[0].mxu0
    %v5656 = vadd.f32 0.0, %v5655
    %v5657 = vpop.f32.mrb[0].mxu0
    %5658 = vmatprep.mubr.f32.mxu0 0.0
    %5659 = vmatmul.mubr.f32.gmra.mrb[0].mxu0 %v5509
    %v5660 = vpop.f32.mrb[0].mxu0
    %v5661 = vadd.f32 0.0, %v5660
    %v5662 = vpop.f32.mrb[0].mxu0
    %5663 = vmatprep.mubr.f32.mxu0 0.0
    %5664 = vmatmul.mubr.f32.gmra.mrb[0].mxu0 %v5510
    %v5665 = vpop.f32.mrb[0].mxu0
    %v5666 = vadd.f32 0.0, %v5665
    %v5667 = vpop.f32.mrb[0].mxu0
    %5668 = vmatprep.mubr.f32.mxu0 0.0
    %5669 = vmatmul.mubr.f32.gmra.mrb[0].mxu0 %v5511
    %v5670 = vpop.f32.mrb[0].mxu0
    %v5671 = vadd.f32 0.0, %v5670
    %v5672 = vpop.f32.mrb[0].mxu0
    %5673 = vmatprep.mubr.f32.mxu0 0.0
    %5674 = vmatmul.mubr.f32.gmra.mrb[0].mxu0 %v5512
    %v5675 = vpop.f32.mrb[0].mxu0
    %v5676 = vadd.f32 0.0, %v5675
    %v5677 = vpop.f32.mrb[0].mxu0
    %5678 = vmatprep.mubr.f32.mxu0 0.0
    %5679 = vmatmul.mubr.f32.gmra.mrb[0].mxu0 %v5513
    %v5680 = vpop.f32.mrb[0].mxu0
    %v5681 = vadd.f32 0.0, %v5680
    %v5682 = vpop.f32.mrb[0].mxu0
    %5683 = vmatprep.mubr.f32.mxu0 0.0
    %5684 = vmatmul.mubr.f32.gmra.mrb[0].mxu0 %v5514
    %v5685 = vpop.f32.mrb[0].mxu0
    %v5686 = vadd.f32 0.0, %v5685
    %v5687 = vpop.f32.mrb[0].mxu0
    %5688 = vmatprep.mubr.f32.mxu0 0.0
    %5689 = vmatmul.mubr.f32.gmra.mrb[0].mxu0 %v5515
    %v5690 = vpop.f32.mrb[0].mxu0
    %v5691 = vadd.f32 0.0, %v5690
    %v5692 = vpop.f32.mrb[0].mxu0
    %5693 = vmatprep.mubr.f32.mxu0 0.0
    %5694 = vmatmul.mubr.f32.gmra.mrb[0].mxu0 %v5516
    %v5695 = vpop.f32.mrb[0].mxu0
    %v5696 = vadd.f32 0.0, %v5695
    %v5697 = vpop.f32.mrb[0].mxu0
    %5698 = vmatprep.mubr.f32.mxu0 0.0
    %5699 = vmatmul.mubr.f32.gmra.mrb[0].mxu0 %v5517
    %v5700 = vpop.f32.mrb[0].mxu0
    %v5701 = vadd.f32 0.0, %v5700
    %v5702 = vpop.f32.mrb[0].mxu0
    %5703 = vmatprep.mubr.f32.mxu0 0.0
    %5704 = vmatmul.mubr.f32.gmra.mrb[0].mxu0 %v5518
    %v5705 = vpop.f32.mrb[0].mxu0
    %v5706 = vadd.f32 0.0, %v5705
    %v5707 = vpop.f32.mrb[0].mxu0
    %5708 = vmatprep.mubr.f32.mxu0 0.0
    %5709 = vmatmul.mubr.f32.gmra.mrb[0].mxu0 %v5519
    %v5710 = vpop.f32.mrb[0].mxu0
    %v5711 = vadd.f32 0.0, %v5710
    %v5712 = vpop.f32.mrb[0].mxu0
    %5713 = vmatprep.mubr.f32.mxu0 0.0
    %5714 = vmatmul.mubr.f32.gmra.mrb[0].mxu0 %v5520
    %v5715 = vpop.f32.mrb[0].mxu0
    %v5716 = vadd.f32 0.0, %v5715
    %v5717 = vpop.f32.mrb[0].mxu0
    %5718 = vmatprep.mubr.f32.mxu0 0.0
    %5719 = vmatmul.mubr.f32.gmra.mrb[0].mxu0 %v5521
    %v5720 = vpop.f32.mrb[0].mxu0
    %v5721 = vadd.f32 0.0, %v5720
    %v5722 = vpop.f32.mrb[0].mxu0
    %5723 = vmatprep.mubr.f32.mxu0 0.0
    %5724 = vmatmul.mubr.f32.gmra.mrb[0].mxu0 %v5522
    %v5725 = vpop.f32.mrb[0].mxu0
    %v5726 = vadd.f32 0.0, %v5725
    %v5727 = vpop.f32.mrb[0].mxu0
    %5728 = vmatprep.mubr.f32.mxu0 0.0
    %5729 = vmatmul.mubr.f32.gmra.mrb[0].mxu0 %v5523
    %v5730 = vpop.f32.mrb[0].mxu0
    %v5731 = vadd.f32 0.0, %v5730
    %v5732 = vpop.f32.mrb[0].mxu0
    %5733 = vmatprep.mubr.f32.mxu0 0.0
    %5734 = vmatmul.mubr.f32.gmra.mrb[0].mxu0 %v5524
    %v5735 = vpop.f32.mrb[0].mxu0
    %v5736 = vadd.f32 0.0, %v5735
    %v5737 = vpop.f32.mrb[0].mxu0
    %5738 = vmatprep.mubr.f32.mxu0 0.0
    %5739 = vmatmul.mubr.f32.gmra.mrb[0].mxu0 %v5525
    %v5740 = vpop.f32.mrb[0].mxu0
    %v5741 = vadd.f32 0.0, %v5740
    %v5742 = vpop.f32.mrb[0].mxu0
    %5743 = vmatprep.mubr.f32.mxu0 0.0
    %5744 = vmatmul.mubr.f32.gmra.mrb[0].mxu0 %v5526
    %v5745 = vpop.f32.mrb[0].mxu0
    %v5746 = vadd.f32 0.0, %v5745
    %v5747 = vpop.f32.mrb[0].mxu0
    %5748 = vmatprep.mubr.f32.mxu0 0.0
    %5749 = vmatmul.mubr.f32.gmra.mrb[0].mxu0 %v5527
    %v5750 = vpop.f32.mrb[0].mxu0
    %v5751 = vadd.f32 0.0, %v5750
    %v5752 = vpop.f32.mrb[0].mxu0
    %5753 = vmatprep.mubr.f32.mxu0 0.0
    %5754 = vmatmul.mubr.f32.gmra.mrb[0].mxu0 %v5528
    %v5755 = vpop.f32.mrb[0].mxu0
    %v5756 = vadd.f32 0.0, %v5755
    %v5757 = vpop.f32.mrb[0].mxu0
    %5758 = vmatprep.mubr.f32.mxu0 0.0
    %5759 = vmatmul.mubr.f32.gmra.mrb[0].mxu0 %v5529
    %v5760 = vpop.f32.mrb[0].mxu0
    %v5761 = vadd.f32 0.0, %v5760
    %v5762 = vpop.f32.mrb[0].mxu0
    %5763 = vmatprep.mubr.f32.mxu0 0.0
    %5764 = vmatmul.mubr.f32.gmra.mrb[0].mxu0 %v5530
    %v5765 = vpop.f32.mrb[0].mxu0
    %v5766 = vadd.f32 0.0, %v5765
    %v5767 = vpop.f32.mrb[0].mxu0
    %5768 = vmatprep.mubr.f32.mxu0 0.0
    %5769 = vmatmul.mubr.f32.gmra.mrb[0].mxu0 %v5531
    %v5770 = vpop.f32.mrb[0].mxu0
    %v5771 = vadd.f32 0.0, %v5770
    %v5772 = vpop.f32.mrb[0].mxu0
    %5773 = vmatprep.mubr.f32.mxu0 0.0
    %5774 = vmatmul.mubr.f32.gmra.mrb[0].mxu0 %v5532
    %v5775 = vpop.f32.mrb[0].mxu0
    %v5776 = vadd.f32 0.0, %v5775
    %v5777 = vpop.f32.mrb[0].mxu0
    %5778 = vmatprep.mubr.f32.mxu0 0.0
    %5779 = vmatmul.mubr.f32.gmra.mrb[0].mxu0 %v5533
    %v5780 = vpop.f32.mrb[0].mxu0
    %v5781 = vadd.f32 0.0, %v5780
    %v5782 = vpop.f32.mrb[0].mxu0
    %5783 = vmatprep.mubr.f32.mxu0 0.0
    %5784 = vmatmul.mubr.f32.gmra.mrb[0].mxu0 %v5534
    %v5785 = vpop.f32.mrb[0].mxu0
    %v5786 = vadd.f32 0.0, %v5785
    %v5787 = vpop.f32.mrb[0].mxu0
    %5788 = vmatprep.mubr.f32.mxu0 0.0
    %5789 = vmatmul.mubr.f32.gmra.mrb[0].mxu0 %v5535
    %v5790 = vpop.f32.mrb[0].mxu0
    %v5791 = vadd.f32 0.0, %v5790
    %v5792 = vpop.f32.mrb[0].mxu0
    %5793 = vmatprep.mubr.f32.mxu0 0.0
    %5794 = vmatmul.mubr.f32.gmra.mrb[0].mxu0 %v5536
    %v5795 = vpop.f32.mrb[0].mxu0
    %v5796 = vadd.f32 0.0, %v5795
    %v5797 = vpop.f32.mrb[0].mxu0
    %5798 = vmatprep.mubr.f32.mxu0 0.0
    %5799 = vmatmul.mubr.f32.gmra.mrb[0].mxu0 %v5537
    %v5800 = vpop.f32.mrb[0].mxu0
    %v5801 = vadd.f32 0.0, %v5800
    %v5802 = vpop.f32.mrb[0].mxu0
    %5803 = vmatprep.mubr.f32.mxu0 0.0
    %5804 = vmatmul.mubr.f32.gmra.mrb[0].mxu0 %v5538
    %v5805 = vpop.f32.mrb[0].mxu0
    %v5806 = vadd.f32 0.0, %v5805
    %v5807 = vpop.f32.mrb[0].mxu0
    %5808 = vmatprep.mubr.f32.mxu0 0.0
    %5809 = vmatmul.mubr.f32.gmra.mrb[0].mxu0 %v5539
    %v5810 = vpop.f32.mrb[0].mxu0
    %v5811 = vadd.f32 0.0, %v5810
    %v5812 = vpop.f32.mrb[0].mxu0
    %5813 = vmatprep.mubr.f32.mxu0 0.0
    %5814 = vmatmul.mubr.f32.gmra.mrb[0].mxu0 %v5540
    %v5815 = vpop.f32.mrb[0].mxu0
    %v5816 = vadd.f32 0.0, %v5815
    %v5817 = vpop.f32.mrb[0].mxu0
    %5818 = vmatprep.mubr.f32.mxu0 0.0
    %5819 = vmatmul.mubr.f32.gmra.mrb[0].mxu0 %v5541
    %v5820 = vpop.f32.mrb[0].mxu0
    %v5821 = vadd.f32 0.0, %v5820
    %v5822 = vpop.f32.mrb[0].mxu0
    %5823 = vmatprep.mubr.f32.mxu0 0.0
    %5824 = vmatmul.mubr.f32.gmra.mrb[0].mxu0 %v5542
    %v5825 = vpop.f32.mrb[0].mxu0
    %v5826 = vadd.f32 0.0, %v5825
    %v5827 = vpop.f32.mrb[0].mxu0
    %5828 = vmatprep.mubr.f32.mxu0 0.0
    %5829 = vmatmul.mubr.f32.gmra.mrb[0].mxu0 %v5543
    %v5830 = vpop.f32.mrb[0].mxu0
    %v5831 = vadd.f32 0.0, %v5830
    %v5832 = vpop.f32.mrb[0].mxu0
    %5833 = vmatprep.mubr.f32.mxu0 0.0
    %5834 = vmatmul.mubr.f32.gmra.mrb[0].mxu0 %v5544
    %v5835 = vpop.f32.mrb[0].mxu0
    %v5836 = vadd.f32 0.0, %v5835
    %v5837 = vpop.f32.mrb[0].mxu0
    %5838 = vmatprep.mubr.f32.mxu0 0.0
    %5839 = vmatmul.mubr.f32.gmra.mrb[0].mxu0 %v5545
    %v5840 = vpop.f32.mrb[0].mxu0
    %v5841 = vadd.f32 0.0, %v5840
    %v5842 = vpop.f32.mrb[0].mxu0
    %5843 = vmatprep.mubr.f32.mxu0 0.0
    %5844 = vmatmul.mubr.f32.gmra.mrb[0].mxu0 %v5546
    %v5845 = vpop.f32.mrb[0].mxu0
    %v5846 = vadd.f32 0.0, %v5845
    %v5847 = vpop.f32.mrb[0].mxu0
    %5848 = vmatprep.mubr.f32.mxu0 0.0
    %5849 = vmatmul.mubr.f32.gmra.mrb[0].mxu0 %v5547
    %v5850 = vpop.f32.mrb[0].mxu0
    %v5851 = vadd.f32 0.0, %v5850
    %v5852 = vpop.f32.mrb[0].mxu0
    %5853 = vmatprep.mubr.f32.mxu0 0.0
    %5854 = vmatmul.mubr.f32.gmra.mrb[0].mxu0 %v5548
    %v5855 = vpop.f32.mrb[0].mxu0
    %v5856 = vadd.f32 0.0, %v5855
    %v5857 = vpop.f32.mrb[0].mxu0
    %5858 = vmatprep.mubr.f32.mxu0 0.0
    %5859 = vmatmul.mubr.f32.gmra.mrb[0].mxu0 %v5549
    %v5860 = vpop.f32.mrb[0].mxu0
    %v5861 = vadd.f32 0.0, %v5860
    %v5862 = vpop.f32.mrb[0].mxu0
    %5863 = vmatprep.mubr.f32.mxu0 0.0
    %5864 = vmatmul.mubr.f32.gmra.mrb[0].mxu0 %v5550
    %v5865 = vpop.f32.mrb[0].mxu0
    %v5866 = vadd.f32 0.0, %v5865
    %v5867 = vpop.f32.mrb[0].mxu0
    %5868 = vmatprep.mubr.f32.mxu0 0.0
    %5869 = vmatmul.mubr.f32.gmra.mrb[0].mxu0 %v5551
    %v5870 = vpop.f32.mrb[0].mxu0
    %v5871 = vadd.f32 0.0, %v5870
    %v5872 = vpop.f32.mrb[0].mxu0
    %5873 = vmatprep.mubr.f32.mxu0 0.0
    %5874 = vmatmul.mubr.f32.gmra.mrb[0].mxu0 %v5552
    %v5875 = vpop.f32.mrb[0].mxu0
    %v5876 = vadd.f32 0.0, %v5875
    %v5877 = vpop.f32.mrb[0].mxu0
    %5878 = vmatprep.mubr.f32.mxu0 0.0
    %5879 = vmatmul.mubr.f32.gmra.mrb[0].mxu0 %v5553
    %v5880 = vpop.f32.mrb[0].mxu0
    %v5881 = vadd.f32 0.0, %v5880
    %v5882 = vpop.f32.mrb[0].mxu0
    %5883 = vmatprep.mubr.f32.mxu0 0.0
    %5884 = vmatmul.mubr.f32.gmra.mrb[0].mxu0 %v5554
    %v5885 = vpop.f32.mrb[0].mxu0
    %v5886 = vadd.f32 0.0, %v5885
    %v5887 = vpop.f32.mrb[0].mxu0
    %5888 = vmatprep.mubr.f32.mxu0 0.0
    %5889 = vmatmul.mubr.f32.gmra.mrb[0].mxu0 %v5555
    %v5890 = vpop.f32.mrb[0].mxu0
    %v5891 = vadd.f32 0.0, %v5890
    %v5892 = vpop.f32.mrb[0].mxu0
    %5893 = vmatprep.mubr.f32.mxu0 0.0
    %5894 = vmatmul.mubr.f32.gmra.mrb[0].mxu0 %v5556
    %v5895 = vpop.f32.mrb[0].mxu0
    %v5896 = vadd.f32 0.0, %v5895
    %v5897 = vpop.f32.mrb[0].mxu0
    %5898 = vmatprep.mubr.f32.mxu0 0.0
    %5899 = vmatmul.mubr.f32.gmra.mrb[0].mxu0 %v5557
    %v5900 = vpop.f32.mrb[0].mxu0
    %v5901 = vadd.f32 0.0, %v5900
    %v5902 = vpop.f32.mrb[0].mxu0
    %5903 = vmatprep.mubr.f32.mxu0 0.0
    %5904 = vmatmul.mubr.f32.gmra.mrb[0].mxu0 %v5558
    %v5905 = vpop.f32.mrb[0].mxu0
    %v5906 = vadd.f32 0.0, %v5905
    %v5907 = vpop.f32.mrb[0].mxu0
    %5908 = vmatprep.mubr.f32.mxu0 0.0
    %5909 = vmatmul.mubr.f32.gmra.mrb[0].mxu0 %v5559
    %v5910 = vpop.f32.mrb[0].mxu0
    %v5911 = vadd.f32 0.0, %v5910
    %v5912 = vpop.f32.mrb[0].mxu0
    %5913 = vmatprep.mubr.f32.mxu0 0.0
    %5914 = vmatmul.mubr.f32.gmra.mrb[0].mxu0 %v5560
    %v5915 = vpop.f32.mrb[0].mxu0
    %v5916 = vadd.f32 0.0, %v5915
    %v5917 = vpop.f32.mrb[0].mxu0
    %5918 = vmatprep.mubr.f32.mxu0 0.0
    %5919 = vmatmul.mubr.f32.gmra.mrb[0].mxu0 %v5561
    %v5920 = vpop.f32.mrb[0].mxu0
    %v5921 = vadd.f32 0.0, %v5920
    %v5922 = vpop.f32.mrb[0].mxu0
    %5923 = vmatprep.mubr.f32.mxu0 0.0
    %5924 = vmatmul.mubr.f32.gmra.mrb[0].mxu0 %v5562
    %v5925 = vpop.f32.mrb[0].mxu0
    %v5926 = vadd.f32 0.0, %v5925
    %v5927 = vpop.f32.mrb[0].mxu0
    %5928 = vmatprep.mubr.f32.mxu0 0.0
    %5929 = vmatmul.mubr.f32.gmra.mrb[0].mxu0 %v5563
    %v5930 = vpop.f32.mrb[0].mxu0
    %v5931 = vadd.f32 0.0, %v5930
    %v5932 = vpop.f32.mrb[0].mxu0
    %5933 = vmatprep.mubr.f32.mxu0 0.0
    %5934 = vmatmul.mubr.f32.gmra.mrb[0].mxu0 %v5564
    %v5935 = vpop.f32.mrb[0].mxu0
    %v5936 = vadd.f32 0.0, %v5935
    %v5937 = vpop.f32.mrb[0].mxu0
    %5938 = vmatprep.mubr.f32.mxu0 0.0
    %5939 = vmatmul.mubr.f32.gmra.mrb[0].mxu0 %v5565
    %v5940 = vpop.f32.mrb[0].mxu0
    %v5941 = vadd.f32 0.0, %v5940
    %v5942 = vpop.f32.mrb[0].mxu0
    %5943 = vmatprep.mubr.f32.mxu0 0.0
    %5944 = vmatmul.mubr.f32.gmra.mrb[0].mxu0 %v5566
    %v5945 = vpop.f32.mrb[0].mxu0
    %v5946 = vadd.f32 0.0, %v5945
    %v5947 = vpop.f32.mrb[0].mxu0
    %5948 = vmatprep.mubr.f32.mxu0 0.0
    %5949 = vmatmul.mubr.f32.gmra.mrb[0].mxu0 %v5567
    %v5950 = vpop.f32.mrb[0].mxu0
    %v5951 = vadd.f32 0.0, %v5950
    %v5952 = vpop.f32.mrb[0].mxu0
    %5953 = vmatprep.mubr.f32.mxu0 0.0
    %5954 = vmatmul.mubr.f32.gmra.mrb[0].mxu0 %v5568
    %v5955 = vpop.f32.mrb[0].mxu0
    %v5956 = vadd.f32 0.0, %v5955
    %v5957 = vpop.f32.mrb[0].mxu0
    %5958 = vmatprep.mubr.f32.mxu0 0.0
    %5959 = vmatmul.mubr.f32.gmra.mrb[0].mxu0 %v5569
    %v5960 = vpop.f32.mrb[0].mxu0
    %v5961 = vadd.f32 0.0, %v5960
    %v5962 = vpop.f32.mrb[0].mxu0
    %5963 = vmatprep.mubr.f32.mxu0 0.0
    %5964 = vmatmul.mubr.f32.gmra.mrb[0].mxu0 %v5570
    %v5965 = vpop.f32.mrb[0].mxu0
    %v5966 = vadd.f32 0.0, %v5965
    %v5967 = vpop.f32.mrb[0].mxu0
    %5968 = vmatprep.mubr.f32.mxu0 0.0
    %5969 = vmatmul.mubr.f32.gmra.mrb[0].mxu0 %v5571
    %v5970 = vpop.f32.mrb[0].mxu0
    %v5971 = vadd.f32 0.0, %v5970
    %v5972 = vpop.f32.mrb[0].mxu0
    %5973 = vdwg.mxu0
    %5974 = vmatprep.subr.mxu0 0.0
    %5975 = vmatpush1.msra.mxu0 %v5492
    %5976 = vmatprep.subr.mxu0 0.0
    %5977 = vmatpush1.msra.mxu0 %v5493
    %5978 = vmatprep.subr.mxu0 0.0
    %5979 = vmatpush1.msra.mxu0 %v5494
    %5980 = vmatprep.subr.mxu0 0.0
    %5981 = vmatpush1.msra.mxu0 %v5495
    %5982 = vmatprep.subr.mxu0 0.0
    %5983 = vmatpush1.msra.mxu0 %v5496
    %5984 = vmatprep.subr.mxu0 0.0
    %5985 = vmatpush1.msra.mxu0 %v5497
    %5986 = vmatprep.subr.mxu0 0.0
    %5987 = vmatpush1.msra.mxu0 %v5498
    %5988 = vmatprep.subr.mxu0 0.0
    %5989 = vmatpush1.msra.mxu0 %v5499
    %5990 = vmatprep.subr.mxu0 0.0
    %5991 = vmatpush1.msra.mxu0 %v5500
    %5992 = vmatprep.subr.mxu0 0.0
    %5993 = vmatpush1.msra.mxu0 %v5501
    %5994 = vmatprep.subr.mxu0 0.0
    %5995 = vmatpush1.msra.mxu0 %v5502
    %5996 = vmatprep.subr.mxu0 0.0
    %5997 = vmatpush1.msra.mxu0 %v5503
    %5998 = vmatprep.subr.mxu0 0.0
    %5999 = vmatpush1.msra.mxu0 %v5504
    %6000 = vmatprep.subr.mxu0 0.0
    %6001 = vmatpush1.msra.mxu0 %v5505
    %6002 = vmatprep.subr.mxu0 0.0
    %6003 = vmatpush1.msra.mxu0 %v5506
    %6004 = vmatprep.subr.mxu0 0.0
    %6005 = vmatpush1.msra.mxu0 %v5507
    %6006 = vmatprep.subr.mxu0 0.0
    %6007 = vmatpush1.msra.mxu0 0.0
    %6008 = vmatprep.subr.mxu0 0.0
    %6009 = vmatpush1.msra.mxu0 0.0
    %6010 = vmatprep.subr.mxu0 0.0
    %6011 = vmatpush1.msra.mxu0 0.0
    %6012 = vmatprep.subr.mxu0 0.0
    %6013 = vmatpush1.msra.mxu0 0.0
    %6014 = vmatprep.subr.mxu0 0.0
    %6015 = vmatpush1.msra.mxu0 0.0
    %6016 = vmatprep.subr.mxu0 0.0
    %6017 = vmatpush1.msra.mxu0 0.0
    %6018 = vmatprep.subr.mxu0 0.0
    %6019 = vmatpush1.msra.mxu0 0.0
    %6020 = vmatprep.subr.mxu0 0.0
    %6021 = vmatpush1.msra.mxu0 0.0
    %6022 = vmatprep.subr.mxu0 0.0
    %6023 = vmatpush1.msra.mxu0 0.0
    %6024 = vmatprep.subr.mxu0 0.0
    %6025 = vmatpush1.msra.mxu0 0.0
    %6026 = vmatprep.subr.mxu0 0.0
    %6027 = vmatpush1.msra.mxu0 0.0
    %6028 = vmatprep.subr.mxu0 0.0
    %6029 = vmatpush1.msra.mxu0 0.0
    %6030 = vmatprep.subr.mxu0 0.0
    %6031 = vmatpush1.msra.mxu0 0.0
    %6032 = vmatprep.subr.mxu0 0.0
    %6033 = vmatpush1.msra.mxu0 0.0
    %6034 = vmatprep.subr.mxu0 0.0
    %6035 = vmatpush1.msra.mxu0 0.0
    %6036 = vmatprep.subr.mxu0 0.0
    %6037 = vmatpush1.msra.mxu0 0.0
    %6038 = vmatprep.mubr.f32.mxu0 0.0
    %6039 = vmatmul.mubr.f32.gmra.mrb[0].mxu0 %v5428
    %v6040 = vpop.f32.mrb[0].mxu0
    %v6041 = vadd.f32 %v5656, %v6040
    %v6042 = vpop.f32.mrb[0].mxu0
    %6043 = vmatprep.mubr.f32.mxu0 0.0
    %6044 = vmatmul.mubr.f32.gmra.mrb[0].mxu0 %v5429
    %v6045 = vpop.f32.mrb[0].mxu0
    %v6046 = vadd.f32 %v5661, %v6045
    %v6047 = vpop.f32.mrb[0].mxu0
    %6048 = vmatprep.mubr.f32.mxu0 0.0
    %6049 = vmatmul.mubr.f32.gmra.mrb[0].mxu0 %v5430
    %v6050 = vpop.f32.mrb[0].mxu0
    %v6051 = vadd.f32 %v5666, %v6050
    %v6052 = vpop.f32.mrb[0].mxu0
    %6053 = vmatprep.mubr.f32.mxu0 0.0
    %6054 = vmatmul.mubr.f32.gmra.mrb[0].mxu0 %v5431
    %v6055 = vpop.f32.mrb[0].mxu0
    %v6056 = vadd.f32 %v5671, %v6055
    %v6057 = vpop.f32.mrb[0].mxu0
    %6058 = vmatprep.mubr.f32.mxu0 0.0
    %6059 = vmatmul.mubr.f32.gmra.mrb[0].mxu0 %v5432
    %v6060 = vpop.f32.mrb[0].mxu0
    %v6061 = vadd.f32 %v5676, %v6060
    %v6062 = vpop.f32.mrb[0].mxu0
    %6063 = vmatprep.mubr.f32.mxu0 0.0
    %6064 = vmatmul.mubr.f32.gmra.mrb[0].mxu0 %v5433
    %v6065 = vpop.f32.mrb[0].mxu0
    %v6066 = vadd.f32 %v5681, %v6065
    %v6067 = vpop.f32.mrb[0].mxu0
    %6068 = vmatprep.mubr.f32.mxu0 0.0
    %6069 = vmatmul.mubr.f32.gmra.mrb[0].mxu0 %v5434
    %v6070 = vpop.f32.mrb[0].mxu0
    %v6071 = vadd.f32 %v5686, %v6070
    %v6072 = vpop.f32.mrb[0].mxu0
    %6073 = vmatprep.mubr.f32.mxu0 0.0
    %6074 = vmatmul.mubr.f32.gmra.mrb[0].mxu0 %v5435
    %v6075 = vpop.f32.mrb[0].mxu0
    %v6076 = vadd.f32 %v5691, %v6075
    %v6077 = vpop.f32.mrb[0].mxu0
    %6078 = vmatprep.mubr.f32.mxu0 0.0
    %6079 = vmatmul.mubr.f32.gmra.mrb[0].mxu0 %v5436
    %v6080 = vpop.f32.mrb[0].mxu0
    %v6081 = vadd.f32 %v5696, %v6080
    %v6082 = vpop.f32.mrb[0].mxu0
    %6083 = vmatprep.mubr.f32.mxu0 0.0
    %6084 = vmatmul.mubr.f32.gmra.mrb[0].mxu0 %v5437
    %v6085 = vpop.f32.mrb[0].mxu0
    %v6086 = vadd.f32 %v5701, %v6085
    %v6087 = vpop.f32.mrb[0].mxu0
    %6088 = vmatprep.mubr.f32.mxu0 0.0
    %6089 = vmatmul.mubr.f32.gmra.mrb[0].mxu0 %v5438
    %v6090 = vpop.f32.mrb[0].mxu0
    %v6091 = vadd.f32 %v5706, %v6090
    %v6092 = vpop.f32.mrb[0].mxu0
    %6093 = vmatprep.mubr.f32.mxu0 0.0
    %6094 = vmatmul.mubr.f32.gmra.mrb[0].mxu0 %v5439
    %v6095 = vpop.f32.mrb[0].mxu0
    %v6096 = vadd.f32 %v5711, %v6095
    %v6097 = vpop.f32.mrb[0].mxu0
    %6098 = vmatprep.mubr.f32.mxu0 0.0
    %6099 = vmatmul.mubr.f32.gmra.mrb[0].mxu0 %v5440
    %v6100 = vpop.f32.mrb[0].mxu0
    %v6101 = vadd.f32 %v5716, %v6100
    %v6102 = vpop.f32.mrb[0].mxu0
    %6103 = vmatprep.mubr.f32.mxu0 0.0
    %6104 = vmatmul.mubr.f32.gmra.mrb[0].mxu0 %v5441
    %v6105 = vpop.f32.mrb[0].mxu0
    %v6106 = vadd.f32 %v5721, %v6105
    %v6107 = vpop.f32.mrb[0].mxu0
    %6108 = vmatprep.mubr.f32.mxu0 0.0
    %6109 = vmatmul.mubr.f32.gmra.mrb[0].mxu0 %v5442
    %v6110 = vpop.f32.mrb[0].mxu0
    %v6111 = vadd.f32 %v5726, %v6110
    %v6112 = vpop.f32.mrb[0].mxu0
    %6113 = vmatprep.mubr.f32.mxu0 0.0
    %6114 = vmatmul.mubr.f32.gmra.mrb[0].mxu0 %v5443
    %v6115 = vpop.f32.mrb[0].mxu0
    %v6116 = vadd.f32 %v5731, %v6115
    %v6117 = vpop.f32.mrb[0].mxu0
    %6118 = vmatprep.mubr.f32.mxu0 0.0
    %6119 = vmatmul.mubr.f32.gmra.mrb[0].mxu0 %v5444
    %v6120 = vpop.f32.mrb[0].mxu0
    %v6121 = vadd.f32 %v5736, %v6120
    %v6122 = vpop.f32.mrb[0].mxu0
    %6123 = vmatprep.mubr.f32.mxu0 0.0
    %6124 = vmatmul.mubr.f32.gmra.mrb[0].mxu0 %v5445
    %v6125 = vpop.f32.mrb[0].mxu0
    %v6126 = vadd.f32 %v5741, %v6125
    %v6127 = vpop.f32.mrb[0].mxu0
    %6128 = vmatprep.mubr.f32.mxu0 0.0
    %6129 = vmatmul.mubr.f32.gmra.mrb[0].mxu0 %v5446
    %v6130 = vpop.f32.mrb[0].mxu0
    %v6131 = vadd.f32 %v5746, %v6130
    %v6132 = vpop.f32.mrb[0].mxu0
    %6133 = vmatprep.mubr.f32.mxu0 0.0
    %6134 = vmatmul.mubr.f32.gmra.mrb[0].mxu0 %v5447
    %v6135 = vpop.f32.mrb[0].mxu0
    %v6136 = vadd.f32 %v5751, %v6135
    %v6137 = vpop.f32.mrb[0].mxu0
    %6138 = vmatprep.mubr.f32.mxu0 0.0
    %6139 = vmatmul.mubr.f32.gmra.mrb[0].mxu0 %v5448
    %v6140 = vpop.f32.mrb[0].mxu0
    %v6141 = vadd.f32 %v5756, %v6140
    %v6142 = vpop.f32.mrb[0].mxu0
    %6143 = vmatprep.mubr.f32.mxu0 0.0
    %6144 = vmatmul.mubr.f32.gmra.mrb[0].mxu0 %v5449
    %v6145 = vpop.f32.mrb[0].mxu0
    %v6146 = vadd.f32 %v5761, %v6145
    %v6147 = vpop.f32.mrb[0].mxu0
    %6148 = vmatprep.mubr.f32.mxu0 0.0
    %6149 = vmatmul.mubr.f32.gmra.mrb[0].mxu0 %v5450
    %v6150 = vpop.f32.mrb[0].mxu0
    %v6151 = vadd.f32 %v5766, %v6150
    %v6152 = vpop.f32.mrb[0].mxu0
    %6153 = vmatprep.mubr.f32.mxu0 0.0
    %6154 = vmatmul.mubr.f32.gmra.mrb[0].mxu0 %v5451
    %v6155 = vpop.f32.mrb[0].mxu0
    %v6156 = vadd.f32 %v5771, %v6155
    %v6157 = vpop.f32.mrb[0].mxu0
    %6158 = vmatprep.mubr.f32.mxu0 0.0
    %6159 = vmatmul.mubr.f32.gmra.mrb[0].mxu0 %v5452
    %v6160 = vpop.f32.mrb[0].mxu0
    %v6161 = vadd.f32 %v5776, %v6160
    %v6162 = vpop.f32.mrb[0].mxu0
    %6163 = vmatprep.mubr.f32.mxu0 0.0
    %6164 = vmatmul.mubr.f32.gmra.mrb[0].mxu0 %v5453
    %v6165 = vpop.f32.mrb[0].mxu0
    %v6166 = vadd.f32 %v5781, %v6165
    %v6167 = vpop.f32.mrb[0].mxu0
    %6168 = vmatprep.mubr.f32.mxu0 0.0
    %6169 = vmatmul.mubr.f32.gmra.mrb[0].mxu0 %v5454
    %v6170 = vpop.f32.mrb[0].mxu0
    %v6171 = vadd.f32 %v5786, %v6170
    %v6172 = vpop.f32.mrb[0].mxu0
    %6173 = vmatprep.mubr.f32.mxu0 0.0
    %6174 = vmatmul.mubr.f32.gmra.mrb[0].mxu0 %v5455
    %v6175 = vpop.f32.mrb[0].mxu0
    %v6176 = vadd.f32 %v5791, %v6175
    %v6177 = vpop.f32.mrb[0].mxu0
    %6178 = vmatprep.mubr.f32.mxu0 0.0
    %6179 = vmatmul.mubr.f32.gmra.mrb[0].mxu0 %v5456
    %v6180 = vpop.f32.mrb[0].mxu0
    %v6181 = vadd.f32 %v5796, %v6180
    %v6182 = vpop.f32.mrb[0].mxu0
    %6183 = vmatprep.mubr.f32.mxu0 0.0
    %6184 = vmatmul.mubr.f32.gmra.mrb[0].mxu0 %v5457
    %v6185 = vpop.f32.mrb[0].mxu0
    %v6186 = vadd.f32 %v5801, %v6185
    %v6187 = vpop.f32.mrb[0].mxu0
    %6188 = vmatprep.mubr.f32.mxu0 0.0
    %6189 = vmatmul.mubr.f32.gmra.mrb[0].mxu0 %v5458
    %v6190 = vpop.f32.mrb[0].mxu0
    %v6191 = vadd.f32 %v5806, %v6190
    %v6192 = vpop.f32.mrb[0].mxu0
    %6193 = vmatprep.mubr.f32.mxu0 0.0
    %6194 = vmatmul.mubr.f32.gmra.mrb[0].mxu0 %v5459
    %v6195 = vpop.f32.mrb[0].mxu0
    %v6196 = vadd.f32 %v5811, %v6195
    %v6197 = vpop.f32.mrb[0].mxu0
    %6198 = vmatprep.mubr.f32.mxu0 0.0
    %6199 = vmatmul.mubr.f32.gmra.mrb[0].mxu0 %v5460
    %v6200 = vpop.f32.mrb[0].mxu0
    %v6201 = vadd.f32 %v5816, %v6200
    %v6202 = vpop.f32.mrb[0].mxu0
    %6203 = vmatprep.mubr.f32.mxu0 0.0
    %6204 = vmatmul.mubr.f32.gmra.mrb[0].mxu0 %v5461
    %v6205 = vpop.f32.mrb[0].mxu0
    %v6206 = vadd.f32 %v5821, %v6205
    %v6207 = vpop.f32.mrb[0].mxu0
    %6208 = vmatprep.mubr.f32.mxu0 0.0
    %6209 = vmatmul.mubr.f32.gmra.mrb[0].mxu0 %v5462
    %v6210 = vpop.f32.mrb[0].mxu0
    %v6211 = vadd.f32 %v5826, %v6210
    %v6212 = vpop.f32.mrb[0].mxu0
    %6213 = vmatprep.mubr.f32.mxu0 0.0
    %6214 = vmatmul.mubr.f32.gmra.mrb[0].mxu0 %v5463
    %v6215 = vpop.f32.mrb[0].mxu0
    %v6216 = vadd.f32 %v5831, %v6215
    %v6217 = vpop.f32.mrb[0].mxu0
    %6218 = vmatprep.mubr.f32.mxu0 0.0
    %6219 = vmatmul.mubr.f32.gmra.mrb[0].mxu0 %v5464
    %v6220 = vpop.f32.mrb[0].mxu0
    %v6221 = vadd.f32 %v5836, %v6220
    %v6222 = vpop.f32.mrb[0].mxu0
    %6223 = vmatprep.mubr.f32.mxu0 0.0
    %6224 = vmatmul.mubr.f32.gmra.mrb[0].mxu0 %v5465
    %v6225 = vpop.f32.mrb[0].mxu0
    %v6226 = vadd.f32 %v5841, %v6225
    %v6227 = vpop.f32.mrb[0].mxu0
    %6228 = vmatprep.mubr.f32.mxu0 0.0
    %6229 = vmatmul.mubr.f32.gmra.mrb[0].mxu0 %v5466
    %v6230 = vpop.f32.mrb[0].mxu0
    %v6231 = vadd.f32 %v5846, %v6230
    %v6232 = vpop.f32.mrb[0].mxu0
    %6233 = vmatprep.mubr.f32.mxu0 0.0
    %6234 = vmatmul.mubr.f32.gmra.mrb[0].mxu0 %v5467
    %v6235 = vpop.f32.mrb[0].mxu0
    %v6236 = vadd.f32 %v5851, %v6235
    %v6237 = vpop.f32.mrb[0].mxu0
    %6238 = vmatprep.mubr.f32.mxu0 0.0
    %6239 = vmatmul.mubr.f32.gmra.mrb[0].mxu0 %v5468
    %v6240 = vpop.f32.mrb[0].mxu0
    %v6241 = vadd.f32 %v5856, %v6240
    %v6242 = vpop.f32.mrb[0].mxu0
    %6243 = vmatprep.mubr.f32.mxu0 0.0
    %6244 = vmatmul.mubr.f32.gmra.mrb[0].mxu0 %v5469
    %v6245 = vpop.f32.mrb[0].mxu0
    %v6246 = vadd.f32 %v5861, %v6245
    %v6247 = vpop.f32.mrb[0].mxu0
    %6248 = vmatprep.mubr.f32.mxu0 0.0
    %6249 = vmatmul.mubr.f32.gmra.mrb[0].mxu0 %v5470
    %v6250 = vpop.f32.mrb[0].mxu0
    %v6251 = vadd.f32 %v5866, %v6250
    %v6252 = vpop.f32.mrb[0].mxu0
    %6253 = vmatprep.mubr.f32.mxu0 0.0
    %6254 = vmatmul.mubr.f32.gmra.mrb[0].mxu0 %v5471
    %v6255 = vpop.f32.mrb[0].mxu0
    %v6256 = vadd.f32 %v5871, %v6255
    %v6257 = vpop.f32.mrb[0].mxu0
    %6258 = vmatprep.mubr.f32.mxu0 0.0
    %6259 = vmatmul.mubr.f32.gmra.mrb[0].mxu0 %v5472
    %v6260 = vpop.f32.mrb[0].mxu0
    %v6261 = vadd.f32 %v5876, %v6260
    %v6262 = vpop.f32.mrb[0].mxu0
    %6263 = vmatprep.mubr.f32.mxu0 0.0
    %6264 = vmatmul.mubr.f32.gmra.mrb[0].mxu0 %v5473
    %v6265 = vpop.f32.mrb[0].mxu0
    %v6266 = vadd.f32 %v5881, %v6265
    %v6267 = vpop.f32.mrb[0].mxu0
    %6268 = vmatprep.mubr.f32.mxu0 0.0
    %6269 = vmatmul.mubr.f32.gmra.mrb[0].mxu0 %v5474
    %v6270 = vpop.f32.mrb[0].mxu0
    %v6271 = vadd.f32 %v5886, %v6270
    %v6272 = vpop.f32.mrb[0].mxu0
    %6273 = vmatprep.mubr.f32.mxu0 0.0
    %6274 = vmatmul.mubr.f32.gmra.mrb[0].mxu0 %v5475
    %v6275 = vpop.f32.mrb[0].mxu0
    %v6276 = vadd.f32 %v5891, %v6275
    %v6277 = vpop.f32.mrb[0].mxu0
    %6278 = vmatprep.mubr.f32.mxu0 0.0
    %6279 = vmatmul.mubr.f32.gmra.mrb[0].mxu0 %v5476
    %v6280 = vpop.f32.mrb[0].mxu0
    %v6281 = vadd.f32 %v5896, %v6280
    %v6282 = vpop.f32.mrb[0].mxu0
    %6283 = vmatprep.mubr.f32.mxu0 0.0
    %6284 = vmatmul.mubr.f32.gmra.mrb[0].mxu0 %v5477
    %v6285 = vpop.f32.mrb[0].mxu0
    %v6286 = vadd.f32 %v5901, %v6285
    %v6287 = vpop.f32.mrb[0].mxu0
    %6288 = vmatprep.mubr.f32.mxu0 0.0
    %6289 = vmatmul.mubr.f32.gmra.mrb[0].mxu0 %v5478
    %v6290 = vpop.f32.mrb[0].mxu0
    %v6291 = vadd.f32 %v5906, %v6290
    %v6292 = vpop.f32.mrb[0].mxu0
    %6293 = vmatprep.mubr.f32.mxu0 0.0
    %6294 = vmatmul.mubr.f32.gmra.mrb[0].mxu0 %v5479
    %v6295 = vpop.f32.mrb[0].mxu0
    %v6296 = vadd.f32 %v5911, %v6295
    %v6297 = vpop.f32.mrb[0].mxu0
    %6298 = vmatprep.mubr.f32.mxu0 0.0
    %6299 = vmatmul.mubr.f32.gmra.mrb[0].mxu0 %v5480
    %v6300 = vpop.f32.mrb[0].mxu0
    %v6301 = vadd.f32 %v5916, %v6300
    %v6302 = vpop.f32.mrb[0].mxu0
    %6303 = vmatprep.mubr.f32.mxu0 0.0
    %6304 = vmatmul.mubr.f32.gmra.mrb[0].mxu0 %v5481
    %v6305 = vpop.f32.mrb[0].mxu0
    %v6306 = vadd.f32 %v5921, %v6305
    %v6307 = vpop.f32.mrb[0].mxu0
    %6308 = vmatprep.mubr.f32.mxu0 0.0
    %6309 = vmatmul.mubr.f32.gmra.mrb[0].mxu0 %v5482
    %v6310 = vpop.f32.mrb[0].mxu0
    %v6311 = vadd.f32 %v5926, %v6310
    %v6312 = vpop.f32.mrb[0].mxu0
    %6313 = vmatprep.mubr.f32.mxu0 0.0
    %6314 = vmatmul.mubr.f32.gmra.mrb[0].mxu0 %v5483
    %v6315 = vpop.f32.mrb[0].mxu0
    %v6316 = vadd.f32 %v5931, %v6315
    %v6317 = vpop.f32.mrb[0].mxu0
    %6318 = vmatprep.mubr.f32.mxu0 0.0
    %6319 = vmatmul.mubr.f32.gmra.mrb[0].mxu0 %v5484
    %v6320 = vpop.f32.mrb[0].mxu0
    %v6321 = vadd.f32 %v5936, %v6320
    %v6322 = vpop.f32.mrb[0].mxu0
    %6323 = vmatprep.mubr.f32.mxu0 0.0
    %6324 = vmatmul.mubr.f32.gmra.mrb[0].mxu0 %v5485
    %v6325 = vpop.f32.mrb[0].mxu0
    %v6326 = vadd.f32 %v5941, %v6325
    %v6327 = vpop.f32.mrb[0].mxu0
    %6328 = vmatprep.mubr.f32.mxu0 0.0
    %6329 = vmatmul.mubr.f32.gmra.mrb[0].mxu0 %v5486
    %v6330 = vpop.f32.mrb[0].mxu0
    %v6331 = vadd.f32 %v5946, %v6330
    %v6332 = vpop.f32.mrb[0].mxu0
    %6333 = vmatprep.mubr.f32.mxu0 0.0
    %6334 = vmatmul.mubr.f32.gmra.mrb[0].mxu0 %v5487
    %v6335 = vpop.f32.mrb[0].mxu0
    %v6336 = vadd.f32 %v5951, %v6335
    %v6337 = vpop.f32.mrb[0].mxu0
    %6338 = vmatprep.mubr.f32.mxu0 0.0
    %6339 = vmatmul.mubr.f32.gmra.mrb[0].mxu0 %v5488
    %v6340 = vpop.f32.mrb[0].mxu0
    %v6341 = vadd.f32 %v5956, %v6340
    %v6342 = vpop.f32.mrb[0].mxu0
    %6343 = vmatprep.mubr.f32.mxu0 0.0
    %6344 = vmatmul.mubr.f32.gmra.mrb[0].mxu0 %v5489
    %v6345 = vpop.f32.mrb[0].mxu0
    %v6346 = vadd.f32 %v5961, %v6345
    %v6347 = vpop.f32.mrb[0].mxu0
    %6348 = vmatprep.mubr.f32.mxu0 0.0
    %6349 = vmatmul.mubr.f32.gmra.mrb[0].mxu0 %v5490
    %v6350 = vpop.f32.mrb[0].mxu0
    %v6351 = vadd.f32 %v5966, %v6350
    %v6352 = vpop.f32.mrb[0].mxu0
    %6353 = vmatprep.mubr.f32.mxu0 0.0
    %6354 = vmatmul.mubr.f32.gmra.mrb[0].mxu0 %v5491
    %v6355 = vpop.f32.mrb[0].mxu0
    %v6356 = vadd.f32 %v5971, %v6355
    %v6357 = vpop.f32.mrb[0].mxu0
    %6358 = vdwg.mxu0
    %v6359 = vld [vmem:[#allocation2 + $0x2] sm:$0xff]
    %v6360 = vld [vmem:[#allocation2 + $0xa] sm:$0xff]
    %v6361 = vld [vmem:[#allocation2 + $0x1a] sm:$0xff]
    %v6362 = vld [vmem:[#allocation2 + $0x22] sm:$0xff]
    %v6363 = vld [vmem:[#allocation2 + $0x32] sm:$0xff]
    %v6364 = vld [vmem:[#allocation2 + $0x3a] sm:$0xff]
    %v6365 = vld [vmem:[#allocation2 + $0x4a] sm:$0xff]
    %v6366 = vld [vmem:[#allocation2 + $0x52] sm:$0xff]
    %v6367 = vld [vmem:[#allocation2 + $0x62] sm:$0xff]
    %v6368 = vld [vmem:[#allocation2 + $0x6a] sm:$0xff]
    %v6369 = vld [vmem:[#allocation2 + $0x7a] sm:$0xff]
    %v6370 = vld [vmem:[#allocation2 + $0x82] sm:$0xff]
    %v6371 = vld [vmem:[#allocation2 + $0x92] sm:$0xff]
    %v6372 = vld [vmem:[#allocation2 + $0x9a] sm:$0xff]
    %v6373 = vld [vmem:[#allocation2 + $0xaa] sm:$0xff]
    %v6374 = vld [vmem:[#allocation2 + $0xb2] sm:$0xff]
    %v6375 = vld [vmem:[#allocation2 + $0xc2] sm:$0xff]
    %v6376 = vld [vmem:[#allocation2 + $0xca] sm:$0xff]
    %v6377 = vld [vmem:[#allocation2 + $0xda] sm:$0xff]
    %v6378 = vld [vmem:[#allocation2 + $0xe2] sm:$0xff]
    %v6379 = vld [vmem:[#allocation2 + $0xf2] sm:$0xff]
    %v6380 = vld [vmem:[#allocation2 + $0xfa] sm:$0xff]
    %v6381 = vld [vmem:[#allocation2 + $0x10a] sm:$0xff]
    %v6382 = vld [vmem:[#allocation2 + $0x112] sm:$0xff]
    %v6383 = vld [vmem:[#allocation2 + $0x122] sm:$0xff]
    %v6384 = vld [vmem:[#allocation2 + $0x12a] sm:$0xff]
    %v6385 = vld [vmem:[#allocation2 + $0x13a] sm:$0xff]
    %v6386 = vld [vmem:[#allocation2 + $0x142] sm:$0xff]
    %v6387 = vld [vmem:[#allocation2 + $0x152] sm:$0xff]
    %v6388 = vld [vmem:[#allocation2 + $0x15a] sm:$0xff]
    %v6389 = vld [vmem:[#allocation2 + $0x16a] sm:$0xff]
    %v6390 = vld [vmem:[#allocation2 + $0x172] sm:$0xff]
    %v6391 = vld [vmem:[#allocation2 + $0x1b2] sm:$0xff]
    %v6392 = vld [vmem:[#allocation2 + $0x1ba] sm:$0xff]
    %v6393 = vld [vmem:[#allocation2 + $0x1ca] sm:$0xff]
    %v6394 = vld [vmem:[#allocation2 + $0x1d2] sm:$0xff]
    %v6395 = vld [vmem:[#allocation2 + $0x1e2] sm:$0xff]
    %v6396 = vld [vmem:[#allocation2 + $0x1ea] sm:$0xff]
    %v6397 = vld [vmem:[#allocation2 + $0x1fa] sm:$0xff]
    %v6398 = vld [vmem:[#allocation2 + $0x202] sm:$0xff]
    %v6399 = vld [vmem:[#allocation2 + $0x212] sm:$0xff]
    %v6400 = vld [vmem:[#allocation2 + $0x21a] sm:$0xff]
    %v6401 = vld [vmem:[#allocation2 + $0x22a] sm:$0xff]
    %v6402 = vld [vmem:[#allocation2 + $0x232] sm:$0xff]
    %v6403 = vld [vmem:[#allocation2 + $0x242] sm:$0xff]
    %v6404 = vld [vmem:[#allocation2 + $0x24a] sm:$0xff]
    %v6405 = vld [vmem:[#allocation2 + $0x25a] sm:$0xff]
    %v6406 = vld [vmem:[#allocation2 + $0x262] sm:$0xff]
    %v6407 = vld [vmem:[#allocation2 + $0x272] sm:$0xff]
    %v6408 = vld [vmem:[#allocation2 + $0x27a] sm:$0xff]
    %v6409 = vld [vmem:[#allocation2 + $0x28a] sm:$0xff]
    %v6410 = vld [vmem:[#allocation2 + $0x292] sm:$0xff]
    %v6411 = vld [vmem:[#allocation2 + $0x2a2] sm:$0xff]
    %v6412 = vld [vmem:[#allocation2 + $0x2aa] sm:$0xff]
    %v6413 = vld [vmem:[#allocation2 + $0x2ba] sm:$0xff]
    %v6414 = vld [vmem:[#allocation2 + $0x2c2] sm:$0xff]
    %v6415 = vld [vmem:[#allocation2 + $0x2d2] sm:$0xff]
    %v6416 = vld [vmem:[#allocation2 + $0x2da] sm:$0xff]
    %v6417 = vld [vmem:[#allocation2 + $0x2ea] sm:$0xff]
    %v6418 = vld [vmem:[#allocation2 + $0x2f2] sm:$0xff]
    %v6419 = vld [vmem:[#allocation2 + $0x302] sm:$0xff]
    %v6420 = vld [vmem:[#allocation2 + $0x30a] sm:$0xff]
    %v6421 = vld [vmem:[#allocation2 + $0x31a] sm:$0xff]
    %v6422 = vld [vmem:[#allocation2 + $0x322] sm:$0xff]
    %s6423 = scalar_lea.vmem [#allocation8], 256
    %v6424 = vld [vmem:[%s6423] sm:$0xff]
    %v6425 = vld [vmem:[%s6423 + $0x8] sm:$0xff]
    %v6426 = vld [vmem:[%s6423 + $0x10] sm:$0xff]
    %v6427 = vld [vmem:[%s6423 + $0x18] sm:$0xff]
    %v6428 = vld [vmem:[%s6423 + $0x20] sm:$0xff]
    %v6429 = vld [vmem:[%s6423 + $0x28] sm:$0xff]
    %v6430 = vld [vmem:[%s6423 + $0x30] sm:$0xff]
    %v6431 = vld [vmem:[%s6423 + $0x38] sm:$0xff]
    %v6432 = vld [vmem:[%s6423 + $0x40] sm:$0xff]
    %v6433 = vld [vmem:[%s6423 + $0x48] sm:$0xff]
    %v6434 = vld [vmem:[%s6423 + $0x50] sm:$0xff]
    %v6435 = vld [vmem:[%s6423 + $0x58] sm:$0xff]
    %v6436 = vld [vmem:[%s6423 + $0x60] sm:$0xff]
    %v6437 = vld [vmem:[%s6423 + $0x68] sm:$0xff]
    %v6438 = vld [vmem:[%s6423 + $0x70] sm:$0xff]
    %v6439 = vld [vmem:[%s6423 + $0x78] sm:$0xff]
    %6440 = vmatprep.subr.mxu0 0.0
    %6441 = vmatpush1.msra.mxu0 %v6424
    %6442 = vmatprep.subr.mxu0 0.0
    %6443 = vmatpush1.msra.mxu0 %v6425
    %6444 = vmatprep.subr.mxu0 0.0
    %6445 = vmatpush1.msra.mxu0 %v6426
    %6446 = vmatprep.subr.mxu0 0.0
    %6447 = vmatpush1.msra.mxu0 %v6427
    %6448 = vmatprep.subr.mxu0 0.0
    %6449 = vmatpush1.msra.mxu0 %v6428
    %6450 = vmatprep.subr.mxu0 0.0
    %6451 = vmatpush1.msra.mxu0 %v6429
    %6452 = vmatprep.subr.mxu0 0.0
    %6453 = vmatpush1.msra.mxu0 %v6430
    %6454 = vmatprep.subr.mxu0 0.0
    %6455 = vmatpush1.msra.mxu0 %v6431
    %6456 = vmatprep.subr.mxu0 0.0
    %6457 = vmatpush1.msra.mxu0 %v6432
    %6458 = vmatprep.subr.mxu0 0.0
    %6459 = vmatpush1.msra.mxu0 %v6433
    %6460 = vmatprep.subr.mxu0 0.0
    %6461 = vmatpush1.msra.mxu0 %v6434
    %6462 = vmatprep.subr.mxu0 0.0
    %6463 = vmatpush1.msra.mxu0 %v6435
    %6464 = vmatprep.subr.mxu0 0.0
    %6465 = vmatpush1.msra.mxu0 %v6436
    %6466 = vmatprep.subr.mxu0 0.0
    %6467 = vmatpush1.msra.mxu0 %v6437
    %6468 = vmatprep.subr.mxu0 0.0
    %6469 = vmatpush1.msra.mxu0 %v6438
    %6470 = vmatprep.subr.mxu0 0.0
    %6471 = vmatpush1.msra.mxu0 %v6439
    %6472 = vmatprep.subr.mxu0 0.0
    %6473 = vmatpush1.msra.mxu0 0.0
    %6474 = vmatprep.subr.mxu0 0.0
    %6475 = vmatpush1.msra.mxu0 0.0
    %6476 = vmatprep.subr.mxu0 0.0
    %6477 = vmatpush1.msra.mxu0 0.0
    %6478 = vmatprep.subr.mxu0 0.0
    %6479 = vmatpush1.msra.mxu0 0.0
    %6480 = vmatprep.subr.mxu0 0.0
    %6481 = vmatpush1.msra.mxu0 0.0
    %6482 = vmatprep.subr.mxu0 0.0
    %6483 = vmatpush1.msra.mxu0 0.0
    %6484 = vmatprep.subr.mxu0 0.0
    %6485 = vmatpush1.msra.mxu0 0.0
    %6486 = vmatprep.subr.mxu0 0.0
    %6487 = vmatpush1.msra.mxu0 0.0
    %6488 = vmatprep.subr.mxu0 0.0
    %6489 = vmatpush1.msra.mxu0 0.0
    %6490 = vmatprep.subr.mxu0 0.0
    %6491 = vmatpush1.msra.mxu0 0.0
    %6492 = vmatprep.subr.mxu0 0.0
    %6493 = vmatpush1.msra.mxu0 0.0
    %6494 = vmatprep.subr.mxu0 0.0
    %6495 = vmatpush1.msra.mxu0 0.0
    %6496 = vmatprep.subr.mxu0 0.0
    %6497 = vmatpush1.msra.mxu0 0.0
    %6498 = vmatprep.subr.mxu0 0.0
    %6499 = vmatpush1.msra.mxu0 0.0
    %6500 = vmatprep.subr.mxu0 0.0
    %6501 = vmatpush1.msra.mxu0 0.0
    %6502 = vmatprep.subr.mxu0 0.0
    %6503 = vmatpush1.msra.mxu0 0.0
    %6504 = vmatprep.mubr.f32.mxu0 0.0
    %6505 = vmatmul.mubr.f32.gmra.mrb[0].mxu0 %v6359
    %v6506 = vpop.f32.mrb[0].mxu0
    %v6507 = vadd.f32 0.0, %v6506
    %v6508 = vpop.f32.mrb[0].mxu0
    %6509 = vmatprep.mubr.f32.mxu0 0.0
    %6510 = vmatmul.mubr.f32.gmra.mrb[0].mxu0 %v6360
    %v6511 = vpop.f32.mrb[0].mxu0
    %v6512 = vadd.f32 0.0, %v6511
    %v6513 = vpop.f32.mrb[0].mxu0
    %6514 = vmatprep.mubr.f32.mxu0 0.0
    %6515 = vmatmul.mubr.f32.gmra.mrb[0].mxu0 %v6361
    %v6516 = vpop.f32.mrb[0].mxu0
    %v6517 = vadd.f32 0.0, %v6516
    %v6518 = vpop.f32.mrb[0].mxu0
    %6519 = vmatprep.mubr.f32.mxu0 0.0
    %6520 = vmatmul.mubr.f32.gmra.mrb[0].mxu0 %v6362
    %v6521 = vpop.f32.mrb[0].mxu0
    %v6522 = vadd.f32 0.0, %v6521
    %v6523 = vpop.f32.mrb[0].mxu0
    %6524 = vmatprep.mubr.f32.mxu0 0.0
    %6525 = vmatmul.mubr.f32.gmra.mrb[0].mxu0 %v6363
    %v6526 = vpop.f32.mrb[0].mxu0
    %v6527 = vadd.f32 0.0, %v6526
    %v6528 = vpop.f32.mrb[0].mxu0
    %6529 = vmatprep.mubr.f32.mxu0 0.0
    %6530 = vmatmul.mubr.f32.gmra.mrb[0].mxu0 %v6364
    %v6531 = vpop.f32.mrb[0].mxu0
    %v6532 = vadd.f32 0.0, %v6531
    %v6533 = vpop.f32.mrb[0].mxu0
    %6534 = vmatprep.mubr.f32.mxu0 0.0
    %6535 = vmatmul.mubr.f32.gmra.mrb[0].mxu0 %v6365
    %v6536 = vpop.f32.mrb[0].mxu0
    %v6537 = vadd.f32 0.0, %v6536
    %v6538 = vpop.f32.mrb[0].mxu0
    %6539 = vmatprep.mubr.f32.mxu0 0.0
    %6540 = vmatmul.mubr.f32.gmra.mrb[0].mxu0 %v6366
    %v6541 = vpop.f32.mrb[0].mxu0
    %v6542 = vadd.f32 0.0, %v6541
    %v6543 = vpop.f32.mrb[0].mxu0
    %6544 = vmatprep.mubr.f32.mxu0 0.0
    %6545 = vmatmul.mubr.f32.gmra.mrb[0].mxu0 %v6367
    %v6546 = vpop.f32.mrb[0].mxu0
    %v6547 = vadd.f32 0.0, %v6546
    %v6548 = vpop.f32.mrb[0].mxu0
    %6549 = vmatprep.mubr.f32.mxu0 0.0
    %6550 = vmatmul.mubr.f32.gmra.mrb[0].mxu0 %v6368
    %v6551 = vpop.f32.mrb[0].mxu0
    %v6552 = vadd.f32 0.0, %v6551
    %v6553 = vpop.f32.mrb[0].mxu0
    %6554 = vmatprep.mubr.f32.mxu0 0.0
    %6555 = vmatmul.mubr.f32.gmra.mrb[0].mxu0 %v6369
    %v6556 = vpop.f32.mrb[0].mxu0
    %v6557 = vadd.f32 0.0, %v6556
    %v6558 = vpop.f32.mrb[0].mxu0
    %6559 = vmatprep.mubr.f32.mxu0 0.0
    %6560 = vmatmul.mubr.f32.gmra.mrb[0].mxu0 %v6370
    %v6561 = vpop.f32.mrb[0].mxu0
    %v6562 = vadd.f32 0.0, %v6561
    %v6563 = vpop.f32.mrb[0].mxu0
    %6564 = vmatprep.mubr.f32.mxu0 0.0
    %6565 = vmatmul.mubr.f32.gmra.mrb[0].mxu0 %v6371
    %v6566 = vpop.f32.mrb[0].mxu0
    %v6567 = vadd.f32 0.0, %v6566
    %v6568 = vpop.f32.mrb[0].mxu0
    %6569 = vmatprep.mubr.f32.mxu0 0.0
    %6570 = vmatmul.mubr.f32.gmra.mrb[0].mxu0 %v6372
    %v6571 = vpop.f32.mrb[0].mxu0
    %v6572 = vadd.f32 0.0, %v6571
    %v6573 = vpop.f32.mrb[0].mxu0
    %6574 = vmatprep.mubr.f32.mxu0 0.0
    %6575 = vmatmul.mubr.f32.gmra.mrb[0].mxu0 %v6373
    %v6576 = vpop.f32.mrb[0].mxu0
    %v6577 = vadd.f32 0.0, %v6576
    %v6578 = vpop.f32.mrb[0].mxu0
    %6579 = vmatprep.mubr.f32.mxu0 0.0
    %6580 = vmatmul.mubr.f32.gmra.mrb[0].mxu0 %v6374
    %v6581 = vpop.f32.mrb[0].mxu0
    %v6582 = vadd.f32 0.0, %v6581
    %v6583 = vpop.f32.mrb[0].mxu0
    %6584 = vmatprep.mubr.f32.mxu0 0.0
    %6585 = vmatmul.mubr.f32.gmra.mrb[0].mxu0 %v6375
    %v6586 = vpop.f32.mrb[0].mxu0
    %v6587 = vadd.f32 0.0, %v6586
    %v6588 = vpop.f32.mrb[0].mxu0
    %6589 = vmatprep.mubr.f32.mxu0 0.0
    %6590 = vmatmul.mubr.f32.gmra.mrb[0].mxu0 %v6376
    %v6591 = vpop.f32.mrb[0].mxu0
    %v6592 = vadd.f32 0.0, %v6591
    %v6593 = vpop.f32.mrb[0].mxu0
    %6594 = vmatprep.mubr.f32.mxu0 0.0
    %6595 = vmatmul.mubr.f32.gmra.mrb[0].mxu0 %v6377
    %v6596 = vpop.f32.mrb[0].mxu0
    %v6597 = vadd.f32 0.0, %v6596
    %v6598 = vpop.f32.mrb[0].mxu0
    %6599 = vmatprep.mubr.f32.mxu0 0.0
    %6600 = vmatmul.mubr.f32.gmra.mrb[0].mxu0 %v6378
    %v6601 = vpop.f32.mrb[0].mxu0
    %v6602 = vadd.f32 0.0, %v6601
    %v6603 = vpop.f32.mrb[0].mxu0
    %6604 = vmatprep.mubr.f32.mxu0 0.0
    %6605 = vmatmul.mubr.f32.gmra.mrb[0].mxu0 %v6379
    %v6606 = vpop.f32.mrb[0].mxu0
    %v6607 = vadd.f32 0.0, %v6606
    %v6608 = vpop.f32.mrb[0].mxu0
    %6609 = vmatprep.mubr.f32.mxu0 0.0
    %6610 = vmatmul.mubr.f32.gmra.mrb[0].mxu0 %v6380
    %v6611 = vpop.f32.mrb[0].mxu0
    %v6612 = vadd.f32 0.0, %v6611
    %v6613 = vpop.f32.mrb[0].mxu0
    %6614 = vmatprep.mubr.f32.mxu0 0.0
    %6615 = vmatmul.mubr.f32.gmra.mrb[0].mxu0 %v6381
    %v6616 = vpop.f32.mrb[0].mxu0
    %v6617 = vadd.f32 0.0, %v6616
    %v6618 = vpop.f32.mrb[0].mxu0
    %6619 = vmatprep.mubr.f32.mxu0 0.0
    %6620 = vmatmul.mubr.f32.gmra.mrb[0].mxu0 %v6382
    %v6621 = vpop.f32.mrb[0].mxu0
    %v6622 = vadd.f32 0.0, %v6621
    %v6623 = vpop.f32.mrb[0].mxu0
    %6624 = vmatprep.mubr.f32.mxu0 0.0
    %6625 = vmatmul.mubr.f32.gmra.mrb[0].mxu0 %v6383
    %v6626 = vpop.f32.mrb[0].mxu0
    %v6627 = vadd.f32 0.0, %v6626
    %v6628 = vpop.f32.mrb[0].mxu0
    %6629 = vmatprep.mubr.f32.mxu0 0.0
    %6630 = vmatmul.mubr.f32.gmra.mrb[0].mxu0 %v6384
    %v6631 = vpop.f32.mrb[0].mxu0
    %v6632 = vadd.f32 0.0, %v6631
    %v6633 = vpop.f32.mrb[0].mxu0
    %6634 = vmatprep.mubr.f32.mxu0 0.0
    %6635 = vmatmul.mubr.f32.gmra.mrb[0].mxu0 %v6385
    %v6636 = vpop.f32.mrb[0].mxu0
    %v6637 = vadd.f32 0.0, %v6636
    %v6638 = vpop.f32.mrb[0].mxu0
    %6639 = vmatprep.mubr.f32.mxu0 0.0
    %6640 = vmatmul.mubr.f32.gmra.mrb[0].mxu0 %v6386
    %v6641 = vpop.f32.mrb[0].mxu0
    %v6642 = vadd.f32 0.0, %v6641
    %v6643 = vpop.f32.mrb[0].mxu0
    %6644 = vmatprep.mubr.f32.mxu0 0.0
    %6645 = vmatmul.mubr.f32.gmra.mrb[0].mxu0 %v6387
    %v6646 = vpop.f32.mrb[0].mxu0
    %v6647 = vadd.f32 0.0, %v6646
    %v6648 = vpop.f32.mrb[0].mxu0
    %6649 = vmatprep.mubr.f32.mxu0 0.0
    %6650 = vmatmul.mubr.f32.gmra.mrb[0].mxu0 %v6388
    %v6651 = vpop.f32.mrb[0].mxu0
    %v6652 = vadd.f32 0.0, %v6651
    %v6653 = vpop.f32.mrb[0].mxu0
    %6654 = vmatprep.mubr.f32.mxu0 0.0
    %6655 = vmatmul.mubr.f32.gmra.mrb[0].mxu0 %v6389
    %v6656 = vpop.f32.mrb[0].mxu0
    %v6657 = vadd.f32 0.0, %v6656
    %v6658 = vpop.f32.mrb[0].mxu0
    %6659 = vmatprep.mubr.f32.mxu0 0.0
    %6660 = vmatmul.mubr.f32.gmra.mrb[0].mxu0 %v6390
    %v6661 = vpop.f32.mrb[0].mxu0
    %v6662 = vadd.f32 0.0, %v6661
    %v6663 = vpop.f32.mrb[0].mxu0
    %6664 = vmatprep.mubr.f32.mxu0 0.0
    %6665 = vmatmul.mubr.f32.gmra.mrb[0].mxu0 %v6391
    %v6666 = vpop.f32.mrb[0].mxu0
    %v6667 = vadd.f32 0.0, %v6666
    %v6668 = vpop.f32.mrb[0].mxu0
    %6669 = vmatprep.mubr.f32.mxu0 0.0
    %6670 = vmatmul.mubr.f32.gmra.mrb[0].mxu0 %v6392
    %v6671 = vpop.f32.mrb[0].mxu0
    %v6672 = vadd.f32 0.0, %v6671
    %v6673 = vpop.f32.mrb[0].mxu0
    %6674 = vmatprep.mubr.f32.mxu0 0.0
    %6675 = vmatmul.mubr.f32.gmra.mrb[0].mxu0 %v6393
    %v6676 = vpop.f32.mrb[0].mxu0
    %v6677 = vadd.f32 0.0, %v6676
    %v6678 = vpop.f32.mrb[0].mxu0
    %6679 = vmatprep.mubr.f32.mxu0 0.0
    %6680 = vmatmul.mubr.f32.gmra.mrb[0].mxu0 %v6394
    %v6681 = vpop.f32.mrb[0].mxu0
    %v6682 = vadd.f32 0.0, %v6681
    %v6683 = vpop.f32.mrb[0].mxu0
    %6684 = vmatprep.mubr.f32.mxu0 0.0
    %6685 = vmatmul.mubr.f32.gmra.mrb[0].mxu0 %v6395
    %v6686 = vpop.f32.mrb[0].mxu0
    %v6687 = vadd.f32 0.0, %v6686
    %v6688 = vpop.f32.mrb[0].mxu0
    %6689 = vmatprep.mubr.f32.mxu0 0.0
    %6690 = vmatmul.mubr.f32.gmra.mrb[0].mxu0 %v6396
    %v6691 = vpop.f32.mrb[0].mxu0
    %v6692 = vadd.f32 0.0, %v6691
    %v6693 = vpop.f32.mrb[0].mxu0
    %6694 = vmatprep.mubr.f32.mxu0 0.0
    %6695 = vmatmul.mubr.f32.gmra.mrb[0].mxu0 %v6397
    %v6696 = vpop.f32.mrb[0].mxu0
    %v6697 = vadd.f32 0.0, %v6696
    %v6698 = vpop.f32.mrb[0].mxu0
    %6699 = vmatprep.mubr.f32.mxu0 0.0
    %6700 = vmatmul.mubr.f32.gmra.mrb[0].mxu0 %v6398
    %v6701 = vpop.f32.mrb[0].mxu0
    %v6702 = vadd.f32 0.0, %v6701
    %v6703 = vpop.f32.mrb[0].mxu0
    %6704 = vmatprep.mubr.f32.mxu0 0.0
    %6705 = vmatmul.mubr.f32.gmra.mrb[0].mxu0 %v6399
    %v6706 = vpop.f32.mrb[0].mxu0
    %v6707 = vadd.f32 0.0, %v6706
    %v6708 = vpop.f32.mrb[0].mxu0
    %6709 = vmatprep.mubr.f32.mxu0 0.0
    %6710 = vmatmul.mubr.f32.gmra.mrb[0].mxu0 %v6400
    %v6711 = vpop.f32.mrb[0].mxu0
    %v6712 = vadd.f32 0.0, %v6711
    %v6713 = vpop.f32.mrb[0].mxu0
    %6714 = vmatprep.mubr.f32.mxu0 0.0
    %6715 = vmatmul.mubr.f32.gmra.mrb[0].mxu0 %v6401
    %v6716 = vpop.f32.mrb[0].mxu0
    %v6717 = vadd.f32 0.0, %v6716
    %v6718 = vpop.f32.mrb[0].mxu0
    %6719 = vmatprep.mubr.f32.mxu0 0.0
    %6720 = vmatmul.mubr.f32.gmra.mrb[0].mxu0 %v6402
    %v6721 = vpop.f32.mrb[0].mxu0
    %v6722 = vadd.f32 0.0, %v6721
    %v6723 = vpop.f32.mrb[0].mxu0
    %6724 = vmatprep.mubr.f32.mxu0 0.0
    %6725 = vmatmul.mubr.f32.gmra.mrb[0].mxu0 %v6403
    %v6726 = vpop.f32.mrb[0].mxu0
    %v6727 = vadd.f32 0.0, %v6726
    %v6728 = vpop.f32.mrb[0].mxu0
    %6729 = vmatprep.mubr.f32.mxu0 0.0
    %6730 = vmatmul.mubr.f32.gmra.mrb[0].mxu0 %v6404
    %v6731 = vpop.f32.mrb[0].mxu0
    %v6732 = vadd.f32 0.0, %v6731
    %v6733 = vpop.f32.mrb[0].mxu0
    %6734 = vmatprep.mubr.f32.mxu0 0.0
    %6735 = vmatmul.mubr.f32.gmra.mrb[0].mxu0 %v6405
    %v6736 = vpop.f32.mrb[0].mxu0
    %v6737 = vadd.f32 0.0, %v6736
    %v6738 = vpop.f32.mrb[0].mxu0
    %6739 = vmatprep.mubr.f32.mxu0 0.0
    %6740 = vmatmul.mubr.f32.gmra.mrb[0].mxu0 %v6406
    %v6741 = vpop.f32.mrb[0].mxu0
    %v6742 = vadd.f32 0.0, %v6741
    %v6743 = vpop.f32.mrb[0].mxu0
    %6744 = vmatprep.mubr.f32.mxu0 0.0
    %6745 = vmatmul.mubr.f32.gmra.mrb[0].mxu0 %v6407
    %v6746 = vpop.f32.mrb[0].mxu0
    %v6747 = vadd.f32 0.0, %v6746
    %v6748 = vpop.f32.mrb[0].mxu0
    %6749 = vmatprep.mubr.f32.mxu0 0.0
    %6750 = vmatmul.mubr.f32.gmra.mrb[0].mxu0 %v6408
    %v6751 = vpop.f32.mrb[0].mxu0
    %v6752 = vadd.f32 0.0, %v6751
    %v6753 = vpop.f32.mrb[0].mxu0
    %6754 = vmatprep.mubr.f32.mxu0 0.0
    %6755 = vmatmul.mubr.f32.gmra.mrb[0].mxu0 %v6409
    %v6756 = vpop.f32.mrb[0].mxu0
    %v6757 = vadd.f32 0.0, %v6756
    %v6758 = vpop.f32.mrb[0].mxu0
    %6759 = vmatprep.mubr.f32.mxu0 0.0
    %6760 = vmatmul.mubr.f32.gmra.mrb[0].mxu0 %v6410
    %v6761 = vpop.f32.mrb[0].mxu0
    %v6762 = vadd.f32 0.0, %v6761
    %v6763 = vpop.f32.mrb[0].mxu0
    %6764 = vmatprep.mubr.f32.mxu0 0.0
    %6765 = vmatmul.mubr.f32.gmra.mrb[0].mxu0 %v6411
    %v6766 = vpop.f32.mrb[0].mxu0
    %v6767 = vadd.f32 0.0, %v6766
    %v6768 = vpop.f32.mrb[0].mxu0
    %6769 = vmatprep.mubr.f32.mxu0 0.0
    %6770 = vmatmul.mubr.f32.gmra.mrb[0].mxu0 %v6412
    %v6771 = vpop.f32.mrb[0].mxu0
    %v6772 = vadd.f32 0.0, %v6771
    %v6773 = vpop.f32.mrb[0].mxu0
    %6774 = vmatprep.mubr.f32.mxu0 0.0
    %6775 = vmatmul.mubr.f32.gmra.mrb[0].mxu0 %v6413
    %v6776 = vpop.f32.mrb[0].mxu0
    %v6777 = vadd.f32 0.0, %v6776
    %v6778 = vpop.f32.mrb[0].mxu0
    %6779 = vmatprep.mubr.f32.mxu0 0.0
    %6780 = vmatmul.mubr.f32.gmra.mrb[0].mxu0 %v6414
    %v6781 = vpop.f32.mrb[0].mxu0
    %v6782 = vadd.f32 0.0, %v6781
    %v6783 = vpop.f32.mrb[0].mxu0
    %6784 = vmatprep.mubr.f32.mxu0 0.0
    %6785 = vmatmul.mubr.f32.gmra.mrb[0].mxu0 %v6415
    %v6786 = vpop.f32.mrb[0].mxu0
    %v6787 = vadd.f32 0.0, %v6786
    %v6788 = vpop.f32.mrb[0].mxu0
    %6789 = vmatprep.mubr.f32.mxu0 0.0
    %6790 = vmatmul.mubr.f32.gmra.mrb[0].mxu0 %v6416
    %v6791 = vpop.f32.mrb[0].mxu0
    %v6792 = vadd.f32 0.0, %v6791
    %v6793 = vpop.f32.mrb[0].mxu0
    %6794 = vmatprep.mubr.f32.mxu0 0.0
    %6795 = vmatmul.mubr.f32.gmra.mrb[0].mxu0 %v6417
    %v6796 = vpop.f32.mrb[0].mxu0
    %v6797 = vadd.f32 0.0, %v6796
    %v6798 = vpop.f32.mrb[0].mxu0
    %6799 = vmatprep.mubr.f32.mxu0 0.0
    %6800 = vmatmul.mubr.f32.gmra.mrb[0].mxu0 %v6418
    %v6801 = vpop.f32.mrb[0].mxu0
    %v6802 = vadd.f32 0.0, %v6801
    %v6803 = vpop.f32.mrb[0].mxu0
    %6804 = vmatprep.mubr.f32.mxu0 0.0
    %6805 = vmatmul.mubr.f32.gmra.mrb[0].mxu0 %v6419
    %v6806 = vpop.f32.mrb[0].mxu0
    %v6807 = vadd.f32 0.0, %v6806
    %v6808 = vpop.f32.mrb[0].mxu0
    %6809 = vmatprep.mubr.f32.mxu0 0.0
    %6810 = vmatmul.mubr.f32.gmra.mrb[0].mxu0 %v6420
    %v6811 = vpop.f32.mrb[0].mxu0
    %v6812 = vadd.f32 0.0, %v6811
    %v6813 = vpop.f32.mrb[0].mxu0
    %6814 = vmatprep.mubr.f32.mxu0 0.0
    %6815 = vmatmul.mubr.f32.gmra.mrb[0].mxu0 %v6421
    %v6816 = vpop.f32.mrb[0].mxu0
    %v6817 = vadd.f32 0.0, %v6816
    %v6818 = vpop.f32.mrb[0].mxu0
    %6819 = vmatprep.mubr.f32.mxu0 0.0
    %6820 = vmatmul.mubr.f32.gmra.mrb[0].mxu0 %v6422
    %v6821 = vpop.f32.mrb[0].mxu0
    %v6822 = vadd.f32 0.0, %v6821
    %v6823 = vpop.f32.mrb[0].mxu0
    %6824 = vdwg.mxu0
    %v6825 = vadd.f32 %v6041, %v6507
    %v6826 = vadd.f32 %v6046, %v6512
    %v6827 = vadd.f32 %v6051, %v6517
    %v6828 = vadd.f32 %v6056, %v6522
    %v6829 = vadd.f32 %v6061, %v6527
    %v6830 = vadd.f32 %v6066, %v6532
    %v6831 = vadd.f32 %v6071, %v6537
    %v6832 = vadd.f32 %v6076, %v6542
    %v6833 = vadd.f32 %v6081, %v6547
    %v6834 = vadd.f32 %v6086, %v6552
    %v6835 = vadd.f32 %v6091, %v6557
    %v6836 = vadd.f32 %v6096, %v6562
    %v6837 = vadd.f32 %v6101, %v6567
    %v6838 = vadd.f32 %v6106, %v6572
    %v6839 = vadd.f32 %v6111, %v6577
    %v6840 = vadd.f32 %v6116, %v6582
    %v6841 = vadd.f32 %v6121, %v6587
    %v6842 = vadd.f32 %v6126, %v6592
    %v6843 = vadd.f32 %v6131, %v6597
    %v6844 = vadd.f32 %v6136, %v6602
    %v6845 = vadd.f32 %v6141, %v6607
    %v6846 = vadd.f32 %v6146, %v6612
    %v6847 = vadd.f32 %v6151, %v6617
    %v6848 = vadd.f32 %v6156, %v6622
    %v6849 = vadd.f32 %v6161, %v6627
    %v6850 = vadd.f32 %v6166, %v6632
    %v6851 = vadd.f32 %v6171, %v6637
    %v6852 = vadd.f32 %v6176, %v6642
    %v6853 = vadd.f32 %v6181, %v6647
    %v6854 = vadd.f32 %v6186, %v6652
    %v6855 = vadd.f32 %v6191, %v6657
    %v6856 = vadd.f32 %v6196, %v6662
    %v6857 = vadd.f32 %v6201, %v6667
    %v6858 = vadd.f32 %v6206, %v6672
    %v6859 = vadd.f32 %v6211, %v6677
    %v6860 = vadd.f32 %v6216, %v6682
    %v6861 = vadd.f32 %v6221, %v6687
    %v6862 = vadd.f32 %v6226, %v6692
    %v6863 = vadd.f32 %v6231, %v6697
    %v6864 = vadd.f32 %v6236, %v6702
    %v6865 = vadd.f32 %v6241, %v6707
    %v6866 = vadd.f32 %v6246, %v6712
    %v6867 = vadd.f32 %v6251, %v6717
    %v6868 = vadd.f32 %v6256, %v6722
    %v6869 = vadd.f32 %v6261, %v6727
    %v6870 = vadd.f32 %v6266, %v6732
    %v6871 = vadd.f32 %v6271, %v6737
    %v6872 = vadd.f32 %v6276, %v6742
    %v6873 = vadd.f32 %v6281, %v6747
    %v6874 = vadd.f32 %v6286, %v6752
    %v6875 = vadd.f32 %v6291, %v6757
    %v6876 = vadd.f32 %v6296, %v6762
    %v6877 = vadd.f32 %v6301, %v6767
    %v6878 = vadd.f32 %v6306, %v6772
    %v6879 = vadd.f32 %v6311, %v6777
    %v6880 = vadd.f32 %v6316, %v6782
    %v6881 = vadd.f32 %v6321, %v6787
    %v6882 = vadd.f32 %v6326, %v6792
    %v6883 = vadd.f32 %v6331, %v6797
    %v6884 = vadd.f32 %v6336, %v6802
    %v6885 = vadd.f32 %v6341, %v6807
    %v6886 = vadd.f32 %v6346, %v6812
    %v6887 = vadd.f32 %v6351, %v6817
    %v6888 = vadd.f32 %v6356, %v6822
    %v6889 = vld [vmem:[%s240] sm:$0xff]
    %v6890 = vld [vmem:[%s240 + $0x8] sm:$0xff]
    %v6891 = vld [vmem:[%s240 + $0x18] sm:$0xff]
    %v6892 = vld [vmem:[%s240 + $0x20] sm:$0xff]
    %v6893 = vld [vmem:[%s240 + $0x30] sm:$0xff]
    %v6894 = vld [vmem:[%s240 + $0x38] sm:$0xff]
    %v6895 = vld [vmem:[%s240 + $0x48] sm:$0xff]
    %v6896 = vld [vmem:[%s240 + $0x50] sm:$0xff]
    %v6897 = vld [vmem:[%s240 + $0x60] sm:$0xff]
    %v6898 = vld [vmem:[%s240 + $0x68] sm:$0xff]
    %v6899 = vld [vmem:[%s240 + $0x78] sm:$0xff]
    %v6900 = vld [vmem:[%s240 + $0x80] sm:$0xff]
    %v6901 = vld [vmem:[%s240 + $0x90] sm:$0xff]
    %v6902 = vld [vmem:[%s240 + $0x98] sm:$0xff]
    %v6903 = vld [vmem:[%s240 + $0xa8] sm:$0xff]
    %v6904 = vld [vmem:[%s240 + $0xb0] sm:$0xff]
    %v6905 = vld [vmem:[%s240 + $0xc0] sm:$0xff]
    %v6906 = vld [vmem:[%s240 + $0xc8] sm:$0xff]
    %v6907 = vld [vmem:[%s240 + $0xd8] sm:$0xff]
    %v6908 = vld [vmem:[%s240 + $0xe0] sm:$0xff]
    %v6909 = vld [vmem:[%s240 + $0xf0] sm:$0xff]
    %v6910 = vld [vmem:[%s240 + $0xf8] sm:$0xff]
    %v6911 = vld [vmem:[%s240 + $0x108] sm:$0xff]
    %v6912 = vld [vmem:[%s240 + $0x110] sm:$0xff]
    %v6913 = vld [vmem:[%s240 + $0x120] sm:$0xff]
    %v6914 = vld [vmem:[%s240 + $0x128] sm:$0xff]
    %v6915 = vld [vmem:[%s240 + $0x138] sm:$0xff]
    %v6916 = vld [vmem:[%s240 + $0x140] sm:$0xff]
    %v6917 = vld [vmem:[%s240 + $0x150] sm:$0xff]
    %v6918 = vld [vmem:[%s240 + $0x158] sm:$0xff]
    %v6919 = vld [vmem:[%s240 + $0x168] sm:$0xff]
    %v6920 = vld [vmem:[%s240 + $0x170] sm:$0xff]
    %v6921 = vld [vmem:[%s240 + $0x1b0] sm:$0xff]
    %v6922 = vld [vmem:[%s240 + $0x1b8] sm:$0xff]
    %v6923 = vld [vmem:[%s240 + $0x1c8] sm:$0xff]
    %v6924 = vld [vmem:[%s240 + $0x1d0] sm:$0xff]
    %v6925 = vld [vmem:[%s240 + $0x1e0] sm:$0xff]
    %v6926 = vld [vmem:[%s240 + $0x1e8] sm:$0xff]
    %v6927 = vld [vmem:[%s240 + $0x1f8] sm:$0xff]
    %v6928 = vld [vmem:[%s240 + $0x200] sm:$0xff]
    %v6929 = vld [vmem:[%s240 + $0x210] sm:$0xff]
    %v6930 = vld [vmem:[%s240 + $0x218] sm:$0xff]
    %v6931 = vld [vmem:[%s240 + $0x228] sm:$0xff]
    %v6932 = vld [vmem:[%s240 + $0x230] sm:$0xff]
    %v6933 = vld [vmem:[%s240 + $0x240] sm:$0xff]
    %v6934 = vld [vmem:[%s240 + $0x248] sm:$0xff]
    %v6935 = vld [vmem:[%s240 + $0x258] sm:$0xff]
    %v6936 = vld [vmem:[%s240 + $0x260] sm:$0xff]
    %v6937 = vld [vmem:[%s240 + $0x270] sm:$0xff]
    %v6938 = vld [vmem:[%s240 + $0x278] sm:$0xff]
    %v6939 = vld [vmem:[%s240 + $0x288] sm:$0xff]
    %v6940 = vld [vmem:[%s240 + $0x290] sm:$0xff]
    %v6941 = vld [vmem:[%s240 + $0x2a0] sm:$0xff]
    %v6942 = vld [vmem:[%s240 + $0x2a8] sm:$0xff]
    %v6943 = vld [vmem:[%s240 + $0x2b8] sm:$0xff]
    %v6944 = vld [vmem:[%s240 + $0x2c0] sm:$0xff]
    %v6945 = vld [vmem:[%s240 + $0x2d0] sm:$0xff]
    %v6946 = vld [vmem:[%s240 + $0x2d8] sm:$0xff]
    %v6947 = vld [vmem:[%s240 + $0x2e8] sm:$0xff]
    %v6948 = vld [vmem:[%s240 + $0x2f0] sm:$0xff]
    %v6949 = vld [vmem:[%s240 + $0x300] sm:$0xff]
    %v6950 = vld [vmem:[%s240 + $0x308] sm:$0xff]
    %v6951 = vld [vmem:[%s240 + $0x318] sm:$0xff]
    %v6952 = vld [vmem:[%s240 + $0x320] sm:$0xff]
    %s6953 = scalar_lea.vmem [#allocation8], 384
    %v6954 = vld [vmem:[%s6953] sm:$0xff]
    %v6955 = vld [vmem:[%s6953 + $0x8] sm:$0xff]
    %v6956 = vld [vmem:[%s6953 + $0x10] sm:$0xff]
    %v6957 = vld [vmem:[%s6953 + $0x18] sm:$0xff]
    %v6958 = vld [vmem:[%s6953 + $0x20] sm:$0xff]
    %v6959 = vld [vmem:[%s6953 + $0x28] sm:$0xff]
    %v6960 = vld [vmem:[%s6953 + $0x30] sm:$0xff]
    %v6961 = vld [vmem:[%s6953 + $0x38] sm:$0xff]
    %v6962 = vld [vmem:[%s6953 + $0x40] sm:$0xff]
    %v6963 = vld [vmem:[%s6953 + $0x48] sm:$0xff]
    %v6964 = vld [vmem:[%s6953 + $0x50] sm:$0xff]
    %v6965 = vld [vmem:[%s6953 + $0x58] sm:$0xff]
    %v6966 = vld [vmem:[%s6953 + $0x60] sm:$0xff]
    %v6967 = vld [vmem:[%s6953 + $0x68] sm:$0xff]
    %v6968 = vld [vmem:[%s6953 + $0x70] sm:$0xff]
    %v6969 = vld [vmem:[%s6953 + $0x78] sm:$0xff]
    %6970 = vmatprep.subr.mxu0 0.0
    %6971 = vmatpush1.msra.mxu0 %v6954
    %6972 = vmatprep.subr.mxu0 0.0
    %6973 = vmatpush1.msra.mxu0 %v6955
    %6974 = vmatprep.subr.mxu0 0.0
    %6975 = vmatpush1.msra.mxu0 %v6956
    %6976 = vmatprep.subr.mxu0 0.0
    %6977 = vmatpush1.msra.mxu0 %v6957
    %6978 = vmatprep.subr.mxu0 0.0
    %6979 = vmatpush1.msra.mxu0 %v6958
    %6980 = vmatprep.subr.mxu0 0.0
    %6981 = vmatpush1.msra.mxu0 %v6959
    %6982 = vmatprep.subr.mxu0 0.0
    %6983 = vmatpush1.msra.mxu0 %v6960
    %6984 = vmatprep.subr.mxu0 0.0
    %6985 = vmatpush1.msra.mxu0 %v6961
    %6986 = vmatprep.subr.mxu0 0.0
    %6987 = vmatpush1.msra.mxu0 %v6962
    %6988 = vmatprep.subr.mxu0 0.0
    %6989 = vmatpush1.msra.mxu0 %v6963
    %6990 = vmatprep.subr.mxu0 0.0
    %6991 = vmatpush1.msra.mxu0 %v6964
    %6992 = vmatprep.subr.mxu0 0.0
    %6993 = vmatpush1.msra.mxu0 %v6965
    %6994 = vmatprep.subr.mxu0 0.0
    %6995 = vmatpush1.msra.mxu0 %v6966
    %6996 = vmatprep.subr.mxu0 0.0
    %6997 = vmatpush1.msra.mxu0 %v6967
    %6998 = vmatprep.subr.mxu0 0.0
    %6999 = vmatpush1.msra.mxu0 %v6968
    %7000 = vmatprep.subr.mxu0 0.0
    %7001 = vmatpush1.msra.mxu0 %v6969
    %7002 = vmatprep.subr.mxu0 0.0
    %7003 = vmatpush1.msra.mxu0 0.0
    %7004 = vmatprep.subr.mxu0 0.0
    %7005 = vmatpush1.msra.mxu0 0.0
    %7006 = vmatprep.subr.mxu0 0.0
    %7007 = vmatpush1.msra.mxu0 0.0
    %7008 = vmatprep.subr.mxu0 0.0
    %7009 = vmatpush1.msra.mxu0 0.0
    %7010 = vmatprep.subr.mxu0 0.0
    %7011 = vmatpush1.msra.mxu0 0.0
    %7012 = vmatprep.subr.mxu0 0.0
    %7013 = vmatpush1.msra.mxu0 0.0
    %7014 = vmatprep.subr.mxu0 0.0
    %7015 = vmatpush1.msra.mxu0 0.0
    %7016 = vmatprep.subr.mxu0 0.0
    %7017 = vmatpush1.msra.mxu0 0.0
    %7018 = vmatprep.subr.mxu0 0.0
    %7019 = vmatpush1.msra.mxu0 0.0
    %7020 = vmatprep.subr.mxu0 0.0
    %7021 = vmatpush1.msra.mxu0 0.0
    %7022 = vmatprep.subr.mxu0 0.0
    %7023 = vmatpush1.msra.mxu0 0.0
    %7024 = vmatprep.subr.mxu0 0.0
    %7025 = vmatpush1.msra.mxu0 0.0
    %7026 = vmatprep.subr.mxu0 0.0
    %7027 = vmatpush1.msra.mxu0 0.0
    %7028 = vmatprep.subr.mxu0 0.0
    %7029 = vmatpush1.msra.mxu0 0.0
    %7030 = vmatprep.subr.mxu0 0.0
    %7031 = vmatpush1.msra.mxu0 0.0
    %7032 = vmatprep.subr.mxu0 0.0
    %7033 = vmatpush1.msra.mxu0 0.0
    %7034 = vmatprep.mubr.f32.mxu0 0.0
    %7035 = vmatmul.mubr.f32.gmra.mrb[0].mxu0 %v6889
    %v7036 = vpop.f32.mrb[0].mxu0
    %v7037 = vadd.f32 0.0, %v7036
    %v7038 = vpop.f32.mrb[0].mxu0
    %7039 = vmatprep.mubr.f32.mxu0 0.0
    %7040 = vmatmul.mubr.f32.gmra.mrb[0].mxu0 %v6890
    %v7041 = vpop.f32.mrb[0].mxu0
    %v7042 = vadd.f32 0.0, %v7041
    %v7043 = vpop.f32.mrb[0].mxu0
    %7044 = vmatprep.mubr.f32.mxu0 0.0
    %7045 = vmatmul.mubr.f32.gmra.mrb[0].mxu0 %v6891
    %v7046 = vpop.f32.mrb[0].mxu0
    %v7047 = vadd.f32 0.0, %v7046
    %v7048 = vpop.f32.mrb[0].mxu0
    %7049 = vmatprep.mubr.f32.mxu0 0.0
    %7050 = vmatmul.mubr.f32.gmra.mrb[0].mxu0 %v6892
    %v7051 = vpop.f32.mrb[0].mxu0
    %v7052 = vadd.f32 0.0, %v7051
    %v7053 = vpop.f32.mrb[0].mxu0
    %7054 = vmatprep.mubr.f32.mxu0 0.0
    %7055 = vmatmul.mubr.f32.gmra.mrb[0].mxu0 %v6893
    %v7056 = vpop.f32.mrb[0].mxu0
    %v7057 = vadd.f32 0.0, %v7056
    %v7058 = vpop.f32.mrb[0].mxu0
    %7059 = vmatprep.mubr.f32.mxu0 0.0
    %7060 = vmatmul.mubr.f32.gmra.mrb[0].mxu0 %v6894
    %v7061 = vpop.f32.mrb[0].mxu0
    %v7062 = vadd.f32 0.0, %v7061
    %v7063 = vpop.f32.mrb[0].mxu0
    %7064 = vmatprep.mubr.f32.mxu0 0.0
    %7065 = vmatmul.mubr.f32.gmra.mrb[0].mxu0 %v6895
    %v7066 = vpop.f32.mrb[0].mxu0
    %v7067 = vadd.f32 0.0, %v7066
    %v7068 = vpop.f32.mrb[0].mxu0
    %7069 = vmatprep.mubr.f32.mxu0 0.0
    %7070 = vmatmul.mubr.f32.gmra.mrb[0].mxu0 %v6896
    %v7071 = vpop.f32.mrb[0].mxu0
    %v7072 = vadd.f32 0.0, %v7071
    %v7073 = vpop.f32.mrb[0].mxu0
    %7074 = vmatprep.mubr.f32.mxu0 0.0
    %7075 = vmatmul.mubr.f32.gmra.mrb[0].mxu0 %v6897
    %v7076 = vpop.f32.mrb[0].mxu0
    %v7077 = vadd.f32 0.0, %v7076
    %v7078 = vpop.f32.mrb[0].mxu0
    %7079 = vmatprep.mubr.f32.mxu0 0.0
    %7080 = vmatmul.mubr.f32.gmra.mrb[0].mxu0 %v6898
    %v7081 = vpop.f32.mrb[0].mxu0
    %v7082 = vadd.f32 0.0, %v7081
    %v7083 = vpop.f32.mrb[0].mxu0
    %7084 = vmatprep.mubr.f32.mxu0 0.0
    %7085 = vmatmul.mubr.f32.gmra.mrb[0].mxu0 %v6899
    %v7086 = vpop.f32.mrb[0].mxu0
    %v7087 = vadd.f32 0.0, %v7086
    %v7088 = vpop.f32.mrb[0].mxu0
    %7089 = vmatprep.mubr.f32.mxu0 0.0
    %7090 = vmatmul.mubr.f32.gmra.mrb[0].mxu0 %v6900
    %v7091 = vpop.f32.mrb[0].mxu0
    %v7092 = vadd.f32 0.0, %v7091
    %v7093 = vpop.f32.mrb[0].mxu0
    %7094 = vmatprep.mubr.f32.mxu0 0.0
    %7095 = vmatmul.mubr.f32.gmra.mrb[0].mxu0 %v6901
    %v7096 = vpop.f32.mrb[0].mxu0
    %v7097 = vadd.f32 0.0, %v7096
    %v7098 = vpop.f32.mrb[0].mxu0
    %7099 = vmatprep.mubr.f32.mxu0 0.0
    %7100 = vmatmul.mubr.f32.gmra.mrb[0].mxu0 %v6902
    %v7101 = vpop.f32.mrb[0].mxu0
    %v7102 = vadd.f32 0.0, %v7101
    %v7103 = vpop.f32.mrb[0].mxu0
    %7104 = vmatprep.mubr.f32.mxu0 0.0
    %7105 = vmatmul.mubr.f32.gmra.mrb[0].mxu0 %v6903
    %v7106 = vpop.f32.mrb[0].mxu0
    %v7107 = vadd.f32 0.0, %v7106
    %v7108 = vpop.f32.mrb[0].mxu0
    %7109 = vmatprep.mubr.f32.mxu0 0.0
    %7110 = vmatmul.mubr.f32.gmra.mrb[0].mxu0 %v6904
    %v7111 = vpop.f32.mrb[0].mxu0
    %v7112 = vadd.f32 0.0, %v7111
    %v7113 = vpop.f32.mrb[0].mxu0
    %7114 = vmatprep.mubr.f32.mxu0 0.0
    %7115 = vmatmul.mubr.f32.gmra.mrb[0].mxu0 %v6905
    %v7116 = vpop.f32.mrb[0].mxu0
    %v7117 = vadd.f32 0.0, %v7116
    %v7118 = vpop.f32.mrb[0].mxu0
    %7119 = vmatprep.mubr.f32.mxu0 0.0
    %7120 = vmatmul.mubr.f32.gmra.mrb[0].mxu0 %v6906
    %v7121 = vpop.f32.mrb[0].mxu0
    %v7122 = vadd.f32 0.0, %v7121
    %v7123 = vpop.f32.mrb[0].mxu0
    %7124 = vmatprep.mubr.f32.mxu0 0.0
    %7125 = vmatmul.mubr.f32.gmra.mrb[0].mxu0 %v6907
    %v7126 = vpop.f32.mrb[0].mxu0
    %v7127 = vadd.f32 0.0, %v7126
    %v7128 = vpop.f32.mrb[0].mxu0
    %7129 = vmatprep.mubr.f32.mxu0 0.0
    %7130 = vmatmul.mubr.f32.gmra.mrb[0].mxu0 %v6908
    %v7131 = vpop.f32.mrb[0].mxu0
    %v7132 = vadd.f32 0.0, %v7131
    %v7133 = vpop.f32.mrb[0].mxu0
    %7134 = vmatprep.mubr.f32.mxu0 0.0
    %7135 = vmatmul.mubr.f32.gmra.mrb[0].mxu0 %v6909
    %v7136 = vpop.f32.mrb[0].mxu0
    %v7137 = vadd.f32 0.0, %v7136
    %v7138 = vpop.f32.mrb[0].mxu0
    %7139 = vmatprep.mubr.f32.mxu0 0.0
    %7140 = vmatmul.mubr.f32.gmra.mrb[0].mxu0 %v6910
    %v7141 = vpop.f32.mrb[0].mxu0
    %v7142 = vadd.f32 0.0, %v7141
    %v7143 = vpop.f32.mrb[0].mxu0
    %7144 = vmatprep.mubr.f32.mxu0 0.0
    %7145 = vmatmul.mubr.f32.gmra.mrb[0].mxu0 %v6911
    %v7146 = vpop.f32.mrb[0].mxu0
    %v7147 = vadd.f32 0.0, %v7146
    %v7148 = vpop.f32.mrb[0].mxu0
    %7149 = vmatprep.mubr.f32.mxu0 0.0
    %7150 = vmatmul.mubr.f32.gmra.mrb[0].mxu0 %v6912
    %v7151 = vpop.f32.mrb[0].mxu0
    %v7152 = vadd.f32 0.0, %v7151
    %v7153 = vpop.f32.mrb[0].mxu0
    %7154 = vmatprep.mubr.f32.mxu0 0.0
    %7155 = vmatmul.mubr.f32.gmra.mrb[0].mxu0 %v6913
    %v7156 = vpop.f32.mrb[0].mxu0
    %v7157 = vadd.f32 0.0, %v7156
    %v7158 = vpop.f32.mrb[0].mxu0
    %7159 = vmatprep.mubr.f32.mxu0 0.0
    %7160 = vmatmul.mubr.f32.gmra.mrb[0].mxu0 %v6914
    %v7161 = vpop.f32.mrb[0].mxu0
    %v7162 = vadd.f32 0.0, %v7161
    %v7163 = vpop.f32.mrb[0].mxu0
    %7164 = vmatprep.mubr.f32.mxu0 0.0
    %7165 = vmatmul.mubr.f32.gmra.mrb[0].mxu0 %v6915
    %v7166 = vpop.f32.mrb[0].mxu0
    %v7167 = vadd.f32 0.0, %v7166
    %v7168 = vpop.f32.mrb[0].mxu0
    %7169 = vmatprep.mubr.f32.mxu0 0.0
    %7170 = vmatmul.mubr.f32.gmra.mrb[0].mxu0 %v6916
    %v7171 = vpop.f32.mrb[0].mxu0
    %v7172 = vadd.f32 0.0, %v7171
    %v7173 = vpop.f32.mrb[0].mxu0
    %7174 = vmatprep.mubr.f32.mxu0 0.0
    %7175 = vmatmul.mubr.f32.gmra.mrb[0].mxu0 %v6917
    %v7176 = vpop.f32.mrb[0].mxu0
    %v7177 = vadd.f32 0.0, %v7176
    %v7178 = vpop.f32.mrb[0].mxu0
    %7179 = vmatprep.mubr.f32.mxu0 0.0
    %7180 = vmatmul.mubr.f32.gmra.mrb[0].mxu0 %v6918
    %v7181 = vpop.f32.mrb[0].mxu0
    %v7182 = vadd.f32 0.0, %v7181
    %v7183 = vpop.f32.mrb[0].mxu0
    %7184 = vmatprep.mubr.f32.mxu0 0.0
    %7185 = vmatmul.mubr.f32.gmra.mrb[0].mxu0 %v6919
    %v7186 = vpop.f32.mrb[0].mxu0
    %v7187 = vadd.f32 0.0, %v7186
    %v7188 = vpop.f32.mrb[0].mxu0
    %7189 = vmatprep.mubr.f32.mxu0 0.0
    %7190 = vmatmul.mubr.f32.gmra.mrb[0].mxu0 %v6920
    %v7191 = vpop.f32.mrb[0].mxu0
    %v7192 = vadd.f32 0.0, %v7191
    %v7193 = vpop.f32.mrb[0].mxu0
    %7194 = vmatprep.mubr.f32.mxu0 0.0
    %7195 = vmatmul.mubr.f32.gmra.mrb[0].mxu0 %v6921
    %v7196 = vpop.f32.mrb[0].mxu0
    %v7197 = vadd.f32 0.0, %v7196
    %v7198 = vpop.f32.mrb[0].mxu0
    %7199 = vmatprep.mubr.f32.mxu0 0.0
    %7200 = vmatmul.mubr.f32.gmra.mrb[0].mxu0 %v6922
    %v7201 = vpop.f32.mrb[0].mxu0
    %v7202 = vadd.f32 0.0, %v7201
    %v7203 = vpop.f32.mrb[0].mxu0
    %7204 = vmatprep.mubr.f32.mxu0 0.0
    %7205 = vmatmul.mubr.f32.gmra.mrb[0].mxu0 %v6923
    %v7206 = vpop.f32.mrb[0].mxu0
    %v7207 = vadd.f32 0.0, %v7206
    %v7208 = vpop.f32.mrb[0].mxu0
    %7209 = vmatprep.mubr.f32.mxu0 0.0
    %7210 = vmatmul.mubr.f32.gmra.mrb[0].mxu0 %v6924
    %v7211 = vpop.f32.mrb[0].mxu0
    %v7212 = vadd.f32 0.0, %v7211
    %v7213 = vpop.f32.mrb[0].mxu0
    %7214 = vmatprep.mubr.f32.mxu0 0.0
    %7215 = vmatmul.mubr.f32.gmra.mrb[0].mxu0 %v6925
    %v7216 = vpop.f32.mrb[0].mxu0
    %v7217 = vadd.f32 0.0, %v7216
    %v7218 = vpop.f32.mrb[0].mxu0
    %7219 = vmatprep.mubr.f32.mxu0 0.0
    %7220 = vmatmul.mubr.f32.gmra.mrb[0].mxu0 %v6926
    %v7221 = vpop.f32.mrb[0].mxu0
    %v7222 = vadd.f32 0.0, %v7221
    %v7223 = vpop.f32.mrb[0].mxu0
    %7224 = vmatprep.mubr.f32.mxu0 0.0
    %7225 = vmatmul.mubr.f32.gmra.mrb[0].mxu0 %v6927
    %v7226 = vpop.f32.mrb[0].mxu0
    %v7227 = vadd.f32 0.0, %v7226
    %v7228 = vpop.f32.mrb[0].mxu0
    %7229 = vmatprep.mubr.f32.mxu0 0.0
    %7230 = vmatmul.mubr.f32.gmra.mrb[0].mxu0 %v6928
    %v7231 = vpop.f32.mrb[0].mxu0
    %v7232 = vadd.f32 0.0, %v7231
    %v7233 = vpop.f32.mrb[0].mxu0
    %7234 = vmatprep.mubr.f32.mxu0 0.0
    %7235 = vmatmul.mubr.f32.gmra.mrb[0].mxu0 %v6929
    %v7236 = vpop.f32.mrb[0].mxu0
    %v7237 = vadd.f32 0.0, %v7236
    %v7238 = vpop.f32.mrb[0].mxu0
    %7239 = vmatprep.mubr.f32.mxu0 0.0
    %7240 = vmatmul.mubr.f32.gmra.mrb[0].mxu0 %v6930
    %v7241 = vpop.f32.mrb[0].mxu0
    %v7242 = vadd.f32 0.0, %v7241
    %v7243 = vpop.f32.mrb[0].mxu0
    %7244 = vmatprep.mubr.f32.mxu0 0.0
    %7245 = vmatmul.mubr.f32.gmra.mrb[0].mxu0 %v6931
    %v7246 = vpop.f32.mrb[0].mxu0
    %v7247 = vadd.f32 0.0, %v7246
    %v7248 = vpop.f32.mrb[0].mxu0
    %7249 = vmatprep.mubr.f32.mxu0 0.0
    %7250 = vmatmul.mubr.f32.gmra.mrb[0].mxu0 %v6932
    %v7251 = vpop.f32.mrb[0].mxu0
    %v7252 = vadd.f32 0.0, %v7251
    %v7253 = vpop.f32.mrb[0].mxu0
    %7254 = vmatprep.mubr.f32.mxu0 0.0
    %7255 = vmatmul.mubr.f32.gmra.mrb[0].mxu0 %v6933
    %v7256 = vpop.f32.mrb[0].mxu0
    %v7257 = vadd.f32 0.0, %v7256
    %v7258 = vpop.f32.mrb[0].mxu0
    %7259 = vmatprep.mubr.f32.mxu0 0.0
    %7260 = vmatmul.mubr.f32.gmra.mrb[0].mxu0 %v6934
    %v7261 = vpop.f32.mrb[0].mxu0
    %v7262 = vadd.f32 0.0, %v7261
    %v7263 = vpop.f32.mrb[0].mxu0
    %7264 = vmatprep.mubr.f32.mxu0 0.0
    %7265 = vmatmul.mubr.f32.gmra.mrb[0].mxu0 %v6935
    %v7266 = vpop.f32.mrb[0].mxu0
    %v7267 = vadd.f32 0.0, %v7266
    %v7268 = vpop.f32.mrb[0].mxu0
    %7269 = vmatprep.mubr.f32.mxu0 0.0
    %7270 = vmatmul.mubr.f32.gmra.mrb[0].mxu0 %v6936
    %v7271 = vpop.f32.mrb[0].mxu0
    %v7272 = vadd.f32 0.0, %v7271
    %v7273 = vpop.f32.mrb[0].mxu0
    %7274 = vmatprep.mubr.f32.mxu0 0.0
    %7275 = vmatmul.mubr.f32.gmra.mrb[0].mxu0 %v6937
    %v7276 = vpop.f32.mrb[0].mxu0
    %v7277 = vadd.f32 0.0, %v7276
    %v7278 = vpop.f32.mrb[0].mxu0
    %7279 = vmatprep.mubr.f32.mxu0 0.0
    %7280 = vmatmul.mubr.f32.gmra.mrb[0].mxu0 %v6938
    %v7281 = vpop.f32.mrb[0].mxu0
    %v7282 = vadd.f32 0.0, %v7281
    %v7283 = vpop.f32.mrb[0].mxu0
    %7284 = vmatprep.mubr.f32.mxu0 0.0
    %7285 = vmatmul.mubr.f32.gmra.mrb[0].mxu0 %v6939
    %v7286 = vpop.f32.mrb[0].mxu0
    %v7287 = vadd.f32 0.0, %v7286
    %v7288 = vpop.f32.mrb[0].mxu0
    %7289 = vmatprep.mubr.f32.mxu0 0.0
    %7290 = vmatmul.mubr.f32.gmra.mrb[0].mxu0 %v6940
    %v7291 = vpop.f32.mrb[0].mxu0
    %v7292 = vadd.f32 0.0, %v7291
    %v7293 = vpop.f32.mrb[0].mxu0
    %7294 = vmatprep.mubr.f32.mxu0 0.0
    %7295 = vmatmul.mubr.f32.gmra.mrb[0].mxu0 %v6941
    %v7296 = vpop.f32.mrb[0].mxu0
    %v7297 = vadd.f32 0.0, %v7296
    %v7298 = vpop.f32.mrb[0].mxu0
    %7299 = vmatprep.mubr.f32.mxu0 0.0
    %7300 = vmatmul.mubr.f32.gmra.mrb[0].mxu0 %v6942
    %v7301 = vpop.f32.mrb[0].mxu0
    %v7302 = vadd.f32 0.0, %v7301
    %v7303 = vpop.f32.mrb[0].mxu0
    %7304 = vmatprep.mubr.f32.mxu0 0.0
    %7305 = vmatmul.mubr.f32.gmra.mrb[0].mxu0 %v6943
    %v7306 = vpop.f32.mrb[0].mxu0
    %v7307 = vadd.f32 0.0, %v7306
    %v7308 = vpop.f32.mrb[0].mxu0
    %7309 = vmatprep.mubr.f32.mxu0 0.0
    %7310 = vmatmul.mubr.f32.gmra.mrb[0].mxu0 %v6944
    %v7311 = vpop.f32.mrb[0].mxu0
    %v7312 = vadd.f32 0.0, %v7311
    %v7313 = vpop.f32.mrb[0].mxu0
    %7314 = vmatprep.mubr.f32.mxu0 0.0
    %7315 = vmatmul.mubr.f32.gmra.mrb[0].mxu0 %v6945
    %v7316 = vpop.f32.mrb[0].mxu0
    %v7317 = vadd.f32 0.0, %v7316
    %v7318 = vpop.f32.mrb[0].mxu0
    %7319 = vmatprep.mubr.f32.mxu0 0.0
    %7320 = vmatmul.mubr.f32.gmra.mrb[0].mxu0 %v6946
    %v7321 = vpop.f32.mrb[0].mxu0
    %v7322 = vadd.f32 0.0, %v7321
    %v7323 = vpop.f32.mrb[0].mxu0
    %7324 = vmatprep.mubr.f32.mxu0 0.0
    %7325 = vmatmul.mubr.f32.gmra.mrb[0].mxu0 %v6947
    %v7326 = vpop.f32.mrb[0].mxu0
    %v7327 = vadd.f32 0.0, %v7326
    %v7328 = vpop.f32.mrb[0].mxu0
    %7329 = vmatprep.mubr.f32.mxu0 0.0
    %7330 = vmatmul.mubr.f32.gmra.mrb[0].mxu0 %v6948
    %v7331 = vpop.f32.mrb[0].mxu0
    %v7332 = vadd.f32 0.0, %v7331
    %v7333 = vpop.f32.mrb[0].mxu0
    %7334 = vmatprep.mubr.f32.mxu0 0.0
    %7335 = vmatmul.mubr.f32.gmra.mrb[0].mxu0 %v6949
    %v7336 = vpop.f32.mrb[0].mxu0
    %v7337 = vadd.f32 0.0, %v7336
    %v7338 = vpop.f32.mrb[0].mxu0
    %7339 = vmatprep.mubr.f32.mxu0 0.0
    %7340 = vmatmul.mubr.f32.gmra.mrb[0].mxu0 %v6950
    %v7341 = vpop.f32.mrb[0].mxu0
    %v7342 = vadd.f32 0.0, %v7341
    %v7343 = vpop.f32.mrb[0].mxu0
    %7344 = vmatprep.mubr.f32.mxu0 0.0
    %7345 = vmatmul.mubr.f32.gmra.mrb[0].mxu0 %v6951
    %v7346 = vpop.f32.mrb[0].mxu0
    %v7347 = vadd.f32 0.0, %v7346
    %v7348 = vpop.f32.mrb[0].mxu0
    %7349 = vmatprep.mubr.f32.mxu0 0.0
    %7350 = vmatmul.mubr.f32.gmra.mrb[0].mxu0 %v6952
    %v7351 = vpop.f32.mrb[0].mxu0
    %v7352 = vadd.f32 0.0, %v7351
    %v7353 = vpop.f32.mrb[0].mxu0
    %7354 = vdwg.mxu0
    %v7355 = vadd.f32 %v6825, %v7037
    %v7356 = vadd.f32 %v6826, %v7042
    %v7357 = vadd.f32 %v6827, %v7047
    %v7358 = vadd.f32 %v6828, %v7052
    %v7359 = vadd.f32 %v6829, %v7057
    %v7360 = vadd.f32 %v6830, %v7062
    %v7361 = vadd.f32 %v6831, %v7067
    %v7362 = vadd.f32 %v6832, %v7072
    %v7363 = vadd.f32 %v6833, %v7077
    %v7364 = vadd.f32 %v6834, %v7082
    %v7365 = vadd.f32 %v6835, %v7087
    %v7366 = vadd.f32 %v6836, %v7092
    %v7367 = vadd.f32 %v6837, %v7097
    %v7368 = vadd.f32 %v6838, %v7102
    %v7369 = vadd.f32 %v6839, %v7107
    %v7370 = vadd.f32 %v6840, %v7112
    %v7371 = vadd.f32 %v6841, %v7117
    %v7372 = vadd.f32 %v6842, %v7122
    %v7373 = vadd.f32 %v6843, %v7127
    %v7374 = vadd.f32 %v6844, %v7132
    %v7375 = vadd.f32 %v6845, %v7137
    %v7376 = vadd.f32 %v6846, %v7142
    %v7377 = vadd.f32 %v6847, %v7147
    %v7378 = vadd.f32 %v6848, %v7152
    %v7379 = vadd.f32 %v6849, %v7157
    %v7380 = vadd.f32 %v6850, %v7162
    %v7381 = vadd.f32 %v6851, %v7167
    %v7382 = vadd.f32 %v6852, %v7172
    %v7383 = vadd.f32 %v6853, %v7177
    %v7384 = vadd.f32 %v6854, %v7182
    %v7385 = vadd.f32 %v6855, %v7187
    %v7386 = vadd.f32 %v6856, %v7192
    %v7387 = vadd.f32 %v6857, %v7197
    %v7388 = vadd.f32 %v6858, %v7202
    %v7389 = vadd.f32 %v6859, %v7207
    %v7390 = vadd.f32 %v6860, %v7212
    %v7391 = vadd.f32 %v6861, %v7217
    %v7392 = vadd.f32 %v6862, %v7222
    %v7393 = vadd.f32 %v6863, %v7227
    %v7394 = vadd.f32 %v6864, %v7232
    %v7395 = vadd.f32 %v6865, %v7237
    %v7396 = vadd.f32 %v6866, %v7242
    %v7397 = vadd.f32 %v6867, %v7247
    %v7398 = vadd.f32 %v6868, %v7252
    %v7399 = vadd.f32 %v6869, %v7257
    %v7400 = vadd.f32 %v6870, %v7262
    %v7401 = vadd.f32 %v6871, %v7267
    %v7402 = vadd.f32 %v6872, %v7272
    %v7403 = vadd.f32 %v6873, %v7277
    %v7404 = vadd.f32 %v6874, %v7282
    %v7405 = vadd.f32 %v6875, %v7287
    %v7406 = vadd.f32 %v6876, %v7292
    %v7407 = vadd.f32 %v6877, %v7297
    %v7408 = vadd.f32 %v6878, %v7302
    %v7409 = vadd.f32 %v6879, %v7307
    %v7410 = vadd.f32 %v6880, %v7312
    %v7411 = vadd.f32 %v6881, %v7317
    %v7412 = vadd.f32 %v6882, %v7322
    %v7413 = vadd.f32 %v6883, %v7327
    %v7414 = vadd.f32 %v6884, %v7332
    %v7415 = vadd.f32 %v6885, %v7337
    %v7416 = vadd.f32 %v6886, %v7342
    %v7417 = vadd.f32 %v6887, %v7347
    %v7418 = vadd.f32 %v6888, %v7352
    %v7419 = vld [vmem:[%s240 + $0x1] sm:$0xff]
    %v7420 = vld [vmem:[%s240 + $0x9] sm:$0xff]
    %v7421 = vld [vmem:[%s240 + $0x19] sm:$0xff]
    %v7422 = vld [vmem:[%s240 + $0x21] sm:$0xff]
    %v7423 = vld [vmem:[%s240 + $0x31] sm:$0xff]
    %v7424 = vld [vmem:[%s240 + $0x39] sm:$0xff]
    %v7425 = vld [vmem:[%s240 + $0x49] sm:$0xff]
    %v7426 = vld [vmem:[%s240 + $0x51] sm:$0xff]
    %v7427 = vld [vmem:[%s240 + $0x61] sm:$0xff]
    %v7428 = vld [vmem:[%s240 + $0x69] sm:$0xff]
    %v7429 = vld [vmem:[%s240 + $0x79] sm:$0xff]
    %v7430 = vld [vmem:[%s240 + $0x81] sm:$0xff]
    %v7431 = vld [vmem:[%s240 + $0x91] sm:$0xff]
    %v7432 = vld [vmem:[%s240 + $0x99] sm:$0xff]
    %v7433 = vld [vmem:[%s240 + $0xa9] sm:$0xff]
    %v7434 = vld [vmem:[%s240 + $0xb1] sm:$0xff]
    %v7435 = vld [vmem:[%s240 + $0xc1] sm:$0xff]
    %v7436 = vld [vmem:[%s240 + $0xc9] sm:$0xff]
    %v7437 = vld [vmem:[%s240 + $0xd9] sm:$0xff]
    %v7438 = vld [vmem:[%s240 + $0xe1] sm:$0xff]
    %v7439 = vld [vmem:[%s240 + $0xf1] sm:$0xff]
    %v7440 = vld [vmem:[%s240 + $0xf9] sm:$0xff]
    %v7441 = vld [vmem:[%s240 + $0x109] sm:$0xff]
    %v7442 = vld [vmem:[%s240 + $0x111] sm:$0xff]
    %v7443 = vld [vmem:[%s240 + $0x121] sm:$0xff]
    %v7444 = vld [vmem:[%s240 + $0x129] sm:$0xff]
    %v7445 = vld [vmem:[%s240 + $0x139] sm:$0xff]
    %v7446 = vld [vmem:[%s240 + $0x141] sm:$0xff]
    %v7447 = vld [vmem:[%s240 + $0x151] sm:$0xff]
    %v7448 = vld [vmem:[%s240 + $0x159] sm:$0xff]
    %v7449 = vld [vmem:[%s240 + $0x169] sm:$0xff]
    %v7450 = vld [vmem:[%s240 + $0x171] sm:$0xff]
    %v7451 = vld [vmem:[%s240 + $0x1b1] sm:$0xff]
    %v7452 = vld [vmem:[%s240 + $0x1b9] sm:$0xff]
    %v7453 = vld [vmem:[%s240 + $0x1c9] sm:$0xff]
    %v7454 = vld [vmem:[%s240 + $0x1d1] sm:$0xff]
    %v7455 = vld [vmem:[%s240 + $0x1e1] sm:$0xff]
    %v7456 = vld [vmem:[%s240 + $0x1e9] sm:$0xff]
    %v7457 = vld [vmem:[%s240 + $0x1f9] sm:$0xff]
    %v7458 = vld [vmem:[%s240 + $0x201] sm:$0xff]
    %v7459 = vld [vmem:[%s240 + $0x211] sm:$0xff]
    %v7460 = vld [vmem:[%s240 + $0x219] sm:$0xff]
    %v7461 = vld [vmem:[%s240 + $0x229] sm:$0xff]
    %v7462 = vld [vmem:[%s240 + $0x231] sm:$0xff]
    %v7463 = vld [vmem:[%s240 + $0x241] sm:$0xff]
    %v7464 = vld [vmem:[%s240 + $0x249] sm:$0xff]
    %v7465 = vld [vmem:[%s240 + $0x259] sm:$0xff]
    %v7466 = vld [vmem:[%s240 + $0x261] sm:$0xff]
    %v7467 = vld [vmem:[%s240 + $0x271] sm:$0xff]
    %v7468 = vld [vmem:[%s240 + $0x279] sm:$0xff]
    %v7469 = vld [vmem:[%s240 + $0x289] sm:$0xff]
    %v7470 = vld [vmem:[%s240 + $0x291] sm:$0xff]
    %v7471 = vld [vmem:[%s240 + $0x2a1] sm:$0xff]
    %v7472 = vld [vmem:[%s240 + $0x2a9] sm:$0xff]
    %v7473 = vld [vmem:[%s240 + $0x2b9] sm:$0xff]
    %v7474 = vld [vmem:[%s240 + $0x2c1] sm:$0xff]
    %v7475 = vld [vmem:[%s240 + $0x2d1] sm:$0xff]
    %v7476 = vld [vmem:[%s240 + $0x2d9] sm:$0xff]
    %v7477 = vld [vmem:[%s240 + $0x2e9] sm:$0xff]
    %v7478 = vld [vmem:[%s240 + $0x2f1] sm:$0xff]
    %v7479 = vld [vmem:[%s240 + $0x301] sm:$0xff]
    %v7480 = vld [vmem:[%s240 + $0x309] sm:$0xff]
    %v7481 = vld [vmem:[%s240 + $0x319] sm:$0xff]
    %v7482 = vld [vmem:[%s240 + $0x321] sm:$0xff]
    %s7483 = scalar_lea.vmem [#allocation8], 512
    %v7484 = vld [vmem:[%s7483] sm:$0xff]
    %v7485 = vld [vmem:[%s7483 + $0x8] sm:$0xff]
    %v7486 = vld [vmem:[%s7483 + $0x10] sm:$0xff]
    %v7487 = vld [vmem:[%s7483 + $0x18] sm:$0xff]
    %v7488 = vld [vmem:[%s7483 + $0x20] sm:$0xff]
    %v7489 = vld [vmem:[%s7483 + $0x28] sm:$0xff]
    %v7490 = vld [vmem:[%s7483 + $0x30] sm:$0xff]
    %v7491 = vld [vmem:[%s7483 + $0x38] sm:$0xff]
    %v7492 = vld [vmem:[%s7483 + $0x40] sm:$0xff]
    %v7493 = vld [vmem:[%s7483 + $0x48] sm:$0xff]
    %v7494 = vld [vmem:[%s7483 + $0x50] sm:$0xff]
    %v7495 = vld [vmem:[%s7483 + $0x58] sm:$0xff]
    %v7496 = vld [vmem:[%s7483 + $0x60] sm:$0xff]
    %v7497 = vld [vmem:[%s7483 + $0x68] sm:$0xff]
    %v7498 = vld [vmem:[%s7483 + $0x70] sm:$0xff]
    %v7499 = vld [vmem:[%s7483 + $0x78] sm:$0xff]
    %7500 = vmatprep.subr.mxu0 0.0
    %7501 = vmatpush1.msra.mxu0 %v7484
    %7502 = vmatprep.subr.mxu0 0.0
    %7503 = vmatpush1.msra.mxu0 %v7485
    %7504 = vmatprep.subr.mxu0 0.0
    %7505 = vmatpush1.msra.mxu0 %v7486
    %7506 = vmatprep.subr.mxu0 0.0
    %7507 = vmatpush1.msra.mxu0 %v7487
    %7508 = vmatprep.subr.mxu0 0.0
    %7509 = vmatpush1.msra.mxu0 %v7488
    %7510 = vmatprep.subr.mxu0 0.0
    %7511 = vmatpush1.msra.mxu0 %v7489
    %7512 = vmatprep.subr.mxu0 0.0
    %7513 = vmatpush1.msra.mxu0 %v7490
    %7514 = vmatprep.subr.mxu0 0.0
    %7515 = vmatpush1.msra.mxu0 %v7491
    %7516 = vmatprep.subr.mxu0 0.0
    %7517 = vmatpush1.msra.mxu0 %v7492
    %7518 = vmatprep.subr.mxu0 0.0
    %7519 = vmatpush1.msra.mxu0 %v7493
    %7520 = vmatprep.subr.mxu0 0.0
    %7521 = vmatpush1.msra.mxu0 %v7494
    %7522 = vmatprep.subr.mxu0 0.0
    %7523 = vmatpush1.msra.mxu0 %v7495
    %7524 = vmatprep.subr.mxu0 0.0
    %7525 = vmatpush1.msra.mxu0 %v7496
    %7526 = vmatprep.subr.mxu0 0.0
    %7527 = vmatpush1.msra.mxu0 %v7497
    %7528 = vmatprep.subr.mxu0 0.0
    %7529 = vmatpush1.msra.mxu0 %v7498
    %7530 = vmatprep.subr.mxu0 0.0
    %7531 = vmatpush1.msra.mxu0 %v7499
    %7532 = vmatprep.subr.mxu0 0.0
    %7533 = vmatpush1.msra.mxu0 0.0
    %7534 = vmatprep.subr.mxu0 0.0
    %7535 = vmatpush1.msra.mxu0 0.0
    %7536 = vmatprep.subr.mxu0 0.0
    %7537 = vmatpush1.msra.mxu0 0.0
    %7538 = vmatprep.subr.mxu0 0.0
    %7539 = vmatpush1.msra.mxu0 0.0
    %7540 = vmatprep.subr.mxu0 0.0
    %7541 = vmatpush1.msra.mxu0 0.0
    %7542 = vmatprep.subr.mxu0 0.0
    %7543 = vmatpush1.msra.mxu0 0.0
    %7544 = vmatprep.subr.mxu0 0.0
    %7545 = vmatpush1.msra.mxu0 0.0
    %7546 = vmatprep.subr.mxu0 0.0
    %7547 = vmatpush1.msra.mxu0 0.0
    %7548 = vmatprep.subr.mxu0 0.0
    %7549 = vmatpush1.msra.mxu0 0.0
    %7550 = vmatprep.subr.mxu0 0.0
    %7551 = vmatpush1.msra.mxu0 0.0
    %7552 = vmatprep.subr.mxu0 0.0
    %7553 = vmatpush1.msra.mxu0 0.0
    %7554 = vmatprep.subr.mxu0 0.0
    %7555 = vmatpush1.msra.mxu0 0.0
    %7556 = vmatprep.subr.mxu0 0.0
    %7557 = vmatpush1.msra.mxu0 0.0
    %7558 = vmatprep.subr.mxu0 0.0
    %7559 = vmatpush1.msra.mxu0 0.0
    %7560 = vmatprep.subr.mxu0 0.0
    %7561 = vmatpush1.msra.mxu0 0.0
    %7562 = vmatprep.subr.mxu0 0.0
    %7563 = vmatpush1.msra.mxu0 0.0
    %7564 = vmatprep.mubr.f32.mxu0 0.0
    %7565 = vmatmul.mubr.f32.gmra.mrb[0].mxu0 %v7419
    %v7566 = vpop.f32.mrb[0].mxu0
    %v7567 = vadd.f32 0.0, %v7566
    %v7568 = vpop.f32.mrb[0].mxu0
    %7569 = vmatprep.mubr.f32.mxu0 0.0
    %7570 = vmatmul.mubr.f32.gmra.mrb[0].mxu0 %v7420
    %v7571 = vpop.f32.mrb[0].mxu0
    %v7572 = vadd.f32 0.0, %v7571
    %v7573 = vpop.f32.mrb[0].mxu0
    %7574 = vmatprep.mubr.f32.mxu0 0.0
    %7575 = vmatmul.mubr.f32.gmra.mrb[0].mxu0 %v7421
    %v7576 = vpop.f32.mrb[0].mxu0
    %v7577 = vadd.f32 0.0, %v7576
    %v7578 = vpop.f32.mrb[0].mxu0
    %7579 = vmatprep.mubr.f32.mxu0 0.0
    %7580 = vmatmul.mubr.f32.gmra.mrb[0].mxu0 %v7422
    %v7581 = vpop.f32.mrb[0].mxu0
    %v7582 = vadd.f32 0.0, %v7581
    %v7583 = vpop.f32.mrb[0].mxu0
    %7584 = vmatprep.mubr.f32.mxu0 0.0
    %7585 = vmatmul.mubr.f32.gmra.mrb[0].mxu0 %v7423
    %v7586 = vpop.f32.mrb[0].mxu0
    %v7587 = vadd.f32 0.0, %v7586
    %v7588 = vpop.f32.mrb[0].mxu0
    %7589 = vmatprep.mubr.f32.mxu0 0.0
    %7590 = vmatmul.mubr.f32.gmra.mrb[0].mxu0 %v7424
    %v7591 = vpop.f32.mrb[0].mxu0
    %v7592 = vadd.f32 0.0, %v7591
    %v7593 = vpop.f32.mrb[0].mxu0
    %7594 = vmatprep.mubr.f32.mxu0 0.0
    %7595 = vmatmul.mubr.f32.gmra.mrb[0].mxu0 %v7425
    %v7596 = vpop.f32.mrb[0].mxu0
    %v7597 = vadd.f32 0.0, %v7596
    %v7598 = vpop.f32.mrb[0].mxu0
    %7599 = vmatprep.mubr.f32.mxu0 0.0
    %7600 = vmatmul.mubr.f32.gmra.mrb[0].mxu0 %v7426
    %v7601 = vpop.f32.mrb[0].mxu0
    %v7602 = vadd.f32 0.0, %v7601
    %v7603 = vpop.f32.mrb[0].mxu0
    %7604 = vmatprep.mubr.f32.mxu0 0.0
    %7605 = vmatmul.mubr.f32.gmra.mrb[0].mxu0 %v7427
    %v7606 = vpop.f32.mrb[0].mxu0
    %v7607 = vadd.f32 0.0, %v7606
    %v7608 = vpop.f32.mrb[0].mxu0
    %7609 = vmatprep.mubr.f32.mxu0 0.0
    %7610 = vmatmul.mubr.f32.gmra.mrb[0].mxu0 %v7428
    %v7611 = vpop.f32.mrb[0].mxu0
    %v7612 = vadd.f32 0.0, %v7611
    %v7613 = vpop.f32.mrb[0].mxu0
    %7614 = vmatprep.mubr.f32.mxu0 0.0
    %7615 = vmatmul.mubr.f32.gmra.mrb[0].mxu0 %v7429
    %v7616 = vpop.f32.mrb[0].mxu0
    %v7617 = vadd.f32 0.0, %v7616
    %v7618 = vpop.f32.mrb[0].mxu0
    %7619 = vmatprep.mubr.f32.mxu0 0.0
    %7620 = vmatmul.mubr.f32.gmra.mrb[0].mxu0 %v7430
    %v7621 = vpop.f32.mrb[0].mxu0
    %v7622 = vadd.f32 0.0, %v7621
    %v7623 = vpop.f32.mrb[0].mxu0
    %7624 = vmatprep.mubr.f32.mxu0 0.0
    %7625 = vmatmul.mubr.f32.gmra.mrb[0].mxu0 %v7431
    %v7626 = vpop.f32.mrb[0].mxu0
    %v7627 = vadd.f32 0.0, %v7626
    %v7628 = vpop.f32.mrb[0].mxu0
    %7629 = vmatprep.mubr.f32.mxu0 0.0
    %7630 = vmatmul.mubr.f32.gmra.mrb[0].mxu0 %v7432
    %v7631 = vpop.f32.mrb[0].mxu0
    %v7632 = vadd.f32 0.0, %v7631
    %v7633 = vpop.f32.mrb[0].mxu0
    %7634 = vmatprep.mubr.f32.mxu0 0.0
    %7635 = vmatmul.mubr.f32.gmra.mrb[0].mxu0 %v7433
    %v7636 = vpop.f32.mrb[0].mxu0
    %v7637 = vadd.f32 0.0, %v7636
    %v7638 = vpop.f32.mrb[0].mxu0
    %7639 = vmatprep.mubr.f32.mxu0 0.0
    %7640 = vmatmul.mubr.f32.gmra.mrb[0].mxu0 %v7434
    %v7641 = vpop.f32.mrb[0].mxu0
    %v7642 = vadd.f32 0.0, %v7641
    %v7643 = vpop.f32.mrb[0].mxu0
    %7644 = vmatprep.mubr.f32.mxu0 0.0
    %7645 = vmatmul.mubr.f32.gmra.mrb[0].mxu0 %v7435
    %v7646 = vpop.f32.mrb[0].mxu0
    %v7647 = vadd.f32 0.0, %v7646
    %v7648 = vpop.f32.mrb[0].mxu0
    %7649 = vmatprep.mubr.f32.mxu0 0.0
    %7650 = vmatmul.mubr.f32.gmra.mrb[0].mxu0 %v7436
    %v7651 = vpop.f32.mrb[0].mxu0
    %v7652 = vadd.f32 0.0, %v7651
    %v7653 = vpop.f32.mrb[0].mxu0
    %7654 = vmatprep.mubr.f32.mxu0 0.0
    %7655 = vmatmul.mubr.f32.gmra.mrb[0].mxu0 %v7437
    %v7656 = vpop.f32.mrb[0].mxu0
    %v7657 = vadd.f32 0.0, %v7656
    %v7658 = vpop.f32.mrb[0].mxu0
    %7659 = vmatprep.mubr.f32.mxu0 0.0
    %7660 = vmatmul.mubr.f32.gmra.mrb[0].mxu0 %v7438
    %v7661 = vpop.f32.mrb[0].mxu0
    %v7662 = vadd.f32 0.0, %v7661
    %v7663 = vpop.f32.mrb[0].mxu0
    %7664 = vmatprep.mubr.f32.mxu0 0.0
    %7665 = vmatmul.mubr.f32.gmra.mrb[0].mxu0 %v7439
    %v7666 = vpop.f32.mrb[0].mxu0
    %v7667 = vadd.f32 0.0, %v7666
    %v7668 = vpop.f32.mrb[0].mxu0
    %7669 = vmatprep.mubr.f32.mxu0 0.0
    %7670 = vmatmul.mubr.f32.gmra.mrb[0].mxu0 %v7440
    %v7671 = vpop.f32.mrb[0].mxu0
    %v7672 = vadd.f32 0.0, %v7671
    %v7673 = vpop.f32.mrb[0].mxu0
    %7674 = vmatprep.mubr.f32.mxu0 0.0
    %7675 = vmatmul.mubr.f32.gmra.mrb[0].mxu0 %v7441
    %v7676 = vpop.f32.mrb[0].mxu0
    %v7677 = vadd.f32 0.0, %v7676
    %v7678 = vpop.f32.mrb[0].mxu0
    %7679 = vmatprep.mubr.f32.mxu0 0.0
    %7680 = vmatmul.mubr.f32.gmra.mrb[0].mxu0 %v7442
    %v7681 = vpop.f32.mrb[0].mxu0
    %v7682 = vadd.f32 0.0, %v7681
    %v7683 = vpop.f32.mrb[0].mxu0
    %7684 = vmatprep.mubr.f32.mxu0 0.0
    %7685 = vmatmul.mubr.f32.gmra.mrb[0].mxu0 %v7443
    %v7686 = vpop.f32.mrb[0].mxu0
    %v7687 = vadd.f32 0.0, %v7686
    %v7688 = vpop.f32.mrb[0].mxu0
    %7689 = vmatprep.mubr.f32.mxu0 0.0
    %7690 = vmatmul.mubr.f32.gmra.mrb[0].mxu0 %v7444
    %v7691 = vpop.f32.mrb[0].mxu0
    %v7692 = vadd.f32 0.0, %v7691
    %v7693 = vpop.f32.mrb[0].mxu0
    %7694 = vmatprep.mubr.f32.mxu0 0.0
    %7695 = vmatmul.mubr.f32.gmra.mrb[0].mxu0 %v7445
    %v7696 = vpop.f32.mrb[0].mxu0
    %v7697 = vadd.f32 0.0, %v7696
    %v7698 = vpop.f32.mrb[0].mxu0
    %7699 = vmatprep.mubr.f32.mxu0 0.0
    %7700 = vmatmul.mubr.f32.gmra.mrb[0].mxu0 %v7446
    %v7701 = vpop.f32.mrb[0].mxu0
    %v7702 = vadd.f32 0.0, %v7701
    %v7703 = vpop.f32.mrb[0].mxu0
    %7704 = vmatprep.mubr.f32.mxu0 0.0
    %7705 = vmatmul.mubr.f32.gmra.mrb[0].mxu0 %v7447
    %v7706 = vpop.f32.mrb[0].mxu0
    %v7707 = vadd.f32 0.0, %v7706
    %v7708 = vpop.f32.mrb[0].mxu0
    %7709 = vmatprep.mubr.f32.mxu0 0.0
    %7710 = vmatmul.mubr.f32.gmra.mrb[0].mxu0 %v7448
    %v7711 = vpop.f32.mrb[0].mxu0
    %v7712 = vadd.f32 0.0, %v7711
    %v7713 = vpop.f32.mrb[0].mxu0
    %7714 = vmatprep.mubr.f32.mxu0 0.0
    %7715 = vmatmul.mubr.f32.gmra.mrb[0].mxu0 %v7449
    %v7716 = vpop.f32.mrb[0].mxu0
    %v7717 = vadd.f32 0.0, %v7716
    %v7718 = vpop.f32.mrb[0].mxu0
    %7719 = vmatprep.mubr.f32.mxu0 0.0
    %7720 = vmatmul.mubr.f32.gmra.mrb[0].mxu0 %v7450
    %v7721 = vpop.f32.mrb[0].mxu0
    %v7722 = vadd.f32 0.0, %v7721
    %v7723 = vpop.f32.mrb[0].mxu0
    %7724 = vmatprep.mubr.f32.mxu0 0.0
    %7725 = vmatmul.mubr.f32.gmra.mrb[0].mxu0 %v7451
    %v7726 = vpop.f32.mrb[0].mxu0
    %v7727 = vadd.f32 0.0, %v7726
    %v7728 = vpop.f32.mrb[0].mxu0
    %7729 = vmatprep.mubr.f32.mxu0 0.0
    %7730 = vmatmul.mubr.f32.gmra.mrb[0].mxu0 %v7452
    %v7731 = vpop.f32.mrb[0].mxu0
    %v7732 = vadd.f32 0.0, %v7731
    %v7733 = vpop.f32.mrb[0].mxu0
    %7734 = vmatprep.mubr.f32.mxu0 0.0
    %7735 = vmatmul.mubr.f32.gmra.mrb[0].mxu0 %v7453
    %v7736 = vpop.f32.mrb[0].mxu0
    %v7737 = vadd.f32 0.0, %v7736
    %v7738 = vpop.f32.mrb[0].mxu0
    %7739 = vmatprep.mubr.f32.mxu0 0.0
    %7740 = vmatmul.mubr.f32.gmra.mrb[0].mxu0 %v7454
    %v7741 = vpop.f32.mrb[0].mxu0
    %v7742 = vadd.f32 0.0, %v7741
    %v7743 = vpop.f32.mrb[0].mxu0
    %7744 = vmatprep.mubr.f32.mxu0 0.0
    %7745 = vmatmul.mubr.f32.gmra.mrb[0].mxu0 %v7455
    %v7746 = vpop.f32.mrb[0].mxu0
    %v7747 = vadd.f32 0.0, %v7746
    %v7748 = vpop.f32.mrb[0].mxu0
    %7749 = vmatprep.mubr.f32.mxu0 0.0
    %7750 = vmatmul.mubr.f32.gmra.mrb[0].mxu0 %v7456
    %v7751 = vpop.f32.mrb[0].mxu0
    %v7752 = vadd.f32 0.0, %v7751
    %v7753 = vpop.f32.mrb[0].mxu0
    %7754 = vmatprep.mubr.f32.mxu0 0.0
    %7755 = vmatmul.mubr.f32.gmra.mrb[0].mxu0 %v7457
    %v7756 = vpop.f32.mrb[0].mxu0
    %v7757 = vadd.f32 0.0, %v7756
    %v7758 = vpop.f32.mrb[0].mxu0
    %7759 = vmatprep.mubr.f32.mxu0 0.0
    %7760 = vmatmul.mubr.f32.gmra.mrb[0].mxu0 %v7458
    %v7761 = vpop.f32.mrb[0].mxu0
    %v7762 = vadd.f32 0.0, %v7761
    %v7763 = vpop.f32.mrb[0].mxu0
    %7764 = vmatprep.mubr.f32.mxu0 0.0
    %7765 = vmatmul.mubr.f32.gmra.mrb[0].mxu0 %v7459
    %v7766 = vpop.f32.mrb[0].mxu0
    %v7767 = vadd.f32 0.0, %v7766
    %v7768 = vpop.f32.mrb[0].mxu0
    %7769 = vmatprep.mubr.f32.mxu0 0.0
    %7770 = vmatmul.mubr.f32.gmra.mrb[0].mxu0 %v7460
    %v7771 = vpop.f32.mrb[0].mxu0
    %v7772 = vadd.f32 0.0, %v7771
    %v7773 = vpop.f32.mrb[0].mxu0
    %7774 = vmatprep.mubr.f32.mxu0 0.0
    %7775 = vmatmul.mubr.f32.gmra.mrb[0].mxu0 %v7461
    %v7776 = vpop.f32.mrb[0].mxu0
    %v7777 = vadd.f32 0.0, %v7776
    %v7778 = vpop.f32.mrb[0].mxu0
    %7779 = vmatprep.mubr.f32.mxu0 0.0
    %7780 = vmatmul.mubr.f32.gmra.mrb[0].mxu0 %v7462
    %v7781 = vpop.f32.mrb[0].mxu0
    %v7782 = vadd.f32 0.0, %v7781
    %v7783 = vpop.f32.mrb[0].mxu0
    %7784 = vmatprep.mubr.f32.mxu0 0.0
    %7785 = vmatmul.mubr.f32.gmra.mrb[0].mxu0 %v7463
    %v7786 = vpop.f32.mrb[0].mxu0
    %v7787 = vadd.f32 0.0, %v7786
    %v7788 = vpop.f32.mrb[0].mxu0
    %7789 = vmatprep.mubr.f32.mxu0 0.0
    %7790 = vmatmul.mubr.f32.gmra.mrb[0].mxu0 %v7464
    %v7791 = vpop.f32.mrb[0].mxu0
    %v7792 = vadd.f32 0.0, %v7791
    %v7793 = vpop.f32.mrb[0].mxu0
    %7794 = vmatprep.mubr.f32.mxu0 0.0
    %7795 = vmatmul.mubr.f32.gmra.mrb[0].mxu0 %v7465
    %v7796 = vpop.f32.mrb[0].mxu0
    %v7797 = vadd.f32 0.0, %v7796
    %v7798 = vpop.f32.mrb[0].mxu0
    %7799 = vmatprep.mubr.f32.mxu0 0.0
    %7800 = vmatmul.mubr.f32.gmra.mrb[0].mxu0 %v7466
    %v7801 = vpop.f32.mrb[0].mxu0
    %v7802 = vadd.f32 0.0, %v7801
    %v7803 = vpop.f32.mrb[0].mxu0
    %7804 = vmatprep.mubr.f32.mxu0 0.0
    %7805 = vmatmul.mubr.f32.gmra.mrb[0].mxu0 %v7467
    %v7806 = vpop.f32.mrb[0].mxu0
    %v7807 = vadd.f32 0.0, %v7806
    %v7808 = vpop.f32.mrb[0].mxu0
    %7809 = vmatprep.mubr.f32.mxu0 0.0
    %7810 = vmatmul.mubr.f32.gmra.mrb[0].mxu0 %v7468
    %v7811 = vpop.f32.mrb[0].mxu0
    %v7812 = vadd.f32 0.0, %v7811
    %v7813 = vpop.f32.mrb[0].mxu0
    %7814 = vmatprep.mubr.f32.mxu0 0.0
    %7815 = vmatmul.mubr.f32.gmra.mrb[0].mxu0 %v7469
    %v7816 = vpop.f32.mrb[0].mxu0
    %v7817 = vadd.f32 0.0, %v7816
    %v7818 = vpop.f32.mrb[0].mxu0
    %7819 = vmatprep.mubr.f32.mxu0 0.0
    %7820 = vmatmul.mubr.f32.gmra.mrb[0].mxu0 %v7470
    %v7821 = vpop.f32.mrb[0].mxu0
    %v7822 = vadd.f32 0.0, %v7821
    %v7823 = vpop.f32.mrb[0].mxu0
    %7824 = vmatprep.mubr.f32.mxu0 0.0
    %7825 = vmatmul.mubr.f32.gmra.mrb[0].mxu0 %v7471
    %v7826 = vpop.f32.mrb[0].mxu0
    %v7827 = vadd.f32 0.0, %v7826
    %v7828 = vpop.f32.mrb[0].mxu0
    %7829 = vmatprep.mubr.f32.mxu0 0.0
    %7830 = vmatmul.mubr.f32.gmra.mrb[0].mxu0 %v7472
    %v7831 = vpop.f32.mrb[0].mxu0
    %v7832 = vadd.f32 0.0, %v7831
    %v7833 = vpop.f32.mrb[0].mxu0
    %7834 = vmatprep.mubr.f32.mxu0 0.0
    %7835 = vmatmul.mubr.f32.gmra.mrb[0].mxu0 %v7473
    %v7836 = vpop.f32.mrb[0].mxu0
    %v7837 = vadd.f32 0.0, %v7836
    %v7838 = vpop.f32.mrb[0].mxu0
    %7839 = vmatprep.mubr.f32.mxu0 0.0
    %7840 = vmatmul.mubr.f32.gmra.mrb[0].mxu0 %v7474
    %v7841 = vpop.f32.mrb[0].mxu0
    %v7842 = vadd.f32 0.0, %v7841
    %v7843 = vpop.f32.mrb[0].mxu0
    %7844 = vmatprep.mubr.f32.mxu0 0.0
    %7845 = vmatmul.mubr.f32.gmra.mrb[0].mxu0 %v7475
    %v7846 = vpop.f32.mrb[0].mxu0
    %v7847 = vadd.f32 0.0, %v7846
    %v7848 = vpop.f32.mrb[0].mxu0
    %7849 = vmatprep.mubr.f32.mxu0 0.0
    %7850 = vmatmul.mubr.f32.gmra.mrb[0].mxu0 %v7476
    %v7851 = vpop.f32.mrb[0].mxu0
    %v7852 = vadd.f32 0.0, %v7851
    %v7853 = vpop.f32.mrb[0].mxu0
    %7854 = vmatprep.mubr.f32.mxu0 0.0
    %7855 = vmatmul.mubr.f32.gmra.mrb[0].mxu0 %v7477
    %v7856 = vpop.f32.mrb[0].mxu0
    %v7857 = vadd.f32 0.0, %v7856
    %v7858 = vpop.f32.mrb[0].mxu0
    %7859 = vmatprep.mubr.f32.mxu0 0.0
    %7860 = vmatmul.mubr.f32.gmra.mrb[0].mxu0 %v7478
    %v7861 = vpop.f32.mrb[0].mxu0
    %v7862 = vadd.f32 0.0, %v7861
    %v7863 = vpop.f32.mrb[0].mxu0
    %7864 = vmatprep.mubr.f32.mxu0 0.0
    %7865 = vmatmul.mubr.f32.gmra.mrb[0].mxu0 %v7479
    %v7866 = vpop.f32.mrb[0].mxu0
    %v7867 = vadd.f32 0.0, %v7866
    %v7868 = vpop.f32.mrb[0].mxu0
    %7869 = vmatprep.mubr.f32.mxu0 0.0
    %7870 = vmatmul.mubr.f32.gmra.mrb[0].mxu0 %v7480
    %v7871 = vpop.f32.mrb[0].mxu0
    %v7872 = vadd.f32 0.0, %v7871
    %v7873 = vpop.f32.mrb[0].mxu0
    %7874 = vmatprep.mubr.f32.mxu0 0.0
    %7875 = vmatmul.mubr.f32.gmra.mrb[0].mxu0 %v7481
    %v7876 = vpop.f32.mrb[0].mxu0
    %v7877 = vadd.f32 0.0, %v7876
    %v7878 = vpop.f32.mrb[0].mxu0
    %7879 = vmatprep.mubr.f32.mxu0 0.0
    %7880 = vmatmul.mubr.f32.gmra.mrb[0].mxu0 %v7482
    %v7881 = vpop.f32.mrb[0].mxu0
    %v7882 = vadd.f32 0.0, %v7881
    %v7883 = vpop.f32.mrb[0].mxu0
    %7884 = vdwg.mxu0
    %v7885 = vadd.f32 %v7355, %v7567
    %v7886 = vadd.f32 %v7356, %v7572
    %v7887 = vadd.f32 %v7357, %v7577
    %v7888 = vadd.f32 %v7358, %v7582
    %v7889 = vadd.f32 %v7359, %v7587
    %v7890 = vadd.f32 %v7360, %v7592
    %v7891 = vadd.f32 %v7361, %v7597
    %v7892 = vadd.f32 %v7362, %v7602
    %v7893 = vadd.f32 %v7363, %v7607
    %v7894 = vadd.f32 %v7364, %v7612
    %v7895 = vadd.f32 %v7365, %v7617
    %v7896 = vadd.f32 %v7366, %v7622
    %v7897 = vadd.f32 %v7367, %v7627
    %v7898 = vadd.f32 %v7368, %v7632
    %v7899 = vadd.f32 %v7369, %v7637
    %v7900 = vadd.f32 %v7370, %v7642
    %v7901 = vadd.f32 %v7371, %v7647
    %v7902 = vadd.f32 %v7372, %v7652
    %v7903 = vadd.f32 %v7373, %v7657
    %v7904 = vadd.f32 %v7374, %v7662
    %v7905 = vadd.f32 %v7375, %v7667
    %v7906 = vadd.f32 %v7376, %v7672
    %v7907 = vadd.f32 %v7377, %v7677
    %v7908 = vadd.f32 %v7378, %v7682
    %v7909 = vadd.f32 %v7379, %v7687
    %v7910 = vadd.f32 %v7380, %v7692
    %v7911 = vadd.f32 %v7381, %v7697
    %v7912 = vadd.f32 %v7382, %v7702
    %v7913 = vadd.f32 %v7383, %v7707
    %v7914 = vadd.f32 %v7384, %v7712
    %v7915 = vadd.f32 %v7385, %v7717
    %v7916 = vadd.f32 %v7386, %v7722
    %v7917 = vadd.f32 %v7387, %v7727
    %v7918 = vadd.f32 %v7388, %v7732
    %v7919 = vadd.f32 %v7389, %v7737
    %v7920 = vadd.f32 %v7390, %v7742
    %v7921 = vadd.f32 %v7391, %v7747
    %v7922 = vadd.f32 %v7392, %v7752
    %v7923 = vadd.f32 %v7393, %v7757
    %v7924 = vadd.f32 %v7394, %v7762
    %v7925 = vadd.f32 %v7395, %v7767
    %v7926 = vadd.f32 %v7396, %v7772
    %v7927 = vadd.f32 %v7397, %v7777
    %v7928 = vadd.f32 %v7398, %v7782
    %v7929 = vadd.f32 %v7399, %v7787
    %v7930 = vadd.f32 %v7400, %v7792
    %v7931 = vadd.f32 %v7401, %v7797
    %v7932 = vadd.f32 %v7402, %v7802
    %v7933 = vadd.f32 %v7403, %v7807
    %v7934 = vadd.f32 %v7404, %v7812
    %v7935 = vadd.f32 %v7405, %v7817
    %v7936 = vadd.f32 %v7406, %v7822
    %v7937 = vadd.f32 %v7407, %v7827
    %v7938 = vadd.f32 %v7408, %v7832
    %v7939 = vadd.f32 %v7409, %v7837
    %v7940 = vadd.f32 %v7410, %v7842
    %v7941 = vadd.f32 %v7411, %v7847
    %v7942 = vadd.f32 %v7412, %v7852
    %v7943 = vadd.f32 %v7413, %v7857
    %v7944 = vadd.f32 %v7414, %v7862
    %v7945 = vadd.f32 %v7415, %v7867
    %v7946 = vadd.f32 %v7416, %v7872
    %v7947 = vadd.f32 %v7417, %v7877
    %v7948 = vadd.f32 %v7418, %v7882
    %v7949 = vld [vmem:[%s240 + $0x2] sm:$0xff]
    %v7950 = vld [vmem:[%s240 + $0xa] sm:$0xff]
    %v7951 = vld [vmem:[%s240 + $0x1a] sm:$0xff]
    %v7952 = vld [vmem:[%s240 + $0x22] sm:$0xff]
    %v7953 = vld [vmem:[%s240 + $0x32] sm:$0xff]
    %v7954 = vld [vmem:[%s240 + $0x3a] sm:$0xff]
    %v7955 = vld [vmem:[%s240 + $0x4a] sm:$0xff]
    %v7956 = vld [vmem:[%s240 + $0x52] sm:$0xff]
    %v7957 = vld [vmem:[%s240 + $0x62] sm:$0xff]
    %v7958 = vld [vmem:[%s240 + $0x6a] sm:$0xff]
    %v7959 = vld [vmem:[%s240 + $0x7a] sm:$0xff]
    %v7960 = vld [vmem:[%s240 + $0x82] sm:$0xff]
    %v7961 = vld [vmem:[%s240 + $0x92] sm:$0xff]
    %v7962 = vld [vmem:[%s240 + $0x9a] sm:$0xff]
    %v7963 = vld [vmem:[%s240 + $0xaa] sm:$0xff]
    %v7964 = vld [vmem:[%s240 + $0xb2] sm:$0xff]
    %v7965 = vld [vmem:[%s240 + $0xc2] sm:$0xff]
    %v7966 = vld [vmem:[%s240 + $0xca] sm:$0xff]
    %v7967 = vld [vmem:[%s240 + $0xda] sm:$0xff]
    %v7968 = vld [vmem:[%s240 + $0xe2] sm:$0xff]
    %v7969 = vld [vmem:[%s240 + $0xf2] sm:$0xff]
    %v7970 = vld [vmem:[%s240 + $0xfa] sm:$0xff]
    %v7971 = vld [vmem:[%s240 + $0x10a] sm:$0xff]
    %v7972 = vld [vmem:[%s240 + $0x112] sm:$0xff]
    %v7973 = vld [vmem:[%s240 + $0x122] sm:$0xff]
    %v7974 = vld [vmem:[%s240 + $0x12a] sm:$0xff]
    %v7975 = vld [vmem:[%s240 + $0x13a] sm:$0xff]
    %v7976 = vld [vmem:[%s240 + $0x142] sm:$0xff]
    %v7977 = vld [vmem:[%s240 + $0x152] sm:$0xff]
    %v7978 = vld [vmem:[%s240 + $0x15a] sm:$0xff]
    %v7979 = vld [vmem:[%s240 + $0x16a] sm:$0xff]
    %v7980 = vld [vmem:[%s240 + $0x172] sm:$0xff]
    %v7981 = vld [vmem:[%s240 + $0x1b2] sm:$0xff]
    %v7982 = vld [vmem:[%s240 + $0x1ba] sm:$0xff]
    %v7983 = vld [vmem:[%s240 + $0x1ca] sm:$0xff]
    %v7984 = vld [vmem:[%s240 + $0x1d2] sm:$0xff]
    %v7985 = vld [vmem:[%s240 + $0x1e2] sm:$0xff]
    %v7986 = vld [vmem:[%s240 + $0x1ea] sm:$0xff]
    %v7987 = vld [vmem:[%s240 + $0x1fa] sm:$0xff]
    %v7988 = vld [vmem:[%s240 + $0x202] sm:$0xff]
    %v7989 = vld [vmem:[%s240 + $0x212] sm:$0xff]
    %v7990 = vld [vmem:[%s240 + $0x21a] sm:$0xff]
    %v7991 = vld [vmem:[%s240 + $0x22a] sm:$0xff]
    %v7992 = vld [vmem:[%s240 + $0x232] sm:$0xff]
    %v7993 = vld [vmem:[%s240 + $0x242] sm:$0xff]
    %v7994 = vld [vmem:[%s240 + $0x24a] sm:$0xff]
    %v7995 = vld [vmem:[%s240 + $0x25a] sm:$0xff]
    %v7996 = vld [vmem:[%s240 + $0x262] sm:$0xff]
    %v7997 = vld [vmem:[%s240 + $0x272] sm:$0xff]
    %v7998 = vld [vmem:[%s240 + $0x27a] sm:$0xff]
    %v7999 = vld [vmem:[%s240 + $0x28a] sm:$0xff]
    %v8000 = vld [vmem:[%s240 + $0x292] sm:$0xff]
    %v8001 = vld [vmem:[%s240 + $0x2a2] sm:$0xff]
    %v8002 = vld [vmem:[%s240 + $0x2aa] sm:$0xff]
    %v8003 = vld [vmem:[%s240 + $0x2ba] sm:$0xff]
    %v8004 = vld [vmem:[%s240 + $0x2c2] sm:$0xff]
    %v8005 = vld [vmem:[%s240 + $0x2d2] sm:$0xff]
    %v8006 = vld [vmem:[%s240 + $0x2da] sm:$0xff]
    %v8007 = vld [vmem:[%s240 + $0x2ea] sm:$0xff]
    %v8008 = vld [vmem:[%s240 + $0x2f2] sm:$0xff]
    %v8009 = vld [vmem:[%s240 + $0x302] sm:$0xff]
    %v8010 = vld [vmem:[%s240 + $0x30a] sm:$0xff]
    %v8011 = vld [vmem:[%s240 + $0x31a] sm:$0xff]
    %v8012 = vld [vmem:[%s240 + $0x322] sm:$0xff]
    %s8013 = scalar_lea.vmem [#allocation8], 640
    %v8014 = vld [vmem:[%s8013] sm:$0xff]
    %v8015 = vld [vmem:[%s8013 + $0x8] sm:$0xff]
    %v8016 = vld [vmem:[%s8013 + $0x10] sm:$0xff]
    %v8017 = vld [vmem:[%s8013 + $0x18] sm:$0xff]
    %v8018 = vld [vmem:[%s8013 + $0x20] sm:$0xff]
    %v8019 = vld [vmem:[%s8013 + $0x28] sm:$0xff]
    %v8020 = vld [vmem:[%s8013 + $0x30] sm:$0xff]
    %v8021 = vld [vmem:[%s8013 + $0x38] sm:$0xff]
    %v8022 = vld [vmem:[%s8013 + $0x40] sm:$0xff]
    %v8023 = vld [vmem:[%s8013 + $0x48] sm:$0xff]
    %v8024 = vld [vmem:[%s8013 + $0x50] sm:$0xff]
    %v8025 = vld [vmem:[%s8013 + $0x58] sm:$0xff]
    %v8026 = vld [vmem:[%s8013 + $0x60] sm:$0xff]
    %v8027 = vld [vmem:[%s8013 + $0x68] sm:$0xff]
    %v8028 = vld [vmem:[%s8013 + $0x70] sm:$0xff]
    %v8029 = vld [vmem:[%s8013 + $0x78] sm:$0xff]
    %8030 = vmatprep.subr.mxu0 0.0
    %8031 = vmatpush1.msra.mxu0 %v8014
    %8032 = vmatprep.subr.mxu0 0.0
    %8033 = vmatpush1.msra.mxu0 %v8015
    %8034 = vmatprep.subr.mxu0 0.0
    %8035 = vmatpush1.msra.mxu0 %v8016
    %8036 = vmatprep.subr.mxu0 0.0
    %8037 = vmatpush1.msra.mxu0 %v8017
    %8038 = vmatprep.subr.mxu0 0.0
    %8039 = vmatpush1.msra.mxu0 %v8018
    %8040 = vmatprep.subr.mxu0 0.0
    %8041 = vmatpush1.msra.mxu0 %v8019
    %8042 = vmatprep.subr.mxu0 0.0
    %8043 = vmatpush1.msra.mxu0 %v8020
    %8044 = vmatprep.subr.mxu0 0.0
    %8045 = vmatpush1.msra.mxu0 %v8021
    %8046 = vmatprep.subr.mxu0 0.0
    %8047 = vmatpush1.msra.mxu0 %v8022
    %8048 = vmatprep.subr.mxu0 0.0
    %8049 = vmatpush1.msra.mxu0 %v8023
    %8050 = vmatprep.subr.mxu0 0.0
    %8051 = vmatpush1.msra.mxu0 %v8024
    %8052 = vmatprep.subr.mxu0 0.0
    %8053 = vmatpush1.msra.mxu0 %v8025
    %8054 = vmatprep.subr.mxu0 0.0
    %8055 = vmatpush1.msra.mxu0 %v8026
    %8056 = vmatprep.subr.mxu0 0.0
    %8057 = vmatpush1.msra.mxu0 %v8027
    %8058 = vmatprep.subr.mxu0 0.0
    %8059 = vmatpush1.msra.mxu0 %v8028
    %8060 = vmatprep.subr.mxu0 0.0
    %8061 = vmatpush1.msra.mxu0 %v8029
    %8062 = vmatprep.subr.mxu0 0.0
    %8063 = vmatpush1.msra.mxu0 0.0
    %8064 = vmatprep.subr.mxu0 0.0
    %8065 = vmatpush1.msra.mxu0 0.0
    %8066 = vmatprep.subr.mxu0 0.0
    %8067 = vmatpush1.msra.mxu0 0.0
    %8068 = vmatprep.subr.mxu0 0.0
    %8069 = vmatpush1.msra.mxu0 0.0
    %8070 = vmatprep.subr.mxu0 0.0
    %8071 = vmatpush1.msra.mxu0 0.0
    %8072 = vmatprep.subr.mxu0 0.0
    %8073 = vmatpush1.msra.mxu0 0.0
    %8074 = vmatprep.subr.mxu0 0.0
    %8075 = vmatpush1.msra.mxu0 0.0
    %8076 = vmatprep.subr.mxu0 0.0
    %8077 = vmatpush1.msra.mxu0 0.0
    %8078 = vmatprep.subr.mxu0 0.0
    %8079 = vmatpush1.msra.mxu0 0.0
    %8080 = vmatprep.subr.mxu0 0.0
    %8081 = vmatpush1.msra.mxu0 0.0
    %8082 = vmatprep.subr.mxu0 0.0
    %8083 = vmatpush1.msra.mxu0 0.0
    %8084 = vmatprep.subr.mxu0 0.0
    %8085 = vmatpush1.msra.mxu0 0.0
    %8086 = vmatprep.subr.mxu0 0.0
    %8087 = vmatpush1.msra.mxu0 0.0
    %8088 = vmatprep.subr.mxu0 0.0
    %8089 = vmatpush1.msra.mxu0 0.0
    %8090 = vmatprep.subr.mxu0 0.0
    %8091 = vmatpush1.msra.mxu0 0.0
    %8092 = vmatprep.subr.mxu0 0.0
    %8093 = vmatpush1.msra.mxu0 0.0
    %8094 = vmatprep.mubr.f32.mxu0 0.0
    %8095 = vmatmul.mubr.f32.gmra.mrb[0].mxu0 %v7949
    %v8096 = vpop.f32.mrb[0].mxu0
    %v8097 = vadd.f32 0.0, %v8096
    %v8098 = vpop.f32.mrb[0].mxu0
    %8099 = vmatprep.mubr.f32.mxu0 0.0
    %8100 = vmatmul.mubr.f32.gmra.mrb[0].mxu0 %v7950
    %v8101 = vpop.f32.mrb[0].mxu0
    %v8102 = vadd.f32 0.0, %v8101
    %v8103 = vpop.f32.mrb[0].mxu0
    %8104 = vmatprep.mubr.f32.mxu0 0.0
    %8105 = vmatmul.mubr.f32.gmra.mrb[0].mxu0 %v7951
    %v8106 = vpop.f32.mrb[0].mxu0
    %v8107 = vadd.f32 0.0, %v8106
    %v8108 = vpop.f32.mrb[0].mxu0
    %8109 = vmatprep.mubr.f32.mxu0 0.0
    %8110 = vmatmul.mubr.f32.gmra.mrb[0].mxu0 %v7952
    %v8111 = vpop.f32.mrb[0].mxu0
    %v8112 = vadd.f32 0.0, %v8111
    %v8113 = vpop.f32.mrb[0].mxu0
    %8114 = vmatprep.mubr.f32.mxu0 0.0
    %8115 = vmatmul.mubr.f32.gmra.mrb[0].mxu0 %v7953
    %v8116 = vpop.f32.mrb[0].mxu0
    %v8117 = vadd.f32 0.0, %v8116
    %v8118 = vpop.f32.mrb[0].mxu0
    %8119 = vmatprep.mubr.f32.mxu0 0.0
    %8120 = vmatmul.mubr.f32.gmra.mrb[0].mxu0 %v7954
    %v8121 = vpop.f32.mrb[0].mxu0
    %v8122 = vadd.f32 0.0, %v8121
    %v8123 = vpop.f32.mrb[0].mxu0
    %8124 = vmatprep.mubr.f32.mxu0 0.0
    %8125 = vmatmul.mubr.f32.gmra.mrb[0].mxu0 %v7955
    %v8126 = vpop.f32.mrb[0].mxu0
    %v8127 = vadd.f32 0.0, %v8126
    %v8128 = vpop.f32.mrb[0].mxu0
    %8129 = vmatprep.mubr.f32.mxu0 0.0
    %8130 = vmatmul.mubr.f32.gmra.mrb[0].mxu0 %v7956
    %v8131 = vpop.f32.mrb[0].mxu0
    %v8132 = vadd.f32 0.0, %v8131
    %v8133 = vpop.f32.mrb[0].mxu0
    %8134 = vmatprep.mubr.f32.mxu0 0.0
    %8135 = vmatmul.mubr.f32.gmra.mrb[0].mxu0 %v7957
    %v8136 = vpop.f32.mrb[0].mxu0
    %v8137 = vadd.f32 0.0, %v8136
    %v8138 = vpop.f32.mrb[0].mxu0
    %8139 = vmatprep.mubr.f32.mxu0 0.0
    %8140 = vmatmul.mubr.f32.gmra.mrb[0].mxu0 %v7958
    %v8141 = vpop.f32.mrb[0].mxu0
    %v8142 = vadd.f32 0.0, %v8141
    %v8143 = vpop.f32.mrb[0].mxu0
    %8144 = vmatprep.mubr.f32.mxu0 0.0
    %8145 = vmatmul.mubr.f32.gmra.mrb[0].mxu0 %v7959
    %v8146 = vpop.f32.mrb[0].mxu0
    %v8147 = vadd.f32 0.0, %v8146
    %v8148 = vpop.f32.mrb[0].mxu0
    %8149 = vmatprep.mubr.f32.mxu0 0.0
    %8150 = vmatmul.mubr.f32.gmra.mrb[0].mxu0 %v7960
    %v8151 = vpop.f32.mrb[0].mxu0
    %v8152 = vadd.f32 0.0, %v8151
    %v8153 = vpop.f32.mrb[0].mxu0
    %8154 = vmatprep.mubr.f32.mxu0 0.0
    %8155 = vmatmul.mubr.f32.gmra.mrb[0].mxu0 %v7961
    %v8156 = vpop.f32.mrb[0].mxu0
    %v8157 = vadd.f32 0.0, %v8156
    %v8158 = vpop.f32.mrb[0].mxu0
    %8159 = vmatprep.mubr.f32.mxu0 0.0
    %8160 = vmatmul.mubr.f32.gmra.mrb[0].mxu0 %v7962
    %v8161 = vpop.f32.mrb[0].mxu0
    %v8162 = vadd.f32 0.0, %v8161
    %v8163 = vpop.f32.mrb[0].mxu0
    %8164 = vmatprep.mubr.f32.mxu0 0.0
    %8165 = vmatmul.mubr.f32.gmra.mrb[0].mxu0 %v7963
    %v8166 = vpop.f32.mrb[0].mxu0
    %v8167 = vadd.f32 0.0, %v8166
    %v8168 = vpop.f32.mrb[0].mxu0
    %8169 = vmatprep.mubr.f32.mxu0 0.0
    %8170 = vmatmul.mubr.f32.gmra.mrb[0].mxu0 %v7964
    %v8171 = vpop.f32.mrb[0].mxu0
    %v8172 = vadd.f32 0.0, %v8171
    %v8173 = vpop.f32.mrb[0].mxu0
    %8174 = vmatprep.mubr.f32.mxu0 0.0
    %8175 = vmatmul.mubr.f32.gmra.mrb[0].mxu0 %v7965
    %v8176 = vpop.f32.mrb[0].mxu0
    %v8177 = vadd.f32 0.0, %v8176
    %v8178 = vpop.f32.mrb[0].mxu0
    %8179 = vmatprep.mubr.f32.mxu0 0.0
    %8180 = vmatmul.mubr.f32.gmra.mrb[0].mxu0 %v7966
    %v8181 = vpop.f32.mrb[0].mxu0
    %v8182 = vadd.f32 0.0, %v8181
    %v8183 = vpop.f32.mrb[0].mxu0
    %8184 = vmatprep.mubr.f32.mxu0 0.0
    %8185 = vmatmul.mubr.f32.gmra.mrb[0].mxu0 %v7967
    %v8186 = vpop.f32.mrb[0].mxu0
    %v8187 = vadd.f32 0.0, %v8186
    %v8188 = vpop.f32.mrb[0].mxu0
    %8189 = vmatprep.mubr.f32.mxu0 0.0
    %8190 = vmatmul.mubr.f32.gmra.mrb[0].mxu0 %v7968
    %v8191 = vpop.f32.mrb[0].mxu0
    %v8192 = vadd.f32 0.0, %v8191
    %v8193 = vpop.f32.mrb[0].mxu0
    %8194 = vmatprep.mubr.f32.mxu0 0.0
    %8195 = vmatmul.mubr.f32.gmra.mrb[0].mxu0 %v7969
    %v8196 = vpop.f32.mrb[0].mxu0
    %v8197 = vadd.f32 0.0, %v8196
    %v8198 = vpop.f32.mrb[0].mxu0
    %8199 = vmatprep.mubr.f32.mxu0 0.0
    %8200 = vmatmul.mubr.f32.gmra.mrb[0].mxu0 %v7970
    %v8201 = vpop.f32.mrb[0].mxu0
    %v8202 = vadd.f32 0.0, %v8201
    %v8203 = vpop.f32.mrb[0].mxu0
    %8204 = vmatprep.mubr.f32.mxu0 0.0
    %8205 = vmatmul.mubr.f32.gmra.mrb[0].mxu0 %v7971
    %v8206 = vpop.f32.mrb[0].mxu0
    %v8207 = vadd.f32 0.0, %v8206
    %v8208 = vpop.f32.mrb[0].mxu0
    %8209 = vmatprep.mubr.f32.mxu0 0.0
    %8210 = vmatmul.mubr.f32.gmra.mrb[0].mxu0 %v7972
    %v8211 = vpop.f32.mrb[0].mxu0
    %v8212 = vadd.f32 0.0, %v8211
    %v8213 = vpop.f32.mrb[0].mxu0
    %8214 = vmatprep.mubr.f32.mxu0 0.0
    %8215 = vmatmul.mubr.f32.gmra.mrb[0].mxu0 %v7973
    %v8216 = vpop.f32.mrb[0].mxu0
    %v8217 = vadd.f32 0.0, %v8216
    %v8218 = vpop.f32.mrb[0].mxu0
    %8219 = vmatprep.mubr.f32.mxu0 0.0
    %8220 = vmatmul.mubr.f32.gmra.mrb[0].mxu0 %v7974
    %v8221 = vpop.f32.mrb[0].mxu0
    %v8222 = vadd.f32 0.0, %v8221
    %v8223 = vpop.f32.mrb[0].mxu0
    %8224 = vmatprep.mubr.f32.mxu0 0.0
    %8225 = vmatmul.mubr.f32.gmra.mrb[0].mxu0 %v7975
    %v8226 = vpop.f32.mrb[0].mxu0
    %v8227 = vadd.f32 0.0, %v8226
    %v8228 = vpop.f32.mrb[0].mxu0
    %8229 = vmatprep.mubr.f32.mxu0 0.0
    %8230 = vmatmul.mubr.f32.gmra.mrb[0].mxu0 %v7976
    %v8231 = vpop.f32.mrb[0].mxu0
    %v8232 = vadd.f32 0.0, %v8231
    %v8233 = vpop.f32.mrb[0].mxu0
    %8234 = vmatprep.mubr.f32.mxu0 0.0
    %8235 = vmatmul.mubr.f32.gmra.mrb[0].mxu0 %v7977
    %v8236 = vpop.f32.mrb[0].mxu0
    %v8237 = vadd.f32 0.0, %v8236
    %v8238 = vpop.f32.mrb[0].mxu0
    %8239 = vmatprep.mubr.f32.mxu0 0.0
    %8240 = vmatmul.mubr.f32.gmra.mrb[0].mxu0 %v7978
    %v8241 = vpop.f32.mrb[0].mxu0
    %v8242 = vadd.f32 0.0, %v8241
    %v8243 = vpop.f32.mrb[0].mxu0
    %8244 = vmatprep.mubr.f32.mxu0 0.0
    %8245 = vmatmul.mubr.f32.gmra.mrb[0].mxu0 %v7979
    %v8246 = vpop.f32.mrb[0].mxu0
    %v8247 = vadd.f32 0.0, %v8246
    %v8248 = vpop.f32.mrb[0].mxu0
    %8249 = vmatprep.mubr.f32.mxu0 0.0
    %8250 = vmatmul.mubr.f32.gmra.mrb[0].mxu0 %v7980
    %v8251 = vpop.f32.mrb[0].mxu0
    %v8252 = vadd.f32 0.0, %v8251
    %v8253 = vpop.f32.mrb[0].mxu0
    %8254 = vmatprep.mubr.f32.mxu0 0.0
    %8255 = vmatmul.mubr.f32.gmra.mrb[0].mxu0 %v7981
    %v8256 = vpop.f32.mrb[0].mxu0
    %v8257 = vadd.f32 0.0, %v8256
    %v8258 = vpop.f32.mrb[0].mxu0
    %8259 = vmatprep.mubr.f32.mxu0 0.0
    %8260 = vmatmul.mubr.f32.gmra.mrb[0].mxu0 %v7982
    %v8261 = vpop.f32.mrb[0].mxu0
    %v8262 = vadd.f32 0.0, %v8261
    %v8263 = vpop.f32.mrb[0].mxu0
    %8264 = vmatprep.mubr.f32.mxu0 0.0
    %8265 = vmatmul.mubr.f32.gmra.mrb[0].mxu0 %v7983
    %v8266 = vpop.f32.mrb[0].mxu0
    %v8267 = vadd.f32 0.0, %v8266
    %v8268 = vpop.f32.mrb[0].mxu0
    %8269 = vmatprep.mubr.f32.mxu0 0.0
    %8270 = vmatmul.mubr.f32.gmra.mrb[0].mxu0 %v7984
    %v8271 = vpop.f32.mrb[0].mxu0
    %v8272 = vadd.f32 0.0, %v8271
    %v8273 = vpop.f32.mrb[0].mxu0
    %8274 = vmatprep.mubr.f32.mxu0 0.0
    %8275 = vmatmul.mubr.f32.gmra.mrb[0].mxu0 %v7985
    %v8276 = vpop.f32.mrb[0].mxu0
    %v8277 = vadd.f32 0.0, %v8276
    %v8278 = vpop.f32.mrb[0].mxu0
    %8279 = vmatprep.mubr.f32.mxu0 0.0
    %8280 = vmatmul.mubr.f32.gmra.mrb[0].mxu0 %v7986
    %v8281 = vpop.f32.mrb[0].mxu0
    %v8282 = vadd.f32 0.0, %v8281
    %v8283 = vpop.f32.mrb[0].mxu0
    %8284 = vmatprep.mubr.f32.mxu0 0.0
    %8285 = vmatmul.mubr.f32.gmra.mrb[0].mxu0 %v7987
    %v8286 = vpop.f32.mrb[0].mxu0
    %v8287 = vadd.f32 0.0, %v8286
    %v8288 = vpop.f32.mrb[0].mxu0
    %8289 = vmatprep.mubr.f32.mxu0 0.0
    %8290 = vmatmul.mubr.f32.gmra.mrb[0].mxu0 %v7988
    %v8291 = vpop.f32.mrb[0].mxu0
    %v8292 = vadd.f32 0.0, %v8291
    %v8293 = vpop.f32.mrb[0].mxu0
    %8294 = vmatprep.mubr.f32.mxu0 0.0
    %8295 = vmatmul.mubr.f32.gmra.mrb[0].mxu0 %v7989
    %v8296 = vpop.f32.mrb[0].mxu0
    %v8297 = vadd.f32 0.0, %v8296
    %v8298 = vpop.f32.mrb[0].mxu0
    %8299 = vmatprep.mubr.f32.mxu0 0.0
    %8300 = vmatmul.mubr.f32.gmra.mrb[0].mxu0 %v7990
    %v8301 = vpop.f32.mrb[0].mxu0
    %v8302 = vadd.f32 0.0, %v8301
    %v8303 = vpop.f32.mrb[0].mxu0
    %8304 = vmatprep.mubr.f32.mxu0 0.0
    %8305 = vmatmul.mubr.f32.gmra.mrb[0].mxu0 %v7991
    %v8306 = vpop.f32.mrb[0].mxu0
    %v8307 = vadd.f32 0.0, %v8306
    %v8308 = vpop.f32.mrb[0].mxu0
    %8309 = vmatprep.mubr.f32.mxu0 0.0
    %8310 = vmatmul.mubr.f32.gmra.mrb[0].mxu0 %v7992
    %v8311 = vpop.f32.mrb[0].mxu0
    %v8312 = vadd.f32 0.0, %v8311
    %v8313 = vpop.f32.mrb[0].mxu0
    %8314 = vmatprep.mubr.f32.mxu0 0.0
    %8315 = vmatmul.mubr.f32.gmra.mrb[0].mxu0 %v7993
    %v8316 = vpop.f32.mrb[0].mxu0
    %v8317 = vadd.f32 0.0, %v8316
    %v8318 = vpop.f32.mrb[0].mxu0
    %8319 = vmatprep.mubr.f32.mxu0 0.0
    %8320 = vmatmul.mubr.f32.gmra.mrb[0].mxu0 %v7994
    %v8321 = vpop.f32.mrb[0].mxu0
    %v8322 = vadd.f32 0.0, %v8321
    %v8323 = vpop.f32.mrb[0].mxu0
    %8324 = vmatprep.mubr.f32.mxu0 0.0
    %8325 = vmatmul.mubr.f32.gmra.mrb[0].mxu0 %v7995
    %v8326 = vpop.f32.mrb[0].mxu0
    %v8327 = vadd.f32 0.0, %v8326
    %v8328 = vpop.f32.mrb[0].mxu0
    %8329 = vmatprep.mubr.f32.mxu0 0.0
    %8330 = vmatmul.mubr.f32.gmra.mrb[0].mxu0 %v7996
    %v8331 = vpop.f32.mrb[0].mxu0
    %v8332 = vadd.f32 0.0, %v8331
    %v8333 = vpop.f32.mrb[0].mxu0
    %8334 = vmatprep.mubr.f32.mxu0 0.0
    %8335 = vmatmul.mubr.f32.gmra.mrb[0].mxu0 %v7997
    %v8336 = vpop.f32.mrb[0].mxu0
    %v8337 = vadd.f32 0.0, %v8336
    %v8338 = vpop.f32.mrb[0].mxu0
    %8339 = vmatprep.mubr.f32.mxu0 0.0
    %8340 = vmatmul.mubr.f32.gmra.mrb[0].mxu0 %v7998
    %v8341 = vpop.f32.mrb[0].mxu0
    %v8342 = vadd.f32 0.0, %v8341
    %v8343 = vpop.f32.mrb[0].mxu0
    %8344 = vmatprep.mubr.f32.mxu0 0.0
    %8345 = vmatmul.mubr.f32.gmra.mrb[0].mxu0 %v7999
    %v8346 = vpop.f32.mrb[0].mxu0
    %v8347 = vadd.f32 0.0, %v8346
    %v8348 = vpop.f32.mrb[0].mxu0
    %8349 = vmatprep.mubr.f32.mxu0 0.0
    %8350 = vmatmul.mubr.f32.gmra.mrb[0].mxu0 %v8000
    %v8351 = vpop.f32.mrb[0].mxu0
    %v8352 = vadd.f32 0.0, %v8351
    %v8353 = vpop.f32.mrb[0].mxu0
    %8354 = vmatprep.mubr.f32.mxu0 0.0
    %8355 = vmatmul.mubr.f32.gmra.mrb[0].mxu0 %v8001
    %v8356 = vpop.f32.mrb[0].mxu0
    %v8357 = vadd.f32 0.0, %v8356
    %v8358 = vpop.f32.mrb[0].mxu0
    %8359 = vmatprep.mubr.f32.mxu0 0.0
    %8360 = vmatmul.mubr.f32.gmra.mrb[0].mxu0 %v8002
    %v8361 = vpop.f32.mrb[0].mxu0
    %v8362 = vadd.f32 0.0, %v8361
    %v8363 = vpop.f32.mrb[0].mxu0
    %8364 = vmatprep.mubr.f32.mxu0 0.0
    %8365 = vmatmul.mubr.f32.gmra.mrb[0].mxu0 %v8003
    %v8366 = vpop.f32.mrb[0].mxu0
    %v8367 = vadd.f32 0.0, %v8366
    %v8368 = vpop.f32.mrb[0].mxu0
    %8369 = vmatprep.mubr.f32.mxu0 0.0
    %8370 = vmatmul.mubr.f32.gmra.mrb[0].mxu0 %v8004
    %v8371 = vpop.f32.mrb[0].mxu0
    %v8372 = vadd.f32 0.0, %v8371
    %v8373 = vpop.f32.mrb[0].mxu0
    %8374 = vmatprep.mubr.f32.mxu0 0.0
    %8375 = vmatmul.mubr.f32.gmra.mrb[0].mxu0 %v8005
    %v8376 = vpop.f32.mrb[0].mxu0
    %v8377 = vadd.f32 0.0, %v8376
    %v8378 = vpop.f32.mrb[0].mxu0
    %8379 = vmatprep.mubr.f32.mxu0 0.0
    %8380 = vmatmul.mubr.f32.gmra.mrb[0].mxu0 %v8006
    %v8381 = vpop.f32.mrb[0].mxu0
    %v8382 = vadd.f32 0.0, %v8381
    %v8383 = vpop.f32.mrb[0].mxu0
    %8384 = vmatprep.mubr.f32.mxu0 0.0
    %8385 = vmatmul.mubr.f32.gmra.mrb[0].mxu0 %v8007
    %v8386 = vpop.f32.mrb[0].mxu0
    %v8387 = vadd.f32 0.0, %v8386
    %v8388 = vpop.f32.mrb[0].mxu0
    %8389 = vmatprep.mubr.f32.mxu0 0.0
    %8390 = vmatmul.mubr.f32.gmra.mrb[0].mxu0 %v8008
    %v8391 = vpop.f32.mrb[0].mxu0
    %v8392 = vadd.f32 0.0, %v8391
    %v8393 = vpop.f32.mrb[0].mxu0
    %8394 = vmatprep.mubr.f32.mxu0 0.0
    %8395 = vmatmul.mubr.f32.gmra.mrb[0].mxu0 %v8009
    %v8396 = vpop.f32.mrb[0].mxu0
    %v8397 = vadd.f32 0.0, %v8396
    %v8398 = vpop.f32.mrb[0].mxu0
    %8399 = vmatprep.mubr.f32.mxu0 0.0
    %8400 = vmatmul.mubr.f32.gmra.mrb[0].mxu0 %v8010
    %v8401 = vpop.f32.mrb[0].mxu0
    %v8402 = vadd.f32 0.0, %v8401
    %v8403 = vpop.f32.mrb[0].mxu0
    %8404 = vmatprep.mubr.f32.mxu0 0.0
    %8405 = vmatmul.mubr.f32.gmra.mrb[0].mxu0 %v8011
    %v8406 = vpop.f32.mrb[0].mxu0
    %v8407 = vadd.f32 0.0, %v8406
    %v8408 = vpop.f32.mrb[0].mxu0
    %8409 = vmatprep.mubr.f32.mxu0 0.0
    %8410 = vmatmul.mubr.f32.gmra.mrb[0].mxu0 %v8012
    %v8411 = vpop.f32.mrb[0].mxu0
    %v8412 = vadd.f32 0.0, %v8411
    %v8413 = vpop.f32.mrb[0].mxu0
    %8414 = vdwg.mxu0
    %v8415 = vadd.f32 %v7885, %v8097
    %v8416 = vadd.f32 %v7886, %v8102
    %v8417 = vadd.f32 %v7887, %v8107
    %v8418 = vadd.f32 %v7888, %v8112
    %v8419 = vadd.f32 %v7889, %v8117
    %v8420 = vadd.f32 %v7890, %v8122
    %v8421 = vadd.f32 %v7891, %v8127
    %v8422 = vadd.f32 %v7892, %v8132
    %v8423 = vadd.f32 %v7893, %v8137
    %v8424 = vadd.f32 %v7894, %v8142
    %v8425 = vadd.f32 %v7895, %v8147
    %v8426 = vadd.f32 %v7896, %v8152
    %v8427 = vadd.f32 %v7897, %v8157
    %v8428 = vadd.f32 %v7898, %v8162
    %v8429 = vadd.f32 %v7899, %v8167
    %v8430 = vadd.f32 %v7900, %v8172
    %v8431 = vadd.f32 %v7901, %v8177
    %v8432 = vadd.f32 %v7902, %v8182
    %v8433 = vadd.f32 %v7903, %v8187
    %v8434 = vadd.f32 %v7904, %v8192
    %v8435 = vadd.f32 %v7905, %v8197
    %v8436 = vadd.f32 %v7906, %v8202
    %v8437 = vadd.f32 %v7907, %v8207
    %v8438 = vadd.f32 %v7908, %v8212
    %v8439 = vadd.f32 %v7909, %v8217
    %v8440 = vadd.f32 %v7910, %v8222
    %v8441 = vadd.f32 %v7911, %v8227
    %v8442 = vadd.f32 %v7912, %v8232
    %v8443 = vadd.f32 %v7913, %v8237
    %v8444 = vadd.f32 %v7914, %v8242
    %v8445 = vadd.f32 %v7915, %v8247
    %v8446 = vadd.f32 %v7916, %v8252
    %v8447 = vadd.f32 %v7917, %v8257
    %v8448 = vadd.f32 %v7918, %v8262
    %v8449 = vadd.f32 %v7919, %v8267
    %v8450 = vadd.f32 %v7920, %v8272
    %v8451 = vadd.f32 %v7921, %v8277
    %v8452 = vadd.f32 %v7922, %v8282
    %v8453 = vadd.f32 %v7923, %v8287
    %v8454 = vadd.f32 %v7924, %v8292
    %v8455 = vadd.f32 %v7925, %v8297
    %v8456 = vadd.f32 %v7926, %v8302
    %v8457 = vadd.f32 %v7927, %v8307
    %v8458 = vadd.f32 %v7928, %v8312
    %v8459 = vadd.f32 %v7929, %v8317
    %v8460 = vadd.f32 %v7930, %v8322
    %v8461 = vadd.f32 %v7931, %v8327
    %v8462 = vadd.f32 %v7932, %v8332
    %v8463 = vadd.f32 %v7933, %v8337
    %v8464 = vadd.f32 %v7934, %v8342
    %v8465 = vadd.f32 %v7935, %v8347
    %v8466 = vadd.f32 %v7936, %v8352
    %v8467 = vadd.f32 %v7937, %v8357
    %v8468 = vadd.f32 %v7938, %v8362
    %v8469 = vadd.f32 %v7939, %v8367
    %v8470 = vadd.f32 %v7940, %v8372
    %v8471 = vadd.f32 %v7941, %v8377
    %v8472 = vadd.f32 %v7942, %v8382
    %v8473 = vadd.f32 %v7943, %v8387
    %v8474 = vadd.f32 %v7944, %v8392
    %v8475 = vadd.f32 %v7945, %v8397
    %v8476 = vadd.f32 %v7946, %v8402
    %v8477 = vadd.f32 %v7947, %v8407
    %v8478 = vadd.f32 %v7948, %v8412
    %v8479 = vld [vmem:[%s3356] sm:$0xff]
    %v8480 = vld [vmem:[%s3356 + $0x8] sm:$0xff]
    %v8481 = vld [vmem:[%s3356 + $0x18] sm:$0xff]
    %v8482 = vld [vmem:[%s3356 + $0x20] sm:$0xff]
    %v8483 = vld [vmem:[%s3356 + $0x30] sm:$0xff]
    %v8484 = vld [vmem:[%s3356 + $0x38] sm:$0xff]
    %v8485 = vld [vmem:[%s3356 + $0x48] sm:$0xff]
    %v8486 = vld [vmem:[%s3356 + $0x50] sm:$0xff]
    %v8487 = vld [vmem:[%s3356 + $0x60] sm:$0xff]
    %v8488 = vld [vmem:[%s3356 + $0x68] sm:$0xff]
    %v8489 = vld [vmem:[%s3356 + $0x78] sm:$0xff]
    %v8490 = vld [vmem:[%s3356 + $0x80] sm:$0xff]
    %v8491 = vld [vmem:[%s3356 + $0x90] sm:$0xff]
    %v8492 = vld [vmem:[%s3356 + $0x98] sm:$0xff]
    %v8493 = vld [vmem:[%s3356 + $0xa8] sm:$0xff]
    %v8494 = vld [vmem:[%s3356 + $0xb0] sm:$0xff]
    %v8495 = vld [vmem:[%s3356 + $0xc0] sm:$0xff]
    %v8496 = vld [vmem:[%s3356 + $0xc8] sm:$0xff]
    %v8497 = vld [vmem:[%s3356 + $0xd8] sm:$0xff]
    %v8498 = vld [vmem:[%s3356 + $0xe0] sm:$0xff]
    %v8499 = vld [vmem:[%s3356 + $0xf0] sm:$0xff]
    %v8500 = vld [vmem:[%s3356 + $0xf8] sm:$0xff]
    %v8501 = vld [vmem:[%s3356 + $0x108] sm:$0xff]
    %v8502 = vld [vmem:[%s3356 + $0x110] sm:$0xff]
    %v8503 = vld [vmem:[%s3356 + $0x120] sm:$0xff]
    %v8504 = vld [vmem:[%s3356 + $0x128] sm:$0xff]
    %v8505 = vld [vmem:[%s3356 + $0x138] sm:$0xff]
    %v8506 = vld [vmem:[%s3356 + $0x140] sm:$0xff]
    %v8507 = vld [vmem:[%s3356 + $0x150] sm:$0xff]
    %v8508 = vld [vmem:[%s3356 + $0x158] sm:$0xff]
    %v8509 = vld [vmem:[%s3356 + $0x168] sm:$0xff]
    %v8510 = vld [vmem:[%s3356 + $0x170] sm:$0xff]
    %v8511 = vld [vmem:[%s3356 + $0x1b0] sm:$0xff]
    %v8512 = vld [vmem:[%s3356 + $0x1b8] sm:$0xff]
    %v8513 = vld [vmem:[%s3356 + $0x1c8] sm:$0xff]
    %v8514 = vld [vmem:[%s3356 + $0x1d0] sm:$0xff]
    %v8515 = vld [vmem:[%s3356 + $0x1e0] sm:$0xff]
    %v8516 = vld [vmem:[%s3356 + $0x1e8] sm:$0xff]
    %v8517 = vld [vmem:[%s3356 + $0x1f8] sm:$0xff]
    %v8518 = vld [vmem:[%s3356 + $0x200] sm:$0xff]
    %v8519 = vld [vmem:[%s3356 + $0x210] sm:$0xff]
    %v8520 = vld [vmem:[%s3356 + $0x218] sm:$0xff]
    %v8521 = vld [vmem:[%s3356 + $0x228] sm:$0xff]
    %v8522 = vld [vmem:[%s3356 + $0x230] sm:$0xff]
    %v8523 = vld [vmem:[%s3356 + $0x240] sm:$0xff]
    %v8524 = vld [vmem:[%s3356 + $0x248] sm:$0xff]
    %v8525 = vld [vmem:[%s3356 + $0x258] sm:$0xff]
    %v8526 = vld [vmem:[%s3356 + $0x260] sm:$0xff]
    %v8527 = vld [vmem:[%s3356 + $0x270] sm:$0xff]
    %v8528 = vld [vmem:[%s3356 + $0x278] sm:$0xff]
    %v8529 = vld [vmem:[%s3356 + $0x288] sm:$0xff]
    %v8530 = vld [vmem:[%s3356 + $0x290] sm:$0xff]
    %v8531 = vld [vmem:[%s3356 + $0x2a0] sm:$0xff]
    %v8532 = vld [vmem:[%s3356 + $0x2a8] sm:$0xff]
    %v8533 = vld [vmem:[%s3356 + $0x2b8] sm:$0xff]
    %v8534 = vld [vmem:[%s3356 + $0x2c0] sm:$0xff]
    %v8535 = vld [vmem:[%s3356 + $0x2d0] sm:$0xff]
    %v8536 = vld [vmem:[%s3356 + $0x2d8] sm:$0xff]
    %v8537 = vld [vmem:[%s3356 + $0x2e8] sm:$0xff]
    %v8538 = vld [vmem:[%s3356 + $0x2f0] sm:$0xff]
    %v8539 = vld [vmem:[%s3356 + $0x300] sm:$0xff]
    %v8540 = vld [vmem:[%s3356 + $0x308] sm:$0xff]
    %v8541 = vld [vmem:[%s3356 + $0x318] sm:$0xff]
    %v8542 = vld [vmem:[%s3356 + $0x320] sm:$0xff]
    %s8543 = scalar_lea.vmem [#allocation8], 768
    %v8544 = vld [vmem:[%s8543] sm:$0xff]
    %v8545 = vld [vmem:[%s8543 + $0x8] sm:$0xff]
    %v8546 = vld [vmem:[%s8543 + $0x10] sm:$0xff]
    %v8547 = vld [vmem:[%s8543 + $0x18] sm:$0xff]
    %v8548 = vld [vmem:[%s8543 + $0x20] sm:$0xff]
    %v8549 = vld [vmem:[%s8543 + $0x28] sm:$0xff]
    %v8550 = vld [vmem:[%s8543 + $0x30] sm:$0xff]
    %v8551 = vld [vmem:[%s8543 + $0x38] sm:$0xff]
    %v8552 = vld [vmem:[%s8543 + $0x40] sm:$0xff]
    %v8553 = vld [vmem:[%s8543 + $0x48] sm:$0xff]
    %v8554 = vld [vmem:[%s8543 + $0x50] sm:$0xff]
    %v8555 = vld [vmem:[%s8543 + $0x58] sm:$0xff]
    %v8556 = vld [vmem:[%s8543 + $0x60] sm:$0xff]
    %v8557 = vld [vmem:[%s8543 + $0x68] sm:$0xff]
    %v8558 = vld [vmem:[%s8543 + $0x70] sm:$0xff]
    %v8559 = vld [vmem:[%s8543 + $0x78] sm:$0xff]
    %8560 = vmatprep.subr.mxu0 0.0
    %8561 = vmatpush1.msra.mxu0 %v8544
    %8562 = vmatprep.subr.mxu0 0.0
    %8563 = vmatpush1.msra.mxu0 %v8545
    %8564 = vmatprep.subr.mxu0 0.0
    %8565 = vmatpush1.msra.mxu0 %v8546
    %8566 = vmatprep.subr.mxu0 0.0
    %8567 = vmatpush1.msra.mxu0 %v8547
    %8568 = vmatprep.subr.mxu0 0.0
    %8569 = vmatpush1.msra.mxu0 %v8548
    %8570 = vmatprep.subr.mxu0 0.0
    %8571 = vmatpush1.msra.mxu0 %v8549
    %8572 = vmatprep.subr.mxu0 0.0
    %8573 = vmatpush1.msra.mxu0 %v8550
    %8574 = vmatprep.subr.mxu0 0.0
    %8575 = vmatpush1.msra.mxu0 %v8551
    %8576 = vmatprep.subr.mxu0 0.0
    %8577 = vmatpush1.msra.mxu0 %v8552
    %8578 = vmatprep.subr.mxu0 0.0
    %8579 = vmatpush1.msra.mxu0 %v8553
    %8580 = vmatprep.subr.mxu0 0.0
    %8581 = vmatpush1.msra.mxu0 %v8554
    %8582 = vmatprep.subr.mxu0 0.0
    %8583 = vmatpush1.msra.mxu0 %v8555
    %8584 = vmatprep.subr.mxu0 0.0
    %8585 = vmatpush1.msra.mxu0 %v8556
    %8586 = vmatprep.subr.mxu0 0.0
    %8587 = vmatpush1.msra.mxu0 %v8557
    %8588 = vmatprep.subr.mxu0 0.0
    %8589 = vmatpush1.msra.mxu0 %v8558
    %8590 = vmatprep.subr.mxu0 0.0
    %8591 = vmatpush1.msra.mxu0 %v8559
    %8592 = vmatprep.subr.mxu0 0.0
    %8593 = vmatpush1.msra.mxu0 0.0
    %8594 = vmatprep.subr.mxu0 0.0
    %8595 = vmatpush1.msra.mxu0 0.0
    %8596 = vmatprep.subr.mxu0 0.0
    %8597 = vmatpush1.msra.mxu0 0.0
    %8598 = vmatprep.subr.mxu0 0.0
    %8599 = vmatpush1.msra.mxu0 0.0
    %8600 = vmatprep.subr.mxu0 0.0
    %8601 = vmatpush1.msra.mxu0 0.0
    %8602 = vmatprep.subr.mxu0 0.0
    %8603 = vmatpush1.msra.mxu0 0.0
    %8604 = vmatprep.subr.mxu0 0.0
    %8605 = vmatpush1.msra.mxu0 0.0
    %8606 = vmatprep.subr.mxu0 0.0
    %8607 = vmatpush1.msra.mxu0 0.0
    %8608 = vmatprep.subr.mxu0 0.0
    %8609 = vmatpush1.msra.mxu0 0.0
    %8610 = vmatprep.subr.mxu0 0.0
    %8611 = vmatpush1.msra.mxu0 0.0
    %8612 = vmatprep.subr.mxu0 0.0
    %8613 = vmatpush1.msra.mxu0 0.0
    %8614 = vmatprep.subr.mxu0 0.0
    %8615 = vmatpush1.msra.mxu0 0.0
    %8616 = vmatprep.subr.mxu0 0.0
    %8617 = vmatpush1.msra.mxu0 0.0
    %8618 = vmatprep.subr.mxu0 0.0
    %8619 = vmatpush1.msra.mxu0 0.0
    %8620 = vmatprep.subr.mxu0 0.0
    %8621 = vmatpush1.msra.mxu0 0.0
    %8622 = vmatprep.subr.mxu0 0.0
    %8623 = vmatpush1.msra.mxu0 0.0
    %8624 = vmatprep.mubr.f32.mxu0 0.0
    %8625 = vmatmul.mubr.f32.gmra.mrb[0].mxu0 %v8479
    %v8626 = vpop.f32.mrb[0].mxu0
    %v8627 = vadd.f32 0.0, %v8626
    %v8628 = vpop.f32.mrb[0].mxu0
    %8629 = vmatprep.mubr.f32.mxu0 0.0
    %8630 = vmatmul.mubr.f32.gmra.mrb[0].mxu0 %v8480
    %v8631 = vpop.f32.mrb[0].mxu0
    %v8632 = vadd.f32 0.0, %v8631
    %v8633 = vpop.f32.mrb[0].mxu0
    %8634 = vmatprep.mubr.f32.mxu0 0.0
    %8635 = vmatmul.mubr.f32.gmra.mrb[0].mxu0 %v8481
    %v8636 = vpop.f32.mrb[0].mxu0
    %v8637 = vadd.f32 0.0, %v8636
    %v8638 = vpop.f32.mrb[0].mxu0
    %8639 = vmatprep.mubr.f32.mxu0 0.0
    %8640 = vmatmul.mubr.f32.gmra.mrb[0].mxu0 %v8482
    %v8641 = vpop.f32.mrb[0].mxu0
    %v8642 = vadd.f32 0.0, %v8641
    %v8643 = vpop.f32.mrb[0].mxu0
    %8644 = vmatprep.mubr.f32.mxu0 0.0
    %8645 = vmatmul.mubr.f32.gmra.mrb[0].mxu0 %v8483
    %v8646 = vpop.f32.mrb[0].mxu0
    %v8647 = vadd.f32 0.0, %v8646
    %v8648 = vpop.f32.mrb[0].mxu0
    %8649 = vmatprep.mubr.f32.mxu0 0.0
    %8650 = vmatmul.mubr.f32.gmra.mrb[0].mxu0 %v8484
    %v8651 = vpop.f32.mrb[0].mxu0
    %v8652 = vadd.f32 0.0, %v8651
    %v8653 = vpop.f32.mrb[0].mxu0
    %8654 = vmatprep.mubr.f32.mxu0 0.0
    %8655 = vmatmul.mubr.f32.gmra.mrb[0].mxu0 %v8485
    %v8656 = vpop.f32.mrb[0].mxu0
    %v8657 = vadd.f32 0.0, %v8656
    %v8658 = vpop.f32.mrb[0].mxu0
    %8659 = vmatprep.mubr.f32.mxu0 0.0
    %8660 = vmatmul.mubr.f32.gmra.mrb[0].mxu0 %v8486
    %v8661 = vpop.f32.mrb[0].mxu0
    %v8662 = vadd.f32 0.0, %v8661
    %v8663 = vpop.f32.mrb[0].mxu0
    %8664 = vmatprep.mubr.f32.mxu0 0.0
    %8665 = vmatmul.mubr.f32.gmra.mrb[0].mxu0 %v8487
    %v8666 = vpop.f32.mrb[0].mxu0
    %v8667 = vadd.f32 0.0, %v8666
    %v8668 = vpop.f32.mrb[0].mxu0
    %8669 = vmatprep.mubr.f32.mxu0 0.0
    %8670 = vmatmul.mubr.f32.gmra.mrb[0].mxu0 %v8488
    %v8671 = vpop.f32.mrb[0].mxu0
    %v8672 = vadd.f32 0.0, %v8671
    %v8673 = vpop.f32.mrb[0].mxu0
    %8674 = vmatprep.mubr.f32.mxu0 0.0
    %8675 = vmatmul.mubr.f32.gmra.mrb[0].mxu0 %v8489
    %v8676 = vpop.f32.mrb[0].mxu0
    %v8677 = vadd.f32 0.0, %v8676
    %v8678 = vpop.f32.mrb[0].mxu0
    %8679 = vmatprep.mubr.f32.mxu0 0.0
    %8680 = vmatmul.mubr.f32.gmra.mrb[0].mxu0 %v8490
    %v8681 = vpop.f32.mrb[0].mxu0
    %v8682 = vadd.f32 0.0, %v8681
    %v8683 = vpop.f32.mrb[0].mxu0
    %8684 = vmatprep.mubr.f32.mxu0 0.0
    %8685 = vmatmul.mubr.f32.gmra.mrb[0].mxu0 %v8491
    %v8686 = vpop.f32.mrb[0].mxu0
    %v8687 = vadd.f32 0.0, %v8686
    %v8688 = vpop.f32.mrb[0].mxu0
    %8689 = vmatprep.mubr.f32.mxu0 0.0
    %8690 = vmatmul.mubr.f32.gmra.mrb[0].mxu0 %v8492
    %v8691 = vpop.f32.mrb[0].mxu0
    %v8692 = vadd.f32 0.0, %v8691
    %v8693 = vpop.f32.mrb[0].mxu0
    %8694 = vmatprep.mubr.f32.mxu0 0.0
    %8695 = vmatmul.mubr.f32.gmra.mrb[0].mxu0 %v8493
    %v8696 = vpop.f32.mrb[0].mxu0
    %v8697 = vadd.f32 0.0, %v8696
    %v8698 = vpop.f32.mrb[0].mxu0
    %8699 = vmatprep.mubr.f32.mxu0 0.0
    %8700 = vmatmul.mubr.f32.gmra.mrb[0].mxu0 %v8494
    %v8701 = vpop.f32.mrb[0].mxu0
    %v8702 = vadd.f32 0.0, %v8701
    %v8703 = vpop.f32.mrb[0].mxu0
    %8704 = vmatprep.mubr.f32.mxu0 0.0
    %8705 = vmatmul.mubr.f32.gmra.mrb[0].mxu0 %v8495
    %v8706 = vpop.f32.mrb[0].mxu0
    %v8707 = vadd.f32 0.0, %v8706
    %v8708 = vpop.f32.mrb[0].mxu0
    %8709 = vmatprep.mubr.f32.mxu0 0.0
    %8710 = vmatmul.mubr.f32.gmra.mrb[0].mxu0 %v8496
    %v8711 = vpop.f32.mrb[0].mxu0
    %v8712 = vadd.f32 0.0, %v8711
    %v8713 = vpop.f32.mrb[0].mxu0
    %8714 = vmatprep.mubr.f32.mxu0 0.0
    %8715 = vmatmul.mubr.f32.gmra.mrb[0].mxu0 %v8497
    %v8716 = vpop.f32.mrb[0].mxu0
    %v8717 = vadd.f32 0.0, %v8716
    %v8718 = vpop.f32.mrb[0].mxu0
    %8719 = vmatprep.mubr.f32.mxu0 0.0
    %8720 = vmatmul.mubr.f32.gmra.mrb[0].mxu0 %v8498
    %v8721 = vpop.f32.mrb[0].mxu0
    %v8722 = vadd.f32 0.0, %v8721
    %v8723 = vpop.f32.mrb[0].mxu0
    %8724 = vmatprep.mubr.f32.mxu0 0.0
    %8725 = vmatmul.mubr.f32.gmra.mrb[0].mxu0 %v8499
    %v8726 = vpop.f32.mrb[0].mxu0
    %v8727 = vadd.f32 0.0, %v8726
    %v8728 = vpop.f32.mrb[0].mxu0
    %8729 = vmatprep.mubr.f32.mxu0 0.0
    %8730 = vmatmul.mubr.f32.gmra.mrb[0].mxu0 %v8500
    %v8731 = vpop.f32.mrb[0].mxu0
    %v8732 = vadd.f32 0.0, %v8731
    %v8733 = vpop.f32.mrb[0].mxu0
    %8734 = vmatprep.mubr.f32.mxu0 0.0
    %8735 = vmatmul.mubr.f32.gmra.mrb[0].mxu0 %v8501
    %v8736 = vpop.f32.mrb[0].mxu0
    %v8737 = vadd.f32 0.0, %v8736
    %v8738 = vpop.f32.mrb[0].mxu0
    %8739 = vmatprep.mubr.f32.mxu0 0.0
    %8740 = vmatmul.mubr.f32.gmra.mrb[0].mxu0 %v8502
    %v8741 = vpop.f32.mrb[0].mxu0
    %v8742 = vadd.f32 0.0, %v8741
    %v8743 = vpop.f32.mrb[0].mxu0
    %8744 = vmatprep.mubr.f32.mxu0 0.0
    %8745 = vmatmul.mubr.f32.gmra.mrb[0].mxu0 %v8503
    %v8746 = vpop.f32.mrb[0].mxu0
    %v8747 = vadd.f32 0.0, %v8746
    %v8748 = vpop.f32.mrb[0].mxu0
    %8749 = vmatprep.mubr.f32.mxu0 0.0
    %8750 = vmatmul.mubr.f32.gmra.mrb[0].mxu0 %v8504
    %v8751 = vpop.f32.mrb[0].mxu0
    %v8752 = vadd.f32 0.0, %v8751
    %v8753 = vpop.f32.mrb[0].mxu0
    %8754 = vmatprep.mubr.f32.mxu0 0.0
    %8755 = vmatmul.mubr.f32.gmra.mrb[0].mxu0 %v8505
    %v8756 = vpop.f32.mrb[0].mxu0
    %v8757 = vadd.f32 0.0, %v8756
    %v8758 = vpop.f32.mrb[0].mxu0
    %8759 = vmatprep.mubr.f32.mxu0 0.0
    %8760 = vmatmul.mubr.f32.gmra.mrb[0].mxu0 %v8506
    %v8761 = vpop.f32.mrb[0].mxu0
    %v8762 = vadd.f32 0.0, %v8761
    %v8763 = vpop.f32.mrb[0].mxu0
    %8764 = vmatprep.mubr.f32.mxu0 0.0
    %8765 = vmatmul.mubr.f32.gmra.mrb[0].mxu0 %v8507
    %v8766 = vpop.f32.mrb[0].mxu0
    %v8767 = vadd.f32 0.0, %v8766
    %v8768 = vpop.f32.mrb[0].mxu0
    %8769 = vmatprep.mubr.f32.mxu0 0.0
    %8770 = vmatmul.mubr.f32.gmra.mrb[0].mxu0 %v8508
    %v8771 = vpop.f32.mrb[0].mxu0
    %v8772 = vadd.f32 0.0, %v8771
    %v8773 = vpop.f32.mrb[0].mxu0
    %8774 = vmatprep.mubr.f32.mxu0 0.0
    %8775 = vmatmul.mubr.f32.gmra.mrb[0].mxu0 %v8509
    %v8776 = vpop.f32.mrb[0].mxu0
    %v8777 = vadd.f32 0.0, %v8776
    %v8778 = vpop.f32.mrb[0].mxu0
    %8779 = vmatprep.mubr.f32.mxu0 0.0
    %8780 = vmatmul.mubr.f32.gmra.mrb[0].mxu0 %v8510
    %v8781 = vpop.f32.mrb[0].mxu0
    %v8782 = vadd.f32 0.0, %v8781
    %v8783 = vpop.f32.mrb[0].mxu0
    %8784 = vmatprep.mubr.f32.mxu0 0.0
    %8785 = vmatmul.mubr.f32.gmra.mrb[0].mxu0 %v8511
    %v8786 = vpop.f32.mrb[0].mxu0
    %v8787 = vadd.f32 0.0, %v8786
    %v8788 = vpop.f32.mrb[0].mxu0
    %8789 = vmatprep.mubr.f32.mxu0 0.0
    %8790 = vmatmul.mubr.f32.gmra.mrb[0].mxu0 %v8512
    %v8791 = vpop.f32.mrb[0].mxu0
    %v8792 = vadd.f32 0.0, %v8791
    %v8793 = vpop.f32.mrb[0].mxu0
    %8794 = vmatprep.mubr.f32.mxu0 0.0
    %8795 = vmatmul.mubr.f32.gmra.mrb[0].mxu0 %v8513
    %v8796 = vpop.f32.mrb[0].mxu0
    %v8797 = vadd.f32 0.0, %v8796
    %v8798 = vpop.f32.mrb[0].mxu0
    %8799 = vmatprep.mubr.f32.mxu0 0.0
    %8800 = vmatmul.mubr.f32.gmra.mrb[0].mxu0 %v8514
    %v8801 = vpop.f32.mrb[0].mxu0
    %v8802 = vadd.f32 0.0, %v8801
    %v8803 = vpop.f32.mrb[0].mxu0
    %8804 = vmatprep.mubr.f32.mxu0 0.0
    %8805 = vmatmul.mubr.f32.gmra.mrb[0].mxu0 %v8515
    %v8806 = vpop.f32.mrb[0].mxu0
    %v8807 = vadd.f32 0.0, %v8806
    %v8808 = vpop.f32.mrb[0].mxu0
    %8809 = vmatprep.mubr.f32.mxu0 0.0
    %8810 = vmatmul.mubr.f32.gmra.mrb[0].mxu0 %v8516
    %v8811 = vpop.f32.mrb[0].mxu0
    %v8812 = vadd.f32 0.0, %v8811
    %v8813 = vpop.f32.mrb[0].mxu0
    %8814 = vmatprep.mubr.f32.mxu0 0.0
    %8815 = vmatmul.mubr.f32.gmra.mrb[0].mxu0 %v8517
    %v8816 = vpop.f32.mrb[0].mxu0
    %v8817 = vadd.f32 0.0, %v8816
    %v8818 = vpop.f32.mrb[0].mxu0
    %8819 = vmatprep.mubr.f32.mxu0 0.0
    %8820 = vmatmul.mubr.f32.gmra.mrb[0].mxu0 %v8518
    %v8821 = vpop.f32.mrb[0].mxu0
    %v8822 = vadd.f32 0.0, %v8821
    %v8823 = vpop.f32.mrb[0].mxu0
    %8824 = vmatprep.mubr.f32.mxu0 0.0
    %8825 = vmatmul.mubr.f32.gmra.mrb[0].mxu0 %v8519
    %v8826 = vpop.f32.mrb[0].mxu0
    %v8827 = vadd.f32 0.0, %v8826
    %v8828 = vpop.f32.mrb[0].mxu0
    %8829 = vmatprep.mubr.f32.mxu0 0.0
    %8830 = vmatmul.mubr.f32.gmra.mrb[0].mxu0 %v8520
    %v8831 = vpop.f32.mrb[0].mxu0
    %v8832 = vadd.f32 0.0, %v8831
    %v8833 = vpop.f32.mrb[0].mxu0
    %8834 = vmatprep.mubr.f32.mxu0 0.0
    %8835 = vmatmul.mubr.f32.gmra.mrb[0].mxu0 %v8521
    %v8836 = vpop.f32.mrb[0].mxu0
    %v8837 = vadd.f32 0.0, %v8836
    %v8838 = vpop.f32.mrb[0].mxu0
    %8839 = vmatprep.mubr.f32.mxu0 0.0
    %8840 = vmatmul.mubr.f32.gmra.mrb[0].mxu0 %v8522
    %v8841 = vpop.f32.mrb[0].mxu0
    %v8842 = vadd.f32 0.0, %v8841
    %v8843 = vpop.f32.mrb[0].mxu0
    %8844 = vmatprep.mubr.f32.mxu0 0.0
    %8845 = vmatmul.mubr.f32.gmra.mrb[0].mxu0 %v8523
    %v8846 = vpop.f32.mrb[0].mxu0
    %v8847 = vadd.f32 0.0, %v8846
    %v8848 = vpop.f32.mrb[0].mxu0
    %8849 = vmatprep.mubr.f32.mxu0 0.0
    %8850 = vmatmul.mubr.f32.gmra.mrb[0].mxu0 %v8524
    %v8851 = vpop.f32.mrb[0].mxu0
    %v8852 = vadd.f32 0.0, %v8851
    %v8853 = vpop.f32.mrb[0].mxu0
    %8854 = vmatprep.mubr.f32.mxu0 0.0
    %8855 = vmatmul.mubr.f32.gmra.mrb[0].mxu0 %v8525
    %v8856 = vpop.f32.mrb[0].mxu0
    %v8857 = vadd.f32 0.0, %v8856
    %v8858 = vpop.f32.mrb[0].mxu0
    %8859 = vmatprep.mubr.f32.mxu0 0.0
    %8860 = vmatmul.mubr.f32.gmra.mrb[0].mxu0 %v8526
    %v8861 = vpop.f32.mrb[0].mxu0
    %v8862 = vadd.f32 0.0, %v8861
    %v8863 = vpop.f32.mrb[0].mxu0
    %8864 = vmatprep.mubr.f32.mxu0 0.0
    %8865 = vmatmul.mubr.f32.gmra.mrb[0].mxu0 %v8527
    %v8866 = vpop.f32.mrb[0].mxu0
    %v8867 = vadd.f32 0.0, %v8866
    %v8868 = vpop.f32.mrb[0].mxu0
    %8869 = vmatprep.mubr.f32.mxu0 0.0
    %8870 = vmatmul.mubr.f32.gmra.mrb[0].mxu0 %v8528
    %v8871 = vpop.f32.mrb[0].mxu0
    %v8872 = vadd.f32 0.0, %v8871
    %v8873 = vpop.f32.mrb[0].mxu0
    %8874 = vmatprep.mubr.f32.mxu0 0.0
    %8875 = vmatmul.mubr.f32.gmra.mrb[0].mxu0 %v8529
    %v8876 = vpop.f32.mrb[0].mxu0
    %v8877 = vadd.f32 0.0, %v8876
    %v8878 = vpop.f32.mrb[0].mxu0
    %8879 = vmatprep.mubr.f32.mxu0 0.0
    %8880 = vmatmul.mubr.f32.gmra.mrb[0].mxu0 %v8530
    %v8881 = vpop.f32.mrb[0].mxu0
    %v8882 = vadd.f32 0.0, %v8881
    %v8883 = vpop.f32.mrb[0].mxu0
    %8884 = vmatprep.mubr.f32.mxu0 0.0
    %8885 = vmatmul.mubr.f32.gmra.mrb[0].mxu0 %v8531
    %v8886 = vpop.f32.mrb[0].mxu0
    %v8887 = vadd.f32 0.0, %v8886
    %v8888 = vpop.f32.mrb[0].mxu0
    %8889 = vmatprep.mubr.f32.mxu0 0.0
    %8890 = vmatmul.mubr.f32.gmra.mrb[0].mxu0 %v8532
    %v8891 = vpop.f32.mrb[0].mxu0
    %v8892 = vadd.f32 0.0, %v8891
    %v8893 = vpop.f32.mrb[0].mxu0
    %8894 = vmatprep.mubr.f32.mxu0 0.0
    %8895 = vmatmul.mubr.f32.gmra.mrb[0].mxu0 %v8533
    %v8896 = vpop.f32.mrb[0].mxu0
    %v8897 = vadd.f32 0.0, %v8896
    %v8898 = vpop.f32.mrb[0].mxu0
    %8899 = vmatprep.mubr.f32.mxu0 0.0
    %8900 = vmatmul.mubr.f32.gmra.mrb[0].mxu0 %v8534
    %v8901 = vpop.f32.mrb[0].mxu0
    %v8902 = vadd.f32 0.0, %v8901
    %v8903 = vpop.f32.mrb[0].mxu0
    %8904 = vmatprep.mubr.f32.mxu0 0.0
    %8905 = vmatmul.mubr.f32.gmra.mrb[0].mxu0 %v8535
    %v8906 = vpop.f32.mrb[0].mxu0
    %v8907 = vadd.f32 0.0, %v8906
    %v8908 = vpop.f32.mrb[0].mxu0
    %8909 = vmatprep.mubr.f32.mxu0 0.0
    %8910 = vmatmul.mubr.f32.gmra.mrb[0].mxu0 %v8536
    %v8911 = vpop.f32.mrb[0].mxu0
    %v8912 = vadd.f32 0.0, %v8911
    %v8913 = vpop.f32.mrb[0].mxu0
    %8914 = vmatprep.mubr.f32.mxu0 0.0
    %8915 = vmatmul.mubr.f32.gmra.mrb[0].mxu0 %v8537
    %v8916 = vpop.f32.mrb[0].mxu0
    %v8917 = vadd.f32 0.0, %v8916
    %v8918 = vpop.f32.mrb[0].mxu0
    %8919 = vmatprep.mubr.f32.mxu0 0.0
    %8920 = vmatmul.mubr.f32.gmra.mrb[0].mxu0 %v8538
    %v8921 = vpop.f32.mrb[0].mxu0
    %v8922 = vadd.f32 0.0, %v8921
    %v8923 = vpop.f32.mrb[0].mxu0
    %8924 = vmatprep.mubr.f32.mxu0 0.0
    %8925 = vmatmul.mubr.f32.gmra.mrb[0].mxu0 %v8539
    %v8926 = vpop.f32.mrb[0].mxu0
    %v8927 = vadd.f32 0.0, %v8926
    %v8928 = vpop.f32.mrb[0].mxu0
    %8929 = vmatprep.mubr.f32.mxu0 0.0
    %8930 = vmatmul.mubr.f32.gmra.mrb[0].mxu0 %v8540
    %v8931 = vpop.f32.mrb[0].mxu0
    %v8932 = vadd.f32 0.0, %v8931
    %v8933 = vpop.f32.mrb[0].mxu0
    %8934 = vmatprep.mubr.f32.mxu0 0.0
    %8935 = vmatmul.mubr.f32.gmra.mrb[0].mxu0 %v8541
    %v8936 = vpop.f32.mrb[0].mxu0
    %v8937 = vadd.f32 0.0, %v8936
    %v8938 = vpop.f32.mrb[0].mxu0
    %8939 = vmatprep.mubr.f32.mxu0 0.0
    %8940 = vmatmul.mubr.f32.gmra.mrb[0].mxu0 %v8542
    %v8941 = vpop.f32.mrb[0].mxu0
    %v8942 = vadd.f32 0.0, %v8941
    %v8943 = vpop.f32.mrb[0].mxu0
    %8944 = vdwg.mxu0
    %v8945 = vadd.f32 %v8415, %v8627
    %v8946 = vadd.f32 %v8416, %v8632
    %v8947 = vadd.f32 %v8417, %v8637
    %v8948 = vadd.f32 %v8418, %v8642
    %v8949 = vadd.f32 %v8419, %v8647
    %v8950 = vadd.f32 %v8420, %v8652
    %v8951 = vadd.f32 %v8421, %v8657
    %v8952 = vadd.f32 %v8422, %v8662
    %v8953 = vadd.f32 %v8423, %v8667
    %v8954 = vadd.f32 %v8424, %v8672
    %v8955 = vadd.f32 %v8425, %v8677
    %v8956 = vadd.f32 %v8426, %v8682
    %v8957 = vadd.f32 %v8427, %v8687
    %v8958 = vadd.f32 %v8428, %v8692
    %v8959 = vadd.f32 %v8429, %v8697
    %v8960 = vadd.f32 %v8430, %v8702
    %v8961 = vadd.f32 %v8431, %v8707
    %v8962 = vadd.f32 %v8432, %v8712
    %v8963 = vadd.f32 %v8433, %v8717
    %v8964 = vadd.f32 %v8434, %v8722
    %v8965 = vadd.f32 %v8435, %v8727
    %v8966 = vadd.f32 %v8436, %v8732
    %v8967 = vadd.f32 %v8437, %v8737
    %v8968 = vadd.f32 %v8438, %v8742
    %v8969 = vadd.f32 %v8439, %v8747
    %v8970 = vadd.f32 %v8440, %v8752
    %v8971 = vadd.f32 %v8441, %v8757
    %v8972 = vadd.f32 %v8442, %v8762
    %v8973 = vadd.f32 %v8443, %v8767
    %v8974 = vadd.f32 %v8444, %v8772
    %v8975 = vadd.f32 %v8445, %v8777
    %v8976 = vadd.f32 %v8446, %v8782
    %v8977 = vadd.f32 %v8447, %v8787
    %v8978 = vadd.f32 %v8448, %v8792
    %v8979 = vadd.f32 %v8449, %v8797
    %v8980 = vadd.f32 %v8450, %v8802
    %v8981 = vadd.f32 %v8451, %v8807
    %v8982 = vadd.f32 %v8452, %v8812
    %v8983 = vadd.f32 %v8453, %v8817
    %v8984 = vadd.f32 %v8454, %v8822
    %v8985 = vadd.f32 %v8455, %v8827
    %v8986 = vadd.f32 %v8456, %v8832
    %v8987 = vadd.f32 %v8457, %v8837
    %v8988 = vadd.f32 %v8458, %v8842
    %v8989 = vadd.f32 %v8459, %v8847
    %v8990 = vadd.f32 %v8460, %v8852
    %v8991 = vadd.f32 %v8461, %v8857
    %v8992 = vadd.f32 %v8462, %v8862
    %v8993 = vadd.f32 %v8463, %v8867
    %v8994 = vadd.f32 %v8464, %v8872
    %v8995 = vadd.f32 %v8465, %v8877
    %v8996 = vadd.f32 %v8466, %v8882
    %v8997 = vadd.f32 %v8467, %v8887
    %v8998 = vadd.f32 %v8468, %v8892
    %v8999 = vadd.f32 %v8469, %v8897
    %v9000 = vadd.f32 %v8470, %v8902
    %v9001 = vadd.f32 %v8471, %v8907
    %v9002 = vadd.f32 %v8472, %v8912
    %v9003 = vadd.f32 %v8473, %v8917
    %v9004 = vadd.f32 %v8474, %v8922
    %v9005 = vadd.f32 %v8475, %v8927
    %v9006 = vadd.f32 %v8476, %v8932
    %v9007 = vadd.f32 %v8477, %v8937
    %v9008 = vadd.f32 %v8478, %v8942
    %v9009 = vld [vmem:[%s3356 + $0x1] sm:$0xff]
    %v9010 = vld [vmem:[%s3356 + $0x9] sm:$0xff]
    %v9011 = vld [vmem:[%s3356 + $0x19] sm:$0xff]
    %v9012 = vld [vmem:[%s3356 + $0x21] sm:$0xff]
    %v9013 = vld [vmem:[%s3356 + $0x31] sm:$0xff]
    %v9014 = vld [vmem:[%s3356 + $0x39] sm:$0xff]
    %v9015 = vld [vmem:[%s3356 + $0x49] sm:$0xff]
    %v9016 = vld [vmem:[%s3356 + $0x51] sm:$0xff]
    %v9017 = vld [vmem:[%s3356 + $0x61] sm:$0xff]
    %v9018 = vld [vmem:[%s3356 + $0x69] sm:$0xff]
    %v9019 = vld [vmem:[%s3356 + $0x79] sm:$0xff]
    %v9020 = vld [vmem:[%s3356 + $0x81] sm:$0xff]
    %v9021 = vld [vmem:[%s3356 + $0x91] sm:$0xff]
    %v9022 = vld [vmem:[%s3356 + $0x99] sm:$0xff]
    %v9023 = vld [vmem:[%s3356 + $0xa9] sm:$0xff]
    %v9024 = vld [vmem:[%s3356 + $0xb1] sm:$0xff]
    %v9025 = vld [vmem:[%s3356 + $0xc1] sm:$0xff]
    %v9026 = vld [vmem:[%s3356 + $0xc9] sm:$0xff]
    %v9027 = vld [vmem:[%s3356 + $0xd9] sm:$0xff]
    %v9028 = vld [vmem:[%s3356 + $0xe1] sm:$0xff]
    %v9029 = vld [vmem:[%s3356 + $0xf1] sm:$0xff]
    %v9030 = vld [vmem:[%s3356 + $0xf9] sm:$0xff]
    %v9031 = vld [vmem:[%s3356 + $0x109] sm:$0xff]
    %v9032 = vld [vmem:[%s3356 + $0x111] sm:$0xff]
    %v9033 = vld [vmem:[%s3356 + $0x121] sm:$0xff]
    %v9034 = vld [vmem:[%s3356 + $0x129] sm:$0xff]
    %v9035 = vld [vmem:[%s3356 + $0x139] sm:$0xff]
    %v9036 = vld [vmem:[%s3356 + $0x141] sm:$0xff]
    %v9037 = vld [vmem:[%s3356 + $0x151] sm:$0xff]
    %v9038 = vld [vmem:[%s3356 + $0x159] sm:$0xff]
    %v9039 = vld [vmem:[%s3356 + $0x169] sm:$0xff]
    %v9040 = vld [vmem:[%s3356 + $0x171] sm:$0xff]
    %v9041 = vld [vmem:[%s3356 + $0x1b1] sm:$0xff]
    %v9042 = vld [vmem:[%s3356 + $0x1b9] sm:$0xff]
    %v9043 = vld [vmem:[%s3356 + $0x1c9] sm:$0xff]
    %v9044 = vld [vmem:[%s3356 + $0x1d1] sm:$0xff]
    %v9045 = vld [vmem:[%s3356 + $0x1e1] sm:$0xff]
    %v9046 = vld [vmem:[%s3356 + $0x1e9] sm:$0xff]
    %v9047 = vld [vmem:[%s3356 + $0x1f9] sm:$0xff]
    %v9048 = vld [vmem:[%s3356 + $0x201] sm:$0xff]
    %v9049 = vld [vmem:[%s3356 + $0x211] sm:$0xff]
    %v9050 = vld [vmem:[%s3356 + $0x219] sm:$0xff]
    %v9051 = vld [vmem:[%s3356 + $0x229] sm:$0xff]
    %v9052 = vld [vmem:[%s3356 + $0x231] sm:$0xff]
    %v9053 = vld [vmem:[%s3356 + $0x241] sm:$0xff]
    %v9054 = vld [vmem:[%s3356 + $0x249] sm:$0xff]
    %v9055 = vld [vmem:[%s3356 + $0x259] sm:$0xff]
    %v9056 = vld [vmem:[%s3356 + $0x261] sm:$0xff]
    %v9057 = vld [vmem:[%s3356 + $0x271] sm:$0xff]
    %v9058 = vld [vmem:[%s3356 + $0x279] sm:$0xff]
    %v9059 = vld [vmem:[%s3356 + $0x289] sm:$0xff]
    %v9060 = vld [vmem:[%s3356 + $0x291] sm:$0xff]
    %v9061 = vld [vmem:[%s3356 + $0x2a1] sm:$0xff]
    %v9062 = vld [vmem:[%s3356 + $0x2a9] sm:$0xff]
    %v9063 = vld [vmem:[%s3356 + $0x2b9] sm:$0xff]
    %v9064 = vld [vmem:[%s3356 + $0x2c1] sm:$0xff]
    %v9065 = vld [vmem:[%s3356 + $0x2d1] sm:$0xff]
    %v9066 = vld [vmem:[%s3356 + $0x2d9] sm:$0xff]
    %v9067 = vld [vmem:[%s3356 + $0x2e9] sm:$0xff]
    %v9068 = vld [vmem:[%s3356 + $0x2f1] sm:$0xff]
    %v9069 = vld [vmem:[%s3356 + $0x301] sm:$0xff]
    %v9070 = vld [vmem:[%s3356 + $0x309] sm:$0xff]
    %v9071 = vld [vmem:[%s3356 + $0x319] sm:$0xff]
    %v9072 = vld [vmem:[%s3356 + $0x321] sm:$0xff]
    %s9073 = scalar_lea.vmem [#allocation8], 896
    %v9074 = vld [vmem:[%s9073] sm:$0xff]
    %v9075 = vld [vmem:[%s9073 + $0x8] sm:$0xff]
    %v9076 = vld [vmem:[%s9073 + $0x10] sm:$0xff]
    %v9077 = vld [vmem:[%s9073 + $0x18] sm:$0xff]
    %v9078 = vld [vmem:[%s9073 + $0x20] sm:$0xff]
    %v9079 = vld [vmem:[%s9073 + $0x28] sm:$0xff]
    %v9080 = vld [vmem:[%s9073 + $0x30] sm:$0xff]
    %v9081 = vld [vmem:[%s9073 + $0x38] sm:$0xff]
    %v9082 = vld [vmem:[%s9073 + $0x40] sm:$0xff]
    %v9083 = vld [vmem:[%s9073 + $0x48] sm:$0xff]
    %v9084 = vld [vmem:[%s9073 + $0x50] sm:$0xff]
    %v9085 = vld [vmem:[%s9073 + $0x58] sm:$0xff]
    %v9086 = vld [vmem:[%s9073 + $0x60] sm:$0xff]
    %v9087 = vld [vmem:[%s9073 + $0x68] sm:$0xff]
    %v9088 = vld [vmem:[%s9073 + $0x70] sm:$0xff]
    %v9089 = vld [vmem:[%s9073 + $0x78] sm:$0xff]
    %9090 = vmatprep.subr.mxu0 0.0
    %9091 = vmatpush1.msra.mxu0 %v9074
    %9092 = vmatprep.subr.mxu0 0.0
    %9093 = vmatpush1.msra.mxu0 %v9075
    %9094 = vmatprep.subr.mxu0 0.0
    %9095 = vmatpush1.msra.mxu0 %v9076
    %9096 = vmatprep.subr.mxu0 0.0
    %9097 = vmatpush1.msra.mxu0 %v9077
    %9098 = vmatprep.subr.mxu0 0.0
    %9099 = vmatpush1.msra.mxu0 %v9078
    %9100 = vmatprep.subr.mxu0 0.0
    %9101 = vmatpush1.msra.mxu0 %v9079
    %9102 = vmatprep.subr.mxu0 0.0
    %9103 = vmatpush1.msra.mxu0 %v9080
    %9104 = vmatprep.subr.mxu0 0.0
    %9105 = vmatpush1.msra.mxu0 %v9081
    %9106 = vmatprep.subr.mxu0 0.0
    %9107 = vmatpush1.msra.mxu0 %v9082
    %9108 = vmatprep.subr.mxu0 0.0
    %9109 = vmatpush1.msra.mxu0 %v9083
    %9110 = vmatprep.subr.mxu0 0.0
    %9111 = vmatpush1.msra.mxu0 %v9084
    %9112 = vmatprep.subr.mxu0 0.0
    %9113 = vmatpush1.msra.mxu0 %v9085
    %9114 = vmatprep.subr.mxu0 0.0
    %9115 = vmatpush1.msra.mxu0 %v9086
    %9116 = vmatprep.subr.mxu0 0.0
    %9117 = vmatpush1.msra.mxu0 %v9087
    %9118 = vmatprep.subr.mxu0 0.0
    %9119 = vmatpush1.msra.mxu0 %v9088
    %9120 = vmatprep.subr.mxu0 0.0
    %9121 = vmatpush1.msra.mxu0 %v9089
    %9122 = vmatprep.subr.mxu0 0.0
    %9123 = vmatpush1.msra.mxu0 0.0
    %9124 = vmatprep.subr.mxu0 0.0
    %9125 = vmatpush1.msra.mxu0 0.0
    %9126 = vmatprep.subr.mxu0 0.0
    %9127 = vmatpush1.msra.mxu0 0.0
    %9128 = vmatprep.subr.mxu0 0.0
    %9129 = vmatpush1.msra.mxu0 0.0
    %9130 = vmatprep.subr.mxu0 0.0
    %9131 = vmatpush1.msra.mxu0 0.0
    %9132 = vmatprep.subr.mxu0 0.0
    %9133 = vmatpush1.msra.mxu0 0.0
    %9134 = vmatprep.subr.mxu0 0.0
    %9135 = vmatpush1.msra.mxu0 0.0
    %9136 = vmatprep.subr.mxu0 0.0
    %9137 = vmatpush1.msra.mxu0 0.0
    %9138 = vmatprep.subr.mxu0 0.0
    %9139 = vmatpush1.msra.mxu0 0.0
    %9140 = vmatprep.subr.mxu0 0.0
    %9141 = vmatpush1.msra.mxu0 0.0
    %9142 = vmatprep.subr.mxu0 0.0
    %9143 = vmatpush1.msra.mxu0 0.0
    %9144 = vmatprep.subr.mxu0 0.0
    %9145 = vmatpush1.msra.mxu0 0.0
    %9146 = vmatprep.subr.mxu0 0.0
    %9147 = vmatpush1.msra.mxu0 0.0
    %9148 = vmatprep.subr.mxu0 0.0
    %9149 = vmatpush1.msra.mxu0 0.0
    %9150 = vmatprep.subr.mxu0 0.0
    %9151 = vmatpush1.msra.mxu0 0.0
    %9152 = vmatprep.subr.mxu0 0.0
    %9153 = vmatpush1.msra.mxu0 0.0
    %9154 = vmatprep.mubr.f32.mxu0 0.0
    %9155 = vmatmul.mubr.f32.gmra.mrb[0].mxu0 %v9009
    %v9156 = vpop.f32.mrb[0].mxu0
    %v9157 = vadd.f32 0.0, %v9156
    %v9158 = vpop.f32.mrb[0].mxu0
    %9159 = vmatprep.mubr.f32.mxu0 0.0
    %9160 = vmatmul.mubr.f32.gmra.mrb[0].mxu0 %v9010
    %v9161 = vpop.f32.mrb[0].mxu0
    %v9162 = vadd.f32 0.0, %v9161
    %v9163 = vpop.f32.mrb[0].mxu0
    %9164 = vmatprep.mubr.f32.mxu0 0.0
    %9165 = vmatmul.mubr.f32.gmra.mrb[0].mxu0 %v9011
    %v9166 = vpop.f32.mrb[0].mxu0
    %v9167 = vadd.f32 0.0, %v9166
    %v9168 = vpop.f32.mrb[0].mxu0
    %9169 = vmatprep.mubr.f32.mxu0 0.0
    %9170 = vmatmul.mubr.f32.gmra.mrb[0].mxu0 %v9012
    %v9171 = vpop.f32.mrb[0].mxu0
    %v9172 = vadd.f32 0.0, %v9171
    %v9173 = vpop.f32.mrb[0].mxu0
    %9174 = vmatprep.mubr.f32.mxu0 0.0
    %9175 = vmatmul.mubr.f32.gmra.mrb[0].mxu0 %v9013
    %v9176 = vpop.f32.mrb[0].mxu0
    %v9177 = vadd.f32 0.0, %v9176
    %v9178 = vpop.f32.mrb[0].mxu0
    %9179 = vmatprep.mubr.f32.mxu0 0.0
    %9180 = vmatmul.mubr.f32.gmra.mrb[0].mxu0 %v9014
    %v9181 = vpop.f32.mrb[0].mxu0
    %v9182 = vadd.f32 0.0, %v9181
    %v9183 = vpop.f32.mrb[0].mxu0
    %9184 = vmatprep.mubr.f32.mxu0 0.0
    %9185 = vmatmul.mubr.f32.gmra.mrb[0].mxu0 %v9015
    %v9186 = vpop.f32.mrb[0].mxu0
    %v9187 = vadd.f32 0.0, %v9186
    %v9188 = vpop.f32.mrb[0].mxu0
    %9189 = vmatprep.mubr.f32.mxu0 0.0
    %9190 = vmatmul.mubr.f32.gmra.mrb[0].mxu0 %v9016
    %v9191 = vpop.f32.mrb[0].mxu0
    %v9192 = vadd.f32 0.0, %v9191
    %v9193 = vpop.f32.mrb[0].mxu0
    %9194 = vmatprep.mubr.f32.mxu0 0.0
    %9195 = vmatmul.mubr.f32.gmra.mrb[0].mxu0 %v9017
    %v9196 = vpop.f32.mrb[0].mxu0
    %v9197 = vadd.f32 0.0, %v9196
    %v9198 = vpop.f32.mrb[0].mxu0
    %9199 = vmatprep.mubr.f32.mxu0 0.0
    %9200 = vmatmul.mubr.f32.gmra.mrb[0].mxu0 %v9018
    %v9201 = vpop.f32.mrb[0].mxu0
    %v9202 = vadd.f32 0.0, %v9201
    %v9203 = vpop.f32.mrb[0].mxu0
    %9204 = vmatprep.mubr.f32.mxu0 0.0
    %9205 = vmatmul.mubr.f32.gmra.mrb[0].mxu0 %v9019
    %v9206 = vpop.f32.mrb[0].mxu0
    %v9207 = vadd.f32 0.0, %v9206
    %v9208 = vpop.f32.mrb[0].mxu0
    %9209 = vmatprep.mubr.f32.mxu0 0.0
    %9210 = vmatmul.mubr.f32.gmra.mrb[0].mxu0 %v9020
    %v9211 = vpop.f32.mrb[0].mxu0
    %v9212 = vadd.f32 0.0, %v9211
    %v9213 = vpop.f32.mrb[0].mxu0
    %9214 = vmatprep.mubr.f32.mxu0 0.0
    %9215 = vmatmul.mubr.f32.gmra.mrb[0].mxu0 %v9021
    %v9216 = vpop.f32.mrb[0].mxu0
    %v9217 = vadd.f32 0.0, %v9216
    %v9218 = vpop.f32.mrb[0].mxu0
    %9219 = vmatprep.mubr.f32.mxu0 0.0
    %9220 = vmatmul.mubr.f32.gmra.mrb[0].mxu0 %v9022
    %v9221 = vpop.f32.mrb[0].mxu0
    %v9222 = vadd.f32 0.0, %v9221
    %v9223 = vpop.f32.mrb[0].mxu0
    %9224 = vmatprep.mubr.f32.mxu0 0.0
    %9225 = vmatmul.mubr.f32.gmra.mrb[0].mxu0 %v9023
    %v9226 = vpop.f32.mrb[0].mxu0
    %v9227 = vadd.f32 0.0, %v9226
    %v9228 = vpop.f32.mrb[0].mxu0
    %9229 = vmatprep.mubr.f32.mxu0 0.0
    %9230 = vmatmul.mubr.f32.gmra.mrb[0].mxu0 %v9024
    %v9231 = vpop.f32.mrb[0].mxu0
    %v9232 = vadd.f32 0.0, %v9231
    %v9233 = vpop.f32.mrb[0].mxu0
    %9234 = vmatprep.mubr.f32.mxu0 0.0
    %9235 = vmatmul.mubr.f32.gmra.mrb[0].mxu0 %v9025
    %v9236 = vpop.f32.mrb[0].mxu0
    %v9237 = vadd.f32 0.0, %v9236
    %v9238 = vpop.f32.mrb[0].mxu0
    %9239 = vmatprep.mubr.f32.mxu0 0.0
    %9240 = vmatmul.mubr.f32.gmra.mrb[0].mxu0 %v9026
    %v9241 = vpop.f32.mrb[0].mxu0
    %v9242 = vadd.f32 0.0, %v9241
    %v9243 = vpop.f32.mrb[0].mxu0
    %9244 = vmatprep.mubr.f32.mxu0 0.0
    %9245 = vmatmul.mubr.f32.gmra.mrb[0].mxu0 %v9027
    %v9246 = vpop.f32.mrb[0].mxu0
    %v9247 = vadd.f32 0.0, %v9246
    %v9248 = vpop.f32.mrb[0].mxu0
    %9249 = vmatprep.mubr.f32.mxu0 0.0
    %9250 = vmatmul.mubr.f32.gmra.mrb[0].mxu0 %v9028
    %v9251 = vpop.f32.mrb[0].mxu0
    %v9252 = vadd.f32 0.0, %v9251
    %v9253 = vpop.f32.mrb[0].mxu0
    %9254 = vmatprep.mubr.f32.mxu0 0.0
    %9255 = vmatmul.mubr.f32.gmra.mrb[0].mxu0 %v9029
    %v9256 = vpop.f32.mrb[0].mxu0
    %v9257 = vadd.f32 0.0, %v9256
    %v9258 = vpop.f32.mrb[0].mxu0
    %9259 = vmatprep.mubr.f32.mxu0 0.0
    %9260 = vmatmul.mubr.f32.gmra.mrb[0].mxu0 %v9030
    %v9261 = vpop.f32.mrb[0].mxu0
    %v9262 = vadd.f32 0.0, %v9261
    %v9263 = vpop.f32.mrb[0].mxu0
    %9264 = vmatprep.mubr.f32.mxu0 0.0
    %9265 = vmatmul.mubr.f32.gmra.mrb[0].mxu0 %v9031
    %v9266 = vpop.f32.mrb[0].mxu0
    %v9267 = vadd.f32 0.0, %v9266
    %v9268 = vpop.f32.mrb[0].mxu0
    %9269 = vmatprep.mubr.f32.mxu0 0.0
    %9270 = vmatmul.mubr.f32.gmra.mrb[0].mxu0 %v9032
    %v9271 = vpop.f32.mrb[0].mxu0
    %v9272 = vadd.f32 0.0, %v9271
    %v9273 = vpop.f32.mrb[0].mxu0
    %9274 = vmatprep.mubr.f32.mxu0 0.0
    %9275 = vmatmul.mubr.f32.gmra.mrb[0].mxu0 %v9033
    %v9276 = vpop.f32.mrb[0].mxu0
    %v9277 = vadd.f32 0.0, %v9276
    %v9278 = vpop.f32.mrb[0].mxu0
    %9279 = vmatprep.mubr.f32.mxu0 0.0
    %9280 = vmatmul.mubr.f32.gmra.mrb[0].mxu0 %v9034
    %v9281 = vpop.f32.mrb[0].mxu0
    %v9282 = vadd.f32 0.0, %v9281
    %v9283 = vpop.f32.mrb[0].mxu0
    %9284 = vmatprep.mubr.f32.mxu0 0.0
    %9285 = vmatmul.mubr.f32.gmra.mrb[0].mxu0 %v9035
    %v9286 = vpop.f32.mrb[0].mxu0
    %v9287 = vadd.f32 0.0, %v9286
    %v9288 = vpop.f32.mrb[0].mxu0
    %9289 = vmatprep.mubr.f32.mxu0 0.0
    %9290 = vmatmul.mubr.f32.gmra.mrb[0].mxu0 %v9036
    %v9291 = vpop.f32.mrb[0].mxu0
    %v9292 = vadd.f32 0.0, %v9291
    %v9293 = vpop.f32.mrb[0].mxu0
    %9294 = vmatprep.mubr.f32.mxu0 0.0
    %9295 = vmatmul.mubr.f32.gmra.mrb[0].mxu0 %v9037
    %v9296 = vpop.f32.mrb[0].mxu0
    %v9297 = vadd.f32 0.0, %v9296
    %v9298 = vpop.f32.mrb[0].mxu0
    %9299 = vmatprep.mubr.f32.mxu0 0.0
    %9300 = vmatmul.mubr.f32.gmra.mrb[0].mxu0 %v9038
    %v9301 = vpop.f32.mrb[0].mxu0
    %v9302 = vadd.f32 0.0, %v9301
    %v9303 = vpop.f32.mrb[0].mxu0
    %9304 = vmatprep.mubr.f32.mxu0 0.0
    %9305 = vmatmul.mubr.f32.gmra.mrb[0].mxu0 %v9039
    %v9306 = vpop.f32.mrb[0].mxu0
    %v9307 = vadd.f32 0.0, %v9306
    %v9308 = vpop.f32.mrb[0].mxu0
    %9309 = vmatprep.mubr.f32.mxu0 0.0
    %9310 = vmatmul.mubr.f32.gmra.mrb[0].mxu0 %v9040
    %v9311 = vpop.f32.mrb[0].mxu0
    %v9312 = vadd.f32 0.0, %v9311
    %v9313 = vpop.f32.mrb[0].mxu0
    %9314 = vmatprep.mubr.f32.mxu0 0.0
    %9315 = vmatmul.mubr.f32.gmra.mrb[0].mxu0 %v9041
    %v9316 = vpop.f32.mrb[0].mxu0
    %v9317 = vadd.f32 0.0, %v9316
    %v9318 = vpop.f32.mrb[0].mxu0
    %9319 = vmatprep.mubr.f32.mxu0 0.0
    %9320 = vmatmul.mubr.f32.gmra.mrb[0].mxu0 %v9042
    %v9321 = vpop.f32.mrb[0].mxu0
    %v9322 = vadd.f32 0.0, %v9321
    %v9323 = vpop.f32.mrb[0].mxu0
    %9324 = vmatprep.mubr.f32.mxu0 0.0
    %9325 = vmatmul.mubr.f32.gmra.mrb[0].mxu0 %v9043
    %v9326 = vpop.f32.mrb[0].mxu0
    %v9327 = vadd.f32 0.0, %v9326
    %v9328 = vpop.f32.mrb[0].mxu0
    %9329 = vmatprep.mubr.f32.mxu0 0.0
    %9330 = vmatmul.mubr.f32.gmra.mrb[0].mxu0 %v9044
    %v9331 = vpop.f32.mrb[0].mxu0
    %v9332 = vadd.f32 0.0, %v9331
    %v9333 = vpop.f32.mrb[0].mxu0
    %9334 = vmatprep.mubr.f32.mxu0 0.0
    %9335 = vmatmul.mubr.f32.gmra.mrb[0].mxu0 %v9045
    %v9336 = vpop.f32.mrb[0].mxu0
    %v9337 = vadd.f32 0.0, %v9336
    %v9338 = vpop.f32.mrb[0].mxu0
    %9339 = vmatprep.mubr.f32.mxu0 0.0
    %9340 = vmatmul.mubr.f32.gmra.mrb[0].mxu0 %v9046
    %v9341 = vpop.f32.mrb[0].mxu0
    %v9342 = vadd.f32 0.0, %v9341
    %v9343 = vpop.f32.mrb[0].mxu0
    %9344 = vmatprep.mubr.f32.mxu0 0.0
    %9345 = vmatmul.mubr.f32.gmra.mrb[0].mxu0 %v9047
    %v9346 = vpop.f32.mrb[0].mxu0
    %v9347 = vadd.f32 0.0, %v9346
    %v9348 = vpop.f32.mrb[0].mxu0
    %9349 = vmatprep.mubr.f32.mxu0 0.0
    %9350 = vmatmul.mubr.f32.gmra.mrb[0].mxu0 %v9048
    %v9351 = vpop.f32.mrb[0].mxu0
    %v9352 = vadd.f32 0.0, %v9351
    %v9353 = vpop.f32.mrb[0].mxu0
    %9354 = vmatprep.mubr.f32.mxu0 0.0
    %9355 = vmatmul.mubr.f32.gmra.mrb[0].mxu0 %v9049
    %v9356 = vpop.f32.mrb[0].mxu0
    %v9357 = vadd.f32 0.0, %v9356
    %v9358 = vpop.f32.mrb[0].mxu0
    %9359 = vmatprep.mubr.f32.mxu0 0.0
    %9360 = vmatmul.mubr.f32.gmra.mrb[0].mxu0 %v9050
    %v9361 = vpop.f32.mrb[0].mxu0
    %v9362 = vadd.f32 0.0, %v9361
    %v9363 = vpop.f32.mrb[0].mxu0
    %9364 = vmatprep.mubr.f32.mxu0 0.0
    %9365 = vmatmul.mubr.f32.gmra.mrb[0].mxu0 %v9051
    %v9366 = vpop.f32.mrb[0].mxu0
    %v9367 = vadd.f32 0.0, %v9366
    %v9368 = vpop.f32.mrb[0].mxu0
    %9369 = vmatprep.mubr.f32.mxu0 0.0
    %9370 = vmatmul.mubr.f32.gmra.mrb[0].mxu0 %v9052
    %v9371 = vpop.f32.mrb[0].mxu0
    %v9372 = vadd.f32 0.0, %v9371
    %v9373 = vpop.f32.mrb[0].mxu0
    %9374 = vmatprep.mubr.f32.mxu0 0.0
    %9375 = vmatmul.mubr.f32.gmra.mrb[0].mxu0 %v9053
    %v9376 = vpop.f32.mrb[0].mxu0
    %v9377 = vadd.f32 0.0, %v9376
    %v9378 = vpop.f32.mrb[0].mxu0
    %9379 = vmatprep.mubr.f32.mxu0 0.0
    %9380 = vmatmul.mubr.f32.gmra.mrb[0].mxu0 %v9054
    %v9381 = vpop.f32.mrb[0].mxu0
    %v9382 = vadd.f32 0.0, %v9381
    %v9383 = vpop.f32.mrb[0].mxu0
    %9384 = vmatprep.mubr.f32.mxu0 0.0
    %9385 = vmatmul.mubr.f32.gmra.mrb[0].mxu0 %v9055
    %v9386 = vpop.f32.mrb[0].mxu0
    %v9387 = vadd.f32 0.0, %v9386
    %v9388 = vpop.f32.mrb[0].mxu0
    %9389 = vmatprep.mubr.f32.mxu0 0.0
    %9390 = vmatmul.mubr.f32.gmra.mrb[0].mxu0 %v9056
    %v9391 = vpop.f32.mrb[0].mxu0
    %v9392 = vadd.f32 0.0, %v9391
    %v9393 = vpop.f32.mrb[0].mxu0
    %9394 = vmatprep.mubr.f32.mxu0 0.0
    %9395 = vmatmul.mubr.f32.gmra.mrb[0].mxu0 %v9057
    %v9396 = vpop.f32.mrb[0].mxu0
    %v9397 = vadd.f32 0.0, %v9396
    %v9398 = vpop.f32.mrb[0].mxu0
    %9399 = vmatprep.mubr.f32.mxu0 0.0
    %9400 = vmatmul.mubr.f32.gmra.mrb[0].mxu0 %v9058
    %v9401 = vpop.f32.mrb[0].mxu0
    %v9402 = vadd.f32 0.0, %v9401
    %v9403 = vpop.f32.mrb[0].mxu0
    %9404 = vmatprep.mubr.f32.mxu0 0.0
    %9405 = vmatmul.mubr.f32.gmra.mrb[0].mxu0 %v9059
    %v9406 = vpop.f32.mrb[0].mxu0
    %v9407 = vadd.f32 0.0, %v9406
    %v9408 = vpop.f32.mrb[0].mxu0
    %9409 = vmatprep.mubr.f32.mxu0 0.0
    %9410 = vmatmul.mubr.f32.gmra.mrb[0].mxu0 %v9060
    %v9411 = vpop.f32.mrb[0].mxu0
    %v9412 = vadd.f32 0.0, %v9411
    %v9413 = vpop.f32.mrb[0].mxu0
    %9414 = vmatprep.mubr.f32.mxu0 0.0
    %9415 = vmatmul.mubr.f32.gmra.mrb[0].mxu0 %v9061
    %v9416 = vpop.f32.mrb[0].mxu0
    %v9417 = vadd.f32 0.0, %v9416
    %v9418 = vpop.f32.mrb[0].mxu0
    %9419 = vmatprep.mubr.f32.mxu0 0.0
    %9420 = vmatmul.mubr.f32.gmra.mrb[0].mxu0 %v9062
    %v9421 = vpop.f32.mrb[0].mxu0
    %v9422 = vadd.f32 0.0, %v9421
    %v9423 = vpop.f32.mrb[0].mxu0
    %9424 = vmatprep.mubr.f32.mxu0 0.0
    %9425 = vmatmul.mubr.f32.gmra.mrb[0].mxu0 %v9063
    %v9426 = vpop.f32.mrb[0].mxu0
    %v9427 = vadd.f32 0.0, %v9426
    %v9428 = vpop.f32.mrb[0].mxu0
    %9429 = vmatprep.mubr.f32.mxu0 0.0
    %9430 = vmatmul.mubr.f32.gmra.mrb[0].mxu0 %v9064
    %v9431 = vpop.f32.mrb[0].mxu0
    %v9432 = vadd.f32 0.0, %v9431
    %v9433 = vpop.f32.mrb[0].mxu0
    %9434 = vmatprep.mubr.f32.mxu0 0.0
    %9435 = vmatmul.mubr.f32.gmra.mrb[0].mxu0 %v9065
    %v9436 = vpop.f32.mrb[0].mxu0
    %v9437 = vadd.f32 0.0, %v9436
    %v9438 = vpop.f32.mrb[0].mxu0
    %9439 = vmatprep.mubr.f32.mxu0 0.0
    %9440 = vmatmul.mubr.f32.gmra.mrb[0].mxu0 %v9066
    %v9441 = vpop.f32.mrb[0].mxu0
    %v9442 = vadd.f32 0.0, %v9441
    %v9443 = vpop.f32.mrb[0].mxu0
    %9444 = vmatprep.mubr.f32.mxu0 0.0
    %9445 = vmatmul.mubr.f32.gmra.mrb[0].mxu0 %v9067
    %v9446 = vpop.f32.mrb[0].mxu0
    %v9447 = vadd.f32 0.0, %v9446
    %v9448 = vpop.f32.mrb[0].mxu0
    %9449 = vmatprep.mubr.f32.mxu0 0.0
    %9450 = vmatmul.mubr.f32.gmra.mrb[0].mxu0 %v9068
    %v9451 = vpop.f32.mrb[0].mxu0
    %v9452 = vadd.f32 0.0, %v9451
    %v9453 = vpop.f32.mrb[0].mxu0
    %9454 = vmatprep.mubr.f32.mxu0 0.0
    %9455 = vmatmul.mubr.f32.gmra.mrb[0].mxu0 %v9069
    %v9456 = vpop.f32.mrb[0].mxu0
    %v9457 = vadd.f32 0.0, %v9456
    %v9458 = vpop.f32.mrb[0].mxu0
    %9459 = vmatprep.mubr.f32.mxu0 0.0
    %9460 = vmatmul.mubr.f32.gmra.mrb[0].mxu0 %v9070
    %v9461 = vpop.f32.mrb[0].mxu0
    %v9462 = vadd.f32 0.0, %v9461
    %v9463 = vpop.f32.mrb[0].mxu0
    %9464 = vmatprep.mubr.f32.mxu0 0.0
    %9465 = vmatmul.mubr.f32.gmra.mrb[0].mxu0 %v9071
    %v9466 = vpop.f32.mrb[0].mxu0
    %v9467 = vadd.f32 0.0, %v9466
    %v9468 = vpop.f32.mrb[0].mxu0
    %9469 = vmatprep.mubr.f32.mxu0 0.0
    %9470 = vmatmul.mubr.f32.gmra.mrb[0].mxu0 %v9072
    %v9471 = vpop.f32.mrb[0].mxu0
    %v9472 = vadd.f32 0.0, %v9471
    %v9473 = vpop.f32.mrb[0].mxu0
    %9474 = vdwg.mxu0
    %v9475 = vadd.f32 %v8945, %v9157
    %v9476 = vadd.f32 %v8946, %v9162
    %v9477 = vadd.f32 %v8947, %v9167
    %v9478 = vadd.f32 %v8948, %v9172
    %v9479 = vadd.f32 %v8949, %v9177
    %v9480 = vadd.f32 %v8950, %v9182
    %v9481 = vadd.f32 %v8951, %v9187
    %v9482 = vadd.f32 %v8952, %v9192
    %v9483 = vadd.f32 %v8953, %v9197
    %v9484 = vadd.f32 %v8954, %v9202
    %v9485 = vadd.f32 %v8955, %v9207
    %v9486 = vadd.f32 %v8956, %v9212
    %v9487 = vadd.f32 %v8957, %v9217
    %v9488 = vadd.f32 %v8958, %v9222
    %v9489 = vadd.f32 %v8959, %v9227
    %v9490 = vadd.f32 %v8960, %v9232
    %v9491 = vadd.f32 %v8961, %v9237
    %v9492 = vadd.f32 %v8962, %v9242
    %v9493 = vadd.f32 %v8963, %v9247
    %v9494 = vadd.f32 %v8964, %v9252
    %v9495 = vadd.f32 %v8965, %v9257
    %v9496 = vadd.f32 %v8966, %v9262
    %v9497 = vadd.f32 %v8967, %v9267
    %v9498 = vadd.f32 %v8968, %v9272
    %v9499 = vadd.f32 %v8969, %v9277
    %v9500 = vadd.f32 %v8970, %v9282
    %v9501 = vadd.f32 %v8971, %v9287
    %v9502 = vadd.f32 %v8972, %v9292
    %v9503 = vadd.f32 %v8973, %v9297
    %v9504 = vadd.f32 %v8974, %v9302
    %v9505 = vadd.f32 %v8975, %v9307
    %v9506 = vadd.f32 %v8976, %v9312
    %v9507 = vadd.f32 %v8977, %v9317
    %v9508 = vadd.f32 %v8978, %v9322
    %v9509 = vadd.f32 %v8979, %v9327
    %v9510 = vadd.f32 %v8980, %v9332
    %v9511 = vadd.f32 %v8981, %v9337
    %v9512 = vadd.f32 %v8982, %v9342
    %v9513 = vadd.f32 %v8983, %v9347
    %v9514 = vadd.f32 %v8984, %v9352
    %v9515 = vadd.f32 %v8985, %v9357
    %v9516 = vadd.f32 %v8986, %v9362
    %v9517 = vadd.f32 %v8987, %v9367
    %v9518 = vadd.f32 %v8988, %v9372
    %v9519 = vadd.f32 %v8989, %v9377
    %v9520 = vadd.f32 %v8990, %v9382
    %v9521 = vadd.f32 %v8991, %v9387
    %v9522 = vadd.f32 %v8992, %v9392
    %v9523 = vadd.f32 %v8993, %v9397
    %v9524 = vadd.f32 %v8994, %v9402
    %v9525 = vadd.f32 %v8995, %v9407
    %v9526 = vadd.f32 %v8996, %v9412
    %v9527 = vadd.f32 %v8997, %v9417
    %v9528 = vadd.f32 %v8998, %v9422
    %v9529 = vadd.f32 %v8999, %v9427
    %v9530 = vadd.f32 %v9000, %v9432
    %v9531 = vadd.f32 %v9001, %v9437
    %v9532 = vadd.f32 %v9002, %v9442
    %v9533 = vadd.f32 %v9003, %v9447
    %v9534 = vadd.f32 %v9004, %v9452
    %v9535 = vadd.f32 %v9005, %v9457
    %v9536 = vadd.f32 %v9006, %v9462
    %v9537 = vadd.f32 %v9007, %v9467
    %v9538 = vadd.f32 %v9008, %v9472
    %v9539 = vld [vmem:[%s3356 + $0x2] sm:$0xff]
    %v9540 = vld [vmem:[%s3356 + $0xa] sm:$0xff]
    %v9541 = vld [vmem:[%s3356 + $0x1a] sm:$0xff]
    %v9542 = vld [vmem:[%s3356 + $0x22] sm:$0xff]
    %v9543 = vld [vmem:[%s3356 + $0x32] sm:$0xff]
    %v9544 = vld [vmem:[%s3356 + $0x3a] sm:$0xff]
    %v9545 = vld [vmem:[%s3356 + $0x4a] sm:$0xff]
    %v9546 = vld [vmem:[%s3356 + $0x52] sm:$0xff]
    %v9547 = vld [vmem:[%s3356 + $0x62] sm:$0xff]
    %v9548 = vld [vmem:[%s3356 + $0x6a] sm:$0xff]
    %v9549 = vld [vmem:[%s3356 + $0x7a] sm:$0xff]
    %v9550 = vld [vmem:[%s3356 + $0x82] sm:$0xff]
    %v9551 = vld [vmem:[%s3356 + $0x92] sm:$0xff]
    %v9552 = vld [vmem:[%s3356 + $0x9a] sm:$0xff]
    %v9553 = vld [vmem:[%s3356 + $0xaa] sm:$0xff]
    %v9554 = vld [vmem:[%s3356 + $0xb2] sm:$0xff]
    %v9555 = vld [vmem:[%s3356 + $0xc2] sm:$0xff]
    %v9556 = vld [vmem:[%s3356 + $0xca] sm:$0xff]
    %v9557 = vld [vmem:[%s3356 + $0xda] sm:$0xff]
    %v9558 = vld [vmem:[%s3356 + $0xe2] sm:$0xff]
    %v9559 = vld [vmem:[%s3356 + $0xf2] sm:$0xff]
    %v9560 = vld [vmem:[%s3356 + $0xfa] sm:$0xff]
    %v9561 = vld [vmem:[%s3356 + $0x10a] sm:$0xff]
    %v9562 = vld [vmem:[%s3356 + $0x112] sm:$0xff]
    %v9563 = vld [vmem:[%s3356 + $0x122] sm:$0xff]
    %v9564 = vld [vmem:[%s3356 + $0x12a] sm:$0xff]
    %v9565 = vld [vmem:[%s3356 + $0x13a] sm:$0xff]
    %v9566 = vld [vmem:[%s3356 + $0x142] sm:$0xff]
    %v9567 = vld [vmem:[%s3356 + $0x152] sm:$0xff]
    %v9568 = vld [vmem:[%s3356 + $0x15a] sm:$0xff]
    %v9569 = vld [vmem:[%s3356 + $0x16a] sm:$0xff]
    %v9570 = vld [vmem:[%s3356 + $0x172] sm:$0xff]
    %v9571 = vld [vmem:[%s3356 + $0x1b2] sm:$0xff]
    %v9572 = vld [vmem:[%s3356 + $0x1ba] sm:$0xff]
    %v9573 = vld [vmem:[%s3356 + $0x1ca] sm:$0xff]
    %v9574 = vld [vmem:[%s3356 + $0x1d2] sm:$0xff]
    %v9575 = vld [vmem:[%s3356 + $0x1e2] sm:$0xff]
    %v9576 = vld [vmem:[%s3356 + $0x1ea] sm:$0xff]
    %v9577 = vld [vmem:[%s3356 + $0x1fa] sm:$0xff]
    %v9578 = vld [vmem:[%s3356 + $0x202] sm:$0xff]
    %v9579 = vld [vmem:[%s3356 + $0x212] sm:$0xff]
    %v9580 = vld [vmem:[%s3356 + $0x21a] sm:$0xff]
    %v9581 = vld [vmem:[%s3356 + $0x22a] sm:$0xff]
    %v9582 = vld [vmem:[%s3356 + $0x232] sm:$0xff]
    %v9583 = vld [vmem:[%s3356 + $0x242] sm:$0xff]
    %v9584 = vld [vmem:[%s3356 + $0x24a] sm:$0xff]
    %v9585 = vld [vmem:[%s3356 + $0x25a] sm:$0xff]
    %v9586 = vld [vmem:[%s3356 + $0x262] sm:$0xff]
    %v9587 = vld [vmem:[%s3356 + $0x272] sm:$0xff]
    %v9588 = vld [vmem:[%s3356 + $0x27a] sm:$0xff]
    %v9589 = vld [vmem:[%s3356 + $0x28a] sm:$0xff]
    %v9590 = vld [vmem:[%s3356 + $0x292] sm:$0xff]
    %v9591 = vld [vmem:[%s3356 + $0x2a2] sm:$0xff]
    %v9592 = vld [vmem:[%s3356 + $0x2aa] sm:$0xff]
    %v9593 = vld [vmem:[%s3356 + $0x2ba] sm:$0xff]
    %v9594 = vld [vmem:[%s3356 + $0x2c2] sm:$0xff]
    %v9595 = vld [vmem:[%s3356 + $0x2d2] sm:$0xff]
    %v9596 = vld [vmem:[%s3356 + $0x2da] sm:$0xff]
    %v9597 = vld [vmem:[%s3356 + $0x2ea] sm:$0xff]
    %v9598 = vld [vmem:[%s3356 + $0x2f2] sm:$0xff]
    %v9599 = vld [vmem:[%s3356 + $0x302] sm:$0xff]
    %v9600 = vld [vmem:[%s3356 + $0x30a] sm:$0xff]
    %v9601 = vld [vmem:[%s3356 + $0x31a] sm:$0xff]
    %v9602 = vld [vmem:[%s3356 + $0x322] sm:$0xff]
    %s9603 = scalar_lea.vmem [#allocation8], 1024
    %v9604 = vld [vmem:[%s9603] sm:$0xff]
    %v9605 = vld [vmem:[%s9603 + $0x8] sm:$0xff]
    %v9606 = vld [vmem:[%s9603 + $0x10] sm:$0xff]
    %v9607 = vld [vmem:[%s9603 + $0x18] sm:$0xff]
    %v9608 = vld [vmem:[%s9603 + $0x20] sm:$0xff]
    %v9609 = vld [vmem:[%s9603 + $0x28] sm:$0xff]
    %v9610 = vld [vmem:[%s9603 + $0x30] sm:$0xff]
    %v9611 = vld [vmem:[%s9603 + $0x38] sm:$0xff]
    %v9612 = vld [vmem:[%s9603 + $0x40] sm:$0xff]
    %v9613 = vld [vmem:[%s9603 + $0x48] sm:$0xff]
    %v9614 = vld [vmem:[%s9603 + $0x50] sm:$0xff]
    %v9615 = vld [vmem:[%s9603 + $0x58] sm:$0xff]
    %v9616 = vld [vmem:[%s9603 + $0x60] sm:$0xff]
    %v9617 = vld [vmem:[%s9603 + $0x68] sm:$0xff]
    %v9618 = vld [vmem:[%s9603 + $0x70] sm:$0xff]
    %v9619 = vld [vmem:[%s9603 + $0x78] sm:$0xff]
    %9620 = vmatprep.subr.mxu0 0.0
    %9621 = vmatpush1.msra.mxu0 %v9604
    %9622 = vmatprep.subr.mxu0 0.0
    %9623 = vmatpush1.msra.mxu0 %v9605
    %9624 = vmatprep.subr.mxu0 0.0
    %9625 = vmatpush1.msra.mxu0 %v9606
    %9626 = vmatprep.subr.mxu0 0.0
    %9627 = vmatpush1.msra.mxu0 %v9607
    %9628 = vmatprep.subr.mxu0 0.0
    %9629 = vmatpush1.msra.mxu0 %v9608
    %9630 = vmatprep.subr.mxu0 0.0
    %9631 = vmatpush1.msra.mxu0 %v9609
    %9632 = vmatprep.subr.mxu0 0.0
    %9633 = vmatpush1.msra.mxu0 %v9610
    %9634 = vmatprep.subr.mxu0 0.0
    %9635 = vmatpush1.msra.mxu0 %v9611
    %9636 = vmatprep.subr.mxu0 0.0
    %9637 = vmatpush1.msra.mxu0 %v9612
    %9638 = vmatprep.subr.mxu0 0.0
    %9639 = vmatpush1.msra.mxu0 %v9613
    %9640 = vmatprep.subr.mxu0 0.0
    %9641 = vmatpush1.msra.mxu0 %v9614
    %9642 = vmatprep.subr.mxu0 0.0
    %9643 = vmatpush1.msra.mxu0 %v9615
    %9644 = vmatprep.subr.mxu0 0.0
    %9645 = vmatpush1.msra.mxu0 %v9616
    %9646 = vmatprep.subr.mxu0 0.0
    %9647 = vmatpush1.msra.mxu0 %v9617
    %9648 = vmatprep.subr.mxu0 0.0
    %9649 = vmatpush1.msra.mxu0 %v9618
    %9650 = vmatprep.subr.mxu0 0.0
    %9651 = vmatpush1.msra.mxu0 %v9619
    %9652 = vmatprep.subr.mxu0 0.0
    %9653 = vmatpush1.msra.mxu0 0.0
    %9654 = vmatprep.subr.mxu0 0.0
    %9655 = vmatpush1.msra.mxu0 0.0
    %9656 = vmatprep.subr.mxu0 0.0
    %9657 = vmatpush1.msra.mxu0 0.0
    %9658 = vmatprep.subr.mxu0 0.0
    %9659 = vmatpush1.msra.mxu0 0.0
    %9660 = vmatprep.subr.mxu0 0.0
    %9661 = vmatpush1.msra.mxu0 0.0
    %9662 = vmatprep.subr.mxu0 0.0
    %9663 = vmatpush1.msra.mxu0 0.0
    %9664 = vmatprep.subr.mxu0 0.0
    %9665 = vmatpush1.msra.mxu0 0.0
    %9666 = vmatprep.subr.mxu0 0.0
    %9667 = vmatpush1.msra.mxu0 0.0
    %9668 = vmatprep.subr.mxu0 0.0
    %9669 = vmatpush1.msra.mxu0 0.0
    %9670 = vmatprep.subr.mxu0 0.0
    %9671 = vmatpush1.msra.mxu0 0.0
    %9672 = vmatprep.subr.mxu0 0.0
    %9673 = vmatpush1.msra.mxu0 0.0
    %9674 = vmatprep.subr.mxu0 0.0
    %9675 = vmatpush1.msra.mxu0 0.0
    %9676 = vmatprep.subr.mxu0 0.0
    %9677 = vmatpush1.msra.mxu0 0.0
    %9678 = vmatprep.subr.mxu0 0.0
    %9679 = vmatpush1.msra.mxu0 0.0
    %9680 = vmatprep.subr.mxu0 0.0
    %9681 = vmatpush1.msra.mxu0 0.0
    %9682 = vmatprep.subr.mxu0 0.0
    %9683 = vmatpush1.msra.mxu0 0.0
    %9684 = vmatprep.mubr.f32.mxu0 0.0
    %9685 = vmatmul.mubr.f32.gmra.mrb[0].mxu0 %v9539
    %v9686 = vpop.f32.mrb[0].mxu0
    %v9687 = vadd.f32 0.0, %v9686
    %v9688 = vpop.f32.mrb[0].mxu0
    %9689 = vmatprep.mubr.f32.mxu0 0.0
    %9690 = vmatmul.mubr.f32.gmra.mrb[0].mxu0 %v9540
    %v9691 = vpop.f32.mrb[0].mxu0
    %v9692 = vadd.f32 0.0, %v9691
    %v9693 = vpop.f32.mrb[0].mxu0
    %9694 = vmatprep.mubr.f32.mxu0 0.0
    %9695 = vmatmul.mubr.f32.gmra.mrb[0].mxu0 %v9541
    %v9696 = vpop.f32.mrb[0].mxu0
    %v9697 = vadd.f32 0.0, %v9696
    %v9698 = vpop.f32.mrb[0].mxu0
    %9699 = vmatprep.mubr.f32.mxu0 0.0
    %9700 = vmatmul.mubr.f32.gmra.mrb[0].mxu0 %v9542
    %v9701 = vpop.f32.mrb[0].mxu0
    %v9702 = vadd.f32 0.0, %v9701
    %v9703 = vpop.f32.mrb[0].mxu0
    %9704 = vmatprep.mubr.f32.mxu0 0.0
    %9705 = vmatmul.mubr.f32.gmra.mrb[0].mxu0 %v9543
    %v9706 = vpop.f32.mrb[0].mxu0
    %v9707 = vadd.f32 0.0, %v9706
    %v9708 = vpop.f32.mrb[0].mxu0
    %9709 = vmatprep.mubr.f32.mxu0 0.0
    %9710 = vmatmul.mubr.f32.gmra.mrb[0].mxu0 %v9544
    %v9711 = vpop.f32.mrb[0].mxu0
    %v9712 = vadd.f32 0.0, %v9711
    %v9713 = vpop.f32.mrb[0].mxu0
    %9714 = vmatprep.mubr.f32.mxu0 0.0
    %9715 = vmatmul.mubr.f32.gmra.mrb[0].mxu0 %v9545
    %v9716 = vpop.f32.mrb[0].mxu0
    %v9717 = vadd.f32 0.0, %v9716
    %v9718 = vpop.f32.mrb[0].mxu0
    %9719 = vmatprep.mubr.f32.mxu0 0.0
    %9720 = vmatmul.mubr.f32.gmra.mrb[0].mxu0 %v9546
    %v9721 = vpop.f32.mrb[0].mxu0
    %v9722 = vadd.f32 0.0, %v9721
    %v9723 = vpop.f32.mrb[0].mxu0
    %9724 = vmatprep.mubr.f32.mxu0 0.0
    %9725 = vmatmul.mubr.f32.gmra.mrb[0].mxu0 %v9547
    %v9726 = vpop.f32.mrb[0].mxu0
    %v9727 = vadd.f32 0.0, %v9726
    %v9728 = vpop.f32.mrb[0].mxu0
    %9729 = vmatprep.mubr.f32.mxu0 0.0
    %9730 = vmatmul.mubr.f32.gmra.mrb[0].mxu0 %v9548
    %v9731 = vpop.f32.mrb[0].mxu0
    %v9732 = vadd.f32 0.0, %v9731
    %v9733 = vpop.f32.mrb[0].mxu0
    %9734 = vmatprep.mubr.f32.mxu0 0.0
    %9735 = vmatmul.mubr.f32.gmra.mrb[0].mxu0 %v9549
    %v9736 = vpop.f32.mrb[0].mxu0
    %v9737 = vadd.f32 0.0, %v9736
    %v9738 = vpop.f32.mrb[0].mxu0
    %9739 = vmatprep.mubr.f32.mxu0 0.0
    %9740 = vmatmul.mubr.f32.gmra.mrb[0].mxu0 %v9550
    %v9741 = vpop.f32.mrb[0].mxu0
    %v9742 = vadd.f32 0.0, %v9741
    %v9743 = vpop.f32.mrb[0].mxu0
    %9744 = vmatprep.mubr.f32.mxu0 0.0
    %9745 = vmatmul.mubr.f32.gmra.mrb[0].mxu0 %v9551
    %v9746 = vpop.f32.mrb[0].mxu0
    %v9747 = vadd.f32 0.0, %v9746
    %v9748 = vpop.f32.mrb[0].mxu0
    %9749 = vmatprep.mubr.f32.mxu0 0.0
    %9750 = vmatmul.mubr.f32.gmra.mrb[0].mxu0 %v9552
    %v9751 = vpop.f32.mrb[0].mxu0
    %v9752 = vadd.f32 0.0, %v9751
    %v9753 = vpop.f32.mrb[0].mxu0
    %9754 = vmatprep.mubr.f32.mxu0 0.0
    %9755 = vmatmul.mubr.f32.gmra.mrb[0].mxu0 %v9553
    %v9756 = vpop.f32.mrb[0].mxu0
    %v9757 = vadd.f32 0.0, %v9756
    %v9758 = vpop.f32.mrb[0].mxu0
    %9759 = vmatprep.mubr.f32.mxu0 0.0
    %9760 = vmatmul.mubr.f32.gmra.mrb[0].mxu0 %v9554
    %v9761 = vpop.f32.mrb[0].mxu0
    %v9762 = vadd.f32 0.0, %v9761
    %v9763 = vpop.f32.mrb[0].mxu0
    %9764 = vmatprep.mubr.f32.mxu0 0.0
    %9765 = vmatmul.mubr.f32.gmra.mrb[0].mxu0 %v9555
    %v9766 = vpop.f32.mrb[0].mxu0
    %v9767 = vadd.f32 0.0, %v9766
    %v9768 = vpop.f32.mrb[0].mxu0
    %9769 = vmatprep.mubr.f32.mxu0 0.0
    %9770 = vmatmul.mubr.f32.gmra.mrb[0].mxu0 %v9556
    %v9771 = vpop.f32.mrb[0].mxu0
    %v9772 = vadd.f32 0.0, %v9771
    %v9773 = vpop.f32.mrb[0].mxu0
    %9774 = vmatprep.mubr.f32.mxu0 0.0
    %9775 = vmatmul.mubr.f32.gmra.mrb[0].mxu0 %v9557
    %v9776 = vpop.f32.mrb[0].mxu0
    %v9777 = vadd.f32 0.0, %v9776
    %v9778 = vpop.f32.mrb[0].mxu0
    %9779 = vmatprep.mubr.f32.mxu0 0.0
    %9780 = vmatmul.mubr.f32.gmra.mrb[0].mxu0 %v9558
    %v9781 = vpop.f32.mrb[0].mxu0
    %v9782 = vadd.f32 0.0, %v9781
    %v9783 = vpop.f32.mrb[0].mxu0
    %9784 = vmatprep.mubr.f32.mxu0 0.0
    %9785 = vmatmul.mubr.f32.gmra.mrb[0].mxu0 %v9559
    %v9786 = vpop.f32.mrb[0].mxu0
    %v9787 = vadd.f32 0.0, %v9786
    %v9788 = vpop.f32.mrb[0].mxu0
    %9789 = vmatprep.mubr.f32.mxu0 0.0
    %9790 = vmatmul.mubr.f32.gmra.mrb[0].mxu0 %v9560
    %v9791 = vpop.f32.mrb[0].mxu0
    %v9792 = vadd.f32 0.0, %v9791
    %v9793 = vpop.f32.mrb[0].mxu0
    %9794 = vmatprep.mubr.f32.mxu0 0.0
    %9795 = vmatmul.mubr.f32.gmra.mrb[0].mxu0 %v9561
    %v9796 = vpop.f32.mrb[0].mxu0
    %v9797 = vadd.f32 0.0, %v9796
    %v9798 = vpop.f32.mrb[0].mxu0
    %9799 = vmatprep.mubr.f32.mxu0 0.0
    %9800 = vmatmul.mubr.f32.gmra.mrb[0].mxu0 %v9562
    %v9801 = vpop.f32.mrb[0].mxu0
    %v9802 = vadd.f32 0.0, %v9801
    %v9803 = vpop.f32.mrb[0].mxu0
    %9804 = vmatprep.mubr.f32.mxu0 0.0
    %9805 = vmatmul.mubr.f32.gmra.mrb[0].mxu0 %v9563
    %v9806 = vpop.f32.mrb[0].mxu0
    %v9807 = vadd.f32 0.0, %v9806
    %v9808 = vpop.f32.mrb[0].mxu0
    %9809 = vmatprep.mubr.f32.mxu0 0.0
    %9810 = vmatmul.mubr.f32.gmra.mrb[0].mxu0 %v9564
    %v9811 = vpop.f32.mrb[0].mxu0
    %v9812 = vadd.f32 0.0, %v9811
    %v9813 = vpop.f32.mrb[0].mxu0
    %9814 = vmatprep.mubr.f32.mxu0 0.0
    %9815 = vmatmul.mubr.f32.gmra.mrb[0].mxu0 %v9565
    %v9816 = vpop.f32.mrb[0].mxu0
    %v9817 = vadd.f32 0.0, %v9816
    %v9818 = vpop.f32.mrb[0].mxu0
    %9819 = vmatprep.mubr.f32.mxu0 0.0
    %9820 = vmatmul.mubr.f32.gmra.mrb[0].mxu0 %v9566
    %v9821 = vpop.f32.mrb[0].mxu0
    %v9822 = vadd.f32 0.0, %v9821
    %v9823 = vpop.f32.mrb[0].mxu0
    %9824 = vmatprep.mubr.f32.mxu0 0.0
    %9825 = vmatmul.mubr.f32.gmra.mrb[0].mxu0 %v9567
    %v9826 = vpop.f32.mrb[0].mxu0
    %v9827 = vadd.f32 0.0, %v9826
    %v9828 = vpop.f32.mrb[0].mxu0
    %9829 = vmatprep.mubr.f32.mxu0 0.0
    %9830 = vmatmul.mubr.f32.gmra.mrb[0].mxu0 %v9568
    %v9831 = vpop.f32.mrb[0].mxu0
    %v9832 = vadd.f32 0.0, %v9831
    %v9833 = vpop.f32.mrb[0].mxu0
    %9834 = vmatprep.mubr.f32.mxu0 0.0
    %9835 = vmatmul.mubr.f32.gmra.mrb[0].mxu0 %v9569
    %v9836 = vpop.f32.mrb[0].mxu0
    %v9837 = vadd.f32 0.0, %v9836
    %v9838 = vpop.f32.mrb[0].mxu0
    %9839 = vmatprep.mubr.f32.mxu0 0.0
    %9840 = vmatmul.mubr.f32.gmra.mrb[0].mxu0 %v9570
    %v9841 = vpop.f32.mrb[0].mxu0
    %v9842 = vadd.f32 0.0, %v9841
    %v9843 = vpop.f32.mrb[0].mxu0
    %9844 = vmatprep.mubr.f32.mxu0 0.0
    %9845 = vmatmul.mubr.f32.gmra.mrb[0].mxu0 %v9571
    %v9846 = vpop.f32.mrb[0].mxu0
    %v9847 = vadd.f32 0.0, %v9846
    %v9848 = vpop.f32.mrb[0].mxu0
    %9849 = vmatprep.mubr.f32.mxu0 0.0
    %9850 = vmatmul.mubr.f32.gmra.mrb[0].mxu0 %v9572
    %v9851 = vpop.f32.mrb[0].mxu0
    %v9852 = vadd.f32 0.0, %v9851
    %v9853 = vpop.f32.mrb[0].mxu0
    %9854 = vmatprep.mubr.f32.mxu0 0.0
    %9855 = vmatmul.mubr.f32.gmra.mrb[0].mxu0 %v9573
    %v9856 = vpop.f32.mrb[0].mxu0
    %v9857 = vadd.f32 0.0, %v9856
    %v9858 = vpop.f32.mrb[0].mxu0
    %9859 = vmatprep.mubr.f32.mxu0 0.0
    %9860 = vmatmul.mubr.f32.gmra.mrb[0].mxu0 %v9574
    %v9861 = vpop.f32.mrb[0].mxu0
    %v9862 = vadd.f32 0.0, %v9861
    %v9863 = vpop.f32.mrb[0].mxu0
    %9864 = vmatprep.mubr.f32.mxu0 0.0
    %9865 = vmatmul.mubr.f32.gmra.mrb[0].mxu0 %v9575
    %v9866 = vpop.f32.mrb[0].mxu0
    %v9867 = vadd.f32 0.0, %v9866
    %v9868 = vpop.f32.mrb[0].mxu0
    %9869 = vmatprep.mubr.f32.mxu0 0.0
    %9870 = vmatmul.mubr.f32.gmra.mrb[0].mxu0 %v9576
    %v9871 = vpop.f32.mrb[0].mxu0
    %v9872 = vadd.f32 0.0, %v9871
    %v9873 = vpop.f32.mrb[0].mxu0
    %9874 = vmatprep.mubr.f32.mxu0 0.0
    %9875 = vmatmul.mubr.f32.gmra.mrb[0].mxu0 %v9577
    %v9876 = vpop.f32.mrb[0].mxu0
    %v9877 = vadd.f32 0.0, %v9876
    %v9878 = vpop.f32.mrb[0].mxu0
    %9879 = vmatprep.mubr.f32.mxu0 0.0
    %9880 = vmatmul.mubr.f32.gmra.mrb[0].mxu0 %v9578
    %v9881 = vpop.f32.mrb[0].mxu0
    %v9882 = vadd.f32 0.0, %v9881
    %v9883 = vpop.f32.mrb[0].mxu0
    %9884 = vmatprep.mubr.f32.mxu0 0.0
    %9885 = vmatmul.mubr.f32.gmra.mrb[0].mxu0 %v9579
    %v9886 = vpop.f32.mrb[0].mxu0
    %v9887 = vadd.f32 0.0, %v9886
    %v9888 = vpop.f32.mrb[0].mxu0
    %9889 = vmatprep.mubr.f32.mxu0 0.0
    %9890 = vmatmul.mubr.f32.gmra.mrb[0].mxu0 %v9580
    %v9891 = vpop.f32.mrb[0].mxu0
    %v9892 = vadd.f32 0.0, %v9891
    %v9893 = vpop.f32.mrb[0].mxu0
    %9894 = vmatprep.mubr.f32.mxu0 0.0
    %9895 = vmatmul.mubr.f32.gmra.mrb[0].mxu0 %v9581
    %v9896 = vpop.f32.mrb[0].mxu0
    %v9897 = vadd.f32 0.0, %v9896
    %v9898 = vpop.f32.mrb[0].mxu0
    %9899 = vmatprep.mubr.f32.mxu0 0.0
    %9900 = vmatmul.mubr.f32.gmra.mrb[0].mxu0 %v9582
    %v9901 = vpop.f32.mrb[0].mxu0
    %v9902 = vadd.f32 0.0, %v9901
    %v9903 = vpop.f32.mrb[0].mxu0
    %9904 = vmatprep.mubr.f32.mxu0 0.0
    %9905 = vmatmul.mubr.f32.gmra.mrb[0].mxu0 %v9583
    %v9906 = vpop.f32.mrb[0].mxu0
    %v9907 = vadd.f32 0.0, %v9906
    %v9908 = vpop.f32.mrb[0].mxu0
    %9909 = vmatprep.mubr.f32.mxu0 0.0
    %9910 = vmatmul.mubr.f32.gmra.mrb[0].mxu0 %v9584
    %v9911 = vpop.f32.mrb[0].mxu0
    %v9912 = vadd.f32 0.0, %v9911
    %v9913 = vpop.f32.mrb[0].mxu0
    %9914 = vmatprep.mubr.f32.mxu0 0.0
    %9915 = vmatmul.mubr.f32.gmra.mrb[0].mxu0 %v9585
    %v9916 = vpop.f32.mrb[0].mxu0
    %v9917 = vadd.f32 0.0, %v9916
    %v9918 = vpop.f32.mrb[0].mxu0
    %9919 = vmatprep.mubr.f32.mxu0 0.0
    %9920 = vmatmul.mubr.f32.gmra.mrb[0].mxu0 %v9586
    %v9921 = vpop.f32.mrb[0].mxu0
    %v9922 = vadd.f32 0.0, %v9921
    %v9923 = vpop.f32.mrb[0].mxu0
    %9924 = vmatprep.mubr.f32.mxu0 0.0
    %9925 = vmatmul.mubr.f32.gmra.mrb[0].mxu0 %v9587
    %v9926 = vpop.f32.mrb[0].mxu0
    %v9927 = vadd.f32 0.0, %v9926
    %v9928 = vpop.f32.mrb[0].mxu0
    %9929 = vmatprep.mubr.f32.mxu0 0.0
    %9930 = vmatmul.mubr.f32.gmra.mrb[0].mxu0 %v9588
    %v9931 = vpop.f32.mrb[0].mxu0
    %v9932 = vadd.f32 0.0, %v9931
    %v9933 = vpop.f32.mrb[0].mxu0
    %9934 = vmatprep.mubr.f32.mxu0 0.0
    %9935 = vmatmul.mubr.f32.gmra.mrb[0].mxu0 %v9589
    %v9936 = vpop.f32.mrb[0].mxu0
    %v9937 = vadd.f32 0.0, %v9936
    %v9938 = vpop.f32.mrb[0].mxu0
    %9939 = vmatprep.mubr.f32.mxu0 0.0
    %9940 = vmatmul.mubr.f32.gmra.mrb[0].mxu0 %v9590
    %v9941 = vpop.f32.mrb[0].mxu0
    %v9942 = vadd.f32 0.0, %v9941
    %v9943 = vpop.f32.mrb[0].mxu0
    %9944 = vmatprep.mubr.f32.mxu0 0.0
    %9945 = vmatmul.mubr.f32.gmra.mrb[0].mxu0 %v9591
    %v9946 = vpop.f32.mrb[0].mxu0
    %v9947 = vadd.f32 0.0, %v9946
    %v9948 = vpop.f32.mrb[0].mxu0
    %9949 = vmatprep.mubr.f32.mxu0 0.0
    %9950 = vmatmul.mubr.f32.gmra.mrb[0].mxu0 %v9592
    %v9951 = vpop.f32.mrb[0].mxu0
    %v9952 = vadd.f32 0.0, %v9951
    %v9953 = vpop.f32.mrb[0].mxu0
    %9954 = vmatprep.mubr.f32.mxu0 0.0
    %9955 = vmatmul.mubr.f32.gmra.mrb[0].mxu0 %v9593
    %v9956 = vpop.f32.mrb[0].mxu0
    %v9957 = vadd.f32 0.0, %v9956
    %v9958 = vpop.f32.mrb[0].mxu0
    %9959 = vmatprep.mubr.f32.mxu0 0.0
    %9960 = vmatmul.mubr.f32.gmra.mrb[0].mxu0 %v9594
    %v9961 = vpop.f32.mrb[0].mxu0
    %v9962 = vadd.f32 0.0, %v9961
    %v9963 = vpop.f32.mrb[0].mxu0
    %9964 = vmatprep.mubr.f32.mxu0 0.0
    %9965 = vmatmul.mubr.f32.gmra.mrb[0].mxu0 %v9595
    %v9966 = vpop.f32.mrb[0].mxu0
    %v9967 = vadd.f32 0.0, %v9966
    %v9968 = vpop.f32.mrb[0].mxu0
    %9969 = vmatprep.mubr.f32.mxu0 0.0
    %9970 = vmatmul.mubr.f32.gmra.mrb[0].mxu0 %v9596
    %v9971 = vpop.f32.mrb[0].mxu0
    %v9972 = vadd.f32 0.0, %v9971
    %v9973 = vpop.f32.mrb[0].mxu0
    %9974 = vmatprep.mubr.f32.mxu0 0.0
    %9975 = vmatmul.mubr.f32.gmra.mrb[0].mxu0 %v9597
    %v9976 = vpop.f32.mrb[0].mxu0
    %v9977 = vadd.f32 0.0, %v9976
    %v9978 = vpop.f32.mrb[0].mxu0
    %9979 = vmatprep.mubr.f32.mxu0 0.0
    %9980 = vmatmul.mubr.f32.gmra.mrb[0].mxu0 %v9598
    %v9981 = vpop.f32.mrb[0].mxu0
    %v9982 = vadd.f32 0.0, %v9981
    %v9983 = vpop.f32.mrb[0].mxu0
    %9984 = vmatprep.mubr.f32.mxu0 0.0
    %9985 = vmatmul.mubr.f32.gmra.mrb[0].mxu0 %v9599
    %v9986 = vpop.f32.mrb[0].mxu0
    %v9987 = vadd.f32 0.0, %v9986
    %v9988 = vpop.f32.mrb[0].mxu0
    %9989 = vmatprep.mubr.f32.mxu0 0.0
    %9990 = vmatmul.mubr.f32.gmra.mrb[0].mxu0 %v9600
    %v9991 = vpop.f32.mrb[0].mxu0
    %v9992 = vadd.f32 0.0, %v9991
    %v9993 = vpop.f32.mrb[0].mxu0
    %9994 = vmatprep.mubr.f32.mxu0 0.0
    %9995 = vmatmul.mubr.f32.gmra.mrb[0].mxu0 %v9601
    %v9996 = vpop.f32.mrb[0].mxu0
    %v9997 = vadd.f32 0.0, %v9996
    %v9998 = vpop.f32.mrb[0].mxu0
    %9999 = vmatprep.mubr.f32.mxu0 0.0
    %10000 = vmatmul.mubr.f32.gmra.mrb[0].mxu0 %v9602
    %v10001 = vpop.f32.mrb[0].mxu0
    %v10002 = vadd.f32 0.0, %v10001
    %v10003 = vpop.f32.mrb[0].mxu0
    %10004 = vdwg.mxu0
    %v10005 = vadd.f32 %v9475, %v9687
    %v10006 = vadd.f32 %v9476, %v9692
    %v10007 = vadd.f32 %v9477, %v9697
    %v10008 = vadd.f32 %v9478, %v9702
    %v10009 = vadd.f32 %v9479, %v9707
    %v10010 = vadd.f32 %v9480, %v9712
    %v10011 = vadd.f32 %v9481, %v9717
    %v10012 = vadd.f32 %v9482, %v9722
    %v10013 = vadd.f32 %v9483, %v9727
    %v10014 = vadd.f32 %v9484, %v9732
    %v10015 = vadd.f32 %v9485, %v9737
    %v10016 = vadd.f32 %v9486, %v9742
    %v10017 = vadd.f32 %v9487, %v9747
    %v10018 = vadd.f32 %v9488, %v9752
    %v10019 = vadd.f32 %v9489, %v9757
    %v10020 = vadd.f32 %v9490, %v9762
    %v10021 = vadd.f32 %v9491, %v9767
    %v10022 = vadd.f32 %v9492, %v9772
    %v10023 = vadd.f32 %v9493, %v9777
    %v10024 = vadd.f32 %v9494, %v9782
    %v10025 = vadd.f32 %v9495, %v9787
    %v10026 = vadd.f32 %v9496, %v9792
    %v10027 = vadd.f32 %v9497, %v9797
    %v10028 = vadd.f32 %v9498, %v9802
    %v10029 = vadd.f32 %v9499, %v9807
    %v10030 = vadd.f32 %v9500, %v9812
    %v10031 = vadd.f32 %v9501, %v9817
    %v10032 = vadd.f32 %v9502, %v9822
    %v10033 = vadd.f32 %v9503, %v9827
    %v10034 = vadd.f32 %v9504, %v9832
    %v10035 = vadd.f32 %v9505, %v9837
    %v10036 = vadd.f32 %v9506, %v9842
    %v10037 = vadd.f32 %v9507, %v9847
    %v10038 = vadd.f32 %v9508, %v9852
    %v10039 = vadd.f32 %v9509, %v9857
    %v10040 = vadd.f32 %v9510, %v9862
    %v10041 = vadd.f32 %v9511, %v9867
    %v10042 = vadd.f32 %v9512, %v9872
    %v10043 = vadd.f32 %v9513, %v9877
    %v10044 = vadd.f32 %v9514, %v9882
    %v10045 = vadd.f32 %v9515, %v9887
    %v10046 = vadd.f32 %v9516, %v9892
    %v10047 = vadd.f32 %v9517, %v9897
    %v10048 = vadd.f32 %v9518, %v9902
    %v10049 = vadd.f32 %v9519, %v9907
    %v10050 = vadd.f32 %v9520, %v9912
    %v10051 = vadd.f32 %v9521, %v9917
    %v10052 = vadd.f32 %v9522, %v9922
    %v10053 = vadd.f32 %v9523, %v9927
    %v10054 = vadd.f32 %v9524, %v9932
    %v10055 = vadd.f32 %v9525, %v9937
    %v10056 = vadd.f32 %v9526, %v9942
    %v10057 = vadd.f32 %v9527, %v9947
    %v10058 = vadd.f32 %v9528, %v9952
    %v10059 = vadd.f32 %v9529, %v9957
    %v10060 = vadd.f32 %v9530, %v9962
    %v10061 = vadd.f32 %v9531, %v9967
    %v10062 = vadd.f32 %v9532, %v9972
    %v10063 = vadd.f32 %v9533, %v9977
    %v10064 = vadd.f32 %v9534, %v9982
    %v10065 = vadd.f32 %v9535, %v9987
    %v10066 = vadd.f32 %v9536, %v9992
    %v10067 = vadd.f32 %v9537, %v9997
    %v10068 = vadd.f32 %v9538, %v10002
    %v10069 = vadd.f32 %v10005, %v10006
    %v10070 = vadd.f32 %v10069, %v10007
    %v10071 = vadd.f32 %v10070, %v10008
    %v10072 = vadd.f32 %v10071, %v10009
    %v10073 = vadd.f32 %v10072, %v10010
    %v10074 = vadd.f32 %v10073, %v10011
    %v10075 = vadd.f32 %v10074, %v10012
    %v10076 = vadd.f32 %v10075, %v10013
    %v10077 = vadd.f32 %v10076, %v10014
    %v10078 = vadd.f32 %v10077, %v10015
    %v10079 = vadd.f32 %v10078, %v10016
    %v10080 = vadd.f32 %v10079, %v10017
    %v10081 = vadd.f32 %v10080, %v10018
    %v10082 = vadd.f32 %v10081, %v10019
    %v10083 = vadd.f32 %v10082, %v10020
    %v10084 = vadd.f32 %v10083, %v10021
    %v10085 = vadd.f32 %v10084, %v10022
    %v10086 = vadd.f32 %v10085, %v10023
    %v10087 = vadd.f32 %v10086, %v10024
    %v10088 = vadd.f32 %v10087, %v10025
    %v10089 = vadd.f32 %v10088, %v10026
    %v10090 = vadd.f32 %v10089, %v10027
    %v10091 = vadd.f32 %v10090, %v10028
    %v10092 = vadd.f32 %v10091, %v10029
    %v10093 = vadd.f32 %v10092, %v10030
    %v10094 = vadd.f32 %v10093, %v10031
    %v10095 = vadd.f32 %v10094, %v10032
    %v10096 = vadd.f32 %v10095, %v10033
    %v10097 = vadd.f32 %v10096, %v10034
    %v10098 = vadd.f32 %v10097, %v10035
    %v10099 = vadd.f32 %v10098, %v10036
    %v10100 = vadd.f32 %v10099, %v10037
    %v10101 = vadd.f32 %v10100, %v10038
    %v10102 = vadd.f32 %v10101, %v10039
    %v10103 = vadd.f32 %v10102, %v10040
    %v10104 = vadd.f32 %v10103, %v10041
    %v10105 = vadd.f32 %v10104, %v10042
    %v10106 = vadd.f32 %v10105, %v10043
    %v10107 = vadd.f32 %v10106, %v10044
    %v10108 = vadd.f32 %v10107, %v10045
    %v10109 = vadd.f32 %v10108, %v10046
    %v10110 = vadd.f32 %v10109, %v10047
    %v10111 = vadd.f32 %v10110, %v10048
    %v10112 = vadd.f32 %v10111, %v10049
    %v10113 = vadd.f32 %v10112, %v10050
    %v10114 = vadd.f32 %v10113, %v10051
    %v10115 = vadd.f32 %v10114, %v10052
    %v10116 = vadd.f32 %v10115, %v10053
    %v10117 = vadd.f32 %v10116, %v10054
    %v10118 = vadd.f32 %v10117, %v10055
    %v10119 = vadd.f32 %v10118, %v10056
    %v10120 = vadd.f32 %v10119, %v10057
    %v10121 = vadd.f32 %v10120, %v10058
    %v10122 = vadd.f32 %v10121, %v10059
    %v10123 = vadd.f32 %v10122, %v10060
    %v10124 = vadd.f32 %v10123, %v10061
    %v10125 = vadd.f32 %v10124, %v10062
    %v10126 = vadd.f32 %v10125, %v10063
    %v10127 = vadd.f32 %v10126, %v10064
    %v10128 = vadd.f32 %v10127, %v10065
    %v10129 = vadd.f32 %v10128, %v10066
    %v10130 = vadd.f32 %v10129, %v10067
    %v10131 = vadd.f32 %v10130, %v10068
    %v10132 = vrot.slane %v10131, 4
    %v10133 = vadd.f32 %v10131, %v10132
    %v10134 = vrot.slane %v10133, 2
    %v10135 = vadd.f32 %v10133, %v10134
    %v10136 = vrot.slane %v10135, 1
    %v10137 = vadd.f32 %v10135, %v10136
    %v10138 = vmul.f32 %v10137, 0.001953125
    %v10139 = vmul.f32 %v10005, %v10005
    %v10140 = vmul.f32 %v10006, %v10006
    %v10141 = vmul.f32 %v10007, %v10007
    %v10142 = vmul.f32 %v10008, %v10008
    %v10143 = vmul.f32 %v10009, %v10009
    %v10144 = vmul.f32 %v10010, %v10010
    %v10145 = vmul.f32 %v10011, %v10011
    %v10146 = vmul.f32 %v10012, %v10012
    %v10147 = vmul.f32 %v10013, %v10013
    %v10148 = vmul.f32 %v10014, %v10014
    %v10149 = vmul.f32 %v10015, %v10015
    %v10150 = vmul.f32 %v10016, %v10016
    %v10151 = vmul.f32 %v10017, %v10017
    %v10152 = vmul.f32 %v10018, %v10018
    %v10153 = vmul.f32 %v10019, %v10019
    %v10154 = vmul.f32 %v10020, %v10020
    %v10155 = vmul.f32 %v10021, %v10021
    %v10156 = vmul.f32 %v10022, %v10022
    %v10157 = vmul.f32 %v10023, %v10023
    %v10158 = vmul.f32 %v10024, %v10024
    %v10159 = vmul.f32 %v10025, %v10025
    %v10160 = vmul.f32 %v10026, %v10026
    %v10161 = vmul.f32 %v10027, %v10027
    %v10162 = vmul.f32 %v10028, %v10028
    %v10163 = vmul.f32 %v10029, %v10029
    %v10164 = vmul.f32 %v10030, %v10030
    %v10165 = vmul.f32 %v10031, %v10031
    %v10166 = vmul.f32 %v10032, %v10032
    %v10167 = vmul.f32 %v10033, %v10033
    %v10168 = vmul.f32 %v10034, %v10034
    %v10169 = vmul.f32 %v10035, %v10035
    %v10170 = vmul.f32 %v10036, %v10036
    %v10171 = vmul.f32 %v10037, %v10037
    %v10172 = vmul.f32 %v10038, %v10038
    %v10173 = vmul.f32 %v10039, %v10039
    %v10174 = vmul.f32 %v10040, %v10040
    %v10175 = vmul.f32 %v10041, %v10041
    %v10176 = vmul.f32 %v10042, %v10042
    %v10177 = vmul.f32 %v10043, %v10043
    %v10178 = vmul.f32 %v10044, %v10044
    %v10179 = vmul.f32 %v10045, %v10045
    %v10180 = vmul.f32 %v10046, %v10046
    %v10181 = vmul.f32 %v10047, %v10047
    %v10182 = vmul.f32 %v10048, %v10048
    %v10183 = vmul.f32 %v10049, %v10049
    %v10184 = vmul.f32 %v10050, %v10050
    %v10185 = vmul.f32 %v10051, %v10051
    %v10186 = vmul.f32 %v10052, %v10052
    %v10187 = vmul.f32 %v10053, %v10053
    %v10188 = vmul.f32 %v10054, %v10054
    %v10189 = vmul.f32 %v10055, %v10055
    %v10190 = vmul.f32 %v10056, %v10056
    %v10191 = vmul.f32 %v10057, %v10057
    %v10192 = vmul.f32 %v10058, %v10058
    %v10193 = vmul.f32 %v10059, %v10059
    %v10194 = vmul.f32 %v10060, %v10060
    %v10195 = vmul.f32 %v10061, %v10061
    %v10196 = vmul.f32 %v10062, %v10062
    %v10197 = vmul.f32 %v10063, %v10063
    %v10198 = vmul.f32 %v10064, %v10064
    %v10199 = vmul.f32 %v10065, %v10065
    %v10200 = vmul.f32 %v10066, %v10066
    %v10201 = vmul.f32 %v10067, %v10067
    %v10202 = vmul.f32 %v10068, %v10068
    %v10203 = vadd.f32 %v10139, %v10140
    %v10204 = vadd.f32 %v10203, %v10141
    %v10205 = vadd.f32 %v10204, %v10142
    %v10206 = vadd.f32 %v10205, %v10143
    %v10207 = vadd.f32 %v10206, %v10144
    %v10208 = vadd.f32 %v10207, %v10145
    %v10209 = vadd.f32 %v10208, %v10146
    %v10210 = vadd.f32 %v10209, %v10147
    %v10211 = vadd.f32 %v10210, %v10148
    %v10212 = vadd.f32 %v10211, %v10149
    %v10213 = vadd.f32 %v10212, %v10150
    %v10214 = vadd.f32 %v10213, %v10151
    %v10215 = vadd.f32 %v10214, %v10152
    %v10216 = vadd.f32 %v10215, %v10153
    %v10217 = vadd.f32 %v10216, %v10154
    %v10218 = vadd.f32 %v10217, %v10155
    %v10219 = vadd.f32 %v10218, %v10156
    %v10220 = vadd.f32 %v10219, %v10157
    %v10221 = vadd.f32 %v10220, %v10158
    %v10222 = vadd.f32 %v10221, %v10159
    %v10223 = vadd.f32 %v10222, %v10160
    %v10224 = vadd.f32 %v10223, %v10161
    %v10225 = vadd.f32 %v10224, %v10162
    %v10226 = vadd.f32 %v10225, %v10163
    %v10227 = vadd.f32 %v10226, %v10164
    %v10228 = vadd.f32 %v10227, %v10165
    %v10229 = vadd.f32 %v10228, %v10166
    %v10230 = vadd.f32 %v10229, %v10167
    %v10231 = vadd.f32 %v10230, %v10168
    %v10232 = vadd.f32 %v10231, %v10169
    %v10233 = vadd.f32 %v10232, %v10170
    %v10234 = vadd.f32 %v10233, %v10171
    %v10235 = vadd.f32 %v10234, %v10172
    %v10236 = vadd.f32 %v10235, %v10173
    %v10237 = vadd.f32 %v10236, %v10174
    %v10238 = vadd.f32 %v10237, %v10175
    %v10239 = vadd.f32 %v10238, %v10176
    %v10240 = vadd.f32 %v10239, %v10177
    %v10241 = vadd.f32 %v10240, %v10178
    %v10242 = vadd.f32 %v10241, %v10179
    %v10243 = vadd.f32 %v10242, %v10180
    %v10244 = vadd.f32 %v10243, %v10181
    %v10245 = vadd.f32 %v10244, %v10182
    %v10246 = vadd.f32 %v10245, %v10183
    %v10247 = vadd.f32 %v10246, %v10184
    %v10248 = vadd.f32 %v10247, %v10185
    %v10249 = vadd.f32 %v10248, %v10186
    %v10250 = vadd.f32 %v10249, %v10187
    %v10251 = vadd.f32 %v10250, %v10188
    %v10252 = vadd.f32 %v10251, %v10189
    %v10253 = vadd.f32 %v10252, %v10190
    %v10254 = vadd.f32 %v10253, %v10191
    %v10255 = vadd.f32 %v10254, %v10192
    %v10256 = vadd.f32 %v10255, %v10193
    %v10257 = vadd.f32 %v10256, %v10194
    %v10258 = vadd.f32 %v10257, %v10195
    %v10259 = vadd.f32 %v10258, %v10196
    %v10260 = vadd.f32 %v10259, %v10197
    %v10261 = vadd.f32 %v10260, %v10198
    %v10262 = vadd.f32 %v10261, %v10199
    %v10263 = vadd.f32 %v10262, %v10200
    %v10264 = vadd.f32 %v10263, %v10201
    %v10265 = vadd.f32 %v10264, %v10202
    %v10266 = vrot.slane %v10265, 4
    %v10267 = vadd.f32 %v10265, %v10266
    %v10268 = vrot.slane %v10267, 2
    %v10269 = vadd.f32 %v10267, %v10268
    %v10270 = vrot.slane %v10269, 1
    %v10271 = vadd.f32 %v10269, %v10270
    %v10272 = vmul.f32 %v10271, 0.001953125
    %v10273 = vmul.f32 %v10138, %v10138
    %v10274 = vsub.f32 %v10272, %v10273
    %v10275 = vld [vmem:[%s5] sm:$0x1]
    %v10276 = vadd.f32 %v10274, 1e-05
    %v10277 = vrsqrt.pop %v10276
    %v10278 = vmul.f32 %v10275, %v10277
    %v10279 = vld [vmem:[%s6] sm:$0x1]
    %v10280 = vmul.f32 %v10138, %v10278
    %v10281 = vsub.f32 %v10279, %v10280
    %v10283 = vlaneseq
    %v10284 = vshrl.u32 %v10283, 7
    %v10285 = vsub.s32 0, %v10284
    %v10286 = vrot.slane %v10278, %v10285
    %v10288 = vmul.f32 %v10005, %v10286
    %v10289 = vmul.f32 %v10006, %v10286
    %v10290 = vmul.f32 %v10007, %v10286
    %v10291 = vmul.f32 %v10008, %v10286
    %v10292 = vmul.f32 %v10009, %v10286
    %v10293 = vmul.f32 %v10010, %v10286
    %v10294 = vmul.f32 %v10011, %v10286
    %v10295 = vmul.f32 %v10012, %v10286
    %v10296 = vmul.f32 %v10013, %v10286
    %v10297 = vmul.f32 %v10014, %v10286
    %v10298 = vmul.f32 %v10015, %v10286
    %v10299 = vmul.f32 %v10016, %v10286
    %v10300 = vmul.f32 %v10017, %v10286
    %v10301 = vmul.f32 %v10018, %v10286
    %v10302 = vmul.f32 %v10019, %v10286
    %v10303 = vmul.f32 %v10020, %v10286
    %v10304 = vmul.f32 %v10021, %v10286
    %v10305 = vmul.f32 %v10022, %v10286
    %v10306 = vmul.f32 %v10023, %v10286
    %v10307 = vmul.f32 %v10024, %v10286
    %v10308 = vmul.f32 %v10025, %v10286
    %v10309 = vmul.f32 %v10026, %v10286
    %v10310 = vmul.f32 %v10027, %v10286
    %v10311 = vmul.f32 %v10028, %v10286
    %v10312 = vmul.f32 %v10029, %v10286
    %v10313 = vmul.f32 %v10030, %v10286
    %v10314 = vmul.f32 %v10031, %v10286
    %v10315 = vmul.f32 %v10032, %v10286
    %v10316 = vmul.f32 %v10033, %v10286
    %v10317 = vmul.f32 %v10034, %v10286
    %v10318 = vmul.f32 %v10035, %v10286
    %v10319 = vmul.f32 %v10036, %v10286
    %v10320 = vmul.f32 %v10037, %v10286
    %v10321 = vmul.f32 %v10038, %v10286
    %v10322 = vmul.f32 %v10039, %v10286
    %v10323 = vmul.f32 %v10040, %v10286
    %v10324 = vmul.f32 %v10041, %v10286
    %v10325 = vmul.f32 %v10042, %v10286
    %v10326 = vmul.f32 %v10043, %v10286
    %v10327 = vmul.f32 %v10044, %v10286
    %v10328 = vmul.f32 %v10045, %v10286
    %v10329 = vmul.f32 %v10046, %v10286
    %v10330 = vmul.f32 %v10047, %v10286
    %v10331 = vmul.f32 %v10048, %v10286
    %v10332 = vmul.f32 %v10049, %v10286
    %v10333 = vmul.f32 %v10050, %v10286
    %v10334 = vmul.f32 %v10051, %v10286
    %v10335 = vmul.f32 %v10052, %v10286
    %v10336 = vmul.f32 %v10053, %v10286
    %v10337 = vmul.f32 %v10054, %v10286
    %v10338 = vmul.f32 %v10055, %v10286
    %v10339 = vmul.f32 %v10056, %v10286
    %v10340 = vmul.f32 %v10057, %v10286
    %v10341 = vmul.f32 %v10058, %v10286
    %v10342 = vmul.f32 %v10059, %v10286
    %v10343 = vmul.f32 %v10060, %v10286
    %v10344 = vmul.f32 %v10061, %v10286
    %v10345 = vmul.f32 %v10062, %v10286
    %v10346 = vmul.f32 %v10063, %v10286
    %v10347 = vmul.f32 %v10064, %v10286
    %v10348 = vmul.f32 %v10065, %v10286
    %v10349 = vmul.f32 %v10066, %v10286
    %v10350 = vmul.f32 %v10067, %v10286
    %v10351 = vmul.f32 %v10068, %v10286
    %v10353 = vlaneseq
    %v10354 = vshrl.u32 %v10353, 7
    %v10355 = vsub.s32 0, %v10354
    %v10356 = vrot.slane %v10281, %v10355
    %v10358 = vadd.f32 %v10288, %v10356
    %v10359 = vadd.f32 %v10289, %v10356
    %v10360 = vadd.f32 %v10290, %v10356
    %v10361 = vadd.f32 %v10291, %v10356
    %v10362 = vadd.f32 %v10292, %v10356
    %v10363 = vadd.f32 %v10293, %v10356
    %v10364 = vadd.f32 %v10294, %v10356
    %v10365 = vadd.f32 %v10295, %v10356
    %v10366 = vadd.f32 %v10296, %v10356
    %v10367 = vadd.f32 %v10297, %v10356
    %v10368 = vadd.f32 %v10298, %v10356
    %v10369 = vadd.f32 %v10299, %v10356
    %v10370 = vadd.f32 %v10300, %v10356
    %v10371 = vadd.f32 %v10301, %v10356
    %v10372 = vadd.f32 %v10302, %v10356
    %v10373 = vadd.f32 %v10303, %v10356
    %v10374 = vadd.f32 %v10304, %v10356
    %v10375 = vadd.f32 %v10305, %v10356
    %v10376 = vadd.f32 %v10306, %v10356
    %v10377 = vadd.f32 %v10307, %v10356
    %v10378 = vadd.f32 %v10308, %v10356
    %v10379 = vadd.f32 %v10309, %v10356
    %v10380 = vadd.f32 %v10310, %v10356
    %v10381 = vadd.f32 %v10311, %v10356
    %v10382 = vadd.f32 %v10312, %v10356
    %v10383 = vadd.f32 %v10313, %v10356
    %v10384 = vadd.f32 %v10314, %v10356
    %v10385 = vadd.f32 %v10315, %v10356
    %v10386 = vadd.f32 %v10316, %v10356
    %v10387 = vadd.f32 %v10317, %v10356
    %v10388 = vadd.f32 %v10318, %v10356
    %v10389 = vadd.f32 %v10319, %v10356
    %v10390 = vadd.f32 %v10320, %v10356
    %v10391 = vadd.f32 %v10321, %v10356
    %v10392 = vadd.f32 %v10322, %v10356
    %v10393 = vadd.f32 %v10323, %v10356
    %v10394 = vadd.f32 %v10324, %v10356
    %v10395 = vadd.f32 %v10325, %v10356
    %v10396 = vadd.f32 %v10326, %v10356
    %v10397 = vadd.f32 %v10327, %v10356
    %v10398 = vadd.f32 %v10328, %v10356
    %v10399 = vadd.f32 %v10329, %v10356
    %v10400 = vadd.f32 %v10330, %v10356
    %v10401 = vadd.f32 %v10331, %v10356
    %v10402 = vadd.f32 %v10332, %v10356
    %v10403 = vadd.f32 %v10333, %v10356
    %v10404 = vadd.f32 %v10334, %v10356
    %v10405 = vadd.f32 %v10335, %v10356
    %v10406 = vadd.f32 %v10336, %v10356
    %v10407 = vadd.f32 %v10337, %v10356
    %v10408 = vadd.f32 %v10338, %v10356
    %v10409 = vadd.f32 %v10339, %v10356
    %v10410 = vadd.f32 %v10340, %v10356
    %v10411 = vadd.f32 %v10341, %v10356
    %v10412 = vadd.f32 %v10342, %v10356
    %v10413 = vadd.f32 %v10343, %v10356
    %v10414 = vadd.f32 %v10344, %v10356
    %v10415 = vadd.f32 %v10345, %v10356
    %v10416 = vadd.f32 %v10346, %v10356
    %v10417 = vadd.f32 %v10347, %v10356
    %v10418 = vadd.f32 %v10348, %v10356
    %v10419 = vadd.f32 %v10349, %v10356
    %v10420 = vadd.f32 %v10350, %v10356
    %v10421 = vadd.f32 %v10351, %v10356
    %v10422 = vld [vmem:[#allocation3] sm:$0xff]
    %v10423 = vld [vmem:[#allocation3 + $0x8] sm:$0xff]
    %v10424 = vld [vmem:[#allocation3 + $0x10] sm:$0xff]
    %v10425 = vld [vmem:[#allocation3 + $0x18] sm:$0xff]
    %v10426 = vld [vmem:[#allocation3 + $0x20] sm:$0xff]
    %v10427 = vld [vmem:[#allocation3 + $0x28] sm:$0xff]
    %v10428 = vld [vmem:[#allocation3 + $0x30] sm:$0xff]
    %v10429 = vld [vmem:[#allocation3 + $0x38] sm:$0xff]
    %v10430 = vld [vmem:[#allocation3 + $0x40] sm:$0xff]
    %v10431 = vld [vmem:[#allocation3 + $0x48] sm:$0xff]
    %v10432 = vld [vmem:[#allocation3 + $0x50] sm:$0xff]
    %v10433 = vld [vmem:[#allocation3 + $0x58] sm:$0xff]
    %v10434 = vld [vmem:[#allocation3 + $0x60] sm:$0xff]
    %v10435 = vld [vmem:[#allocation3 + $0x68] sm:$0xff]
    %v10436 = vld [vmem:[#allocation3 + $0x70] sm:$0xff]
    %v10437 = vld [vmem:[#allocation3 + $0x78] sm:$0xff]
    %v10438 = vld [vmem:[#allocation3 + $0x80] sm:$0xff]
    %v10439 = vld [vmem:[#allocation3 + $0x88] sm:$0xff]
    %v10440 = vld [vmem:[#allocation3 + $0x90] sm:$0xff]
    %v10441 = vld [vmem:[#allocation3 + $0x98] sm:$0xff]
    %v10442 = vld [vmem:[#allocation3 + $0xa0] sm:$0xff]
    %v10443 = vld [vmem:[#allocation3 + $0xa8] sm:$0xff]
    %v10444 = vld [vmem:[#allocation3 + $0xb0] sm:$0xff]
    %v10445 = vld [vmem:[#allocation3 + $0xb8] sm:$0xff]
    %v10446 = vld [vmem:[#allocation3 + $0xc0] sm:$0xff]
    %v10447 = vld [vmem:[#allocation3 + $0xc8] sm:$0xff]
    %v10448 = vld [vmem:[#allocation3 + $0xd0] sm:$0xff]
    %v10449 = vld [vmem:[#allocation3 + $0xd8] sm:$0xff]
    %v10450 = vld [vmem:[#allocation3 + $0xe0] sm:$0xff]
    %v10451 = vld [vmem:[#allocation3 + $0xe8] sm:$0xff]
    %v10452 = vld [vmem:[#allocation3 + $0xf0] sm:$0xff]
    %v10453 = vld [vmem:[#allocation3 + $0xf8] sm:$0xff]
    %v10454 = vld [vmem:[#allocation3 + $0x100] sm:$0xff]
    %v10455 = vld [vmem:[#allocation3 + $0x108] sm:$0xff]
    %v10456 = vld [vmem:[#allocation3 + $0x110] sm:$0xff]
    %v10457 = vld [vmem:[#allocation3 + $0x118] sm:$0xff]
    %v10458 = vld [vmem:[#allocation3 + $0x120] sm:$0xff]
    %v10459 = vld [vmem:[#allocation3 + $0x128] sm:$0xff]
    %v10460 = vld [vmem:[#allocation3 + $0x130] sm:$0xff]
    %v10461 = vld [vmem:[#allocation3 + $0x138] sm:$0xff]
    %v10462 = vld [vmem:[#allocation3 + $0x140] sm:$0xff]
    %v10463 = vld [vmem:[#allocation3 + $0x148] sm:$0xff]
    %v10464 = vld [vmem:[#allocation3 + $0x150] sm:$0xff]
    %v10465 = vld [vmem:[#allocation3 + $0x158] sm:$0xff]
    %v10466 = vld [vmem:[#allocation3 + $0x160] sm:$0xff]
    %v10467 = vld [vmem:[#allocation3 + $0x168] sm:$0xff]
    %v10468 = vld [vmem:[#allocation3 + $0x170] sm:$0xff]
    %v10469 = vld [vmem:[#allocation3 + $0x178] sm:$0xff]
    %v10470 = vld [vmem:[#allocation3 + $0x180] sm:$0xff]
    %v10471 = vld [vmem:[#allocation3 + $0x188] sm:$0xff]
    %v10472 = vld [vmem:[#allocation3 + $0x190] sm:$0xff]
    %v10473 = vld [vmem:[#allocation3 + $0x198] sm:$0xff]
    %v10474 = vld [vmem:[#allocation3 + $0x1a0] sm:$0xff]
    %v10475 = vld [vmem:[#allocation3 + $0x1a8] sm:$0xff]
    %v10476 = vld [vmem:[#allocation3 + $0x1b0] sm:$0xff]
    %v10477 = vld [vmem:[#allocation3 + $0x1b8] sm:$0xff]
    %v10478 = vld [vmem:[#allocation3 + $0x1c0] sm:$0xff]
    %v10479 = vld [vmem:[#allocation3 + $0x1c8] sm:$0xff]
    %v10480 = vld [vmem:[#allocation3 + $0x1d0] sm:$0xff]
    %v10481 = vld [vmem:[#allocation3 + $0x1d8] sm:$0xff]
    %v10482 = vld [vmem:[#allocation3 + $0x1e0] sm:$0xff]
    %v10483 = vld [vmem:[#allocation3 + $0x1e8] sm:$0xff]
    %v10484 = vld [vmem:[#allocation3 + $0x1f0] sm:$0xff]
    %v10485 = vld [vmem:[#allocation3 + $0x1f8] sm:$0xff]
    %v10486 = vadd.f32 %v10358, %v10422
    %v10487 = vadd.f32 %v10359, %v10423
    %v10488 = vadd.f32 %v10360, %v10424
    %v10489 = vadd.f32 %v10361, %v10425
    %v10490 = vadd.f32 %v10362, %v10426
    %v10491 = vadd.f32 %v10363, %v10427
    %v10492 = vadd.f32 %v10364, %v10428
    %v10493 = vadd.f32 %v10365, %v10429
    %v10494 = vadd.f32 %v10366, %v10430
    %v10495 = vadd.f32 %v10367, %v10431
    %v10496 = vadd.f32 %v10368, %v10432
    %v10497 = vadd.f32 %v10369, %v10433
    %v10498 = vadd.f32 %v10370, %v10434
    %v10499 = vadd.f32 %v10371, %v10435
    %v10500 = vadd.f32 %v10372, %v10436
    %v10501 = vadd.f32 %v10373, %v10437
    %v10502 = vadd.f32 %v10374, %v10438
    %v10503 = vadd.f32 %v10375, %v10439
    %v10504 = vadd.f32 %v10376, %v10440
    %v10505 = vadd.f32 %v10377, %v10441
    %v10506 = vadd.f32 %v10378, %v10442
    %v10507 = vadd.f32 %v10379, %v10443
    %v10508 = vadd.f32 %v10380, %v10444
    %v10509 = vadd.f32 %v10381, %v10445
    %v10510 = vadd.f32 %v10382, %v10446
    %v10511 = vadd.f32 %v10383, %v10447
    %v10512 = vadd.f32 %v10384, %v10448
    %v10513 = vadd.f32 %v10385, %v10449
    %v10514 = vadd.f32 %v10386, %v10450
    %v10515 = vadd.f32 %v10387, %v10451
    %v10516 = vadd.f32 %v10388, %v10452
    %v10517 = vadd.f32 %v10389, %v10453
    %v10518 = vadd.f32 %v10390, %v10454
    %v10519 = vadd.f32 %v10391, %v10455
    %v10520 = vadd.f32 %v10392, %v10456
    %v10521 = vadd.f32 %v10393, %v10457
    %v10522 = vadd.f32 %v10394, %v10458
    %v10523 = vadd.f32 %v10395, %v10459
    %v10524 = vadd.f32 %v10396, %v10460
    %v10525 = vadd.f32 %v10397, %v10461
    %v10526 = vadd.f32 %v10398, %v10462
    %v10527 = vadd.f32 %v10399, %v10463
    %v10528 = vadd.f32 %v10400, %v10464
    %v10529 = vadd.f32 %v10401, %v10465
    %v10530 = vadd.f32 %v10402, %v10466
    %v10531 = vadd.f32 %v10403, %v10467
    %v10532 = vadd.f32 %v10404, %v10468
    %v10533 = vadd.f32 %v10405, %v10469
    %v10534 = vadd.f32 %v10406, %v10470
    %v10535 = vadd.f32 %v10407, %v10471
    %v10536 = vadd.f32 %v10408, %v10472
    %v10537 = vadd.f32 %v10409, %v10473
    %v10538 = vadd.f32 %v10410, %v10474
    %v10539 = vadd.f32 %v10411, %v10475
    %v10540 = vadd.f32 %v10412, %v10476
    %v10541 = vadd.f32 %v10413, %v10477
    %v10542 = vadd.f32 %v10414, %v10478
    %v10543 = vadd.f32 %v10415, %v10479
    %v10544 = vadd.f32 %v10416, %v10480
    %v10545 = vadd.f32 %v10417, %v10481
    %v10546 = vadd.f32 %v10418, %v10482
    %v10547 = vadd.f32 %v10419, %v10483
    %v10548 = vadd.f32 %v10420, %v10484
    %v10549 = vadd.f32 %v10421, %v10485
    %v10550 = vmax.f32 %v10486, 0.0
    %v10551 = vmax.f32 %v10487, 0.0
    %v10552 = vmax.f32 %v10488, 0.0
    %v10553 = vmax.f32 %v10489, 0.0
    %v10554 = vmax.f32 %v10490, 0.0
    %v10555 = vmax.f32 %v10491, 0.0
    %v10556 = vmax.f32 %v10492, 0.0
    %v10557 = vmax.f32 %v10493, 0.0
    %v10558 = vmax.f32 %v10494, 0.0
    %v10559 = vmax.f32 %v10495, 0.0
    %v10560 = vmax.f32 %v10496, 0.0
    %v10561 = vmax.f32 %v10497, 0.0
    %v10562 = vmax.f32 %v10498, 0.0
    %v10563 = vmax.f32 %v10499, 0.0
    %v10564 = vmax.f32 %v10500, 0.0
    %v10565 = vmax.f32 %v10501, 0.0
    %v10566 = vmax.f32 %v10502, 0.0
    %v10567 = vmax.f32 %v10503, 0.0
    %v10568 = vmax.f32 %v10504, 0.0
    %v10569 = vmax.f32 %v10505, 0.0
    %v10570 = vmax.f32 %v10506, 0.0
    %v10571 = vmax.f32 %v10507, 0.0
    %v10572 = vmax.f32 %v10508, 0.0
    %v10573 = vmax.f32 %v10509, 0.0
    %v10574 = vmax.f32 %v10510, 0.0
    %v10575 = vmax.f32 %v10511, 0.0
    %v10576 = vmax.f32 %v10512, 0.0
    %v10577 = vmax.f32 %v10513, 0.0
    %v10578 = vmax.f32 %v10514, 0.0
    %v10579 = vmax.f32 %v10515, 0.0
    %v10580 = vmax.f32 %v10516, 0.0
    %v10581 = vmax.f32 %v10517, 0.0
    %v10582 = vmax.f32 %v10518, 0.0
    %v10583 = vmax.f32 %v10519, 0.0
    %v10584 = vmax.f32 %v10520, 0.0
    %v10585 = vmax.f32 %v10521, 0.0
    %v10586 = vmax.f32 %v10522, 0.0
    %v10587 = vmax.f32 %v10523, 0.0
    %v10588 = vmax.f32 %v10524, 0.0
    %v10589 = vmax.f32 %v10525, 0.0
    %v10590 = vmax.f32 %v10526, 0.0
    %v10591 = vmax.f32 %v10527, 0.0
    %v10592 = vmax.f32 %v10528, 0.0
    %v10593 = vmax.f32 %v10529, 0.0
    %v10594 = vmax.f32 %v10530, 0.0
    %v10595 = vmax.f32 %v10531, 0.0
    %v10596 = vmax.f32 %v10532, 0.0
    %v10597 = vmax.f32 %v10533, 0.0
    %v10598 = vmax.f32 %v10534, 0.0
    %v10599 = vmax.f32 %v10535, 0.0
    %v10600 = vmax.f32 %v10536, 0.0
    %v10601 = vmax.f32 %v10537, 0.0
    %v10602 = vmax.f32 %v10538, 0.0
    %v10603 = vmax.f32 %v10539, 0.0
    %v10604 = vmax.f32 %v10540, 0.0
    %v10605 = vmax.f32 %v10541, 0.0
    %v10606 = vmax.f32 %v10542, 0.0
    %v10607 = vmax.f32 %v10543, 0.0
    %v10608 = vmax.f32 %v10544, 0.0
    %v10609 = vmax.f32 %v10545, 0.0
    %v10610 = vmax.f32 %v10546, 0.0
    %v10611 = vmax.f32 %v10547, 0.0
    %v10612 = vmax.f32 %v10548, 0.0
    %v10613 = vmax.f32 %v10549, 0.0
    %10614 = vst [vmem:[#allocation9] sm:$0xff] %v10550
    %10615 = vst [vmem:[#allocation9 + $0x8] sm:$0xff] %v10551
    %10616 = vst [vmem:[#allocation9 + $0x10] sm:$0xff] %v10552
    %10617 = vst [vmem:[#allocation9 + $0x18] sm:$0xff] %v10553
    %10618 = vst [vmem:[#allocation9 + $0x20] sm:$0xff] %v10554
    %10619 = vst [vmem:[#allocation9 + $0x28] sm:$0xff] %v10555
    %10620 = vst [vmem:[#allocation9 + $0x30] sm:$0xff] %v10556
    %10621 = vst [vmem:[#allocation9 + $0x38] sm:$0xff] %v10557
    %10622 = vst [vmem:[#allocation9 + $0x40] sm:$0xff] %v10558
    %10623 = vst [vmem:[#allocation9 + $0x48] sm:$0xff] %v10559
    %10624 = vst [vmem:[#allocation9 + $0x50] sm:$0xff] %v10560
    %10625 = vst [vmem:[#allocation9 + $0x58] sm:$0xff] %v10561
    %10626 = vst [vmem:[#allocation9 + $0x60] sm:$0xff] %v10562
    %10627 = vst [vmem:[#allocation9 + $0x68] sm:$0xff] %v10563
    %10628 = vst [vmem:[#allocation9 + $0x70] sm:$0xff] %v10564
    %10629 = vst [vmem:[#allocation9 + $0x78] sm:$0xff] %v10565
    %10630 = vst [vmem:[#allocation9 + $0x80] sm:$0xff] %v10566
    %10631 = vst [vmem:[#allocation9 + $0x88] sm:$0xff] %v10567
    %10632 = vst [vmem:[#allocation9 + $0x90] sm:$0xff] %v10568
    %10633 = vst [vmem:[#allocation9 + $0x98] sm:$0xff] %v10569
    %10634 = vst [vmem:[#allocation9 + $0xa0] sm:$0xff] %v10570
    %10635 = vst [vmem:[#allocation9 + $0xa8] sm:$0xff] %v10571
    %10636 = vst [vmem:[#allocation9 + $0xb0] sm:$0xff] %v10572
    %10637 = vst [vmem:[#allocation9 + $0xb8] sm:$0xff] %v10573
    %10638 = vst [vmem:[#allocation9 + $0xc0] sm:$0xff] %v10574
    %10639 = vst [vmem:[#allocation9 + $0xc8] sm:$0xff] %v10575
    %10640 = vst [vmem:[#allocation9 + $0xd0] sm:$0xff] %v10576
    %10641 = vst [vmem:[#allocation9 + $0xd8] sm:$0xff] %v10577
    %10642 = vst [vmem:[#allocation9 + $0xe0] sm:$0xff] %v10578
    %10643 = vst [vmem:[#allocation9 + $0xe8] sm:$0xff] %v10579
    %10644 = vst [vmem:[#allocation9 + $0xf0] sm:$0xff] %v10580
    %10645 = vst [vmem:[#allocation9 + $0xf8] sm:$0xff] %v10581
    %10646 = vst [vmem:[#allocation9 + $0x100] sm:$0xff] %v10582
    %10647 = vst [vmem:[#allocation9 + $0x108] sm:$0xff] %v10583
    %10648 = vst [vmem:[#allocation9 + $0x110] sm:$0xff] %v10584
    %10649 = vst [vmem:[#allocation9 + $0x118] sm:$0xff] %v10585
    %10650 = vst [vmem:[#allocation9 + $0x120] sm:$0xff] %v10586
    %10651 = vst [vmem:[#allocation9 + $0x128] sm:$0xff] %v10587
    %10652 = vst [vmem:[#allocation9 + $0x130] sm:$0xff] %v10588
    %10653 = vst [vmem:[#allocation9 + $0x138] sm:$0xff] %v10589
    %10654 = vst [vmem:[#allocation9 + $0x140] sm:$0xff] %v10590
    %10655 = vst [vmem:[#allocation9 + $0x148] sm:$0xff] %v10591
    %10656 = vst [vmem:[#allocation9 + $0x150] sm:$0xff] %v10592
    %10657 = vst [vmem:[#allocation9 + $0x158] sm:$0xff] %v10593
    %10658 = vst [vmem:[#allocation9 + $0x160] sm:$0xff] %v10594
    %10659 = vst [vmem:[#allocation9 + $0x168] sm:$0xff] %v10595
    %10660 = vst [vmem:[#allocation9 + $0x170] sm:$0xff] %v10596
    %10661 = vst [vmem:[#allocation9 + $0x178] sm:$0xff] %v10597
    %10662 = vst [vmem:[#allocation9 + $0x180] sm:$0xff] %v10598
    %10663 = vst [vmem:[#allocation9 + $0x188] sm:$0xff] %v10599
    %10664 = vst [vmem:[#allocation9 + $0x190] sm:$0xff] %v10600
    %10665 = vst [vmem:[#allocation9 + $0x198] sm:$0xff] %v10601
    %10666 = vst [vmem:[#allocation9 + $0x1a0] sm:$0xff] %v10602
    %10667 = vst [vmem:[#allocation9 + $0x1a8] sm:$0xff] %v10603
    %10668 = vst [vmem:[#allocation9 + $0x1b0] sm:$0xff] %v10604
    %10669 = vst [vmem:[#allocation9 + $0x1b8] sm:$0xff] %v10605
    %10670 = vst [vmem:[#allocation9 + $0x1c0] sm:$0xff] %v10606
    %10671 = vst [vmem:[#allocation9 + $0x1c8] sm:$0xff] %v10607
    %10672 = vst [vmem:[#allocation9 + $0x1d0] sm:$0xff] %v10608
    %10673 = vst [vmem:[#allocation9 + $0x1d8] sm:$0xff] %v10609
    %10674 = vst [vmem:[#allocation9 + $0x1e0] sm:$0xff] %v10610
    %10675 = vst [vmem:[#allocation9 + $0x1e8] sm:$0xff] %v10611
    %10676 = vst [vmem:[#allocation9 + $0x1f0] sm:$0xff] %v10612
    %10677 = vst [vmem:[#allocation9 + $0x1f8] sm:$0xff] %v10613
    // Predicated region
    $region42: #{tpu_custom_call.1} parent=1 // pred_check
      _
    $region43: #{tpu_custom_call.1} parent=1 // pred_check_branch
      %10679 = sbr.rel (0) target = $region45
    $region44: #{tpu_custom_call.1} parent=1 // pred_region
      %s10681 = ssub.s32 8192, 8192
      %10682 = vsyncadd [#allocation5], %s10681
      %s10683 = sshll.u32 [#allocation9], 4
      %s10684 = int_to_ptr.vmem [resolvable:$true] %s10683
      %10689 = dma.vmem_to_hbm [thread:$0]  %s10684, 8192, %s7, [#allocation5], 128, 128, 8
    $region45: #{tpu_custom_call.1} parent=1 // pred_fallthru
      _
    // Predicated region
    $region46: #{tpu_custom_call.1} parent=1 // pred_check
      _
    $region47: #{tpu_custom_call.1} parent=1 // pred_check_branch
      %10691 = sbr.rel (0) target = $region49
    $region48: #{tpu_custom_call.1} parent=1 // pred_region
      %10692 = dma.done [#allocation5], 8192
    $region49: #{tpu_custom_call.1} parent=1 // pred_fallthru
      _
    %10693 = vsyncpa [#allocation4], 1
    %10694 = vsyncpa [#allocation7], 1
    %10695 = vsyncpa [#allocation5], 1

</llo_original>
